<compile_context>
chip_gen: v5e
topology: v5e:2x2
jax: 0.10.0
libtpu: 0.0.40
codegen_flags: <defaults>
</compile_context>

<pallas_src>
import functools

import jax
import jax.numpy as jnp
from jax import lax
from jax.experimental import pallas as pl
from jax.experimental.pallas import tpu as pltpu


_EPS = 1e-5
_NEG_INF = -1e30


# ----------------------------------------------------------------------------
# In-kernel helpers (operate on values, not refs)
# ----------------------------------------------------------------------------

def _layernorm(x, g, b, eps):
    """x: (M, C) f32, g/b: (1, C) f32."""
    mean = jnp.mean(x, axis=-1, keepdims=True)
    var = jnp.mean((x - mean) ** 2, axis=-1, keepdims=True)
    return (x - mean) * lax.rsqrt(var + eps) * g + b


def _softmax(s):
    s = s - jnp.max(s, axis=-1, keepdims=True)
    p = jnp.exp(s)
    return p * pl.reciprocal(jnp.sum(p, axis=-1, keepdims=True), approx=True)


def _mha_foldproj(q, k, v, w_out, *, num_heads, mask=None):
    """Multi-head attention with the output projection folded into the loop.

    q: (Sq, C) f32, k/v: (Sk, C) f32, w_out: (C, C) bf16.
    Returns concat_h(softmax(q_h k_h^T / sqrt(Dh)) v_h) @ w_out, computed as
    sum_h head_h @ w_out[h*Dh:(h+1)*Dh, :] so no lane-concat of narrow head
    outputs is ever materialized.
    """
    Sq, C = q.shape
    Dh = C // num_heads
    scale = 1.0 / float(Dh) ** 0.5
    acc = jnp.zeros((Sq, C), jnp.float32)
    for h in range(num_heads):
        sl = slice(h * Dh, (h + 1) * Dh)
        qh = q[:, sl].astype(jnp.bfloat16)
        kh = k[:, sl].astype(jnp.bfloat16)
        vh = v[:, sl].astype(jnp.bfloat16)
        s = lax.dot_general(qh, kh, (((1,), (1,)), ((), ())),
                            preferred_element_type=jnp.float32) * scale
        if mask is not None:
            s = jnp.where(mask, s, _NEG_INF)
        p = _softmax(s)
        oh = jnp.dot(p.astype(jnp.bfloat16), vh,
                     preferred_element_type=jnp.float32)            # (Sq, Dh)
        acc = acc + jnp.dot(oh.astype(jnp.bfloat16), w_out[sl, :],
                            preferred_element_type=jnp.float32)     # (Sq, C)
    return acc


# ----------------------------------------------------------------------------
# Pallas kernels
# ----------------------------------------------------------------------------

def _spatial_pool_kernel(x_ref, q_ref, wkv_ref, bkv_ref, wo_ref, bo_ref,
                         slot_ref, g_ref, b_ref, o_ref, *, num_heads, eps):
    """Fused cross-attention spatial pooling for a GROUP of (b,t) elements.

    x_ref: (G, C, WW) channel-major vision features (no wrapper transpose).
    q_ref: (1, C) pre-projected query (slot @ Wq + bq), hoisted to the wrapper.
    o_ref: (G, C).
    """
    G, C, _ = x_ref.shape
    q = q_ref[...].astype(jnp.float32)
    wo = wo_ref[...]
    rows = []
    for g in range(G):                                   # unrolled, in-kernel
        x_g = x_ref[g].astype(jnp.bfloat16)              # (C, WW)
        # kv = x_g^T @ Wkv : contract the channel axis of both operands.
        kv = lax.dot_general(x_g, wkv_ref[...], (((0,), (0,)), ((), ())),
                             preferred_element_type=jnp.float32)
        kv = kv + bkv_ref[...].astype(jnp.float32)       # (WW, 2C)
        rows.append(_mha_foldproj(q, kv[:, :C], kv[:, C:], wo,
                                  num_heads=num_heads))  # (1, C)
    attn = jnp.concatenate(rows, axis=0) + bo_ref[...].astype(jnp.float32)
    # TODO(synk): residual uses the broadcast spatial slot (pre-Q-projection),
    # one common CrossAttentionLayer convention; layer source not given.
    y = _layernorm(slot_ref[...].astype(jnp.float32) + attn,
                   g_ref[...].astype(jnp.float32),
                   b_ref[...].astype(jnp.float32), eps)
    o_ref[...] = y.astype(o_ref.dtype)


def _gpt_stack_kernel(x_ref, ln1g_ref, ln1b_ref, wqkv_ref, bqkv_ref,
                      wproj_ref, bproj_ref, ln2g_ref, ln2b_ref,
                      wfc_ref, bfc_ref, wfp_ref, bfp_ref,
                      lnfg_ref, lnfb_ref, whead_ref, bhead_ref,
                      o_ref, xs_ref, *, num_heads, num_slots, eps):
    """All n_layer pre-LN transformer blocks + ln_f + (mu|log_var) head.

    Grid = (batch, layer); activations live in the VMEM scratch `xs_ref`
    across the layer axis, only the tiny head output goes back to HBM.
    """
    layer = pl.program_id(1)
    n_layer = pl.num_programs(1)
    S, C = xs_ref.shape

    @pl.when(layer == 0)
    def _():
        xs_ref[...] = x_ref[0].astype(jnp.float32)

    x = xs_ref[...]

    # --- pre-LN causal self-attention sub-block ---
    h = _layernorm(x, ln1g_ref[0].astype(jnp.float32),
                   ln1b_ref[0].astype(jnp.float32), eps)
    qkv = jnp.dot(h.astype(jnp.bfloat16), wqkv_ref[0],
                  preferred_element_type=jnp.float32)
    qkv = qkv + bqkv_ref[0].astype(jnp.float32)                      # (S, 3C)
    row = lax.broadcasted_iota(jnp.int32, (S, S), 0)
    col = lax.broadcasted_iota(jnp.int32, (S, S), 1)
    causal = col <= row
    attn = _mha_foldproj(qkv[:, :C], qkv[:, C:2 * C], qkv[:, 2 * C:],
                         wproj_ref[0], num_heads=num_heads, mask=causal)
    x = x + attn + bproj_ref[0].astype(jnp.float32)

    # --- pre-LN MLP sub-block ---
    h = _layernorm(x, ln2g_ref[0].astype(jnp.float32),
                   ln2b_ref[0].astype(jnp.float32), eps)
    h = jnp.dot(h.astype(jnp.bfloat16), wfc_ref[0],
                preferred_element_type=jnp.float32) + bfc_ref[0].astype(jnp.float32)
    h = jax.nn.gelu(h, approximate=True)     # NewGELU (minGPT tanh approx)
    x = x + jnp.dot(h.astype(jnp.bfloat16), wfp_ref[0],
                    preferred_element_type=jnp.float32) + bfp_ref[0].astype(jnp.float32)

    xs_ref[...] = x

    # --- last layer: ln_f + fused (mu | log_var) head on the slot rows ---
    @pl.when(layer == n_layer - 1)
    def _():
        slots = x[0:num_slots, :]
        y = _layernorm(slots, lnfg_ref[...].astype(jnp.float32),
                       lnfb_ref[...].astype(jnp.float32), eps)
        out = jnp.dot(y.astype(jnp.bfloat16), whead_ref[...],
                      preferred_element_type=jnp.float32)
        out = out + bhead_ref[...].astype(jnp.float32)
        o_ref[0] = out.astype(o_ref.dtype)


# ----------------------------------------------------------------------------
# pallas_call wrappers
# ----------------------------------------------------------------------------

def pallas_spatial_pool(x, q, wkv, bkv, wo, bo, slot, g, b, *, num_heads, group):
    """x: (BT, C, WW) f32 -> (BT, C) f32.  Grid over groups of `group` elems."""
    BT, C, WW = x.shape
    const2 = lambda i: (0, 0)
    return pl.pallas_call(
        functools.partial(_spatial_pool_kernel, num_heads=num_heads, eps=_EPS),
        out_shape=jax.ShapeDtypeStruct((BT, C), jnp.float32),
        grid=(BT // group,),
        in_specs=[
            pl.BlockSpec((group, C, WW), lambda i: (i, 0, 0)),  # vision feats
            pl.BlockSpec((1, C), const2),                       # hoisted query
            pl.BlockSpec((C, 2 * C), const2),                   # wkv = [wk | wv]
            pl.BlockSpec((1, 2 * C), const2),                   # bkv
            pl.BlockSpec((C, C), const2),                       # wo
            pl.BlockSpec((1, C), const2),                       # bo
            pl.BlockSpec((1, C), const2),                       # spatial slot
            pl.BlockSpec((1, C), const2),                       # ln gamma
            pl.BlockSpec((1, C), const2),                       # ln beta
        ],
        # TODO(synk): lane-sparse (C=32) store; pad/pack to 128 lanes for
        # production channel counts.
        out_specs=pl.BlockSpec((group, C), lambda i: (i, 0)),
        compiler_params=pltpu.CompilerParams(dimension_semantics=("parallel",)),
    )(x, q, wkv, bkv, wo, bo, slot, g, b)


def pallas_gpt_stack(x, p, *, num_heads, num_slots):
    """Fused GPT stack + head.  x: (B, S, C) -> (B, num_slots, 2C)."""
    B, S, C = x.shape
    L = p["ln1_g"].shape[0]
    c2 = lambda bi, li: (0, 0)
    lsel = lambda bi, li: (li, 0, 0)
    return pl.pallas_call(
        functools.partial(_gpt_stack_kernel, num_heads=num_heads,
                          num_slots=num_slots, eps=_EPS),
        out_shape=jax.ShapeDtypeStruct((B, num_slots, 2 * C), jnp.float32),
        grid=(B, L),                       # layer axis innermost / "arbitrary"
        in_specs=[
            pl.BlockSpec((1, S, C), lambda bi, li: (bi, 0, 0)),            # x
            pl.BlockSpec((1, 1, C), lsel), pl.BlockSpec((1, 1, C), lsel),  # ln1
            pl.BlockSpec((1, C, 3 * C), lsel), pl.BlockSpec((1, 1, 3 * C), lsel),
            pl.BlockSpec((1, C, C), lsel), pl.BlockSpec((1, 1, C), lsel),  # proj
            pl.BlockSpec((1, 1, C), lsel), pl.BlockSpec((1, 1, C), lsel),  # ln2
            pl.BlockSpec((1, C, 4 * C), lsel), pl.BlockSpec((1, 1, 4 * C), lsel),
            pl.BlockSpec((1, 4 * C, C), lsel), pl.BlockSpec((1, 1, C), lsel),
            pl.BlockSpec((1, C), c2), pl.BlockSpec((1, C), c2),            # ln_f
            pl.BlockSpec((C, 2 * C), c2), pl.BlockSpec((1, 2 * C), c2),    # head
        ],
        out_specs=pl.BlockSpec((1, num_slots, 2 * C), lambda bi, li: (bi, 0, 0)),
        scratch_shapes=[pltpu.VMEM((S, C), jnp.float32)],   # resident activations
        compiler_params=pltpu.CompilerParams(
            dimension_semantics=("parallel", "arbitrary")),
    )(x, p["ln1_g"], p["ln1_b"], p["attn_w"], p["attn_b"],
      p["proj_w"], p["proj_b"], p["ln2_g"], p["ln2_b"],
      p["fc_w"], p["fc_b"], p["fc_proj_w"], p["fc_proj_b"],
      p["lnf_g"], p["lnf_b"], p["head_w"], p["head_b"])


# ----------------------------------------------------------------------------
# Parameter construction (deterministic, synthetic)
# ----------------------------------------------------------------------------

def init_params(key, *, hidsize, num_heads, n_layer, block_size, num_slots):
    C = hidsize
    bf16 = jnp.bfloat16

    def nrm(k, shape, scale=0.02):
        return jax.random.normal(k, shape, dtype=jnp.float32) * scale

    keys = iter(jax.random.split(key, 12 + 4 * n_layer))
    p = {}
    p["temporal_slot"] = nrm(next(keys), (num_slots, C), 0.001)
    p["spatial_slot"] = nrm(next(keys), (1, C), 0.001)
    p["mask_token"] = nrm(next(keys), (1, C), 0.001)   # unused in forward

    # CrossAttentionLayer (spatial pooling): fused K|V weight, bf16 for MXU.
    p["ca_wq"] = nrm(next(keys), (C, C)).astype(bf16)
    p["ca_bq"] = jnp.zeros((1, C), jnp.float32)
    p["ca_wkv"] = jnp.concatenate(
        [nrm(next(keys), (C, C)), nrm(next(keys), (C, C))], axis=1).astype(bf16)
    p["ca_bkv"] = jnp.zeros((1, 2 * C), jnp.float32)
    p["ca_wo"] = nrm(next(keys), (C, C)).astype(bf16)
    p["ca_bo"] = jnp.zeros((1, C), jnp.float32)
    p["ca_ln_g"] = jnp.ones((1, C), jnp.float32)
    p["ca_ln_b"] = jnp.zeros((1, C), jnp.float32)

    # GPT (minGPT-style pre-LN blocks), per-layer weights stacked on a leading
    # layer axis so one pallas_call iterates layers on its grid.
    p["wpe"] = nrm(next(keys), (block_size, C))
    attn_w, proj_w, fc_w, fc_proj_w = [], [], [], []
    for _ in range(n_layer):
        attn_w.append(nrm(next(keys), (C, 3 * C)))
        proj_w.append(nrm(next(keys), (C, C)))
        fc_w.append(nrm(next(keys), (C, 4 * C)))
        fc_proj_w.append(nrm(next(keys), (4 * C, C)))
    p["attn_w"] = jnp.stack(attn_w).astype(bf16)
    p["attn_b"] = jnp.zeros((n_layer, 1, 3 * C), jnp.float32)
    p["proj_w"] = jnp.stack(proj_w).astype(bf16)
    p["proj_b"] = jnp.zeros((n_layer, 1, C), jnp.float32)
    p["fc_w"] = jnp.stack(fc_w).astype(bf16)
    p["fc_b"] = jnp.zeros((n_layer, 1, 4 * C), jnp.float32)
    p["fc_proj_w"] = jnp.stack(fc_proj_w).astype(bf16)
    p["fc_proj_b"] = jnp.zeros((n_layer, 1, C), jnp.float32)
    p["ln1_g"] = jnp.ones((n_layer, 1, C), jnp.float32)
    p["ln1_b"] = jnp.zeros((n_layer, 1, C), jnp.float32)
    p["ln2_g"] = jnp.ones((n_layer, 1, C), jnp.float32)
    p["ln2_b"] = jnp.zeros((n_layer, 1, C), jnp.float32)
    p["lnf_g"] = jnp.ones((1, C), jnp.float32)
    p["lnf_b"] = jnp.zeros((1, C), jnp.float32)

    # encode_mu / encode_var fused into one (C, 2C) head.
    p["head_w"] = jnp.concatenate(
        [nrm(next(keys), (C, C)), nrm(next(keys), (C, C))], axis=1).astype(bf16)
    p["head_b"] = jnp.zeros((1, 2 * C), jnp.float32)
    return p


# ----------------------------------------------------------------------------
# Forward pass
# ----------------------------------------------------------------------------

def trajectory_encoder_forward(params, vision_feats, *, num_heads, num_slots):
    B, T, C, W, _ = vision_feats.shape
    BT, WW = B * T, W * W

    # ----- spatial pooling: the slot cross-attends over the W*W tokens -----
    # Channel-major feed (BT, C, WW): the kernel contracts the channel axis
    # directly, so no wrapper-side HBM transpose pass over the vision tensor.
    flat = vision_feats.reshape(BT, C, WW)
    # Query projection is grid-invariant -> hoisted out of the kernel.
    q = jnp.dot(params["spatial_slot"],
                params["ca_wq"].astype(jnp.float32)) + params["ca_bq"]
    group = 8 if (BT % 8 == 0 and BT > 8) else BT
    obs = pallas_spatial_pool(flat, q, params["ca_wkv"], params["ca_bkv"],
                              params["ca_wo"], params["ca_bo"],
                              params["spatial_slot"], params["ca_ln_g"],
                              params["ca_ln_b"],
                              num_heads=num_heads, group=group)
    obs_tokens = obs.reshape(B, T, C)

    # ----- fused GPT stack (wpe + blocks + ln_f + mu|log_var head) -----
    S = num_slots + T
    assert S <= params["wpe"].shape[0], "sequence longer than GPT block_size"
    slots = jnp.broadcast_to(params["temporal_slot"], (B, num_slots, C))
    x = jnp.concatenate([slots, obs_tokens], axis=1) + params["wpe"][:S][None]
    out = pallas_gpt_stack(x, params, num_heads=num_heads, num_slots=num_slots)
    mu = out[..., :C]
    log_var = out[..., C:]
    return mu, log_var


# ----------------------------------------------------------------------------
# Main
# ----------------------------------------------------------------------------

if __name__ == "__main__":
    hidsize = 32
    num_heads = 4
    n_layer = 2
    block_size = 64
    num_slots = 1
    B, T, W = 2, 8, 4

    key = jax.random.PRNGKey(0)
    kp, kx = jax.random.split(key)
    params = init_params(kp, hidsize=hidsize, num_heads=num_heads,
                         n_layer=n_layer, block_size=block_size,
                         num_slots=num_slots)
    vision_feats = jax.random.normal(kx, (B, T, hidsize, W, W), dtype=jnp.float32)

    fwd = jax.jit(functools.partial(trajectory_encoder_forward,
                                    num_heads=num_heads, num_slots=num_slots))
    mu, log_var = fwd(params, vision_feats)
    jax.block_until_ready((mu, log_var))

    assert mu.shape == (B, num_slots, hidsize)
    assert log_var.shape == (B, num_slots, hidsize)
    assert jnp.all(jnp.isfinite(mu)) and jnp.all(jnp.isfinite(log_var))
    print("KERNEL_OK")
</pallas_src>

<mosaic_0001>
module attributes {stable_mosaic.version = 11 : i64} {
  func.func @_spatial_pool_kernel(%arg0: i32, %arg1: memref<8x32x16xf32, #tpu.memory_space<vmem>>, %arg2: memref<1x32xf32, #tpu.memory_space<vmem>>, %arg3: memref<32x64xbf16, #tpu.memory_space<vmem>>, %arg4: memref<1x64xf32, #tpu.memory_space<vmem>>, %arg5: memref<32x32xbf16, #tpu.memory_space<vmem>>, %arg6: memref<1x32xf32, #tpu.memory_space<vmem>>, %arg7: memref<1x32xf32, #tpu.memory_space<vmem>>, %arg8: memref<1x32xf32, #tpu.memory_space<vmem>>, %arg9: memref<1x32xf32, #tpu.memory_space<vmem>>, %arg10: memref<8x32xf32, #tpu.memory_space<vmem>>) attributes {dimension_semantics = [#tpu.dimension_semantics<parallel>], iteration_bounds = array<i64: 2>, scalar_prefetch = 0 : i64, scratch_operands = 0 : i64, tpu.core_type = #tpu.core_type<tc>, window_params = [{transform_indices = @transform_0, window_bounds = array<i64: 8, 32, 16>}, {pipeline_mode = #tpu.pipeline_mode<synchronous>, transform_indices = @transform_1, window_bounds = array<i64: 1, 32>}, {pipeline_mode = #tpu.pipeline_mode<synchronous>, transform_indices = @transform_2, window_bounds = array<i64: 32, 64>}, {pipeline_mode = #tpu.pipeline_mode<synchronous>, transform_indices = @transform_3, window_bounds = array<i64: 1, 64>}, {pipeline_mode = #tpu.pipeline_mode<synchronous>, transform_indices = @transform_4, window_bounds = array<i64: 32, 32>}, {pipeline_mode = #tpu.pipeline_mode<synchronous>, transform_indices = @transform_5, window_bounds = array<i64: 1, 32>}, {pipeline_mode = #tpu.pipeline_mode<synchronous>, transform_indices = @transform_6, window_bounds = array<i64: 1, 32>}, {pipeline_mode = #tpu.pipeline_mode<synchronous>, transform_indices = @transform_7, window_bounds = array<i64: 1, 32>}, {pipeline_mode = #tpu.pipeline_mode<synchronous>, transform_indices = @transform_8, window_bounds = array<i64: 1, 32>}, {transform_indices = @transform_9, window_bounds = array<i64: 8, 32>}]} {
    %c0 = arith.constant 0 : index
    %c0_0 = arith.constant 0 : index
    %0 = vector.load %arg2[%c0, %c0_0] : memref<1x32xf32, #tpu.memory_space<vmem>>, vector<1x32xf32>
    %c0_1 = arith.constant 0 : index
    %c0_2 = arith.constant 0 : index
    %1 = vector.load %arg5[%c0_1, %c0_2] : memref<32x32xbf16, #tpu.memory_space<vmem>>, vector<32x32xbf16>
    %c0_3 = arith.constant 0 : index
    %c0_4 = arith.constant 0 : index
    %c0_5 = arith.constant 0 : index
    %2 = vector.load %arg1[%c0_3, %c0_4, %c0_5] : memref<8x32x16xf32, #tpu.memory_space<vmem>>, vector<1x32x16xf32>
    %3 = vector.shape_cast %2 : vector<1x32x16xf32> to vector<32x16xf32>
    %4 = arith.truncf %3 : vector<32x16xf32> to vector<32x16xbf16>
    %c0_6 = arith.constant 0 : index
    %c0_7 = arith.constant 0 : index
    %5 = vector.load %arg3[%c0_6, %c0_7] : memref<32x64xbf16, #tpu.memory_space<vmem>>, vector<32x64xbf16>
    %cst = arith.constant dense<0.000000e+00> : vector<16x64xf32>
    %6 = tpu.matmul %4, %5, %cst {dimension_numbers = #tpu.dot_dimension_numbers<[0], [0], [1], [1], [0, 1, 1, 1], [], []>} : vector<32x16xbf16>, vector<32x64xbf16>, vector<16x64xf32> -> vector<16x64xf32>
    %c0_8 = arith.constant 0 : index
    %c0_9 = arith.constant 0 : index
    %7 = vector.load %arg4[%c0_8, %c0_9] : memref<1x64xf32, #tpu.memory_space<vmem>>, vector<1x64xf32>
    %8 = vector.broadcast %7 : vector<1x64xf32> to vector<16x64xf32>
    %9 = arith.addf %6, %8 : vector<16x64xf32>
    %10 = vector.extract_strided_slice %9 {offsets = [0, 0], sizes = [16, 32], strides = [1, 1]} : vector<16x64xf32> to vector<16x32xf32>
    %11 = vector.extract_strided_slice %9 {offsets = [0, 32], sizes = [16, 32], strides = [1, 1]} : vector<16x64xf32> to vector<16x32xf32>
    %cst_10 = arith.constant 0.000000e+00 : f32
    %12 = vector.broadcast %cst_10 : f32 to vector<1x32xf32>
    %13 = vector.extract_strided_slice %0 {offsets = [0, 0], sizes = [1, 8], strides = [1, 1]} : vector<1x32xf32> to vector<1x8xf32>
    %14 = arith.truncf %13 : vector<1x8xf32> to vector<1x8xbf16>
    %15 = vector.extract_strided_slice %10 {offsets = [0, 0], sizes = [16, 8], strides = [1, 1]} : vector<16x32xf32> to vector<16x8xf32>
    %16 = arith.truncf %15 : vector<16x8xf32> to vector<16x8xbf16>
    %17 = vector.extract_strided_slice %11 {offsets = [0, 0], sizes = [16, 8], strides = [1, 1]} : vector<16x32xf32> to vector<16x8xf32>
    %18 = arith.truncf %17 : vector<16x8xf32> to vector<16x8xbf16>
    %cst_11 = arith.constant dense<0.000000e+00> : vector<1x16xf32>
    %19 = tpu.matmul %14, %16, %cst_11 {dimension_numbers = #tpu.dot_dimension_numbers<[1], [1], [0], [0], [0, 0, 1, 0], [], []>} : vector<1x8xbf16>, vector<16x8xbf16>, vector<1x16xf32> -> vector<1x16xf32>
    %cst_12 = arith.constant 0.353553385 : f32
    %20 = vector.broadcast %cst_12 : f32 to vector<1x16xf32>
    %21 = arith.mulf %19, %20 : vector<1x16xf32>
    %cst_13 = arith.constant dense<0xFF800000> : vector<1xf32>
    %22 = vector.multi_reduction <maximumf>, %21, %cst_13 [1] : vector<1x16xf32> to vector<1xf32>
    %23 = vector.shape_cast %22 : vector<1xf32> to vector<1x1xf32>
    %24 = vector.broadcast %23 : vector<1x1xf32> to vector<1x16xf32>
    %25 = arith.subf %21, %24 : vector<1x16xf32>
    %26 = math.exp %25 : vector<1x16xf32>
    %cst_14 = arith.constant dense<0.000000e+00> : vector<1xf32>
    %27 = vector.multi_reduction <add>, %26, %cst_14 [1] : vector<1x16xf32> to vector<1xf32>
    %28 = vector.shape_cast %27 : vector<1xf32> to vector<1x1xf32>
    %29 = tpu.reciprocal %28 {approx = true} : vector<1x1xf32> -> vector<1x1xf32>
    %30 = vector.broadcast %29 : vector<1x1xf32> to vector<1x16xf32>
    %31 = arith.mulf %26, %30 : vector<1x16xf32>
    %32 = arith.truncf %31 : vector<1x16xf32> to vector<1x16xbf16>
    %cst_15 = arith.constant dense<0.000000e+00> : vector<1x8xf32>
    %33 = tpu.matmul %32, %18, %cst_15 {dimension_numbers = #tpu.dot_dimension_numbers<[1], [0], [0], [1], [0, 0, 1, 1], [], []>} : vector<1x16xbf16>, vector<16x8xbf16>, vector<1x8xf32> -> vector<1x8xf32>
    %34 = arith.truncf %33 : vector<1x8xf32> to vector<1x8xbf16>
    %35 = vector.extract_strided_slice %1 {offsets = [0, 0], sizes = [8, 32], strides = [1, 1]} : vector<32x32xbf16> to vector<8x32xbf16>
    %cst_16 = arith.constant dense<0.000000e+00> : vector<1x32xf32>
    %36 = tpu.matmul %34, %35, %cst_16 {dimension_numbers = #tpu.dot_dimension_numbers<[1], [0], [0], [1], [0, 0, 1, 1], [], []>} : vector<1x8xbf16>, vector<8x32xbf16>, vector<1x32xf32> -> vector<1x32xf32>
    %37 = arith.addf %12, %36 : vector<1x32xf32>
    %38 = vector.extract_strided_slice %0 {offsets = [0, 8], sizes = [1, 8], strides = [1, 1]} : vector<1x32xf32> to vector<1x8xf32>
    %39 = arith.truncf %38 : vector<1x8xf32> to vector<1x8xbf16>
    %40 = vector.extract_strided_slice %10 {offsets = [0, 8], sizes = [16, 8], strides = [1, 1]} : vector<16x32xf32> to vector<16x8xf32>
    %41 = arith.truncf %40 : vector<16x8xf32> to vector<16x8xbf16>
    %42 = vector.extract_strided_slice %11 {offsets = [0, 8], sizes = [16, 8], strides = [1, 1]} : vector<16x32xf32> to vector<16x8xf32>
    %43 = arith.truncf %42 : vector<16x8xf32> to vector<16x8xbf16>
    %cst_17 = arith.constant dense<0.000000e+00> : vector<1x16xf32>
    %44 = tpu.matmul %39, %41, %cst_17 {dimension_numbers = #tpu.dot_dimension_numbers<[1], [1], [0], [0], [0, 0, 1, 0], [], []>} : vector<1x8xbf16>, vector<16x8xbf16>, vector<1x16xf32> -> vector<1x16xf32>
    %cst_18 = arith.constant 0.353553385 : f32
    %45 = vector.broadcast %cst_18 : f32 to vector<1x16xf32>
    %46 = arith.mulf %44, %45 : vector<1x16xf32>
    %cst_19 = arith.constant dense<0xFF800000> : vector<1xf32>
    %47 = vector.multi_reduction <maximumf>, %46, %cst_19 [1] : vector<1x16xf32> to vector<1xf32>
    %48 = vector.shape_cast %47 : vector<1xf32> to vector<1x1xf32>
    %49 = vector.broadcast %48 : vector<1x1xf32> to vector<1x16xf32>
    %50 = arith.subf %46, %49 : vector<1x16xf32>
    %51 = math.exp %50 : vector<1x16xf32>
    %cst_20 = arith.constant dense<0.000000e+00> : vector<1xf32>
    %52 = vector.multi_reduction <add>, %51, %cst_20 [1] : vector<1x16xf32> to vector<1xf32>
    %53 = vector.shape_cast %52 : vector<1xf32> to vector<1x1xf32>
    %54 = tpu.reciprocal %53 {approx = true} : vector<1x1xf32> -> vector<1x1xf32>
    %55 = vector.broadcast %54 : vector<1x1xf32> to vector<1x16xf32>
    %56 = arith.mulf %51, %55 : vector<1x16xf32>
    %57 = arith.truncf %56 : vector<1x16xf32> to vector<1x16xbf16>
    %cst_21 = arith.constant dense<0.000000e+00> : vector<1x8xf32>
    %58 = tpu.matmul %57, %43, %cst_21 {dimension_numbers = #tpu.dot_dimension_numbers<[1], [0], [0], [1], [0, 0, 1, 1], [], []>} : vector<1x16xbf16>, vector<16x8xbf16>, vector<1x8xf32> -> vector<1x8xf32>
    %59 = arith.truncf %58 : vector<1x8xf32> to vector<1x8xbf16>
    %60 = vector.extract_strided_slice %1 {offsets = [8, 0], sizes = [8, 32], strides = [1, 1]} : vector<32x32xbf16> to vector<8x32xbf16>
    %cst_22 = arith.constant dense<0.000000e+00> : vector<1x32xf32>
    %61 = tpu.matmul %59, %60, %cst_22 {dimension_numbers = #tpu.dot_dimension_numbers<[1], [0], [0], [1], [0, 0, 1, 1], [], []>} : vector<1x8xbf16>, vector<8x32xbf16>, vector<1x32xf32> -> vector<1x32xf32>
    %62 = arith.addf %37, %61 : vector<1x32xf32>
    %63 = vector.extract_strided_slice %0 {offsets = [0, 16], sizes = [1, 8], strides = [1, 1]} : vector<1x32xf32> to vector<1x8xf32>
    %64 = arith.truncf %63 : vector<1x8xf32> to vector<1x8xbf16>
    %65 = vector.extract_strided_slice %10 {offsets = [0, 16], sizes = [16, 8], strides = [1, 1]} : vector<16x32xf32> to vector<16x8xf32>
    %66 = arith.truncf %65 : vector<16x8xf32> to vector<16x8xbf16>
    %67 = vector.extract_strided_slice %11 {offsets = [0, 16], sizes = [16, 8], strides = [1, 1]} : vector<16x32xf32> to vector<16x8xf32>
    %68 = arith.truncf %67 : vector<16x8xf32> to vector<16x8xbf16>
    %cst_23 = arith.constant dense<0.000000e+00> : vector<1x16xf32>
    %69 = tpu.matmul %64, %66, %cst_23 {dimension_numbers = #tpu.dot_dimension_numbers<[1], [1], [0], [0], [0, 0, 1, 0], [], []>} : vector<1x8xbf16>, vector<16x8xbf16>, vector<1x16xf32> -> vector<1x16xf32>
    %cst_24 = arith.constant 0.353553385 : f32
    %70 = vector.broadcast %cst_24 : f32 to vector<1x16xf32>
    %71 = arith.mulf %69, %70 : vector<1x16xf32>
    %cst_25 = arith.constant dense<0xFF800000> : vector<1xf32>
    %72 = vector.multi_reduction <maximumf>, %71, %cst_25 [1] : vector<1x16xf32> to vector<1xf32>
    %73 = vector.shape_cast %72 : vector<1xf32> to vector<1x1xf32>
    %74 = vector.broadcast %73 : vector<1x1xf32> to vector<1x16xf32>
    %75 = arith.subf %71, %74 : vector<1x16xf32>
    %76 = math.exp %75 : vector<1x16xf32>
    %cst_26 = arith.constant dense<0.000000e+00> : vector<1xf32>
    %77 = vector.multi_reduction <add>, %76, %cst_26 [1] : vector<1x16xf32> to vector<1xf32>
    %78 = vector.shape_cast %77 : vector<1xf32> to vector<1x1xf32>
    %79 = tpu.reciprocal %78 {approx = true} : vector<1x1xf32> -> vector<1x1xf32>
    %80 = vector.broadcast %79 : vector<1x1xf32> to vector<1x16xf32>
    %81 = arith.mulf %76, %80 : vector<1x16xf32>
    %82 = arith.truncf %81 : vector<1x16xf32> to vector<1x16xbf16>
    %cst_27 = arith.constant dense<0.000000e+00> : vector<1x8xf32>
    %83 = tpu.matmul %82, %68, %cst_27 {dimension_numbers = #tpu.dot_dimension_numbers<[1], [0], [0], [1], [0, 0, 1, 1], [], []>} : vector<1x16xbf16>, vector<16x8xbf16>, vector<1x8xf32> -> vector<1x8xf32>
    %84 = arith.truncf %83 : vector<1x8xf32> to vector<1x8xbf16>
    %85 = vector.extract_strided_slice %1 {offsets = [16, 0], sizes = [8, 32], strides = [1, 1]} : vector<32x32xbf16> to vector<8x32xbf16>
    %cst_28 = arith.constant dense<0.000000e+00> : vector<1x32xf32>
    %86 = tpu.matmul %84, %85, %cst_28 {dimension_numbers = #tpu.dot_dimension_numbers<[1], [0], [0], [1], [0, 0, 1, 1], [], []>} : vector<1x8xbf16>, vector<8x32xbf16>, vector<1x32xf32> -> vector<1x32xf32>
    %87 = arith.addf %62, %86 : vector<1x32xf32>
    %88 = vector.extract_strided_slice %0 {offsets = [0, 24], sizes = [1, 8], strides = [1, 1]} : vector<1x32xf32> to vector<1x8xf32>
    %89 = arith.truncf %88 : vector<1x8xf32> to vector<1x8xbf16>
    %90 = vector.extract_strided_slice %10 {offsets = [0, 24], sizes = [16, 8], strides = [1, 1]} : vector<16x32xf32> to vector<16x8xf32>
    %91 = arith.truncf %90 : vector<16x8xf32> to vector<16x8xbf16>
    %92 = vector.extract_strided_slice %11 {offsets = [0, 24], sizes = [16, 8], strides = [1, 1]} : vector<16x32xf32> to vector<16x8xf32>
    %93 = arith.truncf %92 : vector<16x8xf32> to vector<16x8xbf16>
    %cst_29 = arith.constant dense<0.000000e+00> : vector<1x16xf32>
    %94 = tpu.matmul %89, %91, %cst_29 {dimension_numbers = #tpu.dot_dimension_numbers<[1], [1], [0], [0], [0, 0, 1, 0], [], []>} : vector<1x8xbf16>, vector<16x8xbf16>, vector<1x16xf32> -> vector<1x16xf32>
    %cst_30 = arith.constant 0.353553385 : f32
    %95 = vector.broadcast %cst_30 : f32 to vector<1x16xf32>
    %96 = arith.mulf %94, %95 : vector<1x16xf32>
    %cst_31 = arith.constant dense<0xFF800000> : vector<1xf32>
    %97 = vector.multi_reduction <maximumf>, %96, %cst_31 [1] : vector<1x16xf32> to vector<1xf32>
    %98 = vector.shape_cast %97 : vector<1xf32> to vector<1x1xf32>
    %99 = vector.broadcast %98 : vector<1x1xf32> to vector<1x16xf32>
    %100 = arith.subf %96, %99 : vector<1x16xf32>
    %101 = math.exp %100 : vector<1x16xf32>
    %cst_32 = arith.constant dense<0.000000e+00> : vector<1xf32>
    %102 = vector.multi_reduction <add>, %101, %cst_32 [1] : vector<1x16xf32> to vector<1xf32>
    %103 = vector.shape_cast %102 : vector<1xf32> to vector<1x1xf32>
    %104 = tpu.reciprocal %103 {approx = true} : vector<1x1xf32> -> vector<1x1xf32>
    %105 = vector.broadcast %104 : vector<1x1xf32> to vector<1x16xf32>
    %106 = arith.mulf %101, %105 : vector<1x16xf32>
    %107 = arith.truncf %106 : vector<1x16xf32> to vector<1x16xbf16>
    %cst_33 = arith.constant dense<0.000000e+00> : vector<1x8xf32>
    %108 = tpu.matmul %107, %93, %cst_33 {dimension_numbers = #tpu.dot_dimension_numbers<[1], [0], [0], [1], [0, 0, 1, 1], [], []>} : vector<1x16xbf16>, vector<16x8xbf16>, vector<1x8xf32> -> vector<1x8xf32>
    %109 = arith.truncf %108 : vector<1x8xf32> to vector<1x8xbf16>
    %110 = vector.extract_strided_slice %1 {offsets = [24, 0], sizes = [8, 32], strides = [1, 1]} : vector<32x32xbf16> to vector<8x32xbf16>
    %cst_34 = arith.constant dense<0.000000e+00> : vector<1x32xf32>
    %111 = tpu.matmul %109, %110, %cst_34 {dimension_numbers = #tpu.dot_dimension_numbers<[1], [0], [0], [1], [0, 0, 1, 1], [], []>} : vector<1x8xbf16>, vector<8x32xbf16>, vector<1x32xf32> -> vector<1x32xf32>
    %112 = arith.addf %87, %111 : vector<1x32xf32>
    %c1 = arith.constant 1 : index
    %c0_35 = arith.constant 0 : index
    %c0_36 = arith.constant 0 : index
    %113 = vector.load %arg1[%c1, %c0_35, %c0_36] : memref<8x32x16xf32, #tpu.memory_space<vmem>>, vector<1x32x16xf32>
    %114 = vector.shape_cast %113 : vector<1x32x16xf32> to vector<32x16xf32>
    %115 = arith.truncf %114 : vector<32x16xf32> to vector<32x16xbf16>
    %c0_37 = arith.constant 0 : index
    %c0_38 = arith.constant 0 : index
    %116 = vector.load %arg3[%c0_37, %c0_38] : memref<32x64xbf16, #tpu.memory_space<vmem>>, vector<32x64xbf16>
    %cst_39 = arith.constant dense<0.000000e+00> : vector<16x64xf32>
    %117 = tpu.matmul %115, %116, %cst_39 {dimension_numbers = #tpu.dot_dimension_numbers<[0], [0], [1], [1], [0, 1, 1, 1], [], []>} : vector<32x16xbf16>, vector<32x64xbf16>, vector<16x64xf32> -> vector<16x64xf32>
    %c0_40 = arith.constant 0 : index
    %c0_41 = arith.constant 0 : index
    %118 = vector.load %arg4[%c0_40, %c0_41] : memref<1x64xf32, #tpu.memory_space<vmem>>, vector<1x64xf32>
    %119 = vector.broadcast %118 : vector<1x64xf32> to vector<16x64xf32>
    %120 = arith.addf %117, %119 : vector<16x64xf32>
    %121 = vector.extract_strided_slice %120 {offsets = [0, 0], sizes = [16, 32], strides = [1, 1]} : vector<16x64xf32> to vector<16x32xf32>
    %122 = vector.extract_strided_slice %120 {offsets = [0, 32], sizes = [16, 32], strides = [1, 1]} : vector<16x64xf32> to vector<16x32xf32>
    %cst_42 = arith.constant 0.000000e+00 : f32
    %123 = vector.broadcast %cst_42 : f32 to vector<1x32xf32>
    %124 = vector.extract_strided_slice %0 {offsets = [0, 0], sizes = [1, 8], strides = [1, 1]} : vector<1x32xf32> to vector<1x8xf32>
    %125 = arith.truncf %124 : vector<1x8xf32> to vector<1x8xbf16>
    %126 = vector.extract_strided_slice %121 {offsets = [0, 0], sizes = [16, 8], strides = [1, 1]} : vector<16x32xf32> to vector<16x8xf32>
    %127 = arith.truncf %126 : vector<16x8xf32> to vector<16x8xbf16>
    %128 = vector.extract_strided_slice %122 {offsets = [0, 0], sizes = [16, 8], strides = [1, 1]} : vector<16x32xf32> to vector<16x8xf32>
    %129 = arith.truncf %128 : vector<16x8xf32> to vector<16x8xbf16>
    %cst_43 = arith.constant dense<0.000000e+00> : vector<1x16xf32>
    %130 = tpu.matmul %125, %127, %cst_43 {dimension_numbers = #tpu.dot_dimension_numbers<[1], [1], [0], [0], [0, 0, 1, 0], [], []>} : vector<1x8xbf16>, vector<16x8xbf16>, vector<1x16xf32> -> vector<1x16xf32>
    %cst_44 = arith.constant 0.353553385 : f32
    %131 = vector.broadcast %cst_44 : f32 to vector<1x16xf32>
    %132 = arith.mulf %130, %131 : vector<1x16xf32>
    %cst_45 = arith.constant dense<0xFF800000> : vector<1xf32>
    %133 = vector.multi_reduction <maximumf>, %132, %cst_45 [1] : vector<1x16xf32> to vector<1xf32>
    %134 = vector.shape_cast %133 : vector<1xf32> to vector<1x1xf32>
    %135 = vector.broadcast %134 : vector<1x1xf32> to vector<1x16xf32>
    %136 = arith.subf %132, %135 : vector<1x16xf32>
    %137 = math.exp %136 : vector<1x16xf32>
    %cst_46 = arith.constant dense<0.000000e+00> : vector<1xf32>
    %138 = vector.multi_reduction <add>, %137, %cst_46 [1] : vector<1x16xf32> to vector<1xf32>
    %139 = vector.shape_cast %138 : vector<1xf32> to vector<1x1xf32>
    %140 = tpu.reciprocal %139 {approx = true} : vector<1x1xf32> -> vector<1x1xf32>
    %141 = vector.broadcast %140 : vector<1x1xf32> to vector<1x16xf32>
    %142 = arith.mulf %137, %141 : vector<1x16xf32>
    %143 = arith.truncf %142 : vector<1x16xf32> to vector<1x16xbf16>
    %cst_47 = arith.constant dense<0.000000e+00> : vector<1x8xf32>
    %144 = tpu.matmul %143, %129, %cst_47 {dimension_numbers = #tpu.dot_dimension_numbers<[1], [0], [0], [1], [0, 0, 1, 1], [], []>} : vector<1x16xbf16>, vector<16x8xbf16>, vector<1x8xf32> -> vector<1x8xf32>
    %145 = arith.truncf %144 : vector<1x8xf32> to vector<1x8xbf16>
    %146 = vector.extract_strided_slice %1 {offsets = [0, 0], sizes = [8, 32], strides = [1, 1]} : vector<32x32xbf16> to vector<8x32xbf16>
    %cst_48 = arith.constant dense<0.000000e+00> : vector<1x32xf32>
    %147 = tpu.matmul %145, %146, %cst_48 {dimension_numbers = #tpu.dot_dimension_numbers<[1], [0], [0], [1], [0, 0, 1, 1], [], []>} : vector<1x8xbf16>, vector<8x32xbf16>, vector<1x32xf32> -> vector<1x32xf32>
    %148 = arith.addf %123, %147 : vector<1x32xf32>
    %149 = vector.extract_strided_slice %0 {offsets = [0, 8], sizes = [1, 8], strides = [1, 1]} : vector<1x32xf32> to vector<1x8xf32>
    %150 = arith.truncf %149 : vector<1x8xf32> to vector<1x8xbf16>
    %151 = vector.extract_strided_slice %121 {offsets = [0, 8], sizes = [16, 8], strides = [1, 1]} : vector<16x32xf32> to vector<16x8xf32>
    %152 = arith.truncf %151 : vector<16x8xf32> to vector<16x8xbf16>
    %153 = vector.extract_strided_slice %122 {offsets = [0, 8], sizes = [16, 8], strides = [1, 1]} : vector<16x32xf32> to vector<16x8xf32>
    %154 = arith.truncf %153 : vector<16x8xf32> to vector<16x8xbf16>
    %cst_49 = arith.constant dense<0.000000e+00> : vector<1x16xf32>
    %155 = tpu.matmul %150, %152, %cst_49 {dimension_numbers = #tpu.dot_dimension_numbers<[1], [1], [0], [0], [0, 0, 1, 0], [], []>} : vector<1x8xbf16>, vector<16x8xbf16>, vector<1x16xf32> -> vector<1x16xf32>
    %cst_50 = arith.constant 0.353553385 : f32
    %156 = vector.broadcast %cst_50 : f32 to vector<1x16xf32>
    %157 = arith.mulf %155, %156 : vector<1x16xf32>
    %cst_51 = arith.constant dense<0xFF800000> : vector<1xf32>
    %158 = vector.multi_reduction <maximumf>, %157, %cst_51 [1] : vector<1x16xf32> to vector<1xf32>
    %159 = vector.shape_cast %158 : vector<1xf32> to vector<1x1xf32>
    %160 = vector.broadcast %159 : vector<1x1xf32> to vector<1x16xf32>
    %161 = arith.subf %157, %160 : vector<1x16xf32>
    %162 = math.exp %161 : vector<1x16xf32>
    %cst_52 = arith.constant dense<0.000000e+00> : vector<1xf32>
    %163 = vector.multi_reduction <add>, %162, %cst_52 [1] : vector<1x16xf32> to vector<1xf32>
    %164 = vector.shape_cast %163 : vector<1xf32> to vector<1x1xf32>
    %165 = tpu.reciprocal %164 {approx = true} : vector<1x1xf32> -> vector<1x1xf32>
    %166 = vector.broadcast %165 : vector<1x1xf32> to vector<1x16xf32>
    %167 = arith.mulf %162, %166 : vector<1x16xf32>
    %168 = arith.truncf %167 : vector<1x16xf32> to vector<1x16xbf16>
    %cst_53 = arith.constant dense<0.000000e+00> : vector<1x8xf32>
    %169 = tpu.matmul %168, %154, %cst_53 {dimension_numbers = #tpu.dot_dimension_numbers<[1], [0], [0], [1], [0, 0, 1, 1], [], []>} : vector<1x16xbf16>, vector<16x8xbf16>, vector<1x8xf32> -> vector<1x8xf32>
    %170 = arith.truncf %169 : vector<1x8xf32> to vector<1x8xbf16>
    %171 = vector.extract_strided_slice %1 {offsets = [8, 0], sizes = [8, 32], strides = [1, 1]} : vector<32x32xbf16> to vector<8x32xbf16>
    %cst_54 = arith.constant dense<0.000000e+00> : vector<1x32xf32>
    %172 = tpu.matmul %170, %171, %cst_54 {dimension_numbers = #tpu.dot_dimension_numbers<[1], [0], [0], [1], [0, 0, 1, 1], [], []>} : vector<1x8xbf16>, vector<8x32xbf16>, vector<1x32xf32> -> vector<1x32xf32>
    %173 = arith.addf %148, %172 : vector<1x32xf32>
    %174 = vector.extract_strided_slice %0 {offsets = [0, 16], sizes = [1, 8], strides = [1, 1]} : vector<1x32xf32> to vector<1x8xf32>
    %175 = arith.truncf %174 : vector<1x8xf32> to vector<1x8xbf16>
    %176 = vector.extract_strided_slice %121 {offsets = [0, 16], sizes = [16, 8], strides = [1, 1]} : vector<16x32xf32> to vector<16x8xf32>
    %177 = arith.truncf %176 : vector<16x8xf32> to vector<16x8xbf16>
    %178 = vector.extract_strided_slice %122 {offsets = [0, 16], sizes = [16, 8], strides = [1, 1]} : vector<16x32xf32> to vector<16x8xf32>
    %179 = arith.truncf %178 : vector<16x8xf32> to vector<16x8xbf16>
    %cst_55 = arith.constant dense<0.000000e+00> : vector<1x16xf32>
    %180 = tpu.matmul %175, %177, %cst_55 {dimension_numbers = #tpu.dot_dimension_numbers<[1], [1], [0], [0], [0, 0, 1, 0], [], []>} : vector<1x8xbf16>, vector<16x8xbf16>, vector<1x16xf32> -> vector<1x16xf32>
    %cst_56 = arith.constant 0.353553385 : f32
    %181 = vector.broadcast %cst_56 : f32 to vector<1x16xf32>
    %182 = arith.mulf %180, %181 : vector<1x16xf32>
    %cst_57 = arith.constant dense<0xFF800000> : vector<1xf32>
    %183 = vector.multi_reduction <maximumf>, %182, %cst_57 [1] : vector<1x16xf32> to vector<1xf32>
    %184 = vector.shape_cast %183 : vector<1xf32> to vector<1x1xf32>
    %185 = vector.broadcast %184 : vector<1x1xf32> to vector<1x16xf32>
    %186 = arith.subf %182, %185 : vector<1x16xf32>
    %187 = math.exp %186 : vector<1x16xf32>
    %cst_58 = arith.constant dense<0.000000e+00> : vector<1xf32>
    %188 = vector.multi_reduction <add>, %187, %cst_58 [1] : vector<1x16xf32> to vector<1xf32>
    %189 = vector.shape_cast %188 : vector<1xf32> to vector<1x1xf32>
    %190 = tpu.reciprocal %189 {approx = true} : vector<1x1xf32> -> vector<1x1xf32>
    %191 = vector.broadcast %190 : vector<1x1xf32> to vector<1x16xf32>
    %192 = arith.mulf %187, %191 : vector<1x16xf32>
    %193 = arith.truncf %192 : vector<1x16xf32> to vector<1x16xbf16>
    %cst_59 = arith.constant dense<0.000000e+00> : vector<1x8xf32>
    %194 = tpu.matmul %193, %179, %cst_59 {dimension_numbers = #tpu.dot_dimension_numbers<[1], [0], [0], [1], [0, 0, 1, 1], [], []>} : vector<1x16xbf16>, vector<16x8xbf16>, vector<1x8xf32> -> vector<1x8xf32>
    %195 = arith.truncf %194 : vector<1x8xf32> to vector<1x8xbf16>
    %196 = vector.extract_strided_slice %1 {offsets = [16, 0], sizes = [8, 32], strides = [1, 1]} : vector<32x32xbf16> to vector<8x32xbf16>
    %cst_60 = arith.constant dense<0.000000e+00> : vector<1x32xf32>
    %197 = tpu.matmul %195, %196, %cst_60 {dimension_numbers = #tpu.dot_dimension_numbers<[1], [0], [0], [1], [0, 0, 1, 1], [], []>} : vector<1x8xbf16>, vector<8x32xbf16>, vector<1x32xf32> -> vector<1x32xf32>
    %198 = arith.addf %173, %197 : vector<1x32xf32>
    %199 = vector.extract_strided_slice %0 {offsets = [0, 24], sizes = [1, 8], strides = [1, 1]} : vector<1x32xf32> to vector<1x8xf32>
    %200 = arith.truncf %199 : vector<1x8xf32> to vector<1x8xbf16>
    %201 = vector.extract_strided_slice %121 {offsets = [0, 24], sizes = [16, 8], strides = [1, 1]} : vector<16x32xf32> to vector<16x8xf32>
    %202 = arith.truncf %201 : vector<16x8xf32> to vector<16x8xbf16>
    %203 = vector.extract_strided_slice %122 {offsets = [0, 24], sizes = [16, 8], strides = [1, 1]} : vector<16x32xf32> to vector<16x8xf32>
    %204 = arith.truncf %203 : vector<16x8xf32> to vector<16x8xbf16>
    %cst_61 = arith.constant dense<0.000000e+00> : vector<1x16xf32>
    %205 = tpu.matmul %200, %202, %cst_61 {dimension_numbers = #tpu.dot_dimension_numbers<[1], [1], [0], [0], [0, 0, 1, 0], [], []>} : vector<1x8xbf16>, vector<16x8xbf16>, vector<1x16xf32> -> vector<1x16xf32>
    %cst_62 = arith.constant 0.353553385 : f32
    %206 = vector.broadcast %cst_62 : f32 to vector<1x16xf32>
    %207 = arith.mulf %205, %206 : vector<1x16xf32>
    %cst_63 = arith.constant dense<0xFF800000> : vector<1xf32>
    %208 = vector.multi_reduction <maximumf>, %207, %cst_63 [1] : vector<1x16xf32> to vector<1xf32>
    %209 = vector.shape_cast %208 : vector<1xf32> to vector<1x1xf32>
    %210 = vector.broadcast %209 : vector<1x1xf32> to vector<1x16xf32>
    %211 = arith.subf %207, %210 : vector<1x16xf32>
    %212 = math.exp %211 : vector<1x16xf32>
    %cst_64 = arith.constant dense<0.000000e+00> : vector<1xf32>
    %213 = vector.multi_reduction <add>, %212, %cst_64 [1] : vector<1x16xf32> to vector<1xf32>
    %214 = vector.shape_cast %213 : vector<1xf32> to vector<1x1xf32>
    %215 = tpu.reciprocal %214 {approx = true} : vector<1x1xf32> -> vector<1x1xf32>
    %216 = vector.broadcast %215 : vector<1x1xf32> to vector<1x16xf32>
    %217 = arith.mulf %212, %216 : vector<1x16xf32>
    %218 = arith.truncf %217 : vector<1x16xf32> to vector<1x16xbf16>
    %cst_65 = arith.constant dense<0.000000e+00> : vector<1x8xf32>
    %219 = tpu.matmul %218, %204, %cst_65 {dimension_numbers = #tpu.dot_dimension_numbers<[1], [0], [0], [1], [0, 0, 1, 1], [], []>} : vector<1x16xbf16>, vector<16x8xbf16>, vector<1x8xf32> -> vector<1x8xf32>
    %220 = arith.truncf %219 : vector<1x8xf32> to vector<1x8xbf16>
    %221 = vector.extract_strided_slice %1 {offsets = [24, 0], sizes = [8, 32], strides = [1, 1]} : vector<32x32xbf16> to vector<8x32xbf16>
    %cst_66 = arith.constant dense<0.000000e+00> : vector<1x32xf32>
    %222 = tpu.matmul %220, %221, %cst_66 {dimension_numbers = #tpu.dot_dimension_numbers<[1], [0], [0], [1], [0, 0, 1, 1], [], []>} : vector<1x8xbf16>, vector<8x32xbf16>, vector<1x32xf32> -> vector<1x32xf32>
    %223 = arith.addf %198, %222 : vector<1x32xf32>
    %c2 = arith.constant 2 : index
    %c0_67 = arith.constant 0 : index
    %c0_68 = arith.constant 0 : index
    %224 = vector.load %arg1[%c2, %c0_67, %c0_68] : memref<8x32x16xf32, #tpu.memory_space<vmem>>, vector<1x32x16xf32>
    %225 = vector.shape_cast %224 : vector<1x32x16xf32> to vector<32x16xf32>
    %226 = arith.truncf %225 : vector<32x16xf32> to vector<32x16xbf16>
    %c0_69 = arith.constant 0 : index
    %c0_70 = arith.constant 0 : index
    %227 = vector.load %arg3[%c0_69, %c0_70] : memref<32x64xbf16, #tpu.memory_space<vmem>>, vector<32x64xbf16>
    %cst_71 = arith.constant dense<0.000000e+00> : vector<16x64xf32>
    %228 = tpu.matmul %226, %227, %cst_71 {dimension_numbers = #tpu.dot_dimension_numbers<[0], [0], [1], [1], [0, 1, 1, 1], [], []>} : vector<32x16xbf16>, vector<32x64xbf16>, vector<16x64xf32> -> vector<16x64xf32>
    %c0_72 = arith.constant 0 : index
    %c0_73 = arith.constant 0 : index
    %229 = vector.load %arg4[%c0_72, %c0_73] : memref<1x64xf32, #tpu.memory_space<vmem>>, vector<1x64xf32>
    %230 = vector.broadcast %229 : vector<1x64xf32> to vector<16x64xf32>
    %231 = arith.addf %228, %230 : vector<16x64xf32>
    %232 = vector.extract_strided_slice %231 {offsets = [0, 0], sizes = [16, 32], strides = [1, 1]} : vector<16x64xf32> to vector<16x32xf32>
    %233 = vector.extract_strided_slice %231 {offsets = [0, 32], sizes = [16, 32], strides = [1, 1]} : vector<16x64xf32> to vector<16x32xf32>
    %cst_74 = arith.constant 0.000000e+00 : f32
    %234 = vector.broadcast %cst_74 : f32 to vector<1x32xf32>
    %235 = vector.extract_strided_slice %0 {offsets = [0, 0], sizes = [1, 8], strides = [1, 1]} : vector<1x32xf32> to vector<1x8xf32>
    %236 = arith.truncf %235 : vector<1x8xf32> to vector<1x8xbf16>
    %237 = vector.extract_strided_slice %232 {offsets = [0, 0], sizes = [16, 8], strides = [1, 1]} : vector<16x32xf32> to vector<16x8xf32>
    %238 = arith.truncf %237 : vector<16x8xf32> to vector<16x8xbf16>
    %239 = vector.extract_strided_slice %233 {offsets = [0, 0], sizes = [16, 8], strides = [1, 1]} : vector<16x32xf32> to vector<16x8xf32>
    %240 = arith.truncf %239 : vector<16x8xf32> to vector<16x8xbf16>
    %cst_75 = arith.constant dense<0.000000e+00> : vector<1x16xf32>
    %241 = tpu.matmul %236, %238, %cst_75 {dimension_numbers = #tpu.dot_dimension_numbers<[1], [1], [0], [0], [0, 0, 1, 0], [], []>} : vector<1x8xbf16>, vector<16x8xbf16>, vector<1x16xf32> -> vector<1x16xf32>
    %cst_76 = arith.constant 0.353553385 : f32
    %242 = vector.broadcast %cst_76 : f32 to vector<1x16xf32>
    %243 = arith.mulf %241, %242 : vector<1x16xf32>
    %cst_77 = arith.constant dense<0xFF800000> : vector<1xf32>
    %244 = vector.multi_reduction <maximumf>, %243, %cst_77 [1] : vector<1x16xf32> to vector<1xf32>
    %245 = vector.shape_cast %244 : vector<1xf32> to vector<1x1xf32>
    %246 = vector.broadcast %245 : vector<1x1xf32> to vector<1x16xf32>
    %247 = arith.subf %243, %246 : vector<1x16xf32>
    %248 = math.exp %247 : vector<1x16xf32>
    %cst_78 = arith.constant dense<0.000000e+00> : vector<1xf32>
    %249 = vector.multi_reduction <add>, %248, %cst_78 [1] : vector<1x16xf32> to vector<1xf32>
    %250 = vector.shape_cast %249 : vector<1xf32> to vector<1x1xf32>
    %251 = tpu.reciprocal %250 {approx = true} : vector<1x1xf32> -> vector<1x1xf32>
    %252 = vector.broadcast %251 : vector<1x1xf32> to vector<1x16xf32>
    %253 = arith.mulf %248, %252 : vector<1x16xf32>
    %254 = arith.truncf %253 : vector<1x16xf32> to vector<1x16xbf16>
    %cst_79 = arith.constant dense<0.000000e+00> : vector<1x8xf32>
    %255 = tpu.matmul %254, %240, %cst_79 {dimension_numbers = #tpu.dot_dimension_numbers<[1], [0], [0], [1], [0, 0, 1, 1], [], []>} : vector<1x16xbf16>, vector<16x8xbf16>, vector<1x8xf32> -> vector<1x8xf32>
    %256 = arith.truncf %255 : vector<1x8xf32> to vector<1x8xbf16>
    %257 = vector.extract_strided_slice %1 {offsets = [0, 0], sizes = [8, 32], strides = [1, 1]} : vector<32x32xbf16> to vector<8x32xbf16>
    %cst_80 = arith.constant dense<0.000000e+00> : vector<1x32xf32>
    %258 = tpu.matmul %256, %257, %cst_80 {dimension_numbers = #tpu.dot_dimension_numbers<[1], [0], [0], [1], [0, 0, 1, 1], [], []>} : vector<1x8xbf16>, vector<8x32xbf16>, vector<1x32xf32> -> vector<1x32xf32>
    %259 = arith.addf %234, %258 : vector<1x32xf32>
    %260 = vector.extract_strided_slice %0 {offsets = [0, 8], sizes = [1, 8], strides = [1, 1]} : vector<1x32xf32> to vector<1x8xf32>
    %261 = arith.truncf %260 : vector<1x8xf32> to vector<1x8xbf16>
    %262 = vector.extract_strided_slice %232 {offsets = [0, 8], sizes = [16, 8], strides = [1, 1]} : vector<16x32xf32> to vector<16x8xf32>
    %263 = arith.truncf %262 : vector<16x8xf32> to vector<16x8xbf16>
    %264 = vector.extract_strided_slice %233 {offsets = [0, 8], sizes = [16, 8], strides = [1, 1]} : vector<16x32xf32> to vector<16x8xf32>
    %265 = arith.truncf %264 : vector<16x8xf32> to vector<16x8xbf16>
    %cst_81 = arith.constant dense<0.000000e+00> : vector<1x16xf32>
    %266 = tpu.matmul %261, %263, %cst_81 {dimension_numbers = #tpu.dot_dimension_numbers<[1], [1], [0], [0], [0, 0, 1, 0], [], []>} : vector<1x8xbf16>, vector<16x8xbf16>, vector<1x16xf32> -> vector<1x16xf32>
    %cst_82 = arith.constant 0.353553385 : f32
    %267 = vector.broadcast %cst_82 : f32 to vector<1x16xf32>
    %268 = arith.mulf %266, %267 : vector<1x16xf32>
    %cst_83 = arith.constant dense<0xFF800000> : vector<1xf32>
    %269 = vector.multi_reduction <maximumf>, %268, %cst_83 [1] : vector<1x16xf32> to vector<1xf32>
    %270 = vector.shape_cast %269 : vector<1xf32> to vector<1x1xf32>
    %271 = vector.broadcast %270 : vector<1x1xf32> to vector<1x16xf32>
    %272 = arith.subf %268, %271 : vector<1x16xf32>
    %273 = math.exp %272 : vector<1x16xf32>
    %cst_84 = arith.constant dense<0.000000e+00> : vector<1xf32>
    %274 = vector.multi_reduction <add>, %273, %cst_84 [1] : vector<1x16xf32> to vector<1xf32>
    %275 = vector.shape_cast %274 : vector<1xf32> to vector<1x1xf32>
    %276 = tpu.reciprocal %275 {approx = true} : vector<1x1xf32> -> vector<1x1xf32>
    %277 = vector.broadcast %276 : vector<1x1xf32> to vector<1x16xf32>
    %278 = arith.mulf %273, %277 : vector<1x16xf32>
    %279 = arith.truncf %278 : vector<1x16xf32> to vector<1x16xbf16>
    %cst_85 = arith.constant dense<0.000000e+00> : vector<1x8xf32>
    %280 = tpu.matmul %279, %265, %cst_85 {dimension_numbers = #tpu.dot_dimension_numbers<[1], [0], [0], [1], [0, 0, 1, 1], [], []>} : vector<1x16xbf16>, vector<16x8xbf16>, vector<1x8xf32> -> vector<1x8xf32>
    %281 = arith.truncf %280 : vector<1x8xf32> to vector<1x8xbf16>
    %282 = vector.extract_strided_slice %1 {offsets = [8, 0], sizes = [8, 32], strides = [1, 1]} : vector<32x32xbf16> to vector<8x32xbf16>
    %cst_86 = arith.constant dense<0.000000e+00> : vector<1x32xf32>
    %283 = tpu.matmul %281, %282, %cst_86 {dimension_numbers = #tpu.dot_dimension_numbers<[1], [0], [0], [1], [0, 0, 1, 1], [], []>} : vector<1x8xbf16>, vector<8x32xbf16>, vector<1x32xf32> -> vector<1x32xf32>
    %284 = arith.addf %259, %283 : vector<1x32xf32>
    %285 = vector.extract_strided_slice %0 {offsets = [0, 16], sizes = [1, 8], strides = [1, 1]} : vector<1x32xf32> to vector<1x8xf32>
    %286 = arith.truncf %285 : vector<1x8xf32> to vector<1x8xbf16>
    %287 = vector.extract_strided_slice %232 {offsets = [0, 16], sizes = [16, 8], strides = [1, 1]} : vector<16x32xf32> to vector<16x8xf32>
    %288 = arith.truncf %287 : vector<16x8xf32> to vector<16x8xbf16>
    %289 = vector.extract_strided_slice %233 {offsets = [0, 16], sizes = [16, 8], strides = [1, 1]} : vector<16x32xf32> to vector<16x8xf32>
    %290 = arith.truncf %289 : vector<16x8xf32> to vector<16x8xbf16>
    %cst_87 = arith.constant dense<0.000000e+00> : vector<1x16xf32>
    %291 = tpu.matmul %286, %288, %cst_87 {dimension_numbers = #tpu.dot_dimension_numbers<[1], [1], [0], [0], [0, 0, 1, 0], [], []>} : vector<1x8xbf16>, vector<16x8xbf16>, vector<1x16xf32> -> vector<1x16xf32>
    %cst_88 = arith.constant 0.353553385 : f32
    %292 = vector.broadcast %cst_88 : f32 to vector<1x16xf32>
    %293 = arith.mulf %291, %292 : vector<1x16xf32>
    %cst_89 = arith.constant dense<0xFF800000> : vector<1xf32>
    %294 = vector.multi_reduction <maximumf>, %293, %cst_89 [1] : vector<1x16xf32> to vector<1xf32>
    %295 = vector.shape_cast %294 : vector<1xf32> to vector<1x1xf32>
    %296 = vector.broadcast %295 : vector<1x1xf32> to vector<1x16xf32>
    %297 = arith.subf %293, %296 : vector<1x16xf32>
    %298 = math.exp %297 : vector<1x16xf32>
    %cst_90 = arith.constant dense<0.000000e+00> : vector<1xf32>
    %299 = vector.multi_reduction <add>, %298, %cst_90 [1] : vector<1x16xf32> to vector<1xf32>
    %300 = vector.shape_cast %299 : vector<1xf32> to vector<1x1xf32>
    %301 = tpu.reciprocal %300 {approx = true} : vector<1x1xf32> -> vector<1x1xf32>
    %302 = vector.broadcast %301 : vector<1x1xf32> to vector<1x16xf32>
    %303 = arith.mulf %298, %302 : vector<1x16xf32>
    %304 = arith.truncf %303 : vector<1x16xf32> to vector<1x16xbf16>
    %cst_91 = arith.constant dense<0.000000e+00> : vector<1x8xf32>
    %305 = tpu.matmul %304, %290, %cst_91 {dimension_numbers = #tpu.dot_dimension_numbers<[1], [0], [0], [1], [0, 0, 1, 1], [], []>} : vector<1x16xbf16>, vector<16x8xbf16>, vector<1x8xf32> -> vector<1x8xf32>
    %306 = arith.truncf %305 : vector<1x8xf32> to vector<1x8xbf16>
    %307 = vector.extract_strided_slice %1 {offsets = [16, 0], sizes = [8, 32], strides = [1, 1]} : vector<32x32xbf16> to vector<8x32xbf16>
    %cst_92 = arith.constant dense<0.000000e+00> : vector<1x32xf32>
    %308 = tpu.matmul %306, %307, %cst_92 {dimension_numbers = #tpu.dot_dimension_numbers<[1], [0], [0], [1], [0, 0, 1, 1], [], []>} : vector<1x8xbf16>, vector<8x32xbf16>, vector<1x32xf32> -> vector<1x32xf32>
    %309 = arith.addf %284, %308 : vector<1x32xf32>
    %310 = vector.extract_strided_slice %0 {offsets = [0, 24], sizes = [1, 8], strides = [1, 1]} : vector<1x32xf32> to vector<1x8xf32>
    %311 = arith.truncf %310 : vector<1x8xf32> to vector<1x8xbf16>
    %312 = vector.extract_strided_slice %232 {offsets = [0, 24], sizes = [16, 8], strides = [1, 1]} : vector<16x32xf32> to vector<16x8xf32>
    %313 = arith.truncf %312 : vector<16x8xf32> to vector<16x8xbf16>
    %314 = vector.extract_strided_slice %233 {offsets = [0, 24], sizes = [16, 8], strides = [1, 1]} : vector<16x32xf32> to vector<16x8xf32>
    %315 = arith.truncf %314 : vector<16x8xf32> to vector<16x8xbf16>
    %cst_93 = arith.constant dense<0.000000e+00> : vector<1x16xf32>
    %316 = tpu.matmul %311, %313, %cst_93 {dimension_numbers = #tpu.dot_dimension_numbers<[1], [1], [0], [0], [0, 0, 1, 0], [], []>} : vector<1x8xbf16>, vector<16x8xbf16>, vector<1x16xf32> -> vector<1x16xf32>
    %cst_94 = arith.constant 0.353553385 : f32
    %317 = vector.broadcast %cst_94 : f32 to vector<1x16xf32>
    %318 = arith.mulf %316, %317 : vector<1x16xf32>
    %cst_95 = arith.constant dense<0xFF800000> : vector<1xf32>
    %319 = vector.multi_reduction <maximumf>, %318, %cst_95 [1] : vector<1x16xf32> to vector<1xf32>
    %320 = vector.shape_cast %319 : vector<1xf32> to vector<1x1xf32>
    %321 = vector.broadcast %320 : vector<1x1xf32> to vector<1x16xf32>
    %322 = arith.subf %318, %321 : vector<1x16xf32>
    %323 = math.exp %322 : vector<1x16xf32>
    %cst_96 = arith.constant dense<0.000000e+00> : vector<1xf32>
    %324 = vector.multi_reduction <add>, %323, %cst_96 [1] : vector<1x16xf32> to vector<1xf32>
    %325 = vector.shape_cast %324 : vector<1xf32> to vector<1x1xf32>
    %326 = tpu.reciprocal %325 {approx = true} : vector<1x1xf32> -> vector<1x1xf32>
    %327 = vector.broadcast %326 : vector<1x1xf32> to vector<1x16xf32>
    %328 = arith.mulf %323, %327 : vector<1x16xf32>
    %329 = arith.truncf %328 : vector<1x16xf32> to vector<1x16xbf16>
    %cst_97 = arith.constant dense<0.000000e+00> : vector<1x8xf32>
    %330 = tpu.matmul %329, %315, %cst_97 {dimension_numbers = #tpu.dot_dimension_numbers<[1], [0], [0], [1], [0, 0, 1, 1], [], []>} : vector<1x16xbf16>, vector<16x8xbf16>, vector<1x8xf32> -> vector<1x8xf32>
    %331 = arith.truncf %330 : vector<1x8xf32> to vector<1x8xbf16>
    %332 = vector.extract_strided_slice %1 {offsets = [24, 0], sizes = [8, 32], strides = [1, 1]} : vector<32x32xbf16> to vector<8x32xbf16>
    %cst_98 = arith.constant dense<0.000000e+00> : vector<1x32xf32>
    %333 = tpu.matmul %331, %332, %cst_98 {dimension_numbers = #tpu.dot_dimension_numbers<[1], [0], [0], [1], [0, 0, 1, 1], [], []>} : vector<1x8xbf16>, vector<8x32xbf16>, vector<1x32xf32> -> vector<1x32xf32>
    %334 = arith.addf %309, %333 : vector<1x32xf32>
    %c3 = arith.constant 3 : index
    %c0_99 = arith.constant 0 : index
    %c0_100 = arith.constant 0 : index
    %335 = vector.load %arg1[%c3, %c0_99, %c0_100] : memref<8x32x16xf32, #tpu.memory_space<vmem>>, vector<1x32x16xf32>
    %336 = vector.shape_cast %335 : vector<1x32x16xf32> to vector<32x16xf32>
    %337 = arith.truncf %336 : vector<32x16xf32> to vector<32x16xbf16>
    %c0_101 = arith.constant 0 : index
    %c0_102 = arith.constant 0 : index
    %338 = vector.load %arg3[%c0_101, %c0_102] : memref<32x64xbf16, #tpu.memory_space<vmem>>, vector<32x64xbf16>
    %cst_103 = arith.constant dense<0.000000e+00> : vector<16x64xf32>
    %339 = tpu.matmul %337, %338, %cst_103 {dimension_numbers = #tpu.dot_dimension_numbers<[0], [0], [1], [1], [0, 1, 1, 1], [], []>} : vector<32x16xbf16>, vector<32x64xbf16>, vector<16x64xf32> -> vector<16x64xf32>
    %c0_104 = arith.constant 0 : index
    %c0_105 = arith.constant 0 : index
    %340 = vector.load %arg4[%c0_104, %c0_105] : memref<1x64xf32, #tpu.memory_space<vmem>>, vector<1x64xf32>
    %341 = vector.broadcast %340 : vector<1x64xf32> to vector<16x64xf32>
    %342 = arith.addf %339, %341 : vector<16x64xf32>
    %343 = vector.extract_strided_slice %342 {offsets = [0, 0], sizes = [16, 32], strides = [1, 1]} : vector<16x64xf32> to vector<16x32xf32>
    %344 = vector.extract_strided_slice %342 {offsets = [0, 32], sizes = [16, 32], strides = [1, 1]} : vector<16x64xf32> to vector<16x32xf32>
    %cst_106 = arith.constant 0.000000e+00 : f32
    %345 = vector.broadcast %cst_106 : f32 to vector<1x32xf32>
    %346 = vector.extract_strided_slice %0 {offsets = [0, 0], sizes = [1, 8], strides = [1, 1]} : vector<1x32xf32> to vector<1x8xf32>
    %347 = arith.truncf %346 : vector<1x8xf32> to vector<1x8xbf16>
    %348 = vector.extract_strided_slice %343 {offsets = [0, 0], sizes = [16, 8], strides = [1, 1]} : vector<16x32xf32> to vector<16x8xf32>
    %349 = arith.truncf %348 : vector<16x8xf32> to vector<16x8xbf16>
    %350 = vector.extract_strided_slice %344 {offsets = [0, 0], sizes = [16, 8], strides = [1, 1]} : vector<16x32xf32> to vector<16x8xf32>
    %351 = arith.truncf %350 : vector<16x8xf32> to vector<16x8xbf16>
    %cst_107 = arith.constant dense<0.000000e+00> : vector<1x16xf32>
    %352 = tpu.matmul %347, %349, %cst_107 {dimension_numbers = #tpu.dot_dimension_numbers<[1], [1], [0], [0], [0, 0, 1, 0], [], []>} : vector<1x8xbf16>, vector<16x8xbf16>, vector<1x16xf32> -> vector<1x16xf32>
    %cst_108 = arith.constant 0.353553385 : f32
    %353 = vector.broadcast %cst_108 : f32 to vector<1x16xf32>
    %354 = arith.mulf %352, %353 : vector<1x16xf32>
    %cst_109 = arith.constant dense<0xFF800000> : vector<1xf32>
    %355 = vector.multi_reduction <maximumf>, %354, %cst_109 [1] : vector<1x16xf32> to vector<1xf32>
    %356 = vector.shape_cast %355 : vector<1xf32> to vector<1x1xf32>
    %357 = vector.broadcast %356 : vector<1x1xf32> to vector<1x16xf32>
    %358 = arith.subf %354, %357 : vector<1x16xf32>
    %359 = math.exp %358 : vector<1x16xf32>
    %cst_110 = arith.constant dense<0.000000e+00> : vector<1xf32>
    %360 = vector.multi_reduction <add>, %359, %cst_110 [1] : vector<1x16xf32> to vector<1xf32>
    %361 = vector.shape_cast %360 : vector<1xf32> to vector<1x1xf32>
    %362 = tpu.reciprocal %361 {approx = true} : vector<1x1xf32> -> vector<1x1xf32>
    %363 = vector.broadcast %362 : vector<1x1xf32> to vector<1x16xf32>
    %364 = arith.mulf %359, %363 : vector<1x16xf32>
    %365 = arith.truncf %364 : vector<1x16xf32> to vector<1x16xbf16>
    %cst_111 = arith.constant dense<0.000000e+00> : vector<1x8xf32>
    %366 = tpu.matmul %365, %351, %cst_111 {dimension_numbers = #tpu.dot_dimension_numbers<[1], [0], [0], [1], [0, 0, 1, 1], [], []>} : vector<1x16xbf16>, vector<16x8xbf16>, vector<1x8xf32> -> vector<1x8xf32>
    %367 = arith.truncf %366 : vector<1x8xf32> to vector<1x8xbf16>
    %368 = vector.extract_strided_slice %1 {offsets = [0, 0], sizes = [8, 32], strides = [1, 1]} : vector<32x32xbf16> to vector<8x32xbf16>
    %cst_112 = arith.constant dense<0.000000e+00> : vector<1x32xf32>
    %369 = tpu.matmul %367, %368, %cst_112 {dimension_numbers = #tpu.dot_dimension_numbers<[1], [0], [0], [1], [0, 0, 1, 1], [], []>} : vector<1x8xbf16>, vector<8x32xbf16>, vector<1x32xf32> -> vector<1x32xf32>
    %370 = arith.addf %345, %369 : vector<1x32xf32>
    %371 = vector.extract_strided_slice %0 {offsets = [0, 8], sizes = [1, 8], strides = [1, 1]} : vector<1x32xf32> to vector<1x8xf32>
    %372 = arith.truncf %371 : vector<1x8xf32> to vector<1x8xbf16>
    %373 = vector.extract_strided_slice %343 {offsets = [0, 8], sizes = [16, 8], strides = [1, 1]} : vector<16x32xf32> to vector<16x8xf32>
    %374 = arith.truncf %373 : vector<16x8xf32> to vector<16x8xbf16>
    %375 = vector.extract_strided_slice %344 {offsets = [0, 8], sizes = [16, 8], strides = [1, 1]} : vector<16x32xf32> to vector<16x8xf32>
    %376 = arith.truncf %375 : vector<16x8xf32> to vector<16x8xbf16>
    %cst_113 = arith.constant dense<0.000000e+00> : vector<1x16xf32>
    %377 = tpu.matmul %372, %374, %cst_113 {dimension_numbers = #tpu.dot_dimension_numbers<[1], [1], [0], [0], [0, 0, 1, 0], [], []>} : vector<1x8xbf16>, vector<16x8xbf16>, vector<1x16xf32> -> vector<1x16xf32>
    %cst_114 = arith.constant 0.353553385 : f32
    %378 = vector.broadcast %cst_114 : f32 to vector<1x16xf32>
    %379 = arith.mulf %377, %378 : vector<1x16xf32>
    %cst_115 = arith.constant dense<0xFF800000> : vector<1xf32>
    %380 = vector.multi_reduction <maximumf>, %379, %cst_115 [1] : vector<1x16xf32> to vector<1xf32>
    %381 = vector.shape_cast %380 : vector<1xf32> to vector<1x1xf32>
    %382 = vector.broadcast %381 : vector<1x1xf32> to vector<1x16xf32>
    %383 = arith.subf %379, %382 : vector<1x16xf32>
    %384 = math.exp %383 : vector<1x16xf32>
    %cst_116 = arith.constant dense<0.000000e+00> : vector<1xf32>
    %385 = vector.multi_reduction <add>, %384, %cst_116 [1] : vector<1x16xf32> to vector<1xf32>
    %386 = vector.shape_cast %385 : vector<1xf32> to vector<1x1xf32>
    %387 = tpu.reciprocal %386 {approx = true} : vector<1x1xf32> -> vector<1x1xf32>
    %388 = vector.broadcast %387 : vector<1x1xf32> to vector<1x16xf32>
    %389 = arith.mulf %384, %388 : vector<1x16xf32>
    %390 = arith.truncf %389 : vector<1x16xf32> to vector<1x16xbf16>
    %cst_117 = arith.constant dense<0.000000e+00> : vector<1x8xf32>
    %391 = tpu.matmul %390, %376, %cst_117 {dimension_numbers = #tpu.dot_dimension_numbers<[1], [0], [0], [1], [0, 0, 1, 1], [], []>} : vector<1x16xbf16>, vector<16x8xbf16>, vector<1x8xf32> -> vector<1x8xf32>
    %392 = arith.truncf %391 : vector<1x8xf32> to vector<1x8xbf16>
    %393 = vector.extract_strided_slice %1 {offsets = [8, 0], sizes = [8, 32], strides = [1, 1]} : vector<32x32xbf16> to vector<8x32xbf16>
    %cst_118 = arith.constant dense<0.000000e+00> : vector<1x32xf32>
    %394 = tpu.matmul %392, %393, %cst_118 {dimension_numbers = #tpu.dot_dimension_numbers<[1], [0], [0], [1], [0, 0, 1, 1], [], []>} : vector<1x8xbf16>, vector<8x32xbf16>, vector<1x32xf32> -> vector<1x32xf32>
    %395 = arith.addf %370, %394 : vector<1x32xf32>
    %396 = vector.extract_strided_slice %0 {offsets = [0, 16], sizes = [1, 8], strides = [1, 1]} : vector<1x32xf32> to vector<1x8xf32>
    %397 = arith.truncf %396 : vector<1x8xf32> to vector<1x8xbf16>
    %398 = vector.extract_strided_slice %343 {offsets = [0, 16], sizes = [16, 8], strides = [1, 1]} : vector<16x32xf32> to vector<16x8xf32>
    %399 = arith.truncf %398 : vector<16x8xf32> to vector<16x8xbf16>
    %400 = vector.extract_strided_slice %344 {offsets = [0, 16], sizes = [16, 8], strides = [1, 1]} : vector<16x32xf32> to vector<16x8xf32>
    %401 = arith.truncf %400 : vector<16x8xf32> to vector<16x8xbf16>
    %cst_119 = arith.constant dense<0.000000e+00> : vector<1x16xf32>
    %402 = tpu.matmul %397, %399, %cst_119 {dimension_numbers = #tpu.dot_dimension_numbers<[1], [1], [0], [0], [0, 0, 1, 0], [], []>} : vector<1x8xbf16>, vector<16x8xbf16>, vector<1x16xf32> -> vector<1x16xf32>
    %cst_120 = arith.constant 0.353553385 : f32
    %403 = vector.broadcast %cst_120 : f32 to vector<1x16xf32>
    %404 = arith.mulf %402, %403 : vector<1x16xf32>
    %cst_121 = arith.constant dense<0xFF800000> : vector<1xf32>
    %405 = vector.multi_reduction <maximumf>, %404, %cst_121 [1] : vector<1x16xf32> to vector<1xf32>
    %406 = vector.shape_cast %405 : vector<1xf32> to vector<1x1xf32>
    %407 = vector.broadcast %406 : vector<1x1xf32> to vector<1x16xf32>
    %408 = arith.subf %404, %407 : vector<1x16xf32>
    %409 = math.exp %408 : vector<1x16xf32>
    %cst_122 = arith.constant dense<0.000000e+00> : vector<1xf32>
    %410 = vector.multi_reduction <add>, %409, %cst_122 [1] : vector<1x16xf32> to vector<1xf32>
    %411 = vector.shape_cast %410 : vector<1xf32> to vector<1x1xf32>
    %412 = tpu.reciprocal %411 {approx = true} : vector<1x1xf32> -> vector<1x1xf32>
    %413 = vector.broadcast %412 : vector<1x1xf32> to vector<1x16xf32>
    %414 = arith.mulf %409, %413 : vector<1x16xf32>
    %415 = arith.truncf %414 : vector<1x16xf32> to vector<1x16xbf16>
    %cst_123 = arith.constant dense<0.000000e+00> : vector<1x8xf32>
    %416 = tpu.matmul %415, %401, %cst_123 {dimension_numbers = #tpu.dot_dimension_numbers<[1], [0], [0], [1], [0, 0, 1, 1], [], []>} : vector<1x16xbf16>, vector<16x8xbf16>, vector<1x8xf32> -> vector<1x8xf32>
    %417 = arith.truncf %416 : vector<1x8xf32> to vector<1x8xbf16>
    %418 = vector.extract_strided_slice %1 {offsets = [16, 0], sizes = [8, 32], strides = [1, 1]} : vector<32x32xbf16> to vector<8x32xbf16>
    %cst_124 = arith.constant dense<0.000000e+00> : vector<1x32xf32>
    %419 = tpu.matmul %417, %418, %cst_124 {dimension_numbers = #tpu.dot_dimension_numbers<[1], [0], [0], [1], [0, 0, 1, 1], [], []>} : vector<1x8xbf16>, vector<8x32xbf16>, vector<1x32xf32> -> vector<1x32xf32>
    %420 = arith.addf %395, %419 : vector<1x32xf32>
    %421 = vector.extract_strided_slice %0 {offsets = [0, 24], sizes = [1, 8], strides = [1, 1]} : vector<1x32xf32> to vector<1x8xf32>
    %422 = arith.truncf %421 : vector<1x8xf32> to vector<1x8xbf16>
    %423 = vector.extract_strided_slice %343 {offsets = [0, 24], sizes = [16, 8], strides = [1, 1]} : vector<16x32xf32> to vector<16x8xf32>
    %424 = arith.truncf %423 : vector<16x8xf32> to vector<16x8xbf16>
    %425 = vector.extract_strided_slice %344 {offsets = [0, 24], sizes = [16, 8], strides = [1, 1]} : vector<16x32xf32> to vector<16x8xf32>
    %426 = arith.truncf %425 : vector<16x8xf32> to vector<16x8xbf16>
    %cst_125 = arith.constant dense<0.000000e+00> : vector<1x16xf32>
    %427 = tpu.matmul %422, %424, %cst_125 {dimension_numbers = #tpu.dot_dimension_numbers<[1], [1], [0], [0], [0, 0, 1, 0], [], []>} : vector<1x8xbf16>, vector<16x8xbf16>, vector<1x16xf32> -> vector<1x16xf32>
    %cst_126 = arith.constant 0.353553385 : f32
    %428 = vector.broadcast %cst_126 : f32 to vector<1x16xf32>
    %429 = arith.mulf %427, %428 : vector<1x16xf32>
    %cst_127 = arith.constant dense<0xFF800000> : vector<1xf32>
    %430 = vector.multi_reduction <maximumf>, %429, %cst_127 [1] : vector<1x16xf32> to vector<1xf32>
    %431 = vector.shape_cast %430 : vector<1xf32> to vector<1x1xf32>
    %432 = vector.broadcast %431 : vector<1x1xf32> to vector<1x16xf32>
    %433 = arith.subf %429, %432 : vector<1x16xf32>
    %434 = math.exp %433 : vector<1x16xf32>
    %cst_128 = arith.constant dense<0.000000e+00> : vector<1xf32>
    %435 = vector.multi_reduction <add>, %434, %cst_128 [1] : vector<1x16xf32> to vector<1xf32>
    %436 = vector.shape_cast %435 : vector<1xf32> to vector<1x1xf32>
    %437 = tpu.reciprocal %436 {approx = true} : vector<1x1xf32> -> vector<1x1xf32>
    %438 = vector.broadcast %437 : vector<1x1xf32> to vector<1x16xf32>
    %439 = arith.mulf %434, %438 : vector<1x16xf32>
    %440 = arith.truncf %439 : vector<1x16xf32> to vector<1x16xbf16>
    %cst_129 = arith.constant dense<0.000000e+00> : vector<1x8xf32>
    %441 = tpu.matmul %440, %426, %cst_129 {dimension_numbers = #tpu.dot_dimension_numbers<[1], [0], [0], [1], [0, 0, 1, 1], [], []>} : vector<1x16xbf16>, vector<16x8xbf16>, vector<1x8xf32> -> vector<1x8xf32>
    %442 = arith.truncf %441 : vector<1x8xf32> to vector<1x8xbf16>
    %443 = vector.extract_strided_slice %1 {offsets = [24, 0], sizes = [8, 32], strides = [1, 1]} : vector<32x32xbf16> to vector<8x32xbf16>
    %cst_130 = arith.constant dense<0.000000e+00> : vector<1x32xf32>
    %444 = tpu.matmul %442, %443, %cst_130 {dimension_numbers = #tpu.dot_dimension_numbers<[1], [0], [0], [1], [0, 0, 1, 1], [], []>} : vector<1x8xbf16>, vector<8x32xbf16>, vector<1x32xf32> -> vector<1x32xf32>
    %445 = arith.addf %420, %444 : vector<1x32xf32>
    %c4 = arith.constant 4 : index
    %c0_131 = arith.constant 0 : index
    %c0_132 = arith.constant 0 : index
    %446 = vector.load %arg1[%c4, %c0_131, %c0_132] : memref<8x32x16xf32, #tpu.memory_space<vmem>>, vector<1x32x16xf32>
    %447 = vector.shape_cast %446 : vector<1x32x16xf32> to vector<32x16xf32>
    %448 = arith.truncf %447 : vector<32x16xf32> to vector<32x16xbf16>
    %c0_133 = arith.constant 0 : index
    %c0_134 = arith.constant 0 : index
    %449 = vector.load %arg3[%c0_133, %c0_134] : memref<32x64xbf16, #tpu.memory_space<vmem>>, vector<32x64xbf16>
    %cst_135 = arith.constant dense<0.000000e+00> : vector<16x64xf32>
    %450 = tpu.matmul %448, %449, %cst_135 {dimension_numbers = #tpu.dot_dimension_numbers<[0], [0], [1], [1], [0, 1, 1, 1], [], []>} : vector<32x16xbf16>, vector<32x64xbf16>, vector<16x64xf32> -> vector<16x64xf32>
    %c0_136 = arith.constant 0 : index
    %c0_137 = arith.constant 0 : index
    %451 = vector.load %arg4[%c0_136, %c0_137] : memref<1x64xf32, #tpu.memory_space<vmem>>, vector<1x64xf32>
    %452 = vector.broadcast %451 : vector<1x64xf32> to vector<16x64xf32>
    %453 = arith.addf %450, %452 : vector<16x64xf32>
    %454 = vector.extract_strided_slice %453 {offsets = [0, 0], sizes = [16, 32], strides = [1, 1]} : vector<16x64xf32> to vector<16x32xf32>
    %455 = vector.extract_strided_slice %453 {offsets = [0, 32], sizes = [16, 32], strides = [1, 1]} : vector<16x64xf32> to vector<16x32xf32>
    %cst_138 = arith.constant 0.000000e+00 : f32
    %456 = vector.broadcast %cst_138 : f32 to vector<1x32xf32>
    %457 = vector.extract_strided_slice %0 {offsets = [0, 0], sizes = [1, 8], strides = [1, 1]} : vector<1x32xf32> to vector<1x8xf32>
    %458 = arith.truncf %457 : vector<1x8xf32> to vector<1x8xbf16>
    %459 = vector.extract_strided_slice %454 {offsets = [0, 0], sizes = [16, 8], strides = [1, 1]} : vector<16x32xf32> to vector<16x8xf32>
    %460 = arith.truncf %459 : vector<16x8xf32> to vector<16x8xbf16>
    %461 = vector.extract_strided_slice %455 {offsets = [0, 0], sizes = [16, 8], strides = [1, 1]} : vector<16x32xf32> to vector<16x8xf32>
    %462 = arith.truncf %461 : vector<16x8xf32> to vector<16x8xbf16>
    %cst_139 = arith.constant dense<0.000000e+00> : vector<1x16xf32>
    %463 = tpu.matmul %458, %460, %cst_139 {dimension_numbers = #tpu.dot_dimension_numbers<[1], [1], [0], [0], [0, 0, 1, 0], [], []>} : vector<1x8xbf16>, vector<16x8xbf16>, vector<1x16xf32> -> vector<1x16xf32>
    %cst_140 = arith.constant 0.353553385 : f32
    %464 = vector.broadcast %cst_140 : f32 to vector<1x16xf32>
    %465 = arith.mulf %463, %464 : vector<1x16xf32>
    %cst_141 = arith.constant dense<0xFF800000> : vector<1xf32>
    %466 = vector.multi_reduction <maximumf>, %465, %cst_141 [1] : vector<1x16xf32> to vector<1xf32>
    %467 = vector.shape_cast %466 : vector<1xf32> to vector<1x1xf32>
    %468 = vector.broadcast %467 : vector<1x1xf32> to vector<1x16xf32>
    %469 = arith.subf %465, %468 : vector<1x16xf32>
    %470 = math.exp %469 : vector<1x16xf32>
    %cst_142 = arith.constant dense<0.000000e+00> : vector<1xf32>
    %471 = vector.multi_reduction <add>, %470, %cst_142 [1] : vector<1x16xf32> to vector<1xf32>
    %472 = vector.shape_cast %471 : vector<1xf32> to vector<1x1xf32>
    %473 = tpu.reciprocal %472 {approx = true} : vector<1x1xf32> -> vector<1x1xf32>
    %474 = vector.broadcast %473 : vector<1x1xf32> to vector<1x16xf32>
    %475 = arith.mulf %470, %474 : vector<1x16xf32>
    %476 = arith.truncf %475 : vector<1x16xf32> to vector<1x16xbf16>
    %cst_143 = arith.constant dense<0.000000e+00> : vector<1x8xf32>
    %477 = tpu.matmul %476, %462, %cst_143 {dimension_numbers = #tpu.dot_dimension_numbers<[1], [0], [0], [1], [0, 0, 1, 1], [], []>} : vector<1x16xbf16>, vector<16x8xbf16>, vector<1x8xf32> -> vector<1x8xf32>
    %478 = arith.truncf %477 : vector<1x8xf32> to vector<1x8xbf16>
    %479 = vector.extract_strided_slice %1 {offsets = [0, 0], sizes = [8, 32], strides = [1, 1]} : vector<32x32xbf16> to vector<8x32xbf16>
    %cst_144 = arith.constant dense<0.000000e+00> : vector<1x32xf32>
    %480 = tpu.matmul %478, %479, %cst_144 {dimension_numbers = #tpu.dot_dimension_numbers<[1], [0], [0], [1], [0, 0, 1, 1], [], []>} : vector<1x8xbf16>, vector<8x32xbf16>, vector<1x32xf32> -> vector<1x32xf32>
    %481 = arith.addf %456, %480 : vector<1x32xf32>
    %482 = vector.extract_strided_slice %0 {offsets = [0, 8], sizes = [1, 8], strides = [1, 1]} : vector<1x32xf32> to vector<1x8xf32>
    %483 = arith.truncf %482 : vector<1x8xf32> to vector<1x8xbf16>
    %484 = vector.extract_strided_slice %454 {offsets = [0, 8], sizes = [16, 8], strides = [1, 1]} : vector<16x32xf32> to vector<16x8xf32>
    %485 = arith.truncf %484 : vector<16x8xf32> to vector<16x8xbf16>
    %486 = vector.extract_strided_slice %455 {offsets = [0, 8], sizes = [16, 8], strides = [1, 1]} : vector<16x32xf32> to vector<16x8xf32>
    %487 = arith.truncf %486 : vector<16x8xf32> to vector<16x8xbf16>
    %cst_145 = arith.constant dense<0.000000e+00> : vector<1x16xf32>
    %488 = tpu.matmul %483, %485, %cst_145 {dimension_numbers = #tpu.dot_dimension_numbers<[1], [1], [0], [0], [0, 0, 1, 0], [], []>} : vector<1x8xbf16>, vector<16x8xbf16>, vector<1x16xf32> -> vector<1x16xf32>
    %cst_146 = arith.constant 0.353553385 : f32
    %489 = vector.broadcast %cst_146 : f32 to vector<1x16xf32>
    %490 = arith.mulf %488, %489 : vector<1x16xf32>
    %cst_147 = arith.constant dense<0xFF800000> : vector<1xf32>
    %491 = vector.multi_reduction <maximumf>, %490, %cst_147 [1] : vector<1x16xf32> to vector<1xf32>
    %492 = vector.shape_cast %491 : vector<1xf32> to vector<1x1xf32>
    %493 = vector.broadcast %492 : vector<1x1xf32> to vector<1x16xf32>
    %494 = arith.subf %490, %493 : vector<1x16xf32>
    %495 = math.exp %494 : vector<1x16xf32>
    %cst_148 = arith.constant dense<0.000000e+00> : vector<1xf32>
    %496 = vector.multi_reduction <add>, %495, %cst_148 [1] : vector<1x16xf32> to vector<1xf32>
    %497 = vector.shape_cast %496 : vector<1xf32> to vector<1x1xf32>
    %498 = tpu.reciprocal %497 {approx = true} : vector<1x1xf32> -> vector<1x1xf32>
    %499 = vector.broadcast %498 : vector<1x1xf32> to vector<1x16xf32>
    %500 = arith.mulf %495, %499 : vector<1x16xf32>
    %501 = arith.truncf %500 : vector<1x16xf32> to vector<1x16xbf16>
    %cst_149 = arith.constant dense<0.000000e+00> : vector<1x8xf32>
    %502 = tpu.matmul %501, %487, %cst_149 {dimension_numbers = #tpu.dot_dimension_numbers<[1], [0], [0], [1], [0, 0, 1, 1], [], []>} : vector<1x16xbf16>, vector<16x8xbf16>, vector<1x8xf32> -> vector<1x8xf32>
    %503 = arith.truncf %502 : vector<1x8xf32> to vector<1x8xbf16>
    %504 = vector.extract_strided_slice %1 {offsets = [8, 0], sizes = [8, 32], strides = [1, 1]} : vector<32x32xbf16> to vector<8x32xbf16>
    %cst_150 = arith.constant dense<0.000000e+00> : vector<1x32xf32>
    %505 = tpu.matmul %503, %504, %cst_150 {dimension_numbers = #tpu.dot_dimension_numbers<[1], [0], [0], [1], [0, 0, 1, 1], [], []>} : vector<1x8xbf16>, vector<8x32xbf16>, vector<1x32xf32> -> vector<1x32xf32>
    %506 = arith.addf %481, %505 : vector<1x32xf32>
    %507 = vector.extract_strided_slice %0 {offsets = [0, 16], sizes = [1, 8], strides = [1, 1]} : vector<1x32xf32> to vector<1x8xf32>
    %508 = arith.truncf %507 : vector<1x8xf32> to vector<1x8xbf16>
    %509 = vector.extract_strided_slice %454 {offsets = [0, 16], sizes = [16, 8], strides = [1, 1]} : vector<16x32xf32> to vector<16x8xf32>
    %510 = arith.truncf %509 : vector<16x8xf32> to vector<16x8xbf16>
    %511 = vector.extract_strided_slice %455 {offsets = [0, 16], sizes = [16, 8], strides = [1, 1]} : vector<16x32xf32> to vector<16x8xf32>
    %512 = arith.truncf %511 : vector<16x8xf32> to vector<16x8xbf16>
    %cst_151 = arith.constant dense<0.000000e+00> : vector<1x16xf32>
    %513 = tpu.matmul %508, %510, %cst_151 {dimension_numbers = #tpu.dot_dimension_numbers<[1], [1], [0], [0], [0, 0, 1, 0], [], []>} : vector<1x8xbf16>, vector<16x8xbf16>, vector<1x16xf32> -> vector<1x16xf32>
    %cst_152 = arith.constant 0.353553385 : f32
    %514 = vector.broadcast %cst_152 : f32 to vector<1x16xf32>
    %515 = arith.mulf %513, %514 : vector<1x16xf32>
    %cst_153 = arith.constant dense<0xFF800000> : vector<1xf32>
    %516 = vector.multi_reduction <maximumf>, %515, %cst_153 [1] : vector<1x16xf32> to vector<1xf32>
    %517 = vector.shape_cast %516 : vector<1xf32> to vector<1x1xf32>
    %518 = vector.broadcast %517 : vector<1x1xf32> to vector<1x16xf32>
    %519 = arith.subf %515, %518 : vector<1x16xf32>
    %520 = math.exp %519 : vector<1x16xf32>
    %cst_154 = arith.constant dense<0.000000e+00> : vector<1xf32>
    %521 = vector.multi_reduction <add>, %520, %cst_154 [1] : vector<1x16xf32> to vector<1xf32>
    %522 = vector.shape_cast %521 : vector<1xf32> to vector<1x1xf32>
    %523 = tpu.reciprocal %522 {approx = true} : vector<1x1xf32> -> vector<1x1xf32>
    %524 = vector.broadcast %523 : vector<1x1xf32> to vector<1x16xf32>
    %525 = arith.mulf %520, %524 : vector<1x16xf32>
    %526 = arith.truncf %525 : vector<1x16xf32> to vector<1x16xbf16>
    %cst_155 = arith.constant dense<0.000000e+00> : vector<1x8xf32>
    %527 = tpu.matmul %526, %512, %cst_155 {dimension_numbers = #tpu.dot_dimension_numbers<[1], [0], [0], [1], [0, 0, 1, 1], [], []>} : vector<1x16xbf16>, vector<16x8xbf16>, vector<1x8xf32> -> vector<1x8xf32>
    %528 = arith.truncf %527 : vector<1x8xf32> to vector<1x8xbf16>
    %529 = vector.extract_strided_slice %1 {offsets = [16, 0], sizes = [8, 32], strides = [1, 1]} : vector<32x32xbf16> to vector<8x32xbf16>
    %cst_156 = arith.constant dense<0.000000e+00> : vector<1x32xf32>
    %530 = tpu.matmul %528, %529, %cst_156 {dimension_numbers = #tpu.dot_dimension_numbers<[1], [0], [0], [1], [0, 0, 1, 1], [], []>} : vector<1x8xbf16>, vector<8x32xbf16>, vector<1x32xf32> -> vector<1x32xf32>
    %531 = arith.addf %506, %530 : vector<1x32xf32>
    %532 = vector.extract_strided_slice %0 {offsets = [0, 24], sizes = [1, 8], strides = [1, 1]} : vector<1x32xf32> to vector<1x8xf32>
    %533 = arith.truncf %532 : vector<1x8xf32> to vector<1x8xbf16>
    %534 = vector.extract_strided_slice %454 {offsets = [0, 24], sizes = [16, 8], strides = [1, 1]} : vector<16x32xf32> to vector<16x8xf32>
    %535 = arith.truncf %534 : vector<16x8xf32> to vector<16x8xbf16>
    %536 = vector.extract_strided_slice %455 {offsets = [0, 24], sizes = [16, 8], strides = [1, 1]} : vector<16x32xf32> to vector<16x8xf32>
    %537 = arith.truncf %536 : vector<16x8xf32> to vector<16x8xbf16>
    %cst_157 = arith.constant dense<0.000000e+00> : vector<1x16xf32>
    %538 = tpu.matmul %533, %535, %cst_157 {dimension_numbers = #tpu.dot_dimension_numbers<[1], [1], [0], [0], [0, 0, 1, 0], [], []>} : vector<1x8xbf16>, vector<16x8xbf16>, vector<1x16xf32> -> vector<1x16xf32>
    %cst_158 = arith.constant 0.353553385 : f32
    %539 = vector.broadcast %cst_158 : f32 to vector<1x16xf32>
    %540 = arith.mulf %538, %539 : vector<1x16xf32>
    %cst_159 = arith.constant dense<0xFF800000> : vector<1xf32>
    %541 = vector.multi_reduction <maximumf>, %540, %cst_159 [1] : vector<1x16xf32> to vector<1xf32>
    %542 = vector.shape_cast %541 : vector<1xf32> to vector<1x1xf32>
    %543 = vector.broadcast %542 : vector<1x1xf32> to vector<1x16xf32>
    %544 = arith.subf %540, %543 : vector<1x16xf32>
    %545 = math.exp %544 : vector<1x16xf32>
    %cst_160 = arith.constant dense<0.000000e+00> : vector<1xf32>
    %546 = vector.multi_reduction <add>, %545, %cst_160 [1] : vector<1x16xf32> to vector<1xf32>
    %547 = vector.shape_cast %546 : vector<1xf32> to vector<1x1xf32>
    %548 = tpu.reciprocal %547 {approx = true} : vector<1x1xf32> -> vector<1x1xf32>
    %549 = vector.broadcast %548 : vector<1x1xf32> to vector<1x16xf32>
    %550 = arith.mulf %545, %549 : vector<1x16xf32>
    %551 = arith.truncf %550 : vector<1x16xf32> to vector<1x16xbf16>
    %cst_161 = arith.constant dense<0.000000e+00> : vector<1x8xf32>
    %552 = tpu.matmul %551, %537, %cst_161 {dimension_numbers = #tpu.dot_dimension_numbers<[1], [0], [0], [1], [0, 0, 1, 1], [], []>} : vector<1x16xbf16>, vector<16x8xbf16>, vector<1x8xf32> -> vector<1x8xf32>
    %553 = arith.truncf %552 : vector<1x8xf32> to vector<1x8xbf16>
    %554 = vector.extract_strided_slice %1 {offsets = [24, 0], sizes = [8, 32], strides = [1, 1]} : vector<32x32xbf16> to vector<8x32xbf16>
    %cst_162 = arith.constant dense<0.000000e+00> : vector<1x32xf32>
    %555 = tpu.matmul %553, %554, %cst_162 {dimension_numbers = #tpu.dot_dimension_numbers<[1], [0], [0], [1], [0, 0, 1, 1], [], []>} : vector<1x8xbf16>, vector<8x32xbf16>, vector<1x32xf32> -> vector<1x32xf32>
    %556 = arith.addf %531, %555 : vector<1x32xf32>
    %c5 = arith.constant 5 : index
    %c0_163 = arith.constant 0 : index
    %c0_164 = arith.constant 0 : index
    %557 = vector.load %arg1[%c5, %c0_163, %c0_164] : memref<8x32x16xf32, #tpu.memory_space<vmem>>, vector<1x32x16xf32>
    %558 = vector.shape_cast %557 : vector<1x32x16xf32> to vector<32x16xf32>
    %559 = arith.truncf %558 : vector<32x16xf32> to vector<32x16xbf16>
    %c0_165 = arith.constant 0 : index
    %c0_166 = arith.constant 0 : index
    %560 = vector.load %arg3[%c0_165, %c0_166] : memref<32x64xbf16, #tpu.memory_space<vmem>>, vector<32x64xbf16>
    %cst_167 = arith.constant dense<0.000000e+00> : vector<16x64xf32>
    %561 = tpu.matmul %559, %560, %cst_167 {dimension_numbers = #tpu.dot_dimension_numbers<[0], [0], [1], [1], [0, 1, 1, 1], [], []>} : vector<32x16xbf16>, vector<32x64xbf16>, vector<16x64xf32> -> vector<16x64xf32>
    %c0_168 = arith.constant 0 : index
    %c0_169 = arith.constant 0 : index
    %562 = vector.load %arg4[%c0_168, %c0_169] : memref<1x64xf32, #tpu.memory_space<vmem>>, vector<1x64xf32>
    %563 = vector.broadcast %562 : vector<1x64xf32> to vector<16x64xf32>
    %564 = arith.addf %561, %563 : vector<16x64xf32>
    %565 = vector.extract_strided_slice %564 {offsets = [0, 0], sizes = [16, 32], strides = [1, 1]} : vector<16x64xf32> to vector<16x32xf32>
    %566 = vector.extract_strided_slice %564 {offsets = [0, 32], sizes = [16, 32], strides = [1, 1]} : vector<16x64xf32> to vector<16x32xf32>
    %cst_170 = arith.constant 0.000000e+00 : f32
    %567 = vector.broadcast %cst_170 : f32 to vector<1x32xf32>
    %568 = vector.extract_strided_slice %0 {offsets = [0, 0], sizes = [1, 8], strides = [1, 1]} : vector<1x32xf32> to vector<1x8xf32>
    %569 = arith.truncf %568 : vector<1x8xf32> to vector<1x8xbf16>
    %570 = vector.extract_strided_slice %565 {offsets = [0, 0], sizes = [16, 8], strides = [1, 1]} : vector<16x32xf32> to vector<16x8xf32>
    %571 = arith.truncf %570 : vector<16x8xf32> to vector<16x8xbf16>
    %572 = vector.extract_strided_slice %566 {offsets = [0, 0], sizes = [16, 8], strides = [1, 1]} : vector<16x32xf32> to vector<16x8xf32>
    %573 = arith.truncf %572 : vector<16x8xf32> to vector<16x8xbf16>
    %cst_171 = arith.constant dense<0.000000e+00> : vector<1x16xf32>
    %574 = tpu.matmul %569, %571, %cst_171 {dimension_numbers = #tpu.dot_dimension_numbers<[1], [1], [0], [0], [0, 0, 1, 0], [], []>} : vector<1x8xbf16>, vector<16x8xbf16>, vector<1x16xf32> -> vector<1x16xf32>
    %cst_172 = arith.constant 0.353553385 : f32
    %575 = vector.broadcast %cst_172 : f32 to vector<1x16xf32>
    %576 = arith.mulf %574, %575 : vector<1x16xf32>
    %cst_173 = arith.constant dense<0xFF800000> : vector<1xf32>
    %577 = vector.multi_reduction <maximumf>, %576, %cst_173 [1] : vector<1x16xf32> to vector<1xf32>
    %578 = vector.shape_cast %577 : vector<1xf32> to vector<1x1xf32>
    %579 = vector.broadcast %578 : vector<1x1xf32> to vector<1x16xf32>
    %580 = arith.subf %576, %579 : vector<1x16xf32>
    %581 = math.exp %580 : vector<1x16xf32>
    %cst_174 = arith.constant dense<0.000000e+00> : vector<1xf32>
    %582 = vector.multi_reduction <add>, %581, %cst_174 [1] : vector<1x16xf32> to vector<1xf32>
    %583 = vector.shape_cast %582 : vector<1xf32> to vector<1x1xf32>
    %584 = tpu.reciprocal %583 {approx = true} : vector<1x1xf32> -> vector<1x1xf32>
    %585 = vector.broadcast %584 : vector<1x1xf32> to vector<1x16xf32>
    %586 = arith.mulf %581, %585 : vector<1x16xf32>
    %587 = arith.truncf %586 : vector<1x16xf32> to vector<1x16xbf16>
    %cst_175 = arith.constant dense<0.000000e+00> : vector<1x8xf32>
    %588 = tpu.matmul %587, %573, %cst_175 {dimension_numbers = #tpu.dot_dimension_numbers<[1], [0], [0], [1], [0, 0, 1, 1], [], []>} : vector<1x16xbf16>, vector<16x8xbf16>, vector<1x8xf32> -> vector<1x8xf32>
    %589 = arith.truncf %588 : vector<1x8xf32> to vector<1x8xbf16>
    %590 = vector.extract_strided_slice %1 {offsets = [0, 0], sizes = [8, 32], strides = [1, 1]} : vector<32x32xbf16> to vector<8x32xbf16>
    %cst_176 = arith.constant dense<0.000000e+00> : vector<1x32xf32>
    %591 = tpu.matmul %589, %590, %cst_176 {dimension_numbers = #tpu.dot_dimension_numbers<[1], [0], [0], [1], [0, 0, 1, 1], [], []>} : vector<1x8xbf16>, vector<8x32xbf16>, vector<1x32xf32> -> vector<1x32xf32>
    %592 = arith.addf %567, %591 : vector<1x32xf32>
    %593 = vector.extract_strided_slice %0 {offsets = [0, 8], sizes = [1, 8], strides = [1, 1]} : vector<1x32xf32> to vector<1x8xf32>
    %594 = arith.truncf %593 : vector<1x8xf32> to vector<1x8xbf16>
    %595 = vector.extract_strided_slice %565 {offsets = [0, 8], sizes = [16, 8], strides = [1, 1]} : vector<16x32xf32> to vector<16x8xf32>
    %596 = arith.truncf %595 : vector<16x8xf32> to vector<16x8xbf16>
    %597 = vector.extract_strided_slice %566 {offsets = [0, 8], sizes = [16, 8], strides = [1, 1]} : vector<16x32xf32> to vector<16x8xf32>
    %598 = arith.truncf %597 : vector<16x8xf32> to vector<16x8xbf16>
    %cst_177 = arith.constant dense<0.000000e+00> : vector<1x16xf32>
    %599 = tpu.matmul %594, %596, %cst_177 {dimension_numbers = #tpu.dot_dimension_numbers<[1], [1], [0], [0], [0, 0, 1, 0], [], []>} : vector<1x8xbf16>, vector<16x8xbf16>, vector<1x16xf32> -> vector<1x16xf32>
    %cst_178 = arith.constant 0.353553385 : f32
    %600 = vector.broadcast %cst_178 : f32 to vector<1x16xf32>
    %601 = arith.mulf %599, %600 : vector<1x16xf32>
    %cst_179 = arith.constant dense<0xFF800000> : vector<1xf32>
    %602 = vector.multi_reduction <maximumf>, %601, %cst_179 [1] : vector<1x16xf32> to vector<1xf32>
    %603 = vector.shape_cast %602 : vector<1xf32> to vector<1x1xf32>
    %604 = vector.broadcast %603 : vector<1x1xf32> to vector<1x16xf32>
    %605 = arith.subf %601, %604 : vector<1x16xf32>
    %606 = math.exp %605 : vector<1x16xf32>
    %cst_180 = arith.constant dense<0.000000e+00> : vector<1xf32>
    %607 = vector.multi_reduction <add>, %606, %cst_180 [1] : vector<1x16xf32> to vector<1xf32>
    %608 = vector.shape_cast %607 : vector<1xf32> to vector<1x1xf32>
    %609 = tpu.reciprocal %608 {approx = true} : vector<1x1xf32> -> vector<1x1xf32>
    %610 = vector.broadcast %609 : vector<1x1xf32> to vector<1x16xf32>
    %611 = arith.mulf %606, %610 : vector<1x16xf32>
    %612 = arith.truncf %611 : vector<1x16xf32> to vector<1x16xbf16>
    %cst_181 = arith.constant dense<0.000000e+00> : vector<1x8xf32>
    %613 = tpu.matmul %612, %598, %cst_181 {dimension_numbers = #tpu.dot_dimension_numbers<[1], [0], [0], [1], [0, 0, 1, 1], [], []>} : vector<1x16xbf16>, vector<16x8xbf16>, vector<1x8xf32> -> vector<1x8xf32>
    %614 = arith.truncf %613 : vector<1x8xf32> to vector<1x8xbf16>
    %615 = vector.extract_strided_slice %1 {offsets = [8, 0], sizes = [8, 32], strides = [1, 1]} : vector<32x32xbf16> to vector<8x32xbf16>
    %cst_182 = arith.constant dense<0.000000e+00> : vector<1x32xf32>
    %616 = tpu.matmul %614, %615, %cst_182 {dimension_numbers = #tpu.dot_dimension_numbers<[1], [0], [0], [1], [0, 0, 1, 1], [], []>} : vector<1x8xbf16>, vector<8x32xbf16>, vector<1x32xf32> -> vector<1x32xf32>
    %617 = arith.addf %592, %616 : vector<1x32xf32>
    %618 = vector.extract_strided_slice %0 {offsets = [0, 16], sizes = [1, 8], strides = [1, 1]} : vector<1x32xf32> to vector<1x8xf32>
    %619 = arith.truncf %618 : vector<1x8xf32> to vector<1x8xbf16>
    %620 = vector.extract_strided_slice %565 {offsets = [0, 16], sizes = [16, 8], strides = [1, 1]} : vector<16x32xf32> to vector<16x8xf32>
    %621 = arith.truncf %620 : vector<16x8xf32> to vector<16x8xbf16>
    %622 = vector.extract_strided_slice %566 {offsets = [0, 16], sizes = [16, 8], strides = [1, 1]} : vector<16x32xf32> to vector<16x8xf32>
    %623 = arith.truncf %622 : vector<16x8xf32> to vector<16x8xbf16>
    %cst_183 = arith.constant dense<0.000000e+00> : vector<1x16xf32>
    %624 = tpu.matmul %619, %621, %cst_183 {dimension_numbers = #tpu.dot_dimension_numbers<[1], [1], [0], [0], [0, 0, 1, 0], [], []>} : vector<1x8xbf16>, vector<16x8xbf16>, vector<1x16xf32> -> vector<1x16xf32>
    %cst_184 = arith.constant 0.353553385 : f32
    %625 = vector.broadcast %cst_184 : f32 to vector<1x16xf32>
    %626 = arith.mulf %624, %625 : vector<1x16xf32>
    %cst_185 = arith.constant dense<0xFF800000> : vector<1xf32>
    %627 = vector.multi_reduction <maximumf>, %626, %cst_185 [1] : vector<1x16xf32> to vector<1xf32>
    %628 = vector.shape_cast %627 : vector<1xf32> to vector<1x1xf32>
    %629 = vector.broadcast %628 : vector<1x1xf32> to vector<1x16xf32>
    %630 = arith.subf %626, %629 : vector<1x16xf32>
    %631 = math.exp %630 : vector<1x16xf32>
    %cst_186 = arith.constant dense<0.000000e+00> : vector<1xf32>
    %632 = vector.multi_reduction <add>, %631, %cst_186 [1] : vector<1x16xf32> to vector<1xf32>
    %633 = vector.shape_cast %632 : vector<1xf32> to vector<1x1xf32>
    %634 = tpu.reciprocal %633 {approx = true} : vector<1x1xf32> -> vector<1x1xf32>
    %635 = vector.broadcast %634 : vector<1x1xf32> to vector<1x16xf32>
    %636 = arith.mulf %631, %635 : vector<1x16xf32>
    %637 = arith.truncf %636 : vector<1x16xf32> to vector<1x16xbf16>
    %cst_187 = arith.constant dense<0.000000e+00> : vector<1x8xf32>
    %638 = tpu.matmul %637, %623, %cst_187 {dimension_numbers = #tpu.dot_dimension_numbers<[1], [0], [0], [1], [0, 0, 1, 1], [], []>} : vector<1x16xbf16>, vector<16x8xbf16>, vector<1x8xf32> -> vector<1x8xf32>
    %639 = arith.truncf %638 : vector<1x8xf32> to vector<1x8xbf16>
    %640 = vector.extract_strided_slice %1 {offsets = [16, 0], sizes = [8, 32], strides = [1, 1]} : vector<32x32xbf16> to vector<8x32xbf16>
    %cst_188 = arith.constant dense<0.000000e+00> : vector<1x32xf32>
    %641 = tpu.matmul %639, %640, %cst_188 {dimension_numbers = #tpu.dot_dimension_numbers<[1], [0], [0], [1], [0, 0, 1, 1], [], []>} : vector<1x8xbf16>, vector<8x32xbf16>, vector<1x32xf32> -> vector<1x32xf32>
    %642 = arith.addf %617, %641 : vector<1x32xf32>
    %643 = vector.extract_strided_slice %0 {offsets = [0, 24], sizes = [1, 8], strides = [1, 1]} : vector<1x32xf32> to vector<1x8xf32>
    %644 = arith.truncf %643 : vector<1x8xf32> to vector<1x8xbf16>
    %645 = vector.extract_strided_slice %565 {offsets = [0, 24], sizes = [16, 8], strides = [1, 1]} : vector<16x32xf32> to vector<16x8xf32>
    %646 = arith.truncf %645 : vector<16x8xf32> to vector<16x8xbf16>
    %647 = vector.extract_strided_slice %566 {offsets = [0, 24], sizes = [16, 8], strides = [1, 1]} : vector<16x32xf32> to vector<16x8xf32>
    %648 = arith.truncf %647 : vector<16x8xf32> to vector<16x8xbf16>
    %cst_189 = arith.constant dense<0.000000e+00> : vector<1x16xf32>
    %649 = tpu.matmul %644, %646, %cst_189 {dimension_numbers = #tpu.dot_dimension_numbers<[1], [1], [0], [0], [0, 0, 1, 0], [], []>} : vector<1x8xbf16>, vector<16x8xbf16>, vector<1x16xf32> -> vector<1x16xf32>
    %cst_190 = arith.constant 0.353553385 : f32
    %650 = vector.broadcast %cst_190 : f32 to vector<1x16xf32>
    %651 = arith.mulf %649, %650 : vector<1x16xf32>
    %cst_191 = arith.constant dense<0xFF800000> : vector<1xf32>
    %652 = vector.multi_reduction <maximumf>, %651, %cst_191 [1] : vector<1x16xf32> to vector<1xf32>
    %653 = vector.shape_cast %652 : vector<1xf32> to vector<1x1xf32>
    %654 = vector.broadcast %653 : vector<1x1xf32> to vector<1x16xf32>
    %655 = arith.subf %651, %654 : vector<1x16xf32>
    %656 = math.exp %655 : vector<1x16xf32>
    %cst_192 = arith.constant dense<0.000000e+00> : vector<1xf32>
    %657 = vector.multi_reduction <add>, %656, %cst_192 [1] : vector<1x16xf32> to vector<1xf32>
    %658 = vector.shape_cast %657 : vector<1xf32> to vector<1x1xf32>
    %659 = tpu.reciprocal %658 {approx = true} : vector<1x1xf32> -> vector<1x1xf32>
    %660 = vector.broadcast %659 : vector<1x1xf32> to vector<1x16xf32>
    %661 = arith.mulf %656, %660 : vector<1x16xf32>
    %662 = arith.truncf %661 : vector<1x16xf32> to vector<1x16xbf16>
    %cst_193 = arith.constant dense<0.000000e+00> : vector<1x8xf32>
    %663 = tpu.matmul %662, %648, %cst_193 {dimension_numbers = #tpu.dot_dimension_numbers<[1], [0], [0], [1], [0, 0, 1, 1], [], []>} : vector<1x16xbf16>, vector<16x8xbf16>, vector<1x8xf32> -> vector<1x8xf32>
    %664 = arith.truncf %663 : vector<1x8xf32> to vector<1x8xbf16>
    %665 = vector.extract_strided_slice %1 {offsets = [24, 0], sizes = [8, 32], strides = [1, 1]} : vector<32x32xbf16> to vector<8x32xbf16>
    %cst_194 = arith.constant dense<0.000000e+00> : vector<1x32xf32>
    %666 = tpu.matmul %664, %665, %cst_194 {dimension_numbers = #tpu.dot_dimension_numbers<[1], [0], [0], [1], [0, 0, 1, 1], [], []>} : vector<1x8xbf16>, vector<8x32xbf16>, vector<1x32xf32> -> vector<1x32xf32>
    %667 = arith.addf %642, %666 : vector<1x32xf32>
    %c6 = arith.constant 6 : index
    %c0_195 = arith.constant 0 : index
    %c0_196 = arith.constant 0 : index
    %668 = vector.load %arg1[%c6, %c0_195, %c0_196] : memref<8x32x16xf32, #tpu.memory_space<vmem>>, vector<1x32x16xf32>
    %669 = vector.shape_cast %668 : vector<1x32x16xf32> to vector<32x16xf32>
    %670 = arith.truncf %669 : vector<32x16xf32> to vector<32x16xbf16>
    %c0_197 = arith.constant 0 : index
    %c0_198 = arith.constant 0 : index
    %671 = vector.load %arg3[%c0_197, %c0_198] : memref<32x64xbf16, #tpu.memory_space<vmem>>, vector<32x64xbf16>
    %cst_199 = arith.constant dense<0.000000e+00> : vector<16x64xf32>
    %672 = tpu.matmul %670, %671, %cst_199 {dimension_numbers = #tpu.dot_dimension_numbers<[0], [0], [1], [1], [0, 1, 1, 1], [], []>} : vector<32x16xbf16>, vector<32x64xbf16>, vector<16x64xf32> -> vector<16x64xf32>
    %c0_200 = arith.constant 0 : index
    %c0_201 = arith.constant 0 : index
    %673 = vector.load %arg4[%c0_200, %c0_201] : memref<1x64xf32, #tpu.memory_space<vmem>>, vector<1x64xf32>
    %674 = vector.broadcast %673 : vector<1x64xf32> to vector<16x64xf32>
    %675 = arith.addf %672, %674 : vector<16x64xf32>
    %676 = vector.extract_strided_slice %675 {offsets = [0, 0], sizes = [16, 32], strides = [1, 1]} : vector<16x64xf32> to vector<16x32xf32>
    %677 = vector.extract_strided_slice %675 {offsets = [0, 32], sizes = [16, 32], strides = [1, 1]} : vector<16x64xf32> to vector<16x32xf32>
    %cst_202 = arith.constant 0.000000e+00 : f32
    %678 = vector.broadcast %cst_202 : f32 to vector<1x32xf32>
    %679 = vector.extract_strided_slice %0 {offsets = [0, 0], sizes = [1, 8], strides = [1, 1]} : vector<1x32xf32> to vector<1x8xf32>
    %680 = arith.truncf %679 : vector<1x8xf32> to vector<1x8xbf16>
    %681 = vector.extract_strided_slice %676 {offsets = [0, 0], sizes = [16, 8], strides = [1, 1]} : vector<16x32xf32> to vector<16x8xf32>
    %682 = arith.truncf %681 : vector<16x8xf32> to vector<16x8xbf16>
    %683 = vector.extract_strided_slice %677 {offsets = [0, 0], sizes = [16, 8], strides = [1, 1]} : vector<16x32xf32> to vector<16x8xf32>
    %684 = arith.truncf %683 : vector<16x8xf32> to vector<16x8xbf16>
    %cst_203 = arith.constant dense<0.000000e+00> : vector<1x16xf32>
    %685 = tpu.matmul %680, %682, %cst_203 {dimension_numbers = #tpu.dot_dimension_numbers<[1], [1], [0], [0], [0, 0, 1, 0], [], []>} : vector<1x8xbf16>, vector<16x8xbf16>, vector<1x16xf32> -> vector<1x16xf32>
    %cst_204 = arith.constant 0.353553385 : f32
    %686 = vector.broadcast %cst_204 : f32 to vector<1x16xf32>
    %687 = arith.mulf %685, %686 : vector<1x16xf32>
    %cst_205 = arith.constant dense<0xFF800000> : vector<1xf32>
    %688 = vector.multi_reduction <maximumf>, %687, %cst_205 [1] : vector<1x16xf32> to vector<1xf32>
    %689 = vector.shape_cast %688 : vector<1xf32> to vector<1x1xf32>
    %690 = vector.broadcast %689 : vector<1x1xf32> to vector<1x16xf32>
    %691 = arith.subf %687, %690 : vector<1x16xf32>
    %692 = math.exp %691 : vector<1x16xf32>
    %cst_206 = arith.constant dense<0.000000e+00> : vector<1xf32>
    %693 = vector.multi_reduction <add>, %692, %cst_206 [1] : vector<1x16xf32> to vector<1xf32>
    %694 = vector.shape_cast %693 : vector<1xf32> to vector<1x1xf32>
    %695 = tpu.reciprocal %694 {approx = true} : vector<1x1xf32> -> vector<1x1xf32>
    %696 = vector.broadcast %695 : vector<1x1xf32> to vector<1x16xf32>
    %697 = arith.mulf %692, %696 : vector<1x16xf32>
    %698 = arith.truncf %697 : vector<1x16xf32> to vector<1x16xbf16>
    %cst_207 = arith.constant dense<0.000000e+00> : vector<1x8xf32>
    %699 = tpu.matmul %698, %684, %cst_207 {dimension_numbers = #tpu.dot_dimension_numbers<[1], [0], [0], [1], [0, 0, 1, 1], [], []>} : vector<1x16xbf16>, vector<16x8xbf16>, vector<1x8xf32> -> vector<1x8xf32>
    %700 = arith.truncf %699 : vector<1x8xf32> to vector<1x8xbf16>
    %701 = vector.extract_strided_slice %1 {offsets = [0, 0], sizes = [8, 32], strides = [1, 1]} : vector<32x32xbf16> to vector<8x32xbf16>
    %cst_208 = arith.constant dense<0.000000e+00> : vector<1x32xf32>
    %702 = tpu.matmul %700, %701, %cst_208 {dimension_numbers = #tpu.dot_dimension_numbers<[1], [0], [0], [1], [0, 0, 1, 1], [], []>} : vector<1x8xbf16>, vector<8x32xbf16>, vector<1x32xf32> -> vector<1x32xf32>
    %703 = arith.addf %678, %702 : vector<1x32xf32>
    %704 = vector.extract_strided_slice %0 {offsets = [0, 8], sizes = [1, 8], strides = [1, 1]} : vector<1x32xf32> to vector<1x8xf32>
    %705 = arith.truncf %704 : vector<1x8xf32> to vector<1x8xbf16>
    %706 = vector.extract_strided_slice %676 {offsets = [0, 8], sizes = [16, 8], strides = [1, 1]} : vector<16x32xf32> to vector<16x8xf32>
    %707 = arith.truncf %706 : vector<16x8xf32> to vector<16x8xbf16>
    %708 = vector.extract_strided_slice %677 {offsets = [0, 8], sizes = [16, 8], strides = [1, 1]} : vector<16x32xf32> to vector<16x8xf32>
    %709 = arith.truncf %708 : vector<16x8xf32> to vector<16x8xbf16>
    %cst_209 = arith.constant dense<0.000000e+00> : vector<1x16xf32>
    %710 = tpu.matmul %705, %707, %cst_209 {dimension_numbers = #tpu.dot_dimension_numbers<[1], [1], [0], [0], [0, 0, 1, 0], [], []>} : vector<1x8xbf16>, vector<16x8xbf16>, vector<1x16xf32> -> vector<1x16xf32>
    %cst_210 = arith.constant 0.353553385 : f32
    %711 = vector.broadcast %cst_210 : f32 to vector<1x16xf32>
    %712 = arith.mulf %710, %711 : vector<1x16xf32>
    %cst_211 = arith.constant dense<0xFF800000> : vector<1xf32>
    %713 = vector.multi_reduction <maximumf>, %712, %cst_211 [1] : vector<1x16xf32> to vector<1xf32>
    %714 = vector.shape_cast %713 : vector<1xf32> to vector<1x1xf32>
    %715 = vector.broadcast %714 : vector<1x1xf32> to vector<1x16xf32>
    %716 = arith.subf %712, %715 : vector<1x16xf32>
    %717 = math.exp %716 : vector<1x16xf32>
    %cst_212 = arith.constant dense<0.000000e+00> : vector<1xf32>
    %718 = vector.multi_reduction <add>, %717, %cst_212 [1] : vector<1x16xf32> to vector<1xf32>
    %719 = vector.shape_cast %718 : vector<1xf32> to vector<1x1xf32>
    %720 = tpu.reciprocal %719 {approx = true} : vector<1x1xf32> -> vector<1x1xf32>
    %721 = vector.broadcast %720 : vector<1x1xf32> to vector<1x16xf32>
    %722 = arith.mulf %717, %721 : vector<1x16xf32>
    %723 = arith.truncf %722 : vector<1x16xf32> to vector<1x16xbf16>
    %cst_213 = arith.constant dense<0.000000e+00> : vector<1x8xf32>
    %724 = tpu.matmul %723, %709, %cst_213 {dimension_numbers = #tpu.dot_dimension_numbers<[1], [0], [0], [1], [0, 0, 1, 1], [], []>} : vector<1x16xbf16>, vector<16x8xbf16>, vector<1x8xf32> -> vector<1x8xf32>
    %725 = arith.truncf %724 : vector<1x8xf32> to vector<1x8xbf16>
    %726 = vector.extract_strided_slice %1 {offsets = [8, 0], sizes = [8, 32], strides = [1, 1]} : vector<32x32xbf16> to vector<8x32xbf16>
    %cst_214 = arith.constant dense<0.000000e+00> : vector<1x32xf32>
    %727 = tpu.matmul %725, %726, %cst_214 {dimension_numbers = #tpu.dot_dimension_numbers<[1], [0], [0], [1], [0, 0, 1, 1], [], []>} : vector<1x8xbf16>, vector<8x32xbf16>, vector<1x32xf32> -> vector<1x32xf32>
    %728 = arith.addf %703, %727 : vector<1x32xf32>
    %729 = vector.extract_strided_slice %0 {offsets = [0, 16], sizes = [1, 8], strides = [1, 1]} : vector<1x32xf32> to vector<1x8xf32>
    %730 = arith.truncf %729 : vector<1x8xf32> to vector<1x8xbf16>
    %731 = vector.extract_strided_slice %676 {offsets = [0, 16], sizes = [16, 8], strides = [1, 1]} : vector<16x32xf32> to vector<16x8xf32>
    %732 = arith.truncf %731 : vector<16x8xf32> to vector<16x8xbf16>
    %733 = vector.extract_strided_slice %677 {offsets = [0, 16], sizes = [16, 8], strides = [1, 1]} : vector<16x32xf32> to vector<16x8xf32>
    %734 = arith.truncf %733 : vector<16x8xf32> to vector<16x8xbf16>
    %cst_215 = arith.constant dense<0.000000e+00> : vector<1x16xf32>
    %735 = tpu.matmul %730, %732, %cst_215 {dimension_numbers = #tpu.dot_dimension_numbers<[1], [1], [0], [0], [0, 0, 1, 0], [], []>} : vector<1x8xbf16>, vector<16x8xbf16>, vector<1x16xf32> -> vector<1x16xf32>
    %cst_216 = arith.constant 0.353553385 : f32
    %736 = vector.broadcast %cst_216 : f32 to vector<1x16xf32>
    %737 = arith.mulf %735, %736 : vector<1x16xf32>
    %cst_217 = arith.constant dense<0xFF800000> : vector<1xf32>
    %738 = vector.multi_reduction <maximumf>, %737, %cst_217 [1] : vector<1x16xf32> to vector<1xf32>
    %739 = vector.shape_cast %738 : vector<1xf32> to vector<1x1xf32>
    %740 = vector.broadcast %739 : vector<1x1xf32> to vector<1x16xf32>
    %741 = arith.subf %737, %740 : vector<1x16xf32>
    %742 = math.exp %741 : vector<1x16xf32>
    %cst_218 = arith.constant dense<0.000000e+00> : vector<1xf32>
    %743 = vector.multi_reduction <add>, %742, %cst_218 [1] : vector<1x16xf32> to vector<1xf32>
    %744 = vector.shape_cast %743 : vector<1xf32> to vector<1x1xf32>
    %745 = tpu.reciprocal %744 {approx = true} : vector<1x1xf32> -> vector<1x1xf32>
    %746 = vector.broadcast %745 : vector<1x1xf32> to vector<1x16xf32>
    %747 = arith.mulf %742, %746 : vector<1x16xf32>
    %748 = arith.truncf %747 : vector<1x16xf32> to vector<1x16xbf16>
    %cst_219 = arith.constant dense<0.000000e+00> : vector<1x8xf32>
    %749 = tpu.matmul %748, %734, %cst_219 {dimension_numbers = #tpu.dot_dimension_numbers<[1], [0], [0], [1], [0, 0, 1, 1], [], []>} : vector<1x16xbf16>, vector<16x8xbf16>, vector<1x8xf32> -> vector<1x8xf32>
    %750 = arith.truncf %749 : vector<1x8xf32> to vector<1x8xbf16>
    %751 = vector.extract_strided_slice %1 {offsets = [16, 0], sizes = [8, 32], strides = [1, 1]} : vector<32x32xbf16> to vector<8x32xbf16>
    %cst_220 = arith.constant dense<0.000000e+00> : vector<1x32xf32>
    %752 = tpu.matmul %750, %751, %cst_220 {dimension_numbers = #tpu.dot_dimension_numbers<[1], [0], [0], [1], [0, 0, 1, 1], [], []>} : vector<1x8xbf16>, vector<8x32xbf16>, vector<1x32xf32> -> vector<1x32xf32>
    %753 = arith.addf %728, %752 : vector<1x32xf32>
    %754 = vector.extract_strided_slice %0 {offsets = [0, 24], sizes = [1, 8], strides = [1, 1]} : vector<1x32xf32> to vector<1x8xf32>
    %755 = arith.truncf %754 : vector<1x8xf32> to vector<1x8xbf16>
    %756 = vector.extract_strided_slice %676 {offsets = [0, 24], sizes = [16, 8], strides = [1, 1]} : vector<16x32xf32> to vector<16x8xf32>
    %757 = arith.truncf %756 : vector<16x8xf32> to vector<16x8xbf16>
    %758 = vector.extract_strided_slice %677 {offsets = [0, 24], sizes = [16, 8], strides = [1, 1]} : vector<16x32xf32> to vector<16x8xf32>
    %759 = arith.truncf %758 : vector<16x8xf32> to vector<16x8xbf16>
    %cst_221 = arith.constant dense<0.000000e+00> : vector<1x16xf32>
    %760 = tpu.matmul %755, %757, %cst_221 {dimension_numbers = #tpu.dot_dimension_numbers<[1], [1], [0], [0], [0, 0, 1, 0], [], []>} : vector<1x8xbf16>, vector<16x8xbf16>, vector<1x16xf32> -> vector<1x16xf32>
    %cst_222 = arith.constant 0.353553385 : f32
    %761 = vector.broadcast %cst_222 : f32 to vector<1x16xf32>
    %762 = arith.mulf %760, %761 : vector<1x16xf32>
    %cst_223 = arith.constant dense<0xFF800000> : vector<1xf32>
    %763 = vector.multi_reduction <maximumf>, %762, %cst_223 [1] : vector<1x16xf32> to vector<1xf32>
    %764 = vector.shape_cast %763 : vector<1xf32> to vector<1x1xf32>
    %765 = vector.broadcast %764 : vector<1x1xf32> to vector<1x16xf32>
    %766 = arith.subf %762, %765 : vector<1x16xf32>
    %767 = math.exp %766 : vector<1x16xf32>
    %cst_224 = arith.constant dense<0.000000e+00> : vector<1xf32>
    %768 = vector.multi_reduction <add>, %767, %cst_224 [1] : vector<1x16xf32> to vector<1xf32>
    %769 = vector.shape_cast %768 : vector<1xf32> to vector<1x1xf32>
    %770 = tpu.reciprocal %769 {approx = true} : vector<1x1xf32> -> vector<1x1xf32>
    %771 = vector.broadcast %770 : vector<1x1xf32> to vector<1x16xf32>
    %772 = arith.mulf %767, %771 : vector<1x16xf32>
    %773 = arith.truncf %772 : vector<1x16xf32> to vector<1x16xbf16>
    %cst_225 = arith.constant dense<0.000000e+00> : vector<1x8xf32>
    %774 = tpu.matmul %773, %759, %cst_225 {dimension_numbers = #tpu.dot_dimension_numbers<[1], [0], [0], [1], [0, 0, 1, 1], [], []>} : vector<1x16xbf16>, vector<16x8xbf16>, vector<1x8xf32> -> vector<1x8xf32>
    %775 = arith.truncf %774 : vector<1x8xf32> to vector<1x8xbf16>
    %776 = vector.extract_strided_slice %1 {offsets = [24, 0], sizes = [8, 32], strides = [1, 1]} : vector<32x32xbf16> to vector<8x32xbf16>
    %cst_226 = arith.constant dense<0.000000e+00> : vector<1x32xf32>
    %777 = tpu.matmul %775, %776, %cst_226 {dimension_numbers = #tpu.dot_dimension_numbers<[1], [0], [0], [1], [0, 0, 1, 1], [], []>} : vector<1x8xbf16>, vector<8x32xbf16>, vector<1x32xf32> -> vector<1x32xf32>
    %778 = arith.addf %753, %777 : vector<1x32xf32>
    %c7 = arith.constant 7 : index
    %c0_227 = arith.constant 0 : index
    %c0_228 = arith.constant 0 : index
    %779 = vector.load %arg1[%c7, %c0_227, %c0_228] : memref<8x32x16xf32, #tpu.memory_space<vmem>>, vector<1x32x16xf32>
    %780 = vector.shape_cast %779 : vector<1x32x16xf32> to vector<32x16xf32>
    %781 = arith.truncf %780 : vector<32x16xf32> to vector<32x16xbf16>
    %c0_229 = arith.constant 0 : index
    %c0_230 = arith.constant 0 : index
    %782 = vector.load %arg3[%c0_229, %c0_230] : memref<32x64xbf16, #tpu.memory_space<vmem>>, vector<32x64xbf16>
    %cst_231 = arith.constant dense<0.000000e+00> : vector<16x64xf32>
    %783 = tpu.matmul %781, %782, %cst_231 {dimension_numbers = #tpu.dot_dimension_numbers<[0], [0], [1], [1], [0, 1, 1, 1], [], []>} : vector<32x16xbf16>, vector<32x64xbf16>, vector<16x64xf32> -> vector<16x64xf32>
    %c0_232 = arith.constant 0 : index
    %c0_233 = arith.constant 0 : index
    %784 = vector.load %arg4[%c0_232, %c0_233] : memref<1x64xf32, #tpu.memory_space<vmem>>, vector<1x64xf32>
    %785 = vector.broadcast %784 : vector<1x64xf32> to vector<16x64xf32>
    %786 = arith.addf %783, %785 : vector<16x64xf32>
    %787 = vector.extract_strided_slice %786 {offsets = [0, 0], sizes = [16, 32], strides = [1, 1]} : vector<16x64xf32> to vector<16x32xf32>
    %788 = vector.extract_strided_slice %786 {offsets = [0, 32], sizes = [16, 32], strides = [1, 1]} : vector<16x64xf32> to vector<16x32xf32>
    %cst_234 = arith.constant 0.000000e+00 : f32
    %789 = vector.broadcast %cst_234 : f32 to vector<1x32xf32>
    %790 = vector.extract_strided_slice %0 {offsets = [0, 0], sizes = [1, 8], strides = [1, 1]} : vector<1x32xf32> to vector<1x8xf32>
    %791 = arith.truncf %790 : vector<1x8xf32> to vector<1x8xbf16>
    %792 = vector.extract_strided_slice %787 {offsets = [0, 0], sizes = [16, 8], strides = [1, 1]} : vector<16x32xf32> to vector<16x8xf32>
    %793 = arith.truncf %792 : vector<16x8xf32> to vector<16x8xbf16>
    %794 = vector.extract_strided_slice %788 {offsets = [0, 0], sizes = [16, 8], strides = [1, 1]} : vector<16x32xf32> to vector<16x8xf32>
    %795 = arith.truncf %794 : vector<16x8xf32> to vector<16x8xbf16>
    %cst_235 = arith.constant dense<0.000000e+00> : vector<1x16xf32>
    %796 = tpu.matmul %791, %793, %cst_235 {dimension_numbers = #tpu.dot_dimension_numbers<[1], [1], [0], [0], [0, 0, 1, 0], [], []>} : vector<1x8xbf16>, vector<16x8xbf16>, vector<1x16xf32> -> vector<1x16xf32>
    %cst_236 = arith.constant 0.353553385 : f32
    %797 = vector.broadcast %cst_236 : f32 to vector<1x16xf32>
    %798 = arith.mulf %796, %797 : vector<1x16xf32>
    %cst_237 = arith.constant dense<0xFF800000> : vector<1xf32>
    %799 = vector.multi_reduction <maximumf>, %798, %cst_237 [1] : vector<1x16xf32> to vector<1xf32>
    %800 = vector.shape_cast %799 : vector<1xf32> to vector<1x1xf32>
    %801 = vector.broadcast %800 : vector<1x1xf32> to vector<1x16xf32>
    %802 = arith.subf %798, %801 : vector<1x16xf32>
    %803 = math.exp %802 : vector<1x16xf32>
    %cst_238 = arith.constant dense<0.000000e+00> : vector<1xf32>
    %804 = vector.multi_reduction <add>, %803, %cst_238 [1] : vector<1x16xf32> to vector<1xf32>
    %805 = vector.shape_cast %804 : vector<1xf32> to vector<1x1xf32>
    %806 = tpu.reciprocal %805 {approx = true} : vector<1x1xf32> -> vector<1x1xf32>
    %807 = vector.broadcast %806 : vector<1x1xf32> to vector<1x16xf32>
    %808 = arith.mulf %803, %807 : vector<1x16xf32>
    %809 = arith.truncf %808 : vector<1x16xf32> to vector<1x16xbf16>
    %cst_239 = arith.constant dense<0.000000e+00> : vector<1x8xf32>
    %810 = tpu.matmul %809, %795, %cst_239 {dimension_numbers = #tpu.dot_dimension_numbers<[1], [0], [0], [1], [0, 0, 1, 1], [], []>} : vector<1x16xbf16>, vector<16x8xbf16>, vector<1x8xf32> -> vector<1x8xf32>
    %811 = arith.truncf %810 : vector<1x8xf32> to vector<1x8xbf16>
    %812 = vector.extract_strided_slice %1 {offsets = [0, 0], sizes = [8, 32], strides = [1, 1]} : vector<32x32xbf16> to vector<8x32xbf16>
    %cst_240 = arith.constant dense<0.000000e+00> : vector<1x32xf32>
    %813 = tpu.matmul %811, %812, %cst_240 {dimension_numbers = #tpu.dot_dimension_numbers<[1], [0], [0], [1], [0, 0, 1, 1], [], []>} : vector<1x8xbf16>, vector<8x32xbf16>, vector<1x32xf32> -> vector<1x32xf32>
    %814 = arith.addf %789, %813 : vector<1x32xf32>
    %815 = vector.extract_strided_slice %0 {offsets = [0, 8], sizes = [1, 8], strides = [1, 1]} : vector<1x32xf32> to vector<1x8xf32>
    %816 = arith.truncf %815 : vector<1x8xf32> to vector<1x8xbf16>
    %817 = vector.extract_strided_slice %787 {offsets = [0, 8], sizes = [16, 8], strides = [1, 1]} : vector<16x32xf32> to vector<16x8xf32>
    %818 = arith.truncf %817 : vector<16x8xf32> to vector<16x8xbf16>
    %819 = vector.extract_strided_slice %788 {offsets = [0, 8], sizes = [16, 8], strides = [1, 1]} : vector<16x32xf32> to vector<16x8xf32>
    %820 = arith.truncf %819 : vector<16x8xf32> to vector<16x8xbf16>
    %cst_241 = arith.constant dense<0.000000e+00> : vector<1x16xf32>
    %821 = tpu.matmul %816, %818, %cst_241 {dimension_numbers = #tpu.dot_dimension_numbers<[1], [1], [0], [0], [0, 0, 1, 0], [], []>} : vector<1x8xbf16>, vector<16x8xbf16>, vector<1x16xf32> -> vector<1x16xf32>
    %cst_242 = arith.constant 0.353553385 : f32
    %822 = vector.broadcast %cst_242 : f32 to vector<1x16xf32>
    %823 = arith.mulf %821, %822 : vector<1x16xf32>
    %cst_243 = arith.constant dense<0xFF800000> : vector<1xf32>
    %824 = vector.multi_reduction <maximumf>, %823, %cst_243 [1] : vector<1x16xf32> to vector<1xf32>
    %825 = vector.shape_cast %824 : vector<1xf32> to vector<1x1xf32>
    %826 = vector.broadcast %825 : vector<1x1xf32> to vector<1x16xf32>
    %827 = arith.subf %823, %826 : vector<1x16xf32>
    %828 = math.exp %827 : vector<1x16xf32>
    %cst_244 = arith.constant dense<0.000000e+00> : vector<1xf32>
    %829 = vector.multi_reduction <add>, %828, %cst_244 [1] : vector<1x16xf32> to vector<1xf32>
    %830 = vector.shape_cast %829 : vector<1xf32> to vector<1x1xf32>
    %831 = tpu.reciprocal %830 {approx = true} : vector<1x1xf32> -> vector<1x1xf32>
    %832 = vector.broadcast %831 : vector<1x1xf32> to vector<1x16xf32>
    %833 = arith.mulf %828, %832 : vector<1x16xf32>
    %834 = arith.truncf %833 : vector<1x16xf32> to vector<1x16xbf16>
    %cst_245 = arith.constant dense<0.000000e+00> : vector<1x8xf32>
    %835 = tpu.matmul %834, %820, %cst_245 {dimension_numbers = #tpu.dot_dimension_numbers<[1], [0], [0], [1], [0, 0, 1, 1], [], []>} : vector<1x16xbf16>, vector<16x8xbf16>, vector<1x8xf32> -> vector<1x8xf32>
    %836 = arith.truncf %835 : vector<1x8xf32> to vector<1x8xbf16>
    %837 = vector.extract_strided_slice %1 {offsets = [8, 0], sizes = [8, 32], strides = [1, 1]} : vector<32x32xbf16> to vector<8x32xbf16>
    %cst_246 = arith.constant dense<0.000000e+00> : vector<1x32xf32>
    %838 = tpu.matmul %836, %837, %cst_246 {dimension_numbers = #tpu.dot_dimension_numbers<[1], [0], [0], [1], [0, 0, 1, 1], [], []>} : vector<1x8xbf16>, vector<8x32xbf16>, vector<1x32xf32> -> vector<1x32xf32>
    %839 = arith.addf %814, %838 : vector<1x32xf32>
    %840 = vector.extract_strided_slice %0 {offsets = [0, 16], sizes = [1, 8], strides = [1, 1]} : vector<1x32xf32> to vector<1x8xf32>
    %841 = arith.truncf %840 : vector<1x8xf32> to vector<1x8xbf16>
    %842 = vector.extract_strided_slice %787 {offsets = [0, 16], sizes = [16, 8], strides = [1, 1]} : vector<16x32xf32> to vector<16x8xf32>
    %843 = arith.truncf %842 : vector<16x8xf32> to vector<16x8xbf16>
    %844 = vector.extract_strided_slice %788 {offsets = [0, 16], sizes = [16, 8], strides = [1, 1]} : vector<16x32xf32> to vector<16x8xf32>
    %845 = arith.truncf %844 : vector<16x8xf32> to vector<16x8xbf16>
    %cst_247 = arith.constant dense<0.000000e+00> : vector<1x16xf32>
    %846 = tpu.matmul %841, %843, %cst_247 {dimension_numbers = #tpu.dot_dimension_numbers<[1], [1], [0], [0], [0, 0, 1, 0], [], []>} : vector<1x8xbf16>, vector<16x8xbf16>, vector<1x16xf32> -> vector<1x16xf32>
    %cst_248 = arith.constant 0.353553385 : f32
    %847 = vector.broadcast %cst_248 : f32 to vector<1x16xf32>
    %848 = arith.mulf %846, %847 : vector<1x16xf32>
    %cst_249 = arith.constant dense<0xFF800000> : vector<1xf32>
    %849 = vector.multi_reduction <maximumf>, %848, %cst_249 [1] : vector<1x16xf32> to vector<1xf32>
    %850 = vector.shape_cast %849 : vector<1xf32> to vector<1x1xf32>
    %851 = vector.broadcast %850 : vector<1x1xf32> to vector<1x16xf32>
    %852 = arith.subf %848, %851 : vector<1x16xf32>
    %853 = math.exp %852 : vector<1x16xf32>
    %cst_250 = arith.constant dense<0.000000e+00> : vector<1xf32>
    %854 = vector.multi_reduction <add>, %853, %cst_250 [1] : vector<1x16xf32> to vector<1xf32>
    %855 = vector.shape_cast %854 : vector<1xf32> to vector<1x1xf32>
    %856 = tpu.reciprocal %855 {approx = true} : vector<1x1xf32> -> vector<1x1xf32>
    %857 = vector.broadcast %856 : vector<1x1xf32> to vector<1x16xf32>
    %858 = arith.mulf %853, %857 : vector<1x16xf32>
    %859 = arith.truncf %858 : vector<1x16xf32> to vector<1x16xbf16>
    %cst_251 = arith.constant dense<0.000000e+00> : vector<1x8xf32>
    %860 = tpu.matmul %859, %845, %cst_251 {dimension_numbers = #tpu.dot_dimension_numbers<[1], [0], [0], [1], [0, 0, 1, 1], [], []>} : vector<1x16xbf16>, vector<16x8xbf16>, vector<1x8xf32> -> vector<1x8xf32>
    %861 = arith.truncf %860 : vector<1x8xf32> to vector<1x8xbf16>
    %862 = vector.extract_strided_slice %1 {offsets = [16, 0], sizes = [8, 32], strides = [1, 1]} : vector<32x32xbf16> to vector<8x32xbf16>
    %cst_252 = arith.constant dense<0.000000e+00> : vector<1x32xf32>
    %863 = tpu.matmul %861, %862, %cst_252 {dimension_numbers = #tpu.dot_dimension_numbers<[1], [0], [0], [1], [0, 0, 1, 1], [], []>} : vector<1x8xbf16>, vector<8x32xbf16>, vector<1x32xf32> -> vector<1x32xf32>
    %864 = arith.addf %839, %863 : vector<1x32xf32>
    %865 = vector.extract_strided_slice %0 {offsets = [0, 24], sizes = [1, 8], strides = [1, 1]} : vector<1x32xf32> to vector<1x8xf32>
    %866 = arith.truncf %865 : vector<1x8xf32> to vector<1x8xbf16>
    %867 = vector.extract_strided_slice %787 {offsets = [0, 24], sizes = [16, 8], strides = [1, 1]} : vector<16x32xf32> to vector<16x8xf32>
    %868 = arith.truncf %867 : vector<16x8xf32> to vector<16x8xbf16>
    %869 = vector.extract_strided_slice %788 {offsets = [0, 24], sizes = [16, 8], strides = [1, 1]} : vector<16x32xf32> to vector<16x8xf32>
    %870 = arith.truncf %869 : vector<16x8xf32> to vector<16x8xbf16>
    %cst_253 = arith.constant dense<0.000000e+00> : vector<1x16xf32>
    %871 = tpu.matmul %866, %868, %cst_253 {dimension_numbers = #tpu.dot_dimension_numbers<[1], [1], [0], [0], [0, 0, 1, 0], [], []>} : vector<1x8xbf16>, vector<16x8xbf16>, vector<1x16xf32> -> vector<1x16xf32>
    %cst_254 = arith.constant 0.353553385 : f32
    %872 = vector.broadcast %cst_254 : f32 to vector<1x16xf32>
    %873 = arith.mulf %871, %872 : vector<1x16xf32>
    %cst_255 = arith.constant dense<0xFF800000> : vector<1xf32>
    %874 = vector.multi_reduction <maximumf>, %873, %cst_255 [1] : vector<1x16xf32> to vector<1xf32>
    %875 = vector.shape_cast %874 : vector<1xf32> to vector<1x1xf32>
    %876 = vector.broadcast %875 : vector<1x1xf32> to vector<1x16xf32>
    %877 = arith.subf %873, %876 : vector<1x16xf32>
    %878 = math.exp %877 : vector<1x16xf32>
    %cst_256 = arith.constant dense<0.000000e+00> : vector<1xf32>
    %879 = vector.multi_reduction <add>, %878, %cst_256 [1] : vector<1x16xf32> to vector<1xf32>
    %880 = vector.shape_cast %879 : vector<1xf32> to vector<1x1xf32>
    %881 = tpu.reciprocal %880 {approx = true} : vector<1x1xf32> -> vector<1x1xf32>
    %882 = vector.broadcast %881 : vector<1x1xf32> to vector<1x16xf32>
    %883 = arith.mulf %878, %882 : vector<1x16xf32>
    %884 = arith.truncf %883 : vector<1x16xf32> to vector<1x16xbf16>
    %cst_257 = arith.constant dense<0.000000e+00> : vector<1x8xf32>
    %885 = tpu.matmul %884, %870, %cst_257 {dimension_numbers = #tpu.dot_dimension_numbers<[1], [0], [0], [1], [0, 0, 1, 1], [], []>} : vector<1x16xbf16>, vector<16x8xbf16>, vector<1x8xf32> -> vector<1x8xf32>
    %886 = arith.truncf %885 : vector<1x8xf32> to vector<1x8xbf16>
    %887 = vector.extract_strided_slice %1 {offsets = [24, 0], sizes = [8, 32], strides = [1, 1]} : vector<32x32xbf16> to vector<8x32xbf16>
    %cst_258 = arith.constant dense<0.000000e+00> : vector<1x32xf32>
    %888 = tpu.matmul %886, %887, %cst_258 {dimension_numbers = #tpu.dot_dimension_numbers<[1], [0], [0], [1], [0, 0, 1, 1], [], []>} : vector<1x8xbf16>, vector<8x32xbf16>, vector<1x32xf32> -> vector<1x32xf32>
    %889 = arith.addf %864, %888 : vector<1x32xf32>
    %890 = tpu.concatenate %112, %223, %334, %445, %556, %667, %778, %889 in 0 : vector<1x32xf32>, vector<1x32xf32>, vector<1x32xf32>, vector<1x32xf32>, vector<1x32xf32>, vector<1x32xf32>, vector<1x32xf32>, vector<1x32xf32> -> vector<8x32xf32>
    %c0_259 = arith.constant 0 : index
    %c0_260 = arith.constant 0 : index
    %891 = vector.load %arg6[%c0_259, %c0_260] : memref<1x32xf32, #tpu.memory_space<vmem>>, vector<1x32xf32>
    %892 = vector.broadcast %891 : vector<1x32xf32> to vector<8x32xf32>
    %893 = arith.addf %890, %892 : vector<8x32xf32>
    %c0_261 = arith.constant 0 : index
    %c0_262 = arith.constant 0 : index
    %894 = vector.load %arg7[%c0_261, %c0_262] : memref<1x32xf32, #tpu.memory_space<vmem>>, vector<1x32xf32>
    %895 = vector.broadcast %894 : vector<1x32xf32> to vector<8x32xf32>
    %896 = arith.addf %895, %893 : vector<8x32xf32>
    %c0_263 = arith.constant 0 : index
    %c0_264 = arith.constant 0 : index
    %897 = vector.load %arg8[%c0_263, %c0_264] : memref<1x32xf32, #tpu.memory_space<vmem>>, vector<1x32xf32>
    %c0_265 = arith.constant 0 : index
    %c0_266 = arith.constant 0 : index
    %898 = vector.load %arg9[%c0_265, %c0_266] : memref<1x32xf32, #tpu.memory_space<vmem>>, vector<1x32xf32>
    %cst_267 = arith.constant dense<0.000000e+00> : vector<8xf32>
    %899 = vector.multi_reduction <add>, %896, %cst_267 [1] : vector<8x32xf32> to vector<8xf32>
    %900 = vector.shape_cast %899 : vector<8xf32> to vector<8x1xf32>
    %cst_268 = arith.constant 3.200000e+01 : f32
    %901 = vector.broadcast %cst_268 : f32 to vector<8x1xf32>
    %902 = arith.divf %900, %901 : vector<8x1xf32>
    %903 = vector.broadcast %902 : vector<8x1xf32> to vector<8x32xf32>
    %904 = arith.subf %896, %903 : vector<8x32xf32>
    %905 = arith.mulf %904, %904 : vector<8x32xf32>
    %cst_269 = arith.constant dense<0.000000e+00> : vector<8xf32>
    %906 = vector.multi_reduction <add>, %905, %cst_269 [1] : vector<8x32xf32> to vector<8xf32>
    %907 = vector.shape_cast %906 : vector<8xf32> to vector<8x1xf32>
    %cst_270 = arith.constant 3.200000e+01 : f32
    %908 = vector.broadcast %cst_270 : f32 to vector<8x1xf32>
    %909 = arith.divf %907, %908 : vector<8x1xf32>
    %910 = vector.broadcast %902 : vector<8x1xf32> to vector<8x32xf32>
    %911 = arith.subf %896, %910 : vector<8x32xf32>
    %cst_271 = arith.constant 9.99999974E-6 : f32
    %912 = vector.broadcast %cst_271 : f32 to vector<8x1xf32>
    %913 = arith.addf %909, %912 : vector<8x1xf32>
    %914 = math.rsqrt %913 : vector<8x1xf32>
    %915 = vector.broadcast %914 : vector<8x1xf32> to vector<8x32xf32>
    %916 = arith.mulf %911, %915 : vector<8x32xf32>
    %917 = vector.broadcast %897 : vector<1x32xf32> to vector<8x32xf32>
    %918 = arith.mulf %916, %917 : vector<8x32xf32>
    %919 = vector.broadcast %898 : vector<1x32xf32> to vector<8x32xf32>
    %920 = arith.addf %918, %919 : vector<8x32xf32>
    %c0_272 = arith.constant 0 : index
    %c0_273 = arith.constant 0 : index
    %921 = vector.load %arg10[%c0_272, %c0_273] : memref<8x32xf32, #tpu.memory_space<vmem>>, vector<8x32xf32>
    tpu.vector_store %arg10[%c0_272, %c0_273], %920 {strides = array<i32>} : memref<8x32xf32, #tpu.memory_space<vmem>>, vector<8x32xf32>,
    return
  }
  func.func @transform_0(%arg0: i32) -> (i32, i32, i32) {
    %c0_i32 = arith.constant 0 : i32
    %c0_i32_0 = arith.constant 0 : i32
    %c0_i32_1 = arith.constant 0 : i32
    return %arg0, %c0_i32, %c0_i32_0 : i32, i32, i32
  }
  func.func @transform_1(%arg0: i32) -> (i32, i32) {
    %c0_i32 = arith.constant 0 : i32
    %c0_i32_0 = arith.constant 0 : i32
    %c0_i32_1 = arith.constant 0 : i32
    return %c0_i32, %c0_i32_0 : i32, i32
  }
  func.func @transform_2(%arg0: i32) -> (i32, i32) {
    %c0_i32 = arith.constant 0 : i32
    %c0_i32_0 = arith.constant 0 : i32
    %c0_i32_1 = arith.constant 0 : i32
    return %c0_i32, %c0_i32_0 : i32, i32
  }
  func.func @transform_3(%arg0: i32) -> (i32, i32) {
    %c0_i32 = arith.constant 0 : i32
    %c0_i32_0 = arith.constant 0 : i32
    %c0_i32_1 = arith.constant 0 : i32
    return %c0_i32, %c0_i32_0 : i32, i32
  }
  func.func @transform_4(%arg0: i32) -> (i32, i32) {
    %c0_i32 = arith.constant 0 : i32
    %c0_i32_0 = arith.constant 0 : i32
    %c0_i32_1 = arith.constant 0 : i32
    return %c0_i32, %c0_i32_0 : i32, i32
  }
  func.func @transform_5(%arg0: i32) -> (i32, i32) {
    %c0_i32 = arith.constant 0 : i32
    %c0_i32_0 = arith.constant 0 : i32
    %c0_i32_1 = arith.constant 0 : i32
    return %c0_i32, %c0_i32_0 : i32, i32
  }
  func.func @transform_6(%arg0: i32) -> (i32, i32) {
    %c0_i32 = arith.constant 0 : i32
    %c0_i32_0 = arith.constant 0 : i32
    %c0_i32_1 = arith.constant 0 : i32
    return %c0_i32, %c0_i32_0 : i32, i32
  }
  func.func @transform_7(%arg0: i32) -> (i32, i32) {
    %c0_i32 = arith.constant 0 : i32
    %c0_i32_0 = arith.constant 0 : i32
    %c0_i32_1 = arith.constant 0 : i32
    return %c0_i32, %c0_i32_0 : i32, i32
  }
  func.func @transform_8(%arg0: i32) -> (i32, i32) {
    %c0_i32 = arith.constant 0 : i32
    %c0_i32_0 = arith.constant 0 : i32
    %c0_i32_1 = arith.constant 0 : i32
    return %c0_i32, %c0_i32_0 : i32, i32
  }
  func.func @transform_9(%arg0: i32) -> (i32, i32) {
    %c0_i32 = arith.constant 0 : i32
    %c0_i32_0 = arith.constant 0 : i32
    return %arg0, %c0_i32 : i32, i32
  }
}

module attributes {stable_mosaic.version = 11 : i64} {
  func.func @_gpt_stack_kernel(%arg0: i32, %arg1: i32, %arg2: memref<1x9x32xf32, #tpu.memory_space<vmem>>, %arg3: memref<1x1x32xf32, #tpu.memory_space<vmem>>, %arg4: memref<1x1x32xf32, #tpu.memory_space<vmem>>, %arg5: memref<1x32x96xbf16, #tpu.memory_space<vmem>>, %arg6: memref<1x1x96xf32, #tpu.memory_space<vmem>>, %arg7: memref<1x32x32xbf16, #tpu.memory_space<vmem>>, %arg8: memref<1x1x32xf32, #tpu.memory_space<vmem>>, %arg9: memref<1x1x32xf32, #tpu.memory_space<vmem>>, %arg10: memref<1x1x32xf32, #tpu.memory_space<vmem>>, %arg11: memref<1x32x128xbf16, #tpu.memory_space<vmem>>, %arg12: memref<1x1x128xf32, #tpu.memory_space<vmem>>, %arg13: memref<1x128x32xbf16, #tpu.memory_space<vmem>>, %arg14: memref<1x1x32xf32, #tpu.memory_space<vmem>>, %arg15: memref<1x32xf32, #tpu.memory_space<vmem>>, %arg16: memref<1x32xf32, #tpu.memory_space<vmem>>, %arg17: memref<32x64xbf16, #tpu.memory_space<vmem>>, %arg18: memref<1x64xf32, #tpu.memory_space<vmem>>, %arg19: memref<1x1x64xf32, #tpu.memory_space<vmem>>, %arg20: memref<9x32xf32, #tpu.memory_space<vmem>>) attributes {dimension_semantics = [#tpu.dimension_semantics<parallel>, #tpu.dimension_semantics<arbitrary>], iteration_bounds = array<i64: 2, 2>, scalar_prefetch = 0 : i64, scratch_operands = 1 : i64, tpu.core_type = #tpu.core_type<tc>, window_params = [{transform_indices = @transform_0, window_bounds = array<i64: 1, 9, 32>}, {transform_indices = @transform_1, window_bounds = array<i64: 1, 1, 32>}, {transform_indices = @transform_2, window_bounds = array<i64: 1, 1, 32>}, {transform_indices = @transform_3, window_bounds = array<i64: 1, 32, 96>}, {transform_indices = @transform_4, window_bounds = array<i64: 1, 1, 96>}, {transform_indices = @transform_5, window_bounds = array<i64: 1, 32, 32>}, {transform_indices = @transform_6, window_bounds = array<i64: 1, 1, 32>}, {transform_indices = @transform_7, window_bounds = array<i64: 1, 1, 32>}, {transform_indices = @transform_8, window_bounds = array<i64: 1, 1, 32>}, {transform_indices = @transform_9, window_bounds = array<i64: 1, 32, 128>}, {transform_indices = @transform_10, window_bounds = array<i64: 1, 1, 128>}, {transform_indices = @transform_11, window_bounds = array<i64: 1, 128, 32>}, {transform_indices = @transform_12, window_bounds = array<i64: 1, 1, 32>}, {pipeline_mode = #tpu.pipeline_mode<synchronous>, transform_indices = @transform_13, window_bounds = array<i64: 1, 32>}, {pipeline_mode = #tpu.pipeline_mode<synchronous>, transform_indices = @transform_14, window_bounds = array<i64: 1, 32>}, {pipeline_mode = #tpu.pipeline_mode<synchronous>, transform_indices = @transform_15, window_bounds = array<i64: 32, 64>}, {pipeline_mode = #tpu.pipeline_mode<synchronous>, transform_indices = @transform_16, window_bounds = array<i64: 1, 64>}, {transform_indices = @transform_17, window_bounds = array<i64: 1, 1, 64>}]} {
    %c0_i32 = arith.constant 0 : i32
    %0 = arith.cmpi eq, %arg1, %c0_i32 : i32
    %1 = arith.extui %0 : i1 to i32
    %c0_i32_0 = arith.constant 0 : i32
    %2 = arith.cmpi ne, %1, %c0_i32_0 : i32
    scf.if %2 {
      %c0_86 = arith.constant 0 : index
      %c0_87 = arith.constant 0 : index
      %c0_88 = arith.constant 0 : index
      %220 = vector.load %arg2[%c0_86, %c0_87, %c0_88] : memref<1x9x32xf32, #tpu.memory_space<vmem>>, vector<1x9x32xf32>
      %221 = vector.shape_cast %220 : vector<1x9x32xf32> to vector<9x32xf32>
      %c0_89 = arith.constant 0 : index
      %c0_90 = arith.constant 0 : index
      %222 = vector.load %arg20[%c0_89, %c0_90] : memref<9x32xf32, #tpu.memory_space<vmem>>, vector<9x32xf32>
      tpu.vector_store %arg20[%c0_89, %c0_90], %221 {strides = array<i32>} : memref<9x32xf32, #tpu.memory_space<vmem>>, vector<9x32xf32>,
    } else {
    }
    %c0 = arith.constant 0 : index
    %c0_1 = arith.constant 0 : index
    %3 = vector.load %arg20[%c0, %c0_1] : memref<9x32xf32, #tpu.memory_space<vmem>>, vector<9x32xf32>
    %c0_2 = arith.constant 0 : index
    %c0_3 = arith.constant 0 : index
    %c0_4 = arith.constant 0 : index
    %4 = vector.load %arg3[%c0_2, %c0_3, %c0_4] : memref<1x1x32xf32, #tpu.memory_space<vmem>>, vector<1x1x32xf32>
    %5 = vector.shape_cast %4 : vector<1x1x32xf32> to vector<1x32xf32>
    %c0_5 = arith.constant 0 : index
    %c0_6 = arith.constant 0 : index
    %c0_7 = arith.constant 0 : index
    %6 = vector.load %arg4[%c0_5, %c0_6, %c0_7] : memref<1x1x32xf32, #tpu.memory_space<vmem>>, vector<1x1x32xf32>
    %7 = vector.shape_cast %6 : vector<1x1x32xf32> to vector<1x32xf32>
    %cst = arith.constant dense<0.000000e+00> : vector<9xf32>
    %8 = vector.multi_reduction <add>, %3, %cst [1] : vector<9x32xf32> to vector<9xf32>
    %9 = vector.shape_cast %8 : vector<9xf32> to vector<9x1xf32>
    %cst_8 = arith.constant 3.200000e+01 : f32
    %10 = vector.broadcast %cst_8 : f32 to vector<9x1xf32>
    %11 = arith.divf %9, %10 : vector<9x1xf32>
    %12 = vector.broadcast %11 : vector<9x1xf32> to vector<9x32xf32>
    %13 = arith.subf %3, %12 : vector<9x32xf32>
    %14 = arith.mulf %13, %13 : vector<9x32xf32>
    %cst_9 = arith.constant dense<0.000000e+00> : vector<9xf32>
    %15 = vector.multi_reduction <add>, %14, %cst_9 [1] : vector<9x32xf32> to vector<9xf32>
    %16 = vector.shape_cast %15 : vector<9xf32> to vector<9x1xf32>
    %cst_10 = arith.constant 3.200000e+01 : f32
    %17 = vector.broadcast %cst_10 : f32 to vector<9x1xf32>
    %18 = arith.divf %16, %17 : vector<9x1xf32>
    %19 = vector.broadcast %11 : vector<9x1xf32> to vector<9x32xf32>
    %20 = arith.subf %3, %19 : vector<9x32xf32>
    %cst_11 = arith.constant 9.99999974E-6 : f32
    %21 = vector.broadcast %cst_11 : f32 to vector<9x1xf32>
    %22 = arith.addf %18, %21 : vector<9x1xf32>
    %23 = math.rsqrt %22 : vector<9x1xf32>
    %24 = vector.broadcast %23 : vector<9x1xf32> to vector<9x32xf32>
    %25 = arith.mulf %20, %24 : vector<9x32xf32>
    %26 = vector.broadcast %5 : vector<1x32xf32> to vector<9x32xf32>
    %27 = arith.mulf %25, %26 : vector<9x32xf32>
    %28 = vector.broadcast %7 : vector<1x32xf32> to vector<9x32xf32>
    %29 = arith.addf %27, %28 : vector<9x32xf32>
    %30 = arith.truncf %29 : vector<9x32xf32> to vector<9x32xbf16>
    %c0_12 = arith.constant 0 : index
    %c0_13 = arith.constant 0 : index
    %c0_14 = arith.constant 0 : index
    %31 = vector.load %arg5[%c0_12, %c0_13, %c0_14] : memref<1x32x96xbf16, #tpu.memory_space<vmem>>, vector<1x32x96xbf16>
    %32 = vector.shape_cast %31 : vector<1x32x96xbf16> to vector<32x96xbf16>
    %cst_15 = arith.constant dense<0.000000e+00> : vector<9x96xf32>
    %33 = tpu.matmul %30, %32, %cst_15 {dimension_numbers = #tpu.dot_dimension_numbers<[1], [0], [0], [1], [0, 0, 1, 1], [], []>} : vector<9x32xbf16>, vector<32x96xbf16>, vector<9x96xf32> -> vector<9x96xf32>
    %c0_16 = arith.constant 0 : index
    %c0_17 = arith.constant 0 : index
    %c0_18 = arith.constant 0 : index
    %34 = vector.load %arg6[%c0_16, %c0_17, %c0_18] : memref<1x1x96xf32, #tpu.memory_space<vmem>>, vector<1x1x96xf32>
    %35 = vector.shape_cast %34 : vector<1x1x96xf32> to vector<1x96xf32>
    %36 = vector.broadcast %35 : vector<1x96xf32> to vector<9x96xf32>
    %37 = arith.addf %33, %36 : vector<9x96xf32>
    %38 = tpu.iota {dimensions = array<i32: 0>} : vector<9x9xi32>
    %39 = tpu.iota {dimensions = array<i32: 1>} : vector<9x9xi32>
    %40 = arith.cmpi sle, %39, %38 : vector<9x9xi32>
    %41 = vector.extract_strided_slice %37 {offsets = [0, 0], sizes = [9, 32], strides = [1, 1]} : vector<9x96xf32> to vector<9x32xf32>
    %42 = vector.extract_strided_slice %37 {offsets = [0, 32], sizes = [9, 32], strides = [1, 1]} : vector<9x96xf32> to vector<9x32xf32>
    %43 = vector.extract_strided_slice %37 {offsets = [0, 64], sizes = [9, 32], strides = [1, 1]} : vector<9x96xf32> to vector<9x32xf32>
    %c0_19 = arith.constant 0 : index
    %c0_20 = arith.constant 0 : index
    %c0_21 = arith.constant 0 : index
    %44 = vector.load %arg7[%c0_19, %c0_20, %c0_21] : memref<1x32x32xbf16, #tpu.memory_space<vmem>>, vector<1x32x32xbf16>
    %45 = vector.shape_cast %44 : vector<1x32x32xbf16> to vector<32x32xbf16>
    %cst_22 = arith.constant 0.000000e+00 : f32
    %46 = vector.broadcast %cst_22 : f32 to vector<9x32xf32>
    %47 = vector.extract_strided_slice %41 {offsets = [0, 0], sizes = [9, 8], strides = [1, 1]} : vector<9x32xf32> to vector<9x8xf32>
    %48 = arith.truncf %47 : vector<9x8xf32> to vector<9x8xbf16>
    %49 = vector.extract_strided_slice %42 {offsets = [0, 0], sizes = [9, 8], strides = [1, 1]} : vector<9x32xf32> to vector<9x8xf32>
    %50 = arith.truncf %49 : vector<9x8xf32> to vector<9x8xbf16>
    %51 = vector.extract_strided_slice %43 {offsets = [0, 0], sizes = [9, 8], strides = [1, 1]} : vector<9x32xf32> to vector<9x8xf32>
    %52 = arith.truncf %51 : vector<9x8xf32> to vector<9x8xbf16>
    %cst_23 = arith.constant dense<0.000000e+00> : vector<9x9xf32>
    %53 = tpu.matmul %48, %50, %cst_23 {dimension_numbers = #tpu.dot_dimension_numbers<[1], [1], [0], [0], [0, 0, 1, 0], [], []>} : vector<9x8xbf16>, vector<9x8xbf16>, vector<9x9xf32> -> vector<9x9xf32>
    %cst_24 = arith.constant 0.353553385 : f32
    %54 = vector.broadcast %cst_24 : f32 to vector<9x9xf32>
    %55 = arith.mulf %53, %54 : vector<9x9xf32>
    %cst_25 = arith.constant -1.000000e+30 : f32
    %56 = vector.broadcast %cst_25 : f32 to vector<9x9xf32>
    %57 = arith.select %40, %55, %56 : vector<9x9xi1>, vector<9x9xf32>
    %cst_26 = arith.constant dense<0xFF800000> : vector<9xf32>
    %58 = vector.multi_reduction <maximumf>, %57, %cst_26 [1] : vector<9x9xf32> to vector<9xf32>
    %59 = vector.shape_cast %58 : vector<9xf32> to vector<9x1xf32>
    %60 = vector.broadcast %59 : vector<9x1xf32> to vector<9x9xf32>
    %61 = arith.subf %57, %60 : vector<9x9xf32>
    %62 = math.exp %61 : vector<9x9xf32>
    %cst_27 = arith.constant dense<0.000000e+00> : vector<9xf32>
    %63 = vector.multi_reduction <add>, %62, %cst_27 [1] : vector<9x9xf32> to vector<9xf32>
    %64 = vector.shape_cast %63 : vector<9xf32> to vector<9x1xf32>
    %65 = tpu.reciprocal %64 {approx = true} : vector<9x1xf32> -> vector<9x1xf32>
    %66 = vector.broadcast %65 : vector<9x1xf32> to vector<9x9xf32>
    %67 = arith.mulf %62, %66 : vector<9x9xf32>
    %68 = arith.truncf %67 : vector<9x9xf32> to vector<9x9xbf16>
    %cst_28 = arith.constant dense<0.000000e+00> : vector<9x8xf32>
    %69 = tpu.matmul %68, %52, %cst_28 {dimension_numbers = #tpu.dot_dimension_numbers<[1], [0], [0], [1], [0, 0, 1, 1], [], []>} : vector<9x9xbf16>, vector<9x8xbf16>, vector<9x8xf32> -> vector<9x8xf32>
    %70 = arith.truncf %69 : vector<9x8xf32> to vector<9x8xbf16>
    %71 = vector.extract_strided_slice %45 {offsets = [0, 0], sizes = [8, 32], strides = [1, 1]} : vector<32x32xbf16> to vector<8x32xbf16>
    %cst_29 = arith.constant dense<0.000000e+00> : vector<9x32xf32>
    %72 = tpu.matmul %70, %71, %cst_29 {dimension_numbers = #tpu.dot_dimension_numbers<[1], [0], [0], [1], [0, 0, 1, 1], [], []>} : vector<9x8xbf16>, vector<8x32xbf16>, vector<9x32xf32> -> vector<9x32xf32>
    %73 = arith.addf %46, %72 : vector<9x32xf32>
    %74 = vector.extract_strided_slice %41 {offsets = [0, 8], sizes = [9, 8], strides = [1, 1]} : vector<9x32xf32> to vector<9x8xf32>
    %75 = arith.truncf %74 : vector<9x8xf32> to vector<9x8xbf16>
    %76 = vector.extract_strided_slice %42 {offsets = [0, 8], sizes = [9, 8], strides = [1, 1]} : vector<9x32xf32> to vector<9x8xf32>
    %77 = arith.truncf %76 : vector<9x8xf32> to vector<9x8xbf16>
    %78 = vector.extract_strided_slice %43 {offsets = [0, 8], sizes = [9, 8], strides = [1, 1]} : vector<9x32xf32> to vector<9x8xf32>
    %79 = arith.truncf %78 : vector<9x8xf32> to vector<9x8xbf16>
    %cst_30 = arith.constant dense<0.000000e+00> : vector<9x9xf32>
    %80 = tpu.matmul %75, %77, %cst_30 {dimension_numbers = #tpu.dot_dimension_numbers<[1], [1], [0], [0], [0, 0, 1, 0], [], []>} : vector<9x8xbf16>, vector<9x8xbf16>, vector<9x9xf32> -> vector<9x9xf32>
    %cst_31 = arith.constant 0.353553385 : f32
    %81 = vector.broadcast %cst_31 : f32 to vector<9x9xf32>
    %82 = arith.mulf %80, %81 : vector<9x9xf32>
    %cst_32 = arith.constant -1.000000e+30 : f32
    %83 = vector.broadcast %cst_32 : f32 to vector<9x9xf32>
    %84 = arith.select %40, %82, %83 : vector<9x9xi1>, vector<9x9xf32>
    %cst_33 = arith.constant dense<0xFF800000> : vector<9xf32>
    %85 = vector.multi_reduction <maximumf>, %84, %cst_33 [1] : vector<9x9xf32> to vector<9xf32>
    %86 = vector.shape_cast %85 : vector<9xf32> to vector<9x1xf32>
    %87 = vector.broadcast %86 : vector<9x1xf32> to vector<9x9xf32>
    %88 = arith.subf %84, %87 : vector<9x9xf32>
    %89 = math.exp %88 : vector<9x9xf32>
    %cst_34 = arith.constant dense<0.000000e+00> : vector<9xf32>
    %90 = vector.multi_reduction <add>, %89, %cst_34 [1] : vector<9x9xf32> to vector<9xf32>
    %91 = vector.shape_cast %90 : vector<9xf32> to vector<9x1xf32>
    %92 = tpu.reciprocal %91 {approx = true} : vector<9x1xf32> -> vector<9x1xf32>
    %93 = vector.broadcast %92 : vector<9x1xf32> to vector<9x9xf32>
    %94 = arith.mulf %89, %93 : vector<9x9xf32>
    %95 = arith.truncf %94 : vector<9x9xf32> to vector<9x9xbf16>
    %cst_35 = arith.constant dense<0.000000e+00> : vector<9x8xf32>
    %96 = tpu.matmul %95, %79, %cst_35 {dimension_numbers = #tpu.dot_dimension_numbers<[1], [0], [0], [1], [0, 0, 1, 1], [], []>} : vector<9x9xbf16>, vector<9x8xbf16>, vector<9x8xf32> -> vector<9x8xf32>
    %97 = arith.truncf %96 : vector<9x8xf32> to vector<9x8xbf16>
    %98 = vector.extract_strided_slice %45 {offsets = [8, 0], sizes = [8, 32], strides = [1, 1]} : vector<32x32xbf16> to vector<8x32xbf16>
    %cst_36 = arith.constant dense<0.000000e+00> : vector<9x32xf32>
    %99 = tpu.matmul %97, %98, %cst_36 {dimension_numbers = #tpu.dot_dimension_numbers<[1], [0], [0], [1], [0, 0, 1, 1], [], []>} : vector<9x8xbf16>, vector<8x32xbf16>, vector<9x32xf32> -> vector<9x32xf32>
    %100 = arith.addf %73, %99 : vector<9x32xf32>
    %101 = vector.extract_strided_slice %41 {offsets = [0, 16], sizes = [9, 8], strides = [1, 1]} : vector<9x32xf32> to vector<9x8xf32>
    %102 = arith.truncf %101 : vector<9x8xf32> to vector<9x8xbf16>
    %103 = vector.extract_strided_slice %42 {offsets = [0, 16], sizes = [9, 8], strides = [1, 1]} : vector<9x32xf32> to vector<9x8xf32>
    %104 = arith.truncf %103 : vector<9x8xf32> to vector<9x8xbf16>
    %105 = vector.extract_strided_slice %43 {offsets = [0, 16], sizes = [9, 8], strides = [1, 1]} : vector<9x32xf32> to vector<9x8xf32>
    %106 = arith.truncf %105 : vector<9x8xf32> to vector<9x8xbf16>
    %cst_37 = arith.constant dense<0.000000e+00> : vector<9x9xf32>
    %107 = tpu.matmul %102, %104, %cst_37 {dimension_numbers = #tpu.dot_dimension_numbers<[1], [1], [0], [0], [0, 0, 1, 0], [], []>} : vector<9x8xbf16>, vector<9x8xbf16>, vector<9x9xf32> -> vector<9x9xf32>
    %cst_38 = arith.constant 0.353553385 : f32
    %108 = vector.broadcast %cst_38 : f32 to vector<9x9xf32>
    %109 = arith.mulf %107, %108 : vector<9x9xf32>
    %cst_39 = arith.constant -1.000000e+30 : f32
    %110 = vector.broadcast %cst_39 : f32 to vector<9x9xf32>
    %111 = arith.select %40, %109, %110 : vector<9x9xi1>, vector<9x9xf32>
    %cst_40 = arith.constant dense<0xFF800000> : vector<9xf32>
    %112 = vector.multi_reduction <maximumf>, %111, %cst_40 [1] : vector<9x9xf32> to vector<9xf32>
    %113 = vector.shape_cast %112 : vector<9xf32> to vector<9x1xf32>
    %114 = vector.broadcast %113 : vector<9x1xf32> to vector<9x9xf32>
    %115 = arith.subf %111, %114 : vector<9x9xf32>
    %116 = math.exp %115 : vector<9x9xf32>
    %cst_41 = arith.constant dense<0.000000e+00> : vector<9xf32>
    %117 = vector.multi_reduction <add>, %116, %cst_41 [1] : vector<9x9xf32> to vector<9xf32>
    %118 = vector.shape_cast %117 : vector<9xf32> to vector<9x1xf32>
    %119 = tpu.reciprocal %118 {approx = true} : vector<9x1xf32> -> vector<9x1xf32>
    %120 = vector.broadcast %119 : vector<9x1xf32> to vector<9x9xf32>
    %121 = arith.mulf %116, %120 : vector<9x9xf32>
    %122 = arith.truncf %121 : vector<9x9xf32> to vector<9x9xbf16>
    %cst_42 = arith.constant dense<0.000000e+00> : vector<9x8xf32>
    %123 = tpu.matmul %122, %106, %cst_42 {dimension_numbers = #tpu.dot_dimension_numbers<[1], [0], [0], [1], [0, 0, 1, 1], [], []>} : vector<9x9xbf16>, vector<9x8xbf16>, vector<9x8xf32> -> vector<9x8xf32>
    %124 = arith.truncf %123 : vector<9x8xf32> to vector<9x8xbf16>
    %125 = vector.extract_strided_slice %45 {offsets = [16, 0], sizes = [8, 32], strides = [1, 1]} : vector<32x32xbf16> to vector<8x32xbf16>
    %cst_43 = arith.constant dense<0.000000e+00> : vector<9x32xf32>
    %126 = tpu.matmul %124, %125, %cst_43 {dimension_numbers = #tpu.dot_dimension_numbers<[1], [0], [0], [1], [0, 0, 1, 1], [], []>} : vector<9x8xbf16>, vector<8x32xbf16>, vector<9x32xf32> -> vector<9x32xf32>
    %127 = arith.addf %100, %126 : vector<9x32xf32>
    %128 = vector.extract_strided_slice %41 {offsets = [0, 24], sizes = [9, 8], strides = [1, 1]} : vector<9x32xf32> to vector<9x8xf32>
    %129 = arith.truncf %128 : vector<9x8xf32> to vector<9x8xbf16>
    %130 = vector.extract_strided_slice %42 {offsets = [0, 24], sizes = [9, 8], strides = [1, 1]} : vector<9x32xf32> to vector<9x8xf32>
    %131 = arith.truncf %130 : vector<9x8xf32> to vector<9x8xbf16>
    %132 = vector.extract_strided_slice %43 {offsets = [0, 24], sizes = [9, 8], strides = [1, 1]} : vector<9x32xf32> to vector<9x8xf32>
    %133 = arith.truncf %132 : vector<9x8xf32> to vector<9x8xbf16>
    %cst_44 = arith.constant dense<0.000000e+00> : vector<9x9xf32>
    %134 = tpu.matmul %129, %131, %cst_44 {dimension_numbers = #tpu.dot_dimension_numbers<[1], [1], [0], [0], [0, 0, 1, 0], [], []>} : vector<9x8xbf16>, vector<9x8xbf16>, vector<9x9xf32> -> vector<9x9xf32>
    %cst_45 = arith.constant 0.353553385 : f32
    %135 = vector.broadcast %cst_45 : f32 to vector<9x9xf32>
    %136 = arith.mulf %134, %135 : vector<9x9xf32>
    %cst_46 = arith.constant -1.000000e+30 : f32
    %137 = vector.broadcast %cst_46 : f32 to vector<9x9xf32>
    %138 = arith.select %40, %136, %137 : vector<9x9xi1>, vector<9x9xf32>
    %cst_47 = arith.constant dense<0xFF800000> : vector<9xf32>
    %139 = vector.multi_reduction <maximumf>, %138, %cst_47 [1] : vector<9x9xf32> to vector<9xf32>
    %140 = vector.shape_cast %139 : vector<9xf32> to vector<9x1xf32>
    %141 = vector.broadcast %140 : vector<9x1xf32> to vector<9x9xf32>
    %142 = arith.subf %138, %141 : vector<9x9xf32>
    %143 = math.exp %142 : vector<9x9xf32>
    %cst_48 = arith.constant dense<0.000000e+00> : vector<9xf32>
    %144 = vector.multi_reduction <add>, %143, %cst_48 [1] : vector<9x9xf32> to vector<9xf32>
    %145 = vector.shape_cast %144 : vector<9xf32> to vector<9x1xf32>
    %146 = tpu.reciprocal %145 {approx = true} : vector<9x1xf32> -> vector<9x1xf32>
    %147 = vector.broadcast %146 : vector<9x1xf32> to vector<9x9xf32>
    %148 = arith.mulf %143, %147 : vector<9x9xf32>
    %149 = arith.truncf %148 : vector<9x9xf32> to vector<9x9xbf16>
    %cst_49 = arith.constant dense<0.000000e+00> : vector<9x8xf32>
    %150 = tpu.matmul %149, %133, %cst_49 {dimension_numbers = #tpu.dot_dimension_numbers<[1], [0], [0], [1], [0, 0, 1, 1], [], []>} : vector<9x9xbf16>, vector<9x8xbf16>, vector<9x8xf32> -> vector<9x8xf32>
    %151 = arith.truncf %150 : vector<9x8xf32> to vector<9x8xbf16>
    %152 = vector.extract_strided_slice %45 {offsets = [24, 0], sizes = [8, 32], strides = [1, 1]} : vector<32x32xbf16> to vector<8x32xbf16>
    %cst_50 = arith.constant dense<0.000000e+00> : vector<9x32xf32>
    %153 = tpu.matmul %151, %152, %cst_50 {dimension_numbers = #tpu.dot_dimension_numbers<[1], [0], [0], [1], [0, 0, 1, 1], [], []>} : vector<9x8xbf16>, vector<8x32xbf16>, vector<9x32xf32> -> vector<9x32xf32>
    %154 = arith.addf %127, %153 : vector<9x32xf32>
    %155 = arith.addf %3, %154 : vector<9x32xf32>
    %c0_51 = arith.constant 0 : index
    %c0_52 = arith.constant 0 : index
    %c0_53 = arith.constant 0 : index
    %156 = vector.load %arg8[%c0_51, %c0_52, %c0_53] : memref<1x1x32xf32, #tpu.memory_space<vmem>>, vector<1x1x32xf32>
    %157 = vector.shape_cast %156 : vector<1x1x32xf32> to vector<1x32xf32>
    %158 = vector.broadcast %157 : vector<1x32xf32> to vector<9x32xf32>
    %159 = arith.addf %155, %158 : vector<9x32xf32>
    %c0_54 = arith.constant 0 : index
    %c0_55 = arith.constant 0 : index
    %c0_56 = arith.constant 0 : index
    %160 = vector.load %arg9[%c0_54, %c0_55, %c0_56] : memref<1x1x32xf32, #tpu.memory_space<vmem>>, vector<1x1x32xf32>
    %161 = vector.shape_cast %160 : vector<1x1x32xf32> to vector<1x32xf32>
    %c0_57 = arith.constant 0 : index
    %c0_58 = arith.constant 0 : index
    %c0_59 = arith.constant 0 : index
    %162 = vector.load %arg10[%c0_57, %c0_58, %c0_59] : memref<1x1x32xf32, #tpu.memory_space<vmem>>, vector<1x1x32xf32>
    %163 = vector.shape_cast %162 : vector<1x1x32xf32> to vector<1x32xf32>
    %cst_60 = arith.constant dense<0.000000e+00> : vector<9xf32>
    %164 = vector.multi_reduction <add>, %159, %cst_60 [1] : vector<9x32xf32> to vector<9xf32>
    %165 = vector.shape_cast %164 : vector<9xf32> to vector<9x1xf32>
    %cst_61 = arith.constant 3.200000e+01 : f32
    %166 = vector.broadcast %cst_61 : f32 to vector<9x1xf32>
    %167 = arith.divf %165, %166 : vector<9x1xf32>
    %168 = vector.broadcast %167 : vector<9x1xf32> to vector<9x32xf32>
    %169 = arith.subf %159, %168 : vector<9x32xf32>
    %170 = arith.mulf %169, %169 : vector<9x32xf32>
    %cst_62 = arith.constant dense<0.000000e+00> : vector<9xf32>
    %171 = vector.multi_reduction <add>, %170, %cst_62 [1] : vector<9x32xf32> to vector<9xf32>
    %172 = vector.shape_cast %171 : vector<9xf32> to vector<9x1xf32>
    %cst_63 = arith.constant 3.200000e+01 : f32
    %173 = vector.broadcast %cst_63 : f32 to vector<9x1xf32>
    %174 = arith.divf %172, %173 : vector<9x1xf32>
    %175 = vector.broadcast %167 : vector<9x1xf32> to vector<9x32xf32>
    %176 = arith.subf %159, %175 : vector<9x32xf32>
    %cst_64 = arith.constant 9.99999974E-6 : f32
    %177 = vector.broadcast %cst_64 : f32 to vector<9x1xf32>
    %178 = arith.addf %174, %177 : vector<9x1xf32>
    %179 = math.rsqrt %178 : vector<9x1xf32>
    %180 = vector.broadcast %179 : vector<9x1xf32> to vector<9x32xf32>
    %181 = arith.mulf %176, %180 : vector<9x32xf32>
    %182 = vector.broadcast %161 : vector<1x32xf32> to vector<9x32xf32>
    %183 = arith.mulf %181, %182 : vector<9x32xf32>
    %184 = vector.broadcast %163 : vector<1x32xf32> to vector<9x32xf32>
    %185 = arith.addf %183, %184 : vector<9x32xf32>
    %186 = arith.truncf %185 : vector<9x32xf32> to vector<9x32xbf16>
    %c0_65 = arith.constant 0 : index
    %c0_66 = arith.constant 0 : index
    %c0_67 = arith.constant 0 : index
    %187 = vector.load %arg11[%c0_65, %c0_66, %c0_67] : memref<1x32x128xbf16, #tpu.memory_space<vmem>>, vector<1x32x128xbf16>
    %188 = vector.shape_cast %187 : vector<1x32x128xbf16> to vector<32x128xbf16>
    %cst_68 = arith.constant dense<0.000000e+00> : vector<9x128xf32>
    %189 = tpu.matmul %186, %188, %cst_68 {dimension_numbers = #tpu.dot_dimension_numbers<[1], [0], [0], [1], [0, 0, 1, 1], [], []>} : vector<9x32xbf16>, vector<32x128xbf16>, vector<9x128xf32> -> vector<9x128xf32>
    %c0_69 = arith.constant 0 : index
    %c0_70 = arith.constant 0 : index
    %c0_71 = arith.constant 0 : index
    %190 = vector.load %arg12[%c0_69, %c0_70, %c0_71] : memref<1x1x128xf32, #tpu.memory_space<vmem>>, vector<1x1x128xf32>
    %191 = vector.shape_cast %190 : vector<1x1x128xf32> to vector<1x128xf32>
    %192 = vector.broadcast %191 : vector<1x128xf32> to vector<9x128xf32>
    %193 = arith.addf %189, %192 : vector<9x128xf32>
    %194 = arith.mulf %193, %193 : vector<9x128xf32>
    %195 = arith.mulf %193, %194 : vector<9x128xf32>
    %cst_72 = arith.constant 4.471500e-02 : f32
    %196 = vector.broadcast %cst_72 : f32 to vector<9x128xf32>
    %197 = arith.mulf %196, %195 : vector<9x128xf32>
    %198 = arith.addf %193, %197 : vector<9x128xf32>
    %cst_73 = arith.constant 0.797884583 : f32
    %199 = vector.broadcast %cst_73 : f32 to vector<9x128xf32>
    %200 = arith.mulf %199, %198 : vector<9x128xf32>
    %201 = math.tanh %200 : vector<9x128xf32>
    %cst_74 = arith.constant 1.000000e+00 : f32
    %202 = vector.broadcast %cst_74 : f32 to vector<9x128xf32>
    %203 = arith.addf %202, %201 : vector<9x128xf32>
    %cst_75 = arith.constant 5.000000e-01 : f32
    %204 = vector.broadcast %cst_75 : f32 to vector<9x128xf32>
    %205 = arith.mulf %204, %203 : vector<9x128xf32>
    %206 = arith.mulf %193, %205 : vector<9x128xf32>
    %207 = arith.truncf %206 : vector<9x128xf32> to vector<9x128xbf16>
    %c0_76 = arith.constant 0 : index
    %c0_77 = arith.constant 0 : index
    %c0_78 = arith.constant 0 : index
    %208 = vector.load %arg13[%c0_76, %c0_77, %c0_78] : memref<1x128x32xbf16, #tpu.memory_space<vmem>>, vector<1x128x32xbf16>
    %209 = vector.shape_cast %208 : vector<1x128x32xbf16> to vector<128x32xbf16>
    %cst_79 = arith.constant dense<0.000000e+00> : vector<9x32xf32>
    %210 = tpu.matmul %207, %209, %cst_79 {dimension_numbers = #tpu.dot_dimension_numbers<[1], [0], [0], [1], [0, 0, 1, 1], [], []>} : vector<9x128xbf16>, vector<128x32xbf16>, vector<9x32xf32> -> vector<9x32xf32>
    %211 = arith.addf %159, %210 : vector<9x32xf32>
    %c0_80 = arith.constant 0 : index
    %c0_81 = arith.constant 0 : index
    %c0_82 = arith.constant 0 : index
    %212 = vector.load %arg14[%c0_80, %c0_81, %c0_82] : memref<1x1x32xf32, #tpu.memory_space<vmem>>, vector<1x1x32xf32>
    %213 = vector.shape_cast %212 : vector<1x1x32xf32> to vector<1x32xf32>
    %214 = vector.broadcast %213 : vector<1x32xf32> to vector<9x32xf32>
    %215 = arith.addf %211, %214 : vector<9x32xf32>
    %c0_83 = arith.constant 0 : index
    %c0_84 = arith.constant 0 : index
    %216 = vector.load %arg20[%c0_83, %c0_84] : memref<9x32xf32, #tpu.memory_space<vmem>>, vector<9x32xf32>
    tpu.vector_store %arg20[%c0_83, %c0_84], %215 {strides = array<i32>} : memref<9x32xf32, #tpu.memory_space<vmem>>, vector<9x32xf32>,
    %c1_i32 = arith.constant 1 : i32
    %217 = arith.cmpi eq, %arg1, %c1_i32 : i32
    %218 = arith.extui %217 : i1 to i32
    %c0_i32_85 = arith.constant 0 : i32
    %219 = arith.cmpi ne, %218, %c0_i32_85 : i32
    scf.if %219 {
      %220 = vector.extract_strided_slice %215 {offsets = [0, 0], sizes = [1, 32], strides = [1, 1]} : vector<9x32xf32> to vector<1x32xf32>
      %c0_86 = arith.constant 0 : index
      %c0_87 = arith.constant 0 : index
      %221 = vector.load %arg15[%c0_86, %c0_87] : memref<1x32xf32, #tpu.memory_space<vmem>>, vector<1x32xf32>
      %c0_88 = arith.constant 0 : index
      %c0_89 = arith.constant 0 : index
      %222 = vector.load %arg16[%c0_88, %c0_89] : memref<1x32xf32, #tpu.memory_space<vmem>>, vector<1x32xf32>
      %cst_90 = arith.constant dense<0.000000e+00> : vector<1xf32>
      %223 = vector.multi_reduction <add>, %220, %cst_90 [1] : vector<1x32xf32> to vector<1xf32>
      %224 = vector.shape_cast %223 : vector<1xf32> to vector<1x1xf32>
      %cst_91 = arith.constant 3.200000e+01 : f32
      %225 = vector.broadcast %cst_91 : f32 to vector<1x1xf32>
      %226 = arith.divf %224, %225 : vector<1x1xf32>
      %227 = vector.broadcast %226 : vector<1x1xf32> to vector<1x32xf32>
      %228 = arith.subf %220, %227 : vector<1x32xf32>
      %229 = arith.mulf %228, %228 : vector<1x32xf32>
      %cst_92 = arith.constant dense<0.000000e+00> : vector<1xf32>
      %230 = vector.multi_reduction <add>, %229, %cst_92 [1] : vector<1x32xf32> to vector<1xf32>
      %231 = vector.shape_cast %230 : vector<1xf32> to vector<1x1xf32>
      %cst_93 = arith.constant 3.200000e+01 : f32
      %232 = vector.broadcast %cst_93 : f32 to vector<1x1xf32>
      %233 = arith.divf %231, %232 : vector<1x1xf32>
      %234 = vector.broadcast %226 : vector<1x1xf32> to vector<1x32xf32>
      %235 = arith.subf %220, %234 : vector<1x32xf32>
      %cst_94 = arith.constant 9.99999974E-6 : f32
      %236 = vector.broadcast %cst_94 : f32 to vector<1x1xf32>
      %237 = arith.addf %233, %236 : vector<1x1xf32>
      %238 = math.rsqrt %237 : vector<1x1xf32>
      %239 = vector.broadcast %238 : vector<1x1xf32> to vector<1x32xf32>
      %240 = arith.mulf %235, %239 : vector<1x32xf32>
      %241 = arith.mulf %240, %221 : vector<1x32xf32>
      %242 = arith.addf %241, %222 : vector<1x32xf32>
      %243 = arith.truncf %242 : vector<1x32xf32> to vector<1x32xbf16>
      %c0_95 = arith.constant 0 : index
      %c0_96 = arith.constant 0 : index
      %244 = vector.load %arg17[%c0_95, %c0_96] : memref<32x64xbf16, #tpu.memory_space<vmem>>, vector<32x64xbf16>
      %cst_97 = arith.constant dense<0.000000e+00> : vector<1x64xf32>
      %245 = tpu.matmul %243, %244, %cst_97 {dimension_numbers = #tpu.dot_dimension_numbers<[1], [0], [0], [1], [0, 0, 1, 1], [], []>} : vector<1x32xbf16>, vector<32x64xbf16>, vector<1x64xf32> -> vector<1x64xf32>
      %c0_98 = arith.constant 0 : index
      %c0_99 = arith.constant 0 : index
      %246 = vector.load %arg18[%c0_98, %c0_99] : memref<1x64xf32, #tpu.memory_space<vmem>>, vector<1x64xf32>
      %247 = arith.addf %245, %246 : vector<1x64xf32>
      %c0_100 = arith.constant 0 : index
      %c0_101 = arith.constant 0 : index
      %c0_102 = arith.constant 0 : index
      %248 = vector.load %arg19[%c0_100, %c0_101, %c0_102] : memref<1x1x64xf32, #tpu.memory_space<vmem>>, vector<1x1x64xf32>
      %249 = vector.shape_cast %248 : vector<1x1x64xf32> to vector<1x64xf32>
      %250 = vector.shape_cast %247 : vector<1x64xf32> to vector<1x1x64xf32>
      tpu.vector_store %arg19[%c0_100, %c0_101, %c0_102], %250 {strides = array<i32>} : memref<1x1x64xf32, #tpu.memory_space<vmem>>, vector<1x1x64xf32>,
    } else {
    }
    return
  }
  func.func @transform_0(%arg0: i32, %arg1: i32) -> (i32, i32, i32) {
    %c0_i32 = arith.constant 0 : i32
    %c0_i32_0 = arith.constant 0 : i32
    %c0_i32_1 = arith.constant 0 : i32
    return %arg0, %c0_i32, %c0_i32_0 : i32, i32, i32
  }
  func.func @transform_1(%arg0: i32, %arg1: i32) -> (i32, i32, i32) {
    %c0_i32 = arith.constant 0 : i32
    %c0_i32_0 = arith.constant 0 : i32
    %c0_i32_1 = arith.constant 0 : i32
    return %arg1, %c0_i32, %c0_i32_0 : i32, i32, i32
  }
  func.func @transform_2(%arg0: i32, %arg1: i32) -> (i32, i32, i32) {
    %c0_i32 = arith.constant 0 : i32
    %c0_i32_0 = arith.constant 0 : i32
    %c0_i32_1 = arith.constant 0 : i32
    return %arg1, %c0_i32, %c0_i32_0 : i32, i32, i32
  }
  func.func @transform_3(%arg0: i32, %arg1: i32) -> (i32, i32, i32) {
    %c0_i32 = arith.constant 0 : i32
    %c0_i32_0 = arith.constant 0 : i32
    %c0_i32_1 = arith.constant 0 : i32
    return %arg1, %c0_i32, %c0_i32_0 : i32, i32, i32
  }
  func.func @transform_4(%arg0: i32, %arg1: i32) -> (i32, i32, i32) {
    %c0_i32 = arith.constant 0 : i32
    %c0_i32_0 = arith.constant 0 : i32
    %c0_i32_1 = arith.constant 0 : i32
    return %arg1, %c0_i32, %c0_i32_0 : i32, i32, i32
  }
  func.func @transform_5(%arg0: i32, %arg1: i32) -> (i32, i32, i32) {
    %c0_i32 = arith.constant 0 : i32
    %c0_i32_0 = arith.constant 0 : i32
    %c0_i32_1 = arith.constant 0 : i32
    return %arg1, %c0_i32, %c0_i32_0 : i32, i32, i32
  }
  func.func @transform_6(%arg0: i32, %arg1: i32) -> (i32, i32, i32) {
    %c0_i32 = arith.constant 0 : i32
    %c0_i32_0 = arith.constant 0 : i32
    %c0_i32_1 = arith.constant 0 : i32
    return %arg1, %c0_i32, %c0_i32_0 : i32, i32, i32
  }
  func.func @transform_7(%arg0: i32, %arg1: i32) -> (i32, i32, i32) {
    %c0_i32 = arith.constant 0 : i32
    %c0_i32_0 = arith.constant 0 : i32
    %c0_i32_1 = arith.constant 0 : i32
    return %arg1, %c0_i32, %c0_i32_0 : i32, i32, i32
  }
  func.func @transform_8(%arg0: i32, %arg1: i32) -> (i32, i32, i32) {
    %c0_i32 = arith.constant 0 : i32
    %c0_i32_0 = arith.constant 0 : i32
    %c0_i32_1 = arith.constant 0 : i32
    return %arg1, %c0_i32, %c0_i32_0 : i32, i32, i32
  }
  func.func @transform_9(%arg0: i32, %arg1: i32) -> (i32, i32, i32) {
    %c0_i32 = arith.constant 0 : i32
    %c0_i32_0 = arith.constant 0 : i32
    %c0_i32_1 = arith.constant 0 : i32
    return %arg1, %c0_i32, %c0_i32_0 : i32, i32, i32
  }
  func.func @transform_10(%arg0: i32, %arg1: i32) -> (i32, i32, i32) {
    %c0_i32 = arith.constant 0 : i32
    %c0_i32_0 = arith.constant 0 : i32
    %c0_i32_1 = arith.constant 0 : i32
    return %arg1, %c0_i32, %c0_i32_0 : i32, i32, i32
  }
  func.func @transform_11(%arg0: i32, %arg1: i32) -> (i32, i32, i32) {
    %c0_i32 = arith.constant 0 : i32
    %c0_i32_0 = arith.constant 0 : i32
    %c0_i32_1 = arith.constant 0 : i32
    return %arg1, %c0_i32, %c0_i32_0 : i32, i32, i32
  }
  func.func @transform_12(%arg0: i32, %arg1: i32) -> (i32, i32, i32) {
    %c0_i32 = arith.constant 0 : i32
    %c0_i32_0 = arith.constant 0 : i32
    %c0_i32_1 = arith.constant 0 : i32
    return %arg1, %c0_i32, %c0_i32_0 : i32, i32, i32
  }
  func.func @transform_13(%arg0: i32, %arg1: i32) -> (i32, i32) {
    %c0_i32 = arith.constant 0 : i32
    %c0_i32_0 = arith.constant 0 : i32
    %c0_i32_1 = arith.constant 0 : i32
    return %c0_i32, %c0_i32_0 : i32, i32
  }
  func.func @transform_14(%arg0: i32, %arg1: i32) -> (i32, i32) {
    %c0_i32 = arith.constant 0 : i32
    %c0_i32_0 = arith.constant 0 : i32
    %c0_i32_1 = arith.constant 0 : i32
    return %c0_i32, %c0_i32_0 : i32, i32
  }
  func.func @transform_15(%arg0: i32, %arg1: i32) -> (i32, i32) {
    %c0_i32 = arith.constant 0 : i32
    %c0_i32_0 = arith.constant 0 : i32
    %c0_i32_1 = arith.constant 0 : i32
    return %c0_i32, %c0_i32_0 : i32, i32
  }
  func.func @transform_16(%arg0: i32, %arg1: i32) -> (i32, i32) {
    %c0_i32 = arith.constant 0 : i32
    %c0_i32_0 = arith.constant 0 : i32
    %c0_i32_1 = arith.constant 0 : i32
    return %c0_i32, %c0_i32_0 : i32, i32
  }
  func.func @transform_17(%arg0: i32, %arg1: i32) -> (i32, i32, i32) {
    %c0_i32 = arith.constant 0 : i32
    %c0_i32_0 = arith.constant 0 : i32
    %c0_i32_1 = arith.constant 0 : i32
    return %arg0, %c0_i32, %c0_i32_0 : i32, i32, i32
  }
}

</mosaic_0001>

<llo_original>
// kernel: trajectory_encoder_forward.3
$region0: #{trajectory_encoder_forward.3}
  #allocation0 [shape = 'u32[]', space=smem, size = 0x4, offset = 0x4, fixed_abs, tag = 'smem constant byte address 0x4 - core index']
  #allocation1 [shape = 'u32[72,128]{1,0:T(1,128)}', space=vmem, size = 0x9000, scoped, tag = 'internal scratch']
  #allocation2 [shape = 'f32[9,32]{1,0:T(8,128)}', space=vmem, size = 0x2000, scoped, tag = 'scratch operand']
  %s0 = inlined_call_operand.vmem [shape: f32[2,9,32], index: 0, kind: input, shape index: {}]
  %s1 = inlined_call_operand.vmem [shape: f32[2,1,32], index: 1, kind: input, shape index: {}]
  %s2 = inlined_call_operand.vmem [shape: f32[2,1,32], index: 2, kind: input, shape index: {}]
  %s3 = inlined_call_operand.vmem [shape: bf16[2,32,96], index: 3, kind: input, shape index: {}]
  %s4 = inlined_call_operand.vmem [shape: f32[2,1,96], index: 4, kind: input, shape index: {}]
  %s5 = inlined_call_operand.vmem [shape: bf16[2,32,32], index: 5, kind: input, shape index: {}]
  %s6 = inlined_call_operand.vmem [shape: f32[2,1,32], index: 6, kind: input, shape index: {}]
  %s7 = inlined_call_operand.vmem [shape: f32[2,1,32], index: 7, kind: input, shape index: {}]
  %s8 = inlined_call_operand.vmem [shape: f32[2,1,32], index: 8, kind: input, shape index: {}]
  %s9 = inlined_call_operand.vmem [shape: bf16[2,32,128], index: 9, kind: input, shape index: {}]
  %s10 = inlined_call_operand.vmem [shape: f32[2,1,128], index: 10, kind: input, shape index: {}]
  %s11 = inlined_call_operand.vmem [shape: bf16[2,128,32], index: 11, kind: input, shape index: {}]
  %s12 = inlined_call_operand.vmem [shape: f32[2,1,32], index: 12, kind: input, shape index: {}]
  %s13 = inlined_call_operand.vmem [shape: f32[1,32], index: 13, kind: input, shape index: {}]
  %s14 = inlined_call_operand.vmem [shape: f32[1,32], index: 14, kind: input, shape index: {}]
  %s15 = inlined_call_operand.vmem [shape: bf16[32,64], index: 15, kind: input, shape index: {}]
  %s16 = inlined_call_operand.vmem [shape: f32[1,64], index: 16, kind: input, shape index: {}]
  %s17 = inlined_call_operand.vmem [shape: f32[2,1,64], index: 17, kind: output, shape index: {}]
  %s18 = sld [smem:[#allocation0]]
  $region109: #{trajectory_encoder_forward.3} parent=0
    _
  %s20 = ssub.s32 1, %s18
  %s21 = scalar_select 0, %s20, %s18
  loop: start=0, step=1, limit=6
  $region2: #{trajectory_encoder_forward.3} parent=0 // loop_pre_header
    _
  $region3: #{trajectory_encoder_forward.3} parent=0 // loop_header
    %s23 = sphi 0, %s27
    %p24 = scmp.ge.s32.totalorder %s23, 6
    %s30 = sphi 0, %s42
    %s31 = sphi 0, %s38
    %s32 = sphi 0, %s30
    %s33 = sphi 0, %s31
    %s34 = sphi 0, %s32
    %s35 = sphi 0, %s33
    %s45 = sphi 0, %s47
    %s48 = sphi 0, %s45
    %s49 = sphi 0, %s48
    %s65 = sphi 0, %s49
    %s71 = sphi 0, %s73
    %s74 = sphi 0, %s71
    %s75 = sphi 0, %s74
    %s91 = sphi 0, %s75
    %s97 = sphi 0, %s99
    %s100 = sphi 0, %s97
    %s101 = sphi 0, %s100
    %s117 = sphi 0, %s101
    %s123 = sphi 0, %s125
    %s126 = sphi 0, %s123
    %s127 = sphi 0, %s126
    %s143 = sphi 0, %s127
    %s149 = sphi 0, %s151
    %s152 = sphi 0, %s149
    %s153 = sphi 0, %s152
    %s169 = sphi 0, %s153
    %s175 = sphi 0, %s177
    %s178 = sphi 0, %s175
    %s179 = sphi 0, %s178
    %s195 = sphi 0, %s179
    %s201 = sphi 0, %s203
    %s204 = sphi 0, %s201
    %s205 = sphi 0, %s204
    %s221 = sphi 0, %s205
    %s227 = sphi 0, %s229
    %s230 = sphi 0, %s227
    %s231 = sphi 0, %s230
    %s247 = sphi 0, %s231
    %s253 = sphi 0, %s255
    %s256 = sphi 0, %s253
    %s257 = sphi 0, %s256
    %s273 = sphi 0, %s257
    %s279 = sphi 0, %s281
    %s282 = sphi 0, %s279
    %s283 = sphi 0, %s282
    %s299 = sphi 0, %s283
    %s305 = sphi 0, %s307
    %s308 = sphi 0, %s305
    %s309 = sphi 0, %s308
    %s325 = sphi 0, %s309
    %s331 = sphi 0, %s333
    %s334 = sphi 0, %s331
    %s335 = sphi 0, %s334
    %s351 = sphi 0, %s335
    %s357 = sphi 0, %s359
    %s360 = sphi 0, %s357
    %s361 = sphi 0, %s360
    %s377 = sphi 0, %s361
    %s381 = sphi 0, %s381
    %s383 = sphi 0, %s381
    %s384 = sphi 0, %s383
    %s398 = sphi 0, %s384
    %s402 = sphi 0, %s402
    %s404 = sphi 0, %s402
    %s405 = sphi 0, %s404
    %s419 = sphi 0, %s405
    %s423 = sphi 0, %s423
    %s425 = sphi 0, %s423
    %s426 = sphi 0, %s425
    %s440 = sphi 0, %s426
    %s444 = sphi 0, %s444
    %s446 = sphi 0, %s444
    %s447 = sphi 0, %s446
    %s461 = sphi 0, %s447
    %s467 = sphi 0, %s469
    %s470 = sphi 0, %s467
    %s471 = sphi 0, %s470
    %s487 = sphi 0, %s471
  $region4: #{trajectory_encoder_forward.3} parent=0 // loop_header_branch
    %26 = sbr.rel (%p24) target = $region8
  $region5: #{trajectory_encoder_forward.3} parent=0 // loop_body
    %s28 = ssub.s32 %s23, 1
    %s29 = ssub.s32 %s23, 2
    %s36 = sadd.s32 1, %s31
    %p37 = scmp.ge.s32.totalorder %s36, 2
    %s38 = scalar_select %p37, 0, %s36
    %s39 = sadd.s32 1, %s30
    %s40 = scalar_select %p37, %s39, %s30
    %p41 = scmp.ge.s32.totalorder %s40, 2
    %s42 = scalar_select %p41, 0, %s40
    %s43 = ssub.s32 %s30, %s42
    %p44 = scmp.eq.s32.totalorder %s43, 0
    %s46 = sadd.s32 %s45, 1
    %s47 = scalar_select %p44, %s45, %s46
    %p50 = pneg %p44
    %p51 = scmp.eq.s32.totalorder %s23, 3
    %p52 = por %p50, %p51
    %p53 = scmp.ne.s32.totalorder %s45, %s48
    %p54 = scmp.eq.s32.totalorder %s23, 0
    %p55 = por %p53, %p54
    %p56 = scmp.ne.s32.totalorder %s45, %s48
    %p57 = scmp.eq.s32.totalorder %s28, 3
    %p58 = por %p56, %p57
    %p59 = scmp.ne.s32.totalorder %s48, %s49
    %p60 = scmp.eq.s32.totalorder %s28, 0
    %p61 = por %p59, %p60
    %p62 = scmp.ne.s32.totalorder %s48, %s49
    %p63 = scmp.eq.s32.totalorder %s29, 3
    %p64 = por %p62, %p63
    %p66 = scmp.ne.s32.totalorder %s49, %s65
    %p67 = scmp.eq.s32.totalorder %s29, 0
    %p68 = por %p66, %p67
    %s69 = ssub.s32 %s31, %s38
    %p70 = scmp.eq.s32.totalorder %s69, 0
    %s72 = sadd.s32 %s71, 1
    %s73 = scalar_select %p70, %s71, %s72
    %p76 = pneg %p70
    %p77 = scmp.eq.s32.totalorder %s23, 3
    %p78 = por %p76, %p77
    %p79 = scmp.ne.s32.totalorder %s71, %s74
    %p80 = scmp.eq.s32.totalorder %s23, 0
    %p81 = por %p79, %p80
    %p82 = scmp.ne.s32.totalorder %s71, %s74
    %p83 = scmp.eq.s32.totalorder %s28, 3
    %p84 = por %p82, %p83
    %p85 = scmp.ne.s32.totalorder %s74, %s75
    %p86 = scmp.eq.s32.totalorder %s28, 0
    %p87 = por %p85, %p86
    %p88 = scmp.ne.s32.totalorder %s74, %s75
    %p89 = scmp.eq.s32.totalorder %s29, 3
    %p90 = por %p88, %p89
    %p92 = scmp.ne.s32.totalorder %s75, %s91
    %p93 = scmp.eq.s32.totalorder %s29, 0
    %p94 = por %p92, %p93
    %s95 = ssub.s32 %s31, %s38
    %p96 = scmp.eq.s32.totalorder %s95, 0
    %s98 = sadd.s32 %s97, 1
    %s99 = scalar_select %p96, %s97, %s98
    %p102 = pneg %p96
    %p103 = scmp.eq.s32.totalorder %s23, 3
    %p104 = por %p102, %p103
    %p105 = scmp.ne.s32.totalorder %s97, %s100
    %p106 = scmp.eq.s32.totalorder %s23, 0
    %p107 = por %p105, %p106
    %p108 = scmp.ne.s32.totalorder %s97, %s100
    %p109 = scmp.eq.s32.totalorder %s28, 3
    %p110 = por %p108, %p109
    %p111 = scmp.ne.s32.totalorder %s100, %s101
    %p112 = scmp.eq.s32.totalorder %s28, 0
    %p113 = por %p111, %p112
    %p114 = scmp.ne.s32.totalorder %s100, %s101
    %p115 = scmp.eq.s32.totalorder %s29, 3
    %p116 = por %p114, %p115
    %p118 = scmp.ne.s32.totalorder %s101, %s117
    %p119 = scmp.eq.s32.totalorder %s29, 0
    %p120 = por %p118, %p119
    %s121 = ssub.s32 %s31, %s38
    %p122 = scmp.eq.s32.totalorder %s121, 0
    %s124 = sadd.s32 %s123, 1
    %s125 = scalar_select %p122, %s123, %s124
    %p128 = pneg %p122
    %p129 = scmp.eq.s32.totalorder %s23, 3
    %p130 = por %p128, %p129
    %p131 = scmp.ne.s32.totalorder %s123, %s126
    %p132 = scmp.eq.s32.totalorder %s23, 0
    %p133 = por %p131, %p132
    %p134 = scmp.ne.s32.totalorder %s123, %s126
    %p135 = scmp.eq.s32.totalorder %s28, 3
    %p136 = por %p134, %p135
    %p137 = scmp.ne.s32.totalorder %s126, %s127
    %p138 = scmp.eq.s32.totalorder %s28, 0
    %p139 = por %p137, %p138
    %p140 = scmp.ne.s32.totalorder %s126, %s127
    %p141 = scmp.eq.s32.totalorder %s29, 3
    %p142 = por %p140, %p141
    %p144 = scmp.ne.s32.totalorder %s127, %s143
    %p145 = scmp.eq.s32.totalorder %s29, 0
    %p146 = por %p144, %p145
    %s147 = ssub.s32 %s31, %s38
    %p148 = scmp.eq.s32.totalorder %s147, 0
    %s150 = sadd.s32 %s149, 1
    %s151 = scalar_select %p148, %s149, %s150
    %p154 = pneg %p148
    %p155 = scmp.eq.s32.totalorder %s23, 3
    %p156 = por %p154, %p155
    %p157 = scmp.ne.s32.totalorder %s149, %s152
    %p158 = scmp.eq.s32.totalorder %s23, 0
    %p159 = por %p157, %p158
    %p160 = scmp.ne.s32.totalorder %s149, %s152
    %p161 = scmp.eq.s32.totalorder %s28, 3
    %p162 = por %p160, %p161
    %p163 = scmp.ne.s32.totalorder %s152, %s153
    %p164 = scmp.eq.s32.totalorder %s28, 0
    %p165 = por %p163, %p164
    %p166 = scmp.ne.s32.totalorder %s152, %s153
    %p167 = scmp.eq.s32.totalorder %s29, 3
    %p168 = por %p166, %p167
    %p170 = scmp.ne.s32.totalorder %s153, %s169
    %p171 = scmp.eq.s32.totalorder %s29, 0
    %p172 = por %p170, %p171
    %s173 = ssub.s32 %s31, %s38
    %p174 = scmp.eq.s32.totalorder %s173, 0
    %s176 = sadd.s32 %s175, 1
    %s177 = scalar_select %p174, %s175, %s176
    %p180 = pneg %p174
    %p181 = scmp.eq.s32.totalorder %s23, 3
    %p182 = por %p180, %p181
    %p183 = scmp.ne.s32.totalorder %s175, %s178
    %p184 = scmp.eq.s32.totalorder %s23, 0
    %p185 = por %p183, %p184
    %p186 = scmp.ne.s32.totalorder %s175, %s178
    %p187 = scmp.eq.s32.totalorder %s28, 3
    %p188 = por %p186, %p187
    %p189 = scmp.ne.s32.totalorder %s178, %s179
    %p190 = scmp.eq.s32.totalorder %s28, 0
    %p191 = por %p189, %p190
    %p192 = scmp.ne.s32.totalorder %s178, %s179
    %p193 = scmp.eq.s32.totalorder %s29, 3
    %p194 = por %p192, %p193
    %p196 = scmp.ne.s32.totalorder %s179, %s195
    %p197 = scmp.eq.s32.totalorder %s29, 0
    %p198 = por %p196, %p197
    %s199 = ssub.s32 %s31, %s38
    %p200 = scmp.eq.s32.totalorder %s199, 0
    %s202 = sadd.s32 %s201, 1
    %s203 = scalar_select %p200, %s201, %s202
    %p206 = pneg %p200
    %p207 = scmp.eq.s32.totalorder %s23, 3
    %p208 = por %p206, %p207
    %p209 = scmp.ne.s32.totalorder %s201, %s204
    %p210 = scmp.eq.s32.totalorder %s23, 0
    %p211 = por %p209, %p210
    %p212 = scmp.ne.s32.totalorder %s201, %s204
    %p213 = scmp.eq.s32.totalorder %s28, 3
    %p214 = por %p212, %p213
    %p215 = scmp.ne.s32.totalorder %s204, %s205
    %p216 = scmp.eq.s32.totalorder %s28, 0
    %p217 = por %p215, %p216
    %p218 = scmp.ne.s32.totalorder %s204, %s205
    %p219 = scmp.eq.s32.totalorder %s29, 3
    %p220 = por %p218, %p219
    %p222 = scmp.ne.s32.totalorder %s205, %s221
    %p223 = scmp.eq.s32.totalorder %s29, 0
    %p224 = por %p222, %p223
    %s225 = ssub.s32 %s31, %s38
    %p226 = scmp.eq.s32.totalorder %s225, 0
    %s228 = sadd.s32 %s227, 1
    %s229 = scalar_select %p226, %s227, %s228
    %p232 = pneg %p226
    %p233 = scmp.eq.s32.totalorder %s23, 3
    %p234 = por %p232, %p233
    %p235 = scmp.ne.s32.totalorder %s227, %s230
    %p236 = scmp.eq.s32.totalorder %s23, 0
    %p237 = por %p235, %p236
    %p238 = scmp.ne.s32.totalorder %s227, %s230
    %p239 = scmp.eq.s32.totalorder %s28, 3
    %p240 = por %p238, %p239
    %p241 = scmp.ne.s32.totalorder %s230, %s231
    %p242 = scmp.eq.s32.totalorder %s28, 0
    %p243 = por %p241, %p242
    %p244 = scmp.ne.s32.totalorder %s230, %s231
    %p245 = scmp.eq.s32.totalorder %s29, 3
    %p246 = por %p244, %p245
    %p248 = scmp.ne.s32.totalorder %s231, %s247
    %p249 = scmp.eq.s32.totalorder %s29, 0
    %p250 = por %p248, %p249
    %s251 = ssub.s32 %s31, %s38
    %p252 = scmp.eq.s32.totalorder %s251, 0
    %s254 = sadd.s32 %s253, 1
    %s255 = scalar_select %p252, %s253, %s254
    %p258 = pneg %p252
    %p259 = scmp.eq.s32.totalorder %s23, 3
    %p260 = por %p258, %p259
    %p261 = scmp.ne.s32.totalorder %s253, %s256
    %p262 = scmp.eq.s32.totalorder %s23, 0
    %p263 = por %p261, %p262
    %p264 = scmp.ne.s32.totalorder %s253, %s256
    %p265 = scmp.eq.s32.totalorder %s28, 3
    %p266 = por %p264, %p265
    %p267 = scmp.ne.s32.totalorder %s256, %s257
    %p268 = scmp.eq.s32.totalorder %s28, 0
    %p269 = por %p267, %p268
    %p270 = scmp.ne.s32.totalorder %s256, %s257
    %p271 = scmp.eq.s32.totalorder %s29, 3
    %p272 = por %p270, %p271
    %p274 = scmp.ne.s32.totalorder %s257, %s273
    %p275 = scmp.eq.s32.totalorder %s29, 0
    %p276 = por %p274, %p275
    %s277 = ssub.s32 %s31, %s38
    %p278 = scmp.eq.s32.totalorder %s277, 0
    %s280 = sadd.s32 %s279, 1
    %s281 = scalar_select %p278, %s279, %s280
    %p284 = pneg %p278
    %p285 = scmp.eq.s32.totalorder %s23, 3
    %p286 = por %p284, %p285
    %p287 = scmp.ne.s32.totalorder %s279, %s282
    %p288 = scmp.eq.s32.totalorder %s23, 0
    %p289 = por %p287, %p288
    %p290 = scmp.ne.s32.totalorder %s279, %s282
    %p291 = scmp.eq.s32.totalorder %s28, 3
    %p292 = por %p290, %p291
    %p293 = scmp.ne.s32.totalorder %s282, %s283
    %p294 = scmp.eq.s32.totalorder %s28, 0
    %p295 = por %p293, %p294
    %p296 = scmp.ne.s32.totalorder %s282, %s283
    %p297 = scmp.eq.s32.totalorder %s29, 3
    %p298 = por %p296, %p297
    %p300 = scmp.ne.s32.totalorder %s283, %s299
    %p301 = scmp.eq.s32.totalorder %s29, 0
    %p302 = por %p300, %p301
    %s303 = ssub.s32 %s31, %s38
    %p304 = scmp.eq.s32.totalorder %s303, 0
    %s306 = sadd.s32 %s305, 1
    %s307 = scalar_select %p304, %s305, %s306
    %p310 = pneg %p304
    %p311 = scmp.eq.s32.totalorder %s23, 3
    %p312 = por %p310, %p311
    %p313 = scmp.ne.s32.totalorder %s305, %s308
    %p314 = scmp.eq.s32.totalorder %s23, 0
    %p315 = por %p313, %p314
    %p316 = scmp.ne.s32.totalorder %s305, %s308
    %p317 = scmp.eq.s32.totalorder %s28, 3
    %p318 = por %p316, %p317
    %p319 = scmp.ne.s32.totalorder %s308, %s309
    %p320 = scmp.eq.s32.totalorder %s28, 0
    %p321 = por %p319, %p320
    %p322 = scmp.ne.s32.totalorder %s308, %s309
    %p323 = scmp.eq.s32.totalorder %s29, 3
    %p324 = por %p322, %p323
    %p326 = scmp.ne.s32.totalorder %s309, %s325
    %p327 = scmp.eq.s32.totalorder %s29, 0
    %p328 = por %p326, %p327
    %s329 = ssub.s32 %s31, %s38
    %p330 = scmp.eq.s32.totalorder %s329, 0
    %s332 = sadd.s32 %s331, 1
    %s333 = scalar_select %p330, %s331, %s332
    %p336 = pneg %p330
    %p337 = scmp.eq.s32.totalorder %s23, 3
    %p338 = por %p336, %p337
    %p339 = scmp.ne.s32.totalorder %s331, %s334
    %p340 = scmp.eq.s32.totalorder %s23, 0
    %p341 = por %p339, %p340
    %p342 = scmp.ne.s32.totalorder %s331, %s334
    %p343 = scmp.eq.s32.totalorder %s28, 3
    %p344 = por %p342, %p343
    %p345 = scmp.ne.s32.totalorder %s334, %s335
    %p346 = scmp.eq.s32.totalorder %s28, 0
    %p347 = por %p345, %p346
    %p348 = scmp.ne.s32.totalorder %s334, %s335
    %p349 = scmp.eq.s32.totalorder %s29, 3
    %p350 = por %p348, %p349
    %p352 = scmp.ne.s32.totalorder %s335, %s351
    %p353 = scmp.eq.s32.totalorder %s29, 0
    %p354 = por %p352, %p353
    %s355 = ssub.s32 %s31, %s38
    %p356 = scmp.eq.s32.totalorder %s355, 0
    %s358 = sadd.s32 %s357, 1
    %s359 = scalar_select %p356, %s357, %s358
    %p362 = pneg %p356
    %p363 = scmp.eq.s32.totalorder %s23, 3
    %p364 = por %p362, %p363
    %p365 = scmp.ne.s32.totalorder %s357, %s360
    %p366 = scmp.eq.s32.totalorder %s23, 0
    %p367 = por %p365, %p366
    %p368 = scmp.ne.s32.totalorder %s357, %s360
    %p369 = scmp.eq.s32.totalorder %s28, 3
    %p370 = por %p368, %p369
    %p371 = scmp.ne.s32.totalorder %s360, %s361
    %p372 = scmp.eq.s32.totalorder %s28, 0
    %p373 = por %p371, %p372
    %p374 = scmp.ne.s32.totalorder %s360, %s361
    %p375 = scmp.eq.s32.totalorder %s29, 3
    %p376 = por %p374, %p375
    %p378 = scmp.ne.s32.totalorder %s361, %s377
    %p379 = scmp.eq.s32.totalorder %s29, 0
    %p380 = por %p378, %p379
    %s382 = sadd.s32 %s381, 1
    %p385 = scmp.eq.s32.totalorder %s23, 3
    %p386 = scmp.ne.s32.totalorder %s381, %s383
    %p387 = scmp.eq.s32.totalorder %s23, 0
    %p388 = por %p386, %p387
    %p389 = scmp.ne.s32.totalorder %s381, %s383
    %p390 = scmp.eq.s32.totalorder %s28, 3
    %p391 = por %p389, %p390
    %p392 = scmp.ne.s32.totalorder %s383, %s384
    %p393 = scmp.eq.s32.totalorder %s28, 0
    %p394 = por %p392, %p393
    %p395 = scmp.ne.s32.totalorder %s383, %s384
    %p396 = scmp.eq.s32.totalorder %s29, 3
    %p397 = por %p395, %p396
    %p399 = scmp.ne.s32.totalorder %s384, %s398
    %p400 = scmp.eq.s32.totalorder %s29, 0
    %p401 = por %p399, %p400
    %s403 = sadd.s32 %s402, 1
    %p406 = scmp.eq.s32.totalorder %s23, 3
    %p407 = scmp.ne.s32.totalorder %s402, %s404
    %p408 = scmp.eq.s32.totalorder %s23, 0
    %p409 = por %p407, %p408
    %p410 = scmp.ne.s32.totalorder %s402, %s404
    %p411 = scmp.eq.s32.totalorder %s28, 3
    %p412 = por %p410, %p411
    %p413 = scmp.ne.s32.totalorder %s404, %s405
    %p414 = scmp.eq.s32.totalorder %s28, 0
    %p415 = por %p413, %p414
    %p416 = scmp.ne.s32.totalorder %s404, %s405
    %p417 = scmp.eq.s32.totalorder %s29, 3
    %p418 = por %p416, %p417
    %p420 = scmp.ne.s32.totalorder %s405, %s419
    %p421 = scmp.eq.s32.totalorder %s29, 0
    %p422 = por %p420, %p421
    %s424 = sadd.s32 %s423, 1
    %p427 = scmp.eq.s32.totalorder %s23, 3
    %p428 = scmp.ne.s32.totalorder %s423, %s425
    %p429 = scmp.eq.s32.totalorder %s23, 0
    %p430 = por %p428, %p429
    %p431 = scmp.ne.s32.totalorder %s423, %s425
    %p432 = scmp.eq.s32.totalorder %s28, 3
    %p433 = por %p431, %p432
    %p434 = scmp.ne.s32.totalorder %s425, %s426
    %p435 = scmp.eq.s32.totalorder %s28, 0
    %p436 = por %p434, %p435
    %p437 = scmp.ne.s32.totalorder %s425, %s426
    %p438 = scmp.eq.s32.totalorder %s29, 3
    %p439 = por %p437, %p438
    %p441 = scmp.ne.s32.totalorder %s426, %s440
    %p442 = scmp.eq.s32.totalorder %s29, 0
    %p443 = por %p441, %p442
    %s445 = sadd.s32 %s444, 1
    %p448 = scmp.eq.s32.totalorder %s23, 3
    %p449 = scmp.ne.s32.totalorder %s444, %s446
    %p450 = scmp.eq.s32.totalorder %s23, 0
    %p451 = por %p449, %p450
    %p452 = scmp.ne.s32.totalorder %s444, %s446
    %p453 = scmp.eq.s32.totalorder %s28, 3
    %p454 = por %p452, %p453
    %p455 = scmp.ne.s32.totalorder %s446, %s447
    %p456 = scmp.eq.s32.totalorder %s28, 0
    %p457 = por %p455, %p456
    %p458 = scmp.ne.s32.totalorder %s446, %s447
    %p459 = scmp.eq.s32.totalorder %s29, 3
    %p460 = por %p458, %p459
    %p462 = scmp.ne.s32.totalorder %s447, %s461
    %p463 = scmp.eq.s32.totalorder %s29, 0
    %p464 = por %p462, %p463
    %s465 = ssub.s32 %s30, %s42
    %p466 = scmp.eq.s32.totalorder %s465, 0
    %s468 = sadd.s32 %s467, 1
    %s469 = scalar_select %p466, %s467, %s468
    %p472 = pneg %p466
    %p473 = scmp.eq.s32.totalorder %s23, 3
    %p474 = por %p472, %p473
    %p475 = scmp.ne.s32.totalorder %s467, %s470
    %p476 = scmp.eq.s32.totalorder %s23, 0
    %p477 = por %p475, %p476
    %p478 = scmp.ne.s32.totalorder %s467, %s470
    %p479 = scmp.eq.s32.totalorder %s28, 3
    %p480 = por %p478, %p479
    %p481 = scmp.ne.s32.totalorder %s470, %s471
    %p482 = scmp.eq.s32.totalorder %s28, 0
    %p483 = por %p481, %p482
    %p484 = scmp.ne.s32.totalorder %s470, %s471
    %p485 = scmp.eq.s32.totalorder %s29, 3
    %p486 = por %p484, %p485
    %p488 = scmp.ne.s32.totalorder %s471, %s487
    %p489 = scmp.eq.s32.totalorder %s29, 0
    %p490 = por %p488, %p489
    %p491 = scmp.le.s32.totalorder 1, %s23
    %p492 = scmp.lt.s32.totalorder %s23, 5
    %p493 = pnand %p491, %p492
    %p494 = pneg %p493
    // Predicated region
    $region9: #{trajectory_encoder_forward.3} parent=5 // pred_check
      _
    $region10: #{trajectory_encoder_forward.3} parent=5 // pred_check_branch
      %496 = sbr.rel (%p493) target = $region12
    $region11: #{trajectory_encoder_forward.3} parent=5 // pred_region
      %s497 = ssub.s32 %s23, 1
      // Predicated region
      $region13: #{trajectory_encoder_forward.3} parent=11 // pred_check
        %p498 = pneg %p394
      $region14: #{trajectory_encoder_forward.3} parent=11 // pred_check_branch
        %500 = sbr.rel (%p498) target = $region16
      $region15: #{trajectory_encoder_forward.3} parent=11 // pred_region
        _
      $region16: #{trajectory_encoder_forward.3} parent=11 // pred_fallthru
        _
      // Predicated region
      $region17: #{trajectory_encoder_forward.3} parent=11 // pred_check
        %p501 = pneg %p415
      $region18: #{trajectory_encoder_forward.3} parent=11 // pred_check_branch
        %503 = sbr.rel (%p501) target = $region20
      $region19: #{trajectory_encoder_forward.3} parent=11 // pred_region
        _
      $region20: #{trajectory_encoder_forward.3} parent=11 // pred_fallthru
        _
      // Predicated region
      $region21: #{trajectory_encoder_forward.3} parent=11 // pred_check
        %p504 = pneg %p436
      $region22: #{trajectory_encoder_forward.3} parent=11 // pred_check_branch
        %506 = sbr.rel (%p504) target = $region24
      $region23: #{trajectory_encoder_forward.3} parent=11 // pred_region
        _
      $region24: #{trajectory_encoder_forward.3} parent=11 // pred_fallthru
        _
      // Predicated region
      $region25: #{trajectory_encoder_forward.3} parent=11 // pred_check
        %p507 = pneg %p457
      $region26: #{trajectory_encoder_forward.3} parent=11 // pred_check_branch
        %509 = sbr.rel (%p507) target = $region28
      $region27: #{trajectory_encoder_forward.3} parent=11 // pred_region
        _
      $region28: #{trajectory_encoder_forward.3} parent=11 // pred_fallthru
        _
    $region12: #{trajectory_encoder_forward.3} parent=5 // pred_fallthru
      _
    %p510 = scmp.lt.s32.totalorder %s23, 4
    // Predicated region
    $region29: #{trajectory_encoder_forward.3} parent=5 // pred_check
      %p511 = pneg %p510
    $region30: #{trajectory_encoder_forward.3} parent=5 // pred_check_branch
      %513 = sbr.rel (%p511) target = $region32
    $region31: #{trajectory_encoder_forward.3} parent=5 // pred_region
      // Predicated region
      $region33: #{trajectory_encoder_forward.3} parent=31 // pred_check
        %p514 = pneg %p55
      $region34: #{trajectory_encoder_forward.3} parent=31 // pred_check_branch
        %516 = sbr.rel (%p514) target = $region36
      $region35: #{trajectory_encoder_forward.3} parent=31 // pred_region
        %p517 = scmp.lt.s32.totalorder %s30, 1
        %s518 = scalar_select %p517, %s30, 1
        %s519 = smul.addr %s518, 2
        %s520 = smul.addr %s519, 8
        %s521 = scalar_lea.vmem %s0, %s520
      $region36: #{trajectory_encoder_forward.3} parent=31 // pred_fallthru
        _
      // Predicated region
      $region37: #{trajectory_encoder_forward.3} parent=31 // pred_check
        %p522 = pneg %p81
      $region38: #{trajectory_encoder_forward.3} parent=31 // pred_check_branch
        %524 = sbr.rel (%p522) target = $region40
      $region39: #{trajectory_encoder_forward.3} parent=31 // pred_region
        %p525 = scmp.lt.s32.totalorder %s31, 1
        %s526 = scalar_select %p525, %s31, 1
        %s527 = scalar_lea.vmem %s1, %s526
      $region40: #{trajectory_encoder_forward.3} parent=31 // pred_fallthru
        _
      // Predicated region
      $region41: #{trajectory_encoder_forward.3} parent=31 // pred_check
        %p528 = pneg %p107
      $region42: #{trajectory_encoder_forward.3} parent=31 // pred_check_branch
        %530 = sbr.rel (%p528) target = $region44
      $region43: #{trajectory_encoder_forward.3} parent=31 // pred_region
        %p531 = scmp.lt.s32.totalorder %s31, 1
        %s532 = scalar_select %p531, %s31, 1
        %s533 = scalar_lea.vmem %s2, %s532
      $region44: #{trajectory_encoder_forward.3} parent=31 // pred_fallthru
        _
      // Predicated region
      $region45: #{trajectory_encoder_forward.3} parent=31 // pred_check
        %p534 = pneg %p133
      $region46: #{trajectory_encoder_forward.3} parent=31 // pred_check_branch
        %536 = sbr.rel (%p534) target = $region48
      $region47: #{trajectory_encoder_forward.3} parent=31 // pred_region
        %p537 = scmp.lt.s32.totalorder %s31, 1
        %s538 = scalar_select %p537, %s31, 1
        %s539 = smul.addr %s538, 4
        %s540 = smul.addr %s539, 4
        %s541 = scalar_lea.vmem %s3, %s540
      $region48: #{trajectory_encoder_forward.3} parent=31 // pred_fallthru
        _
      // Predicated region
      $region49: #{trajectory_encoder_forward.3} parent=31 // pred_check
        %p542 = pneg %p159
      $region50: #{trajectory_encoder_forward.3} parent=31 // pred_check_branch
        %544 = sbr.rel (%p542) target = $region52
      $region51: #{trajectory_encoder_forward.3} parent=31 // pred_region
        %p545 = scmp.lt.s32.totalorder %s31, 1
        %s546 = scalar_select %p545, %s31, 1
        %s547 = scalar_lea.vmem %s4, %s546
      $region52: #{trajectory_encoder_forward.3} parent=31 // pred_fallthru
        _
      // Predicated region
      $region53: #{trajectory_encoder_forward.3} parent=31 // pred_check
        %p548 = pneg %p185
      $region54: #{trajectory_encoder_forward.3} parent=31 // pred_check_branch
        %550 = sbr.rel (%p548) target = $region56
      $region55: #{trajectory_encoder_forward.3} parent=31 // pred_region
        %p551 = scmp.lt.s32.totalorder %s31, 1
        %s552 = scalar_select %p551, %s31, 1
        %s553 = smul.addr %s552, 4
        %s554 = smul.addr %s553, 4
        %s555 = scalar_lea.vmem %s5, %s554
      $region56: #{trajectory_encoder_forward.3} parent=31 // pred_fallthru
        _
      // Predicated region
      $region57: #{trajectory_encoder_forward.3} parent=31 // pred_check
        %p556 = pneg %p211
      $region58: #{trajectory_encoder_forward.3} parent=31 // pred_check_branch
        %558 = sbr.rel (%p556) target = $region60
      $region59: #{trajectory_encoder_forward.3} parent=31 // pred_region
        %p559 = scmp.lt.s32.totalorder %s31, 1
        %s560 = scalar_select %p559, %s31, 1
        %s561 = scalar_lea.vmem %s6, %s560
      $region60: #{trajectory_encoder_forward.3} parent=31 // pred_fallthru
        _
      // Predicated region
      $region61: #{trajectory_encoder_forward.3} parent=31 // pred_check
        %p562 = pneg %p237
      $region62: #{trajectory_encoder_forward.3} parent=31 // pred_check_branch
        %564 = sbr.rel (%p562) target = $region64
      $region63: #{trajectory_encoder_forward.3} parent=31 // pred_region
        %p565 = scmp.lt.s32.totalorder %s31, 1
        %s566 = scalar_select %p565, %s31, 1
        %s567 = scalar_lea.vmem %s7, %s566
      $region64: #{trajectory_encoder_forward.3} parent=31 // pred_fallthru
        _
      // Predicated region
      $region65: #{trajectory_encoder_forward.3} parent=31 // pred_check
        %p568 = pneg %p263
      $region66: #{trajectory_encoder_forward.3} parent=31 // pred_check_branch
        %570 = sbr.rel (%p568) target = $region68
      $region67: #{trajectory_encoder_forward.3} parent=31 // pred_region
        %p571 = scmp.lt.s32.totalorder %s31, 1
        %s572 = scalar_select %p571, %s31, 1
        %s573 = scalar_lea.vmem %s8, %s572
      $region68: #{trajectory_encoder_forward.3} parent=31 // pred_fallthru
        _
      // Predicated region
      $region69: #{trajectory_encoder_forward.3} parent=31 // pred_check
        %p574 = pneg %p289
      $region70: #{trajectory_encoder_forward.3} parent=31 // pred_check_branch
        %576 = sbr.rel (%p574) target = $region72
      $region71: #{trajectory_encoder_forward.3} parent=31 // pred_region
        %p577 = scmp.lt.s32.totalorder %s31, 1
        %s578 = scalar_select %p577, %s31, 1
        %s579 = smul.addr %s578, 4
        %s580 = smul.addr %s579, 4
        %s581 = scalar_lea.vmem %s9, %s580
      $region72: #{trajectory_encoder_forward.3} parent=31 // pred_fallthru
        _
      // Predicated region
      $region73: #{trajectory_encoder_forward.3} parent=31 // pred_check
        %p582 = pneg %p315
      $region74: #{trajectory_encoder_forward.3} parent=31 // pred_check_branch
        %584 = sbr.rel (%p582) target = $region76
      $region75: #{trajectory_encoder_forward.3} parent=31 // pred_region
        %p585 = scmp.lt.s32.totalorder %s31, 1
        %s586 = scalar_select %p585, %s31, 1
        %s587 = scalar_lea.vmem %s10, %s586
      $region76: #{trajectory_encoder_forward.3} parent=31 // pred_fallthru
        _
      // Predicated region
      $region77: #{trajectory_encoder_forward.3} parent=31 // pred_check
        %p588 = pneg %p341
      $region78: #{trajectory_encoder_forward.3} parent=31 // pred_check_branch
        %590 = sbr.rel (%p588) target = $region80
      $region79: #{trajectory_encoder_forward.3} parent=31 // pred_region
        %p591 = scmp.lt.s32.totalorder %s31, 1
        %s592 = scalar_select %p591, %s31, 1
        %s593 = smul.addr %s592, 16
        %s594 = smul.addr %s593, 4
        %s595 = scalar_lea.vmem %s11, %s594
      $region80: #{trajectory_encoder_forward.3} parent=31 // pred_fallthru
        _
      // Predicated region
      $region81: #{trajectory_encoder_forward.3} parent=31 // pred_check
        %p596 = pneg %p367
      $region82: #{trajectory_encoder_forward.3} parent=31 // pred_check_branch
        %598 = sbr.rel (%p596) target = $region84
      $region83: #{trajectory_encoder_forward.3} parent=31 // pred_region
        %p599 = scmp.lt.s32.totalorder %s31, 1
        %s600 = scalar_select %p599, %s31, 1
        %s601 = scalar_lea.vmem %s12, %s600
      $region84: #{trajectory_encoder_forward.3} parent=31 // pred_fallthru
        _
    $region32: #{trajectory_encoder_forward.3} parent=5 // pred_fallthru
      _
    %p602 = scmp.le.s32.totalorder 1, %s23
    %p603 = scmp.lt.s32.totalorder %s23, 5
    %p604 = pnand %p602, %p603
    %p605 = pneg %p604
    // Predicated region
    $region85: #{trajectory_encoder_forward.3} parent=5 // pred_check
      _
    $region86: #{trajectory_encoder_forward.3} parent=5 // pred_check_branch
      %607 = sbr.rel (%p604) target = $region88
    $region87: #{trajectory_encoder_forward.3} parent=5 // pred_region
      %s608 = ssub.s32 %s23, 1
      %p609 = scmp.lt.s32.totalorder %s32, 1
      %s610 = scalar_select %p609, %s32, 1
      %s611 = smul.addr %s610, 2
      %s612 = smul.addr %s611, 8
      %s613 = scalar_lea.vmem %s0, %s612
      %p614 = pneg %p61
      %p615 = pneg %p58
      %p616 = scmp.lt.s32.totalorder %s33, 1
      %s617 = scalar_select %p616, %s33, 1
      %s618 = scalar_lea.vmem %s1, %s617
      %p619 = pneg %p87
      %p620 = pneg %p84
      %p621 = scmp.lt.s32.totalorder %s33, 1
      %s622 = scalar_select %p621, %s33, 1
      %s623 = scalar_lea.vmem %s2, %s622
      %p624 = pneg %p113
      %p625 = pneg %p110
      %p626 = scmp.lt.s32.totalorder %s33, 1
      %s627 = scalar_select %p626, %s33, 1
      %s628 = smul.addr %s627, 4
      %s629 = smul.addr %s628, 4
      %s630 = scalar_lea.vmem %s3, %s629
      %p631 = pneg %p139
      %p632 = pneg %p136
      %p633 = scmp.lt.s32.totalorder %s33, 1
      %s634 = scalar_select %p633, %s33, 1
      %s635 = scalar_lea.vmem %s4, %s634
      %p636 = pneg %p165
      %p637 = pneg %p162
      %p638 = scmp.lt.s32.totalorder %s33, 1
      %s639 = scalar_select %p638, %s33, 1
      %s640 = smul.addr %s639, 4
      %s641 = smul.addr %s640, 4
      %s642 = scalar_lea.vmem %s5, %s641
      %p643 = pneg %p191
      %p644 = pneg %p188
      %p645 = scmp.lt.s32.totalorder %s33, 1
      %s646 = scalar_select %p645, %s33, 1
      %s647 = scalar_lea.vmem %s6, %s646
      %p648 = pneg %p217
      %p649 = pneg %p214
      %p650 = scmp.lt.s32.totalorder %s33, 1
      %s651 = scalar_select %p650, %s33, 1
      %s652 = scalar_lea.vmem %s7, %s651
      %p653 = pneg %p243
      %p654 = pneg %p240
      %p655 = scmp.lt.s32.totalorder %s33, 1
      %s656 = scalar_select %p655, %s33, 1
      %s657 = scalar_lea.vmem %s8, %s656
      %p658 = pneg %p269
      %p659 = pneg %p266
      %p660 = scmp.lt.s32.totalorder %s33, 1
      %s661 = scalar_select %p660, %s33, 1
      %s662 = smul.addr %s661, 4
      %s663 = smul.addr %s662, 4
      %s664 = scalar_lea.vmem %s9, %s663
      %p665 = pneg %p295
      %p666 = pneg %p292
      %p667 = scmp.lt.s32.totalorder %s33, 1
      %s668 = scalar_select %p667, %s33, 1
      %s669 = scalar_lea.vmem %s10, %s668
      %p670 = pneg %p321
      %p671 = pneg %p318
      %p672 = scmp.lt.s32.totalorder %s33, 1
      %s673 = scalar_select %p672, %s33, 1
      %s674 = smul.addr %s673, 16
      %s675 = smul.addr %s674, 4
      %s676 = scalar_lea.vmem %s11, %s675
      %p677 = pneg %p347
      %p678 = pneg %p344
      %p679 = scmp.lt.s32.totalorder %s33, 1
      %s680 = scalar_select %p679, %s33, 1
      %s681 = scalar_lea.vmem %s12, %s680
      %p682 = pneg %p373
      %p683 = pneg %p370
      %p684 = pneg %p394
      %p685 = pneg %p391
      %p686 = pneg %p415
      %p687 = pneg %p412
      %p688 = pneg %p436
      %p689 = pneg %p433
      %p690 = pneg %p457
      %p691 = pneg %p454
      %p692 = pneg %p483
      %p693 = pneg %p480
      %p694 = scmp.lt.s32.totalorder %s32, 1
      %s695 = scalar_select %p694, %s32, 1
      %s696 = scalar_lea.vmem %s17, %s695
      %p697 = scmp.lt.s32.totalorder %s32, 1
      %s698 = scalar_select %p697, %s32, 1
      %s699 = smul.addr %s698, 2
      %s700 = smul.addr %s699, 8
      %s701 = scalar_lea.vmem %s0, %s700
      %p702 = scmp.lt.s32.totalorder %s33, 1
      %s703 = scalar_select %p702, %s33, 1
      %s704 = scalar_lea.vmem %s1, %s703
      %p705 = scmp.lt.s32.totalorder %s33, 1
      %s706 = scalar_select %p705, %s33, 1
      %s707 = scalar_lea.vmem %s2, %s706
      %p708 = scmp.lt.s32.totalorder %s33, 1
      %s709 = scalar_select %p708, %s33, 1
      %s710 = smul.addr %s709, 4
      %s711 = smul.addr %s710, 4
      %s712 = scalar_lea.vmem %s3, %s711
      %p713 = scmp.lt.s32.totalorder %s33, 1
      %s714 = scalar_select %p713, %s33, 1
      %s715 = scalar_lea.vmem %s4, %s714
      %p716 = scmp.lt.s32.totalorder %s33, 1
      %s717 = scalar_select %p716, %s33, 1
      %s718 = smul.addr %s717, 4
      %s719 = smul.addr %s718, 4
      %s720 = scalar_lea.vmem %s5, %s719
      %p721 = scmp.lt.s32.totalorder %s33, 1
      %s722 = scalar_select %p721, %s33, 1
      %s723 = scalar_lea.vmem %s6, %s722
      %p724 = scmp.lt.s32.totalorder %s33, 1
      %s725 = scalar_select %p724, %s33, 1
      %s726 = scalar_lea.vmem %s7, %s725
      %p727 = scmp.lt.s32.totalorder %s33, 1
      %s728 = scalar_select %p727, %s33, 1
      %s729 = scalar_lea.vmem %s8, %s728
      %p730 = scmp.lt.s32.totalorder %s33, 1
      %s731 = scalar_select %p730, %s33, 1
      %s732 = smul.addr %s731, 4
      %s733 = smul.addr %s732, 4
      %s734 = scalar_lea.vmem %s9, %s733
      %p735 = scmp.lt.s32.totalorder %s33, 1
      %s736 = scalar_select %p735, %s33, 1
      %s737 = scalar_lea.vmem %s10, %s736
      %p738 = scmp.lt.s32.totalorder %s33, 1
      %s739 = scalar_select %p738, %s33, 1
      %s740 = smul.addr %s739, 16
      %s741 = smul.addr %s740, 4
      %s742 = scalar_lea.vmem %s11, %s741
      %p743 = scmp.lt.s32.totalorder %s33, 1
      %s744 = scalar_select %p743, %s33, 1
      %s745 = scalar_lea.vmem %s12, %s744
      %p746 = scmp.lt.s32.totalorder %s32, 1
      %s747 = scalar_select %p746, %s32, 1
      %s748 = scalar_lea.vmem %s17, %s747
      %p750 = scmp.eq.s32.totalorder %s33, 0
      // Predicated region
      $region89: #{trajectory_encoder_forward.3} parent=87 // pred_check
        %p751 = pneg %p750
      $region90: #{trajectory_encoder_forward.3} parent=87 // pred_check_branch
        %753 = sbr.rel (%p751) target = $region92
      $region91: #{trajectory_encoder_forward.3} parent=87 // pred_region
        %v754 = vld [vmem:[%s701] sm:$0xff]
        %v755 = vld [vmem:[%s701 + $0x8] sm:$0x1]
        %vm756 = vcmask 261120
        %757 = vst.msk [vmem:[#allocation2] sm:$0xff] %vm756, %v754
        %vm758 = vcmask 253952
        %759 = vst.msk [vmem:[#allocation2 + $0x8] sm:$0x1] %vm758, %v755
      $region92: #{trajectory_encoder_forward.3} parent=87 // pred_fallthru
        _
      %v760 = vld [vmem:[#allocation2] sm:$0xff]
      %v761 = vld [vmem:[#allocation2 + $0x8] sm:$0x1]
      %v762 = vld [vmem:[%s704] sm:$0x1]
      %v763 = vld [vmem:[%s707] sm:$0x1]
      %vm764 = vcmask 261120
      %v765 = vsel %vm764, %v760, 0.0
      %766 = vadd.xlane.f32.xlu0 %v765
      %v767 = vpop.xlane.xlu0 %766
      %vm768 = vcmask 253952
      %v769 = vsel %vm768, %v761, 0.0
      %770 = vadd.xlane.f32.xlu0 %v769
      %v771 = vpop.xlane.xlu0 %770
      %v772 = vrcp.pop 32.0
      %v773 = vmul.f32 32.0, %v772
      %v774 = vsub.f32 1.0, %v773
      %v775 = vmul.f32 %v772, %v774
      %v776 = vadd.f32 %v772, %v775
      %vm777 = vweird.f32 %v772
      %v778 = vsel %vm777, %v772, %v776
      %v779 = vmul.f32 %v767, %v778
      %v780 = vmul.f32 %v771, %v778
      %v781 = vsub.f32 %v760, %v779
      %v782 = vsub.f32 %v761, %v780
      %v783 = vmul.f32 %v781, %v781
      %v784 = vmul.f32 %v782, %v782
      %v785 = vsel %vm764, %v783, 0.0
      %786 = vadd.xlane.f32.xlu0 %v785
      %v787 = vpop.xlane.xlu0 %786
      %v788 = vsel %vm768, %v784, 0.0
      %789 = vadd.xlane.f32.xlu0 %v788
      %v790 = vpop.xlane.xlu0 %789
      %v791 = vmul.f32 %v787, %v778
      %v792 = vmul.f32 %v790, %v778
      %v793 = vadd.f32 %v791, 1e-05
      %v794 = vadd.f32 %v792, 1e-05
      %v795 = vrsqrt.pop %v793
      %v796 = vmul.f32 %v795, %v793
      %v797 = vmul.f32 %v796, %v795
      %v798 = vmul.f32 0.5, %v797
      %v799 = vsub.f32 1.5, %v798
      %v800 = vmul.f32 %v795, %v799
      %vm801 = vweird.f32 %v793
      %vm802 = vweird.f32 %v795
      %vm803 = vmor %vm801, %vm802
      %v804 = vsel %vm803, %v795, %v800
      %v805 = vrsqrt.pop %v794
      %v806 = vmul.f32 %v805, %v794
      %v807 = vmul.f32 %v806, %v805
      %v808 = vmul.f32 0.5, %v807
      %v809 = vsub.f32 1.5, %v808
      %v810 = vmul.f32 %v805, %v809
      %vm811 = vweird.f32 %v794
      %vm812 = vweird.f32 %v805
      %vm813 = vmor %vm811, %vm812
      %v814 = vsel %vm813, %v805, %v810
      %v815 = vmul.f32 %v781, %v804
      %v816 = vmul.f32 %v782, %v814
      %v818 = vperm.slane %v762, 0
      %v820 = vmul.f32 %v815, %v818
      %v821 = vmul.f32 %v816, %v818
      %v823 = vperm.slane %v763, 0
      %v825 = vadd.f32 %v820, %v823
      %v826 = vadd.f32 %v821, %v823
      %v827 = vpack.c.bf16 %v826, %v825
      %v828 = vld [vmem:[%s712] sm:$0xf]
      %v829 = vld [vmem:[%s712 + $0x4] sm:$0xf]
      %v830 = vld [vmem:[%s712 + $0x8] sm:$0xf]
      %v831 = vld [vmem:[%s712 + $0xc] sm:$0xf]
      %v832 = vld [vmem:[%s715] sm:$0x1]
      %v834 = vperm.slane %v832, 0
      %v840 = vunpack.c.l.b16 %v828
      %v841 = vunpack.c.l.b16 %v829
      %v842 = vunpack.c.l.b16 %v830
      %v843 = vunpack.c.l.b16 %v831
      %v844 = vpack.c.b16 %v841, %v840
      %v845 = vpack.c.b16 %v843, %v842
      %v849 = vsel %vm764, %v827, 0
      %851 = vmatpush.bf16.msra.mxu0 0
      %852 = vmatpush.bf16.msra.mxu0 0
      %853 = vmatpush.bf16.msra.mxu0 0
      %854 = vmatpush.bf16.msra.mxu0 0
      %855 = vmatpush.bf16.msra.mxu0 0
      %856 = vmatpush.bf16.msra.mxu0 0
      %857 = vmatpush.bf16.msra.mxu0 %v845
      %858 = vmatpush.bf16.msra.mxu0 %v844
      %859 = vmatmul.bf16.gmra.mxu0 %v849
      %v860 = vpop.f32.mrf.mxu0
      %v861 = vadd.f32 %v834, %v860
      %v862 = vpop.f32.mrf.mxu0
      %v863 = vadd.f32 %v834, %v862
      %864 = vdwg.mxu0
      %v865 = vlaneseq
      %v866 = vshrl.u32 %v865, 7
      %v867 = vadd.s32 %v866, 8
      %v868 = vlaneseq
      %v869 = vand.u32 %v868, 127
      %vm870 = vcmp.le.s32.totalorder %v869, %v866
      %vm871 = vcmp.le.s32.totalorder %v869, %v867
      %v872 = vld [vmem:[%s720] sm:$0xf]
      %v873 = vld [vmem:[%s720 + $0x4] sm:$0xf]
      %v874 = vld [vmem:[%s720 + $0x8] sm:$0xf]
      %v875 = vld [vmem:[%s720 + $0xc] sm:$0xf]
      %v876 = vpack.c.bf16 %v863, %v861
      %878 = vrot.lane.b32.xlu0 %v876, 96
      %v879 = vpop.permute.xlu0 %878
      %vm880 = vcmask 64512
      %v882 = vsel %vm880, %v876, 0
      %v885 = vsel %vm880, %v879, 0
      %887 = vmatpush.bf16.xpose.msra.mxu0 0
      %888 = vmatpush.bf16.xpose.msra.mxu0 0
      %889 = vmatpush.bf16.xpose.msra.mxu0 0
      %890 = vmatpush.bf16.xpose.msra.mxu0 0
      %891 = vmatpush.bf16.xpose.msra.mxu0 0
      %892 = vmatpush.bf16.xpose.msra.mxu0 0
      %893 = vmatpush.bf16.xpose.msra.mxu0 0
      %894 = vmatpush.bf16.xpose.msra.mxu0 %v885
      %895 = vmatmul.bf16.gmra.mxu0 %v882
      %v896 = vpop.f32.mrf.mxu0
      %v897 = vadd.f32 0.0, %v896
      %v898 = vpop.f32.mrf.mxu0
      %v899 = vadd.f32 0.0, %v898
      %900 = vdwg.mxu0
      %v901 = vmul.f32 %v897, 0.35355338
      %v902 = vmul.f32 %v899, 0.35355338
      %v903 = vsel %vm870, %v901, -1e+30
      %v904 = vsel %vm871, %v902, -1e+30
      %vm905 = vcmask 72704
      %v906 = vsel %vm905, %v903, -inf
      %907 = vmax.xlane.f32.xlu0 %v906
      %v908 = vpop.xlane.xlu0 %907
      %vm909 = vcmask 65536
      %v910 = vsel %vm909, %v904, -inf
      %911 = vmax.xlane.f32.xlu0 %v910
      %v912 = vpop.xlane.xlu0 %911
      %v913 = vsub.f32 %v903, %v908
      %v914 = vsub.f32 %v904, %v912
      %v915 = vmul.f32 %v913, 1.442695
      %v916 = vpow.pop %v915
      %v917 = vmul.f32 %v914, 1.442695
      %v918 = vpow.pop %v917
      %v919 = vsel %vm905, %v916, 0.0
      %920 = vadd.xlane.f32.xlu0 %v919
      %v921 = vpop.xlane.xlu0 %920
      %v922 = vsel %vm909, %v918, 0.0
      %923 = vadd.xlane.f32.xlu0 %v922
      %v924 = vpop.xlane.xlu0 %923
      %v925 = vrcp.pop %v921
      %v926 = vrcp.pop %v924
      %v927 = vmul.f32 %v916, %v925
      %v928 = vmul.f32 %v918, %v926
      %v929 = vpack.c.bf16 %v928, %v927
      %930 = vrot.lane.b32.xlu0 %v876, 64
      %v931 = vpop.permute.xlu0 %930
      %v933 = vsel %vm905, %v929, 0
      %vm935 = vcmask 1043456
      %vm936 = vcmask 1044480
      %v937 = vsel %vm935, 4294967295, 65535
      %v938 = vsel %vm936, %v937, 0
      %v940 = vand.u32 %v931, %v938
      %942 = vmatpush.bf16.msra.mxu0 0
      %943 = vmatpush.bf16.msra.mxu0 0
      %944 = vmatpush.bf16.msra.mxu0 0
      %945 = vmatpush.bf16.msra.mxu0 0
      %946 = vmatpush.bf16.msra.mxu0 0
      %947 = vmatpush.bf16.msra.mxu0 0
      %948 = vmatpush.bf16.msra.mxu0 0
      %949 = vmatpush.bf16.msra.mxu0 %v940
      %950 = vmatmul.bf16.gmra.mxu0 %v933
      %v951 = vpop.f32.mrf.mxu0
      %v952 = vadd.f32 0.0, %v951
      %v953 = vpop.f32.mrf.mxu0
      %v954 = vadd.f32 0.0, %v953
      %955 = vdwg.mxu0
      %v956 = vpack.c.bf16 %v954, %v952
      %957 = vrot.lane.b32.xlu0 %v876, 120
      %v958 = vpop.permute.xlu0 %957
      %959 = vrot.lane.b32.xlu0 %v876, 88
      %v960 = vpop.permute.xlu0 %959
      %v962 = vsel %vm880, %v958, 0
      %v965 = vsel %vm880, %v960, 0
      %967 = vmatpush.bf16.xpose.msra.mxu0 0
      %968 = vmatpush.bf16.xpose.msra.mxu0 0
      %969 = vmatpush.bf16.xpose.msra.mxu0 0
      %970 = vmatpush.bf16.xpose.msra.mxu0 0
      %971 = vmatpush.bf16.xpose.msra.mxu0 0
      %972 = vmatpush.bf16.xpose.msra.mxu0 0
      %973 = vmatpush.bf16.xpose.msra.mxu0 0
      %974 = vmatpush.bf16.xpose.msra.mxu0 %v965
      %975 = vmatmul.bf16.gmra.mxu0 %v962
      %v976 = vpop.f32.mrf.mxu0
      %v977 = vadd.f32 0.0, %v976
      %v978 = vpop.f32.mrf.mxu0
      %v979 = vadd.f32 0.0, %v978
      %980 = vdwg.mxu0
      %v981 = vmul.f32 %v977, 0.35355338
      %v982 = vmul.f32 %v979, 0.35355338
      %v983 = vsel %vm870, %v981, -1e+30
      %v984 = vsel %vm871, %v982, -1e+30
      %v985 = vsel %vm905, %v983, -inf
      %986 = vmax.xlane.f32.xlu0 %v985
      %v987 = vpop.xlane.xlu0 %986
      %v988 = vsel %vm909, %v984, -inf
      %989 = vmax.xlane.f32.xlu0 %v988
      %v990 = vpop.xlane.xlu0 %989
      %v991 = vsub.f32 %v983, %v987
      %v992 = vsub.f32 %v984, %v990
      %v993 = vmul.f32 %v991, 1.442695
      %v994 = vpow.pop %v993
      %v995 = vmul.f32 %v992, 1.442695
      %v996 = vpow.pop %v995
      %v997 = vsel %vm905, %v994, 0.0
      %998 = vadd.xlane.f32.xlu0 %v997
      %v999 = vpop.xlane.xlu0 %998
      %v1000 = vsel %vm909, %v996, 0.0
      %1001 = vadd.xlane.f32.xlu0 %v1000
      %v1002 = vpop.xlane.xlu0 %1001
      %v1003 = vrcp.pop %v999
      %v1004 = vrcp.pop %v1002
      %v1005 = vmul.f32 %v994, %v1003
      %v1006 = vmul.f32 %v996, %v1004
      %v1007 = vpack.c.bf16 %v1006, %v1005
      %1008 = vrot.lane.b32.xlu0 %v876, 56
      %v1009 = vpop.permute.xlu0 %1008
      %v1011 = vsel %vm905, %v1007, 0
      %v1014 = vand.u32 %v1009, %v938
      %1016 = vmatpush.bf16.msra.mxu0 0
      %1017 = vmatpush.bf16.msra.mxu0 0
      %1018 = vmatpush.bf16.msra.mxu0 0
      %1019 = vmatpush.bf16.msra.mxu0 0
      %1020 = vmatpush.bf16.msra.mxu0 0
      %1021 = vmatpush.bf16.msra.mxu0 0
      %1022 = vmatpush.bf16.msra.mxu0 0
      %1023 = vmatpush.bf16.msra.mxu0 %v1014
      %1024 = vmatmul.bf16.gmra.mxu0 %v1011
      %v1025 = vpop.f32.mrf.mxu0
      %v1026 = vadd.f32 0.0, %v1025
      %v1027 = vpop.f32.mrf.mxu0
      %v1028 = vadd.f32 0.0, %v1027
      %1029 = vdwg.mxu0
      %v1030 = vpack.c.bf16 %v1028, %v1026
      %v1032 = vsel %vm880, %v1030, 0
      %v1035 = vsel %vm935, %v873, 0
      %1037 = vmatpush.bf16.msra.mxu0 0
      %1038 = vmatpush.bf16.msra.mxu0 0
      %1039 = vmatpush.bf16.msra.mxu0 0
      %1040 = vmatpush.bf16.msra.mxu0 0
      %1041 = vmatpush.bf16.msra.mxu0 0
      %1042 = vmatpush.bf16.msra.mxu0 0
      %1043 = vmatpush.bf16.msra.mxu0 0
      %1044 = vmatpush.bf16.msra.mxu0 %v1035
      %1045 = vmatmul.bf16.gmra.mxu0 %v1032
      %v1046 = vpop.f32.mrf.mxu0
      %v1047 = vadd.f32 0.0, %v1046
      %v1048 = vpop.f32.mrf.mxu0
      %v1049 = vadd.f32 0.0, %v1048
      %1050 = vdwg.mxu0
      %v1052 = vsel %vm880, %v956, 0
      %v1055 = vsel %vm935, %v872, 0
      %1057 = vmatpush.bf16.msra.mxu0 0
      %1058 = vmatpush.bf16.msra.mxu0 0
      %1059 = vmatpush.bf16.msra.mxu0 0
      %1060 = vmatpush.bf16.msra.mxu0 0
      %1061 = vmatpush.bf16.msra.mxu0 0
      %1062 = vmatpush.bf16.msra.mxu0 0
      %1063 = vmatpush.bf16.msra.mxu0 0
      %1064 = vmatpush.bf16.msra.mxu0 %v1055
      %1065 = vmatmul.bf16.gmra.mxu0 %v1052
      %v1066 = vpop.f32.mrf.mxu0
      %v1067 = vadd.f32 %v1047, %v1066
      %v1068 = vpop.f32.mrf.mxu0
      %v1069 = vadd.f32 %v1049, %v1068
      %1070 = vdwg.mxu0
      %1071 = vrot.lane.b32.xlu0 %v876, 112
      %v1072 = vpop.permute.xlu0 %1071
      %1073 = vrot.lane.b32.xlu0 %v876, 80
      %v1074 = vpop.permute.xlu0 %1073
      %v1076 = vsel %vm880, %v1072, 0
      %v1079 = vsel %vm880, %v1074, 0
      %1081 = vmatpush.bf16.xpose.msra.mxu0 0
      %1082 = vmatpush.bf16.xpose.msra.mxu0 0
      %1083 = vmatpush.bf16.xpose.msra.mxu0 0
      %1084 = vmatpush.bf16.xpose.msra.mxu0 0
      %1085 = vmatpush.bf16.xpose.msra.mxu0 0
      %1086 = vmatpush.bf16.xpose.msra.mxu0 0
      %1087 = vmatpush.bf16.xpose.msra.mxu0 0
      %1088 = vmatpush.bf16.xpose.msra.mxu0 %v1079
      %1089 = vmatmul.bf16.gmra.mxu0 %v1076
      %v1090 = vpop.f32.mrf.mxu0
      %v1091 = vadd.f32 0.0, %v1090
      %v1092 = vpop.f32.mrf.mxu0
      %v1093 = vadd.f32 0.0, %v1092
      %1094 = vdwg.mxu0
      %v1095 = vmul.f32 %v1091, 0.35355338
      %v1096 = vmul.f32 %v1093, 0.35355338
      %v1097 = vsel %vm870, %v1095, -1e+30
      %v1098 = vsel %vm871, %v1096, -1e+30
      %v1099 = vsel %vm905, %v1097, -inf
      %1100 = vmax.xlane.f32.xlu0 %v1099
      %v1101 = vpop.xlane.xlu0 %1100
      %v1102 = vsel %vm909, %v1098, -inf
      %1103 = vmax.xlane.f32.xlu0 %v1102
      %v1104 = vpop.xlane.xlu0 %1103
      %v1105 = vsub.f32 %v1097, %v1101
      %v1106 = vsub.f32 %v1098, %v1104
      %v1107 = vmul.f32 %v1105, 1.442695
      %v1108 = vpow.pop %v1107
      %v1109 = vmul.f32 %v1106, 1.442695
      %v1110 = vpow.pop %v1109
      %v1111 = vsel %vm905, %v1108, 0.0
      %1112 = vadd.xlane.f32.xlu0 %v1111
      %v1113 = vpop.xlane.xlu0 %1112
      %v1114 = vsel %vm909, %v1110, 0.0
      %1115 = vadd.xlane.f32.xlu0 %v1114
      %v1116 = vpop.xlane.xlu0 %1115
      %v1117 = vrcp.pop %v1113
      %v1118 = vrcp.pop %v1116
      %v1119 = vmul.f32 %v1108, %v1117
      %v1120 = vmul.f32 %v1110, %v1118
      %v1121 = vpack.c.bf16 %v1120, %v1119
      %1122 = vrot.lane.b32.xlu0 %v876, 48
      %v1123 = vpop.permute.xlu0 %1122
      %v1125 = vsel %vm905, %v1121, 0
      %v1128 = vand.u32 %v1123, %v938
      %1130 = vmatpush.bf16.msra.mxu0 0
      %1131 = vmatpush.bf16.msra.mxu0 0
      %1132 = vmatpush.bf16.msra.mxu0 0
      %1133 = vmatpush.bf16.msra.mxu0 0
      %1134 = vmatpush.bf16.msra.mxu0 0
      %1135 = vmatpush.bf16.msra.mxu0 0
      %1136 = vmatpush.bf16.msra.mxu0 0
      %1137 = vmatpush.bf16.msra.mxu0 %v1128
      %1138 = vmatmul.bf16.gmra.mxu0 %v1125
      %v1139 = vpop.f32.mrf.mxu0
      %v1140 = vadd.f32 0.0, %v1139
      %v1141 = vpop.f32.mrf.mxu0
      %v1142 = vadd.f32 0.0, %v1141
      %1143 = vdwg.mxu0
      %v1144 = vpack.c.bf16 %v1142, %v1140
      %v1146 = vsel %vm880, %v1144, 0
      %v1149 = vsel %vm935, %v874, 0
      %1151 = vmatpush.bf16.msra.mxu0 0
      %1152 = vmatpush.bf16.msra.mxu0 0
      %1153 = vmatpush.bf16.msra.mxu0 0
      %1154 = vmatpush.bf16.msra.mxu0 0
      %1155 = vmatpush.bf16.msra.mxu0 0
      %1156 = vmatpush.bf16.msra.mxu0 0
      %1157 = vmatpush.bf16.msra.mxu0 0
      %1158 = vmatpush.bf16.msra.mxu0 %v1149
      %1159 = vmatmul.bf16.gmra.mxu0 %v1146
      %v1160 = vpop.f32.mrf.mxu0
      %v1161 = vadd.f32 0.0, %v1160
      %v1162 = vpop.f32.mrf.mxu0
      %v1163 = vadd.f32 0.0, %v1162
      %1164 = vdwg.mxu0
      %v1165 = vadd.f32 %v1067, %v1161
      %v1166 = vadd.f32 %v1069, %v1163
      %1167 = vrot.lane.b32.xlu0 %v876, 104
      %v1168 = vpop.permute.xlu0 %1167
      %1169 = vrot.lane.b32.xlu0 %v876, 72
      %v1170 = vpop.permute.xlu0 %1169
      %v1172 = vsel %vm880, %v1168, 0
      %v1175 = vsel %vm880, %v1170, 0
      %1177 = vmatpush.bf16.xpose.msra.mxu0 0
      %1178 = vmatpush.bf16.xpose.msra.mxu0 0
      %1179 = vmatpush.bf16.xpose.msra.mxu0 0
      %1180 = vmatpush.bf16.xpose.msra.mxu0 0
      %1181 = vmatpush.bf16.xpose.msra.mxu0 0
      %1182 = vmatpush.bf16.xpose.msra.mxu0 0
      %1183 = vmatpush.bf16.xpose.msra.mxu0 0
      %1184 = vmatpush.bf16.xpose.msra.mxu0 %v1175
      %1185 = vmatmul.bf16.gmra.mxu0 %v1172
      %v1186 = vpop.f32.mrf.mxu0
      %v1187 = vadd.f32 0.0, %v1186
      %v1188 = vpop.f32.mrf.mxu0
      %v1189 = vadd.f32 0.0, %v1188
      %1190 = vdwg.mxu0
      %v1191 = vmul.f32 %v1187, 0.35355338
      %v1192 = vmul.f32 %v1189, 0.35355338
      %v1193 = vsel %vm870, %v1191, -1e+30
      %v1194 = vsel %vm871, %v1192, -1e+30
      %v1195 = vsel %vm905, %v1193, -inf
      %1196 = vmax.xlane.f32.xlu0 %v1195
      %v1197 = vpop.xlane.xlu0 %1196
      %v1198 = vsel %vm909, %v1194, -inf
      %1199 = vmax.xlane.f32.xlu0 %v1198
      %v1200 = vpop.xlane.xlu0 %1199
      %v1201 = vsub.f32 %v1193, %v1197
      %v1202 = vsub.f32 %v1194, %v1200
      %v1203 = vmul.f32 %v1201, 1.442695
      %v1204 = vpow.pop %v1203
      %v1205 = vmul.f32 %v1202, 1.442695
      %v1206 = vpow.pop %v1205
      %v1207 = vsel %vm905, %v1204, 0.0
      %1208 = vadd.xlane.f32.xlu0 %v1207
      %v1209 = vpop.xlane.xlu0 %1208
      %v1210 = vsel %vm909, %v1206, 0.0
      %1211 = vadd.xlane.f32.xlu0 %v1210
      %v1212 = vpop.xlane.xlu0 %1211
      %v1213 = vrcp.pop %v1209
      %v1214 = vrcp.pop %v1212
      %v1215 = vmul.f32 %v1204, %v1213
      %v1216 = vmul.f32 %v1206, %v1214
      %v1217 = vpack.c.bf16 %v1216, %v1215
      %1218 = vrot.lane.b32.xlu0 %v876, 40
      %v1219 = vpop.permute.xlu0 %1218
      %v1221 = vsel %vm905, %v1217, 0
      %v1224 = vand.u32 %v1219, %v938
      %1226 = vmatpush.bf16.msra.mxu0 0
      %1227 = vmatpush.bf16.msra.mxu0 0
      %1228 = vmatpush.bf16.msra.mxu0 0
      %1229 = vmatpush.bf16.msra.mxu0 0
      %1230 = vmatpush.bf16.msra.mxu0 0
      %1231 = vmatpush.bf16.msra.mxu0 0
      %1232 = vmatpush.bf16.msra.mxu0 0
      %1233 = vmatpush.bf16.msra.mxu0 %v1224
      %1234 = vmatmul.bf16.gmra.mxu0 %v1221
      %v1235 = vpop.f32.mrf.mxu0
      %v1236 = vadd.f32 0.0, %v1235
      %v1237 = vpop.f32.mrf.mxu0
      %v1238 = vadd.f32 0.0, %v1237
      %1239 = vdwg.mxu0
      %v1240 = vpack.c.bf16 %v1238, %v1236
      %v1242 = vsel %vm880, %v1240, 0
      %v1245 = vsel %vm935, %v875, 0
      %1247 = vmatpush.bf16.msra.mxu0 0
      %1248 = vmatpush.bf16.msra.mxu0 0
      %1249 = vmatpush.bf16.msra.mxu0 0
      %1250 = vmatpush.bf16.msra.mxu0 0
      %1251 = vmatpush.bf16.msra.mxu0 0
      %1252 = vmatpush.bf16.msra.mxu0 0
      %1253 = vmatpush.bf16.msra.mxu0 0
      %1254 = vmatpush.bf16.msra.mxu0 %v1245
      %1255 = vmatmul.bf16.gmra.mxu0 %v1242
      %v1256 = vpop.f32.mrf.mxu0
      %v1257 = vadd.f32 0.0, %v1256
      %v1258 = vpop.f32.mrf.mxu0
      %v1259 = vadd.f32 0.0, %v1258
      %1260 = vdwg.mxu0
      %v1261 = vadd.f32 %v1165, %v1257
      %v1262 = vadd.f32 %v1166, %v1259
      %v1263 = vadd.f32 %v760, %v1261
      %v1264 = vadd.f32 %v761, %v1262
      %v1265 = vld [vmem:[%s723] sm:$0x1]
      %v1267 = vperm.slane %v1265, 0
      %v1269 = vadd.f32 %v1263, %v1267
      %v1270 = vadd.f32 %v1264, %v1267
      %v1271 = vld [vmem:[%s726] sm:$0x1]
      %v1272 = vld [vmem:[%s729] sm:$0x1]
      %v1273 = vsel %vm764, %v1269, 0.0
      %1274 = vadd.xlane.f32.xlu0 %v1273
      %v1275 = vpop.xlane.xlu0 %1274
      %v1276 = vsel %vm768, %v1270, 0.0
      %1277 = vadd.xlane.f32.xlu0 %v1276
      %v1278 = vpop.xlane.xlu0 %1277
      %v1279 = vmul.f32 %v1275, %v778
      %v1280 = vmul.f32 %v1278, %v778
      %v1281 = vsub.f32 %v1269, %v1279
      %v1282 = vsub.f32 %v1270, %v1280
      %v1283 = vmul.f32 %v1281, %v1281
      %v1284 = vmul.f32 %v1282, %v1282
      %v1285 = vsel %vm764, %v1283, 0.0
      %1286 = vadd.xlane.f32.xlu0 %v1285
      %v1287 = vpop.xlane.xlu0 %1286
      %v1288 = vsel %vm768, %v1284, 0.0
      %1289 = vadd.xlane.f32.xlu0 %v1288
      %v1290 = vpop.xlane.xlu0 %1289
      %v1291 = vmul.f32 %v1287, %v778
      %v1292 = vmul.f32 %v1290, %v778
      %v1293 = vadd.f32 %v1291, 1e-05
      %v1294 = vadd.f32 %v1292, 1e-05
      %v1295 = vrsqrt.pop %v1293
      %v1296 = vmul.f32 %v1295, %v1293
      %v1297 = vmul.f32 %v1296, %v1295
      %v1298 = vmul.f32 0.5, %v1297
      %v1299 = vsub.f32 1.5, %v1298
      %v1300 = vmul.f32 %v1295, %v1299
      %vm1301 = vweird.f32 %v1293
      %vm1302 = vweird.f32 %v1295
      %vm1303 = vmor %vm1301, %vm1302
      %v1304 = vsel %vm1303, %v1295, %v1300
      %v1305 = vrsqrt.pop %v1294
      %v1306 = vmul.f32 %v1305, %v1294
      %v1307 = vmul.f32 %v1306, %v1305
      %v1308 = vmul.f32 0.5, %v1307
      %v1309 = vsub.f32 1.5, %v1308
      %v1310 = vmul.f32 %v1305, %v1309
      %vm1311 = vweird.f32 %v1294
      %vm1312 = vweird.f32 %v1305
      %vm1313 = vmor %vm1311, %vm1312
      %v1314 = vsel %vm1313, %v1305, %v1310
      %v1315 = vmul.f32 %v1281, %v1304
      %v1316 = vmul.f32 %v1282, %v1314
      %v1318 = vperm.slane %v1271, 0
      %v1320 = vmul.f32 %v1315, %v1318
      %v1321 = vmul.f32 %v1316, %v1318
      %v1323 = vperm.slane %v1272, 0
      %v1325 = vadd.f32 %v1320, %v1323
      %v1326 = vadd.f32 %v1321, %v1323
      %v1327 = vpack.c.bf16 %v1326, %v1325
      %v1328 = vld [vmem:[%s734] sm:$0xf]
      %v1329 = vld [vmem:[%s734 + $0x4] sm:$0xf]
      %v1330 = vld [vmem:[%s734 + $0x8] sm:$0xf]
      %v1331 = vld [vmem:[%s734 + $0xc] sm:$0xf]
      %v1332 = vld [vmem:[%s737] sm:$0x1]
      %v1334 = vperm.slane %v1332, 0
      %v1340 = vunpack.c.l.b16 %v1328
      %v1341 = vunpack.c.l.b16 %v1329
      %v1342 = vunpack.c.l.b16 %v1330
      %v1343 = vunpack.c.l.b16 %v1331
      %v1344 = vpack.c.b16 %v1341, %v1340
      %v1345 = vpack.c.b16 %v1343, %v1342
      %v1349 = vsel %vm764, %v1327, 0
      %1351 = vmatpush.bf16.msra.mxu0 0
      %1352 = vmatpush.bf16.msra.mxu0 0
      %1353 = vmatpush.bf16.msra.mxu0 0
      %1354 = vmatpush.bf16.msra.mxu0 0
      %1355 = vmatpush.bf16.msra.mxu0 0
      %1356 = vmatpush.bf16.msra.mxu0 0
      %1357 = vmatpush.bf16.msra.mxu0 %v1345
      %1358 = vmatpush.bf16.msra.mxu0 %v1344
      %1359 = vmatmul.bf16.gmra.mxu0 %v1349
      %v1360 = vpop.f32.mrf.mxu0
      %v1361 = vadd.f32 %v1334, %v1360
      %v1362 = vpop.f32.mrf.mxu0
      %v1363 = vadd.f32 %v1334, %v1362
      %1364 = vdwg.mxu0
      %v1365 = vmul.f32 %v1361, %v1361
      %v1366 = vmul.f32 %v1363, %v1363
      %v1367 = vmul.f32 %v1361, %v1365
      %v1368 = vmul.f32 %v1363, %v1366
      %v1369 = vmul.f32 %v1367, 0.044715
      %v1370 = vmul.f32 %v1368, 0.044715
      %v1371 = vadd.f32 %v1361, %v1369
      %v1372 = vadd.f32 %v1363, %v1370
      %v1373 = vmul.f32 %v1371, 0.7978846
      %v1374 = vmul.f32 %v1372, 0.7978846
      %v1375 = vtanh.pop %v1373
      %v1376 = vtanh.pop %v1374
      %v1377 = vadd.f32 %v1375, 1.0
      %v1378 = vadd.f32 %v1376, 1.0
      %v1379 = vmul.f32 %v1377, 0.5
      %v1380 = vmul.f32 %v1378, 0.5
      %v1381 = vmul.f32 %v1361, %v1379
      %v1382 = vmul.f32 %v1363, %v1380
      %v1383 = vpack.c.bf16 %v1382, %v1381
      %v1384 = vld [vmem:[%s742] sm:$0xf]
      %v1385 = vld [vmem:[%s742 + $0x4] sm:$0xf]
      %v1386 = vld [vmem:[%s742 + $0x8] sm:$0xf]
      %v1387 = vld [vmem:[%s742 + $0xc] sm:$0xf]
      %v1388 = vld [vmem:[%s742 + $0x10] sm:$0xf]
      %v1389 = vld [vmem:[%s742 + $0x14] sm:$0xf]
      %v1390 = vld [vmem:[%s742 + $0x18] sm:$0xf]
      %v1391 = vld [vmem:[%s742 + $0x1c] sm:$0xf]
      %v1392 = vld [vmem:[%s742 + $0x20] sm:$0xf]
      %v1393 = vld [vmem:[%s742 + $0x24] sm:$0xf]
      %v1394 = vld [vmem:[%s742 + $0x28] sm:$0xf]
      %v1395 = vld [vmem:[%s742 + $0x2c] sm:$0xf]
      %v1396 = vld [vmem:[%s742 + $0x30] sm:$0xf]
      %v1397 = vld [vmem:[%s742 + $0x34] sm:$0xf]
      %v1398 = vld [vmem:[%s742 + $0x38] sm:$0xf]
      %v1399 = vld [vmem:[%s742 + $0x3c] sm:$0xf]
      %v1416 = vunpack.c.l.b16 %v1384
      %v1417 = vunpack.c.l.b16 %v1385
      %v1418 = vunpack.c.l.b16 %v1386
      %v1419 = vunpack.c.l.b16 %v1387
      %v1420 = vunpack.c.l.b16 %v1388
      %v1421 = vunpack.c.l.b16 %v1389
      %v1422 = vunpack.c.l.b16 %v1390
      %v1423 = vunpack.c.l.b16 %v1391
      %v1424 = vunpack.c.l.b16 %v1392
      %v1425 = vunpack.c.l.b16 %v1393
      %v1426 = vunpack.c.l.b16 %v1394
      %v1427 = vunpack.c.l.b16 %v1395
      %v1428 = vunpack.c.l.b16 %v1396
      %v1429 = vunpack.c.l.b16 %v1397
      %v1430 = vunpack.c.l.b16 %v1398
      %v1431 = vunpack.c.l.b16 %v1399
      %v1432 = vpack.c.b16 %v1417, %v1416
      %v1433 = vpack.c.b16 %v1419, %v1418
      %v1434 = vpack.c.b16 %v1421, %v1420
      %v1435 = vpack.c.b16 %v1423, %v1422
      %v1436 = vpack.c.b16 %v1425, %v1424
      %v1437 = vpack.c.b16 %v1427, %v1426
      %v1438 = vpack.c.b16 %v1429, %v1428
      %v1439 = vpack.c.b16 %v1431, %v1430
      %1448 = vmatpush.bf16.msra.mxu0 %v1439
      %1449 = vmatpush.bf16.msra.mxu0 %v1438
      %1450 = vmatpush.bf16.msra.mxu0 %v1437
      %1451 = vmatpush.bf16.msra.mxu0 %v1436
      %1452 = vmatpush.bf16.msra.mxu0 %v1435
      %1453 = vmatpush.bf16.msra.mxu0 %v1434
      %1454 = vmatpush.bf16.msra.mxu0 %v1433
      %1455 = vmatpush.bf16.msra.mxu0 %v1432
      %1456 = vmatmul.bf16.gmra.mxu0 %v1383
      %v1457 = vpop.f32.mrf.mxu0
      %v1458 = vadd.f32 0.0, %v1457
      %v1459 = vpop.f32.mrf.mxu0
      %v1460 = vadd.f32 0.0, %v1459
      %1461 = vdwg.mxu0
      %v1462 = vadd.f32 %v1269, %v1458
      %v1463 = vadd.f32 %v1270, %v1460
      %v1464 = vld [vmem:[%s745] sm:$0x1]
      %v1466 = vperm.slane %v1464, 0
      %v1468 = vadd.f32 %v1462, %v1466
      %v1469 = vadd.f32 %v1463, %v1466
      %1470 = vst.msk [vmem:[#allocation2] sm:$0xff] %vm764, %v1468
      %1471 = vst.msk [vmem:[#allocation2 + $0x8] sm:$0x1] %vm768, %v1469
      %p1472 = scmp.eq.s32.totalorder %s33, 1
      // Predicated region
      $region93: #{trajectory_encoder_forward.3} parent=87 // pred_check
        %p1473 = pneg %p1472
      $region94: #{trajectory_encoder_forward.3} parent=87 // pred_check_branch
        %1475 = sbr.rel (%p1473) target = $region96
      $region95: #{trajectory_encoder_forward.3} parent=87 // pred_region
        %v1476 = vld [vmem:[%s13] sm:$0x1]
        %v1477 = vld [vmem:[%s14] sm:$0x1]
        %v1478 = vsel %vm768, %v1468, 0.0
        %1479 = vadd.xlane.f32.xlu0 %v1478
        %v1480 = vpop.xlane.xlu0 %1479
        %v1481 = vmul.f32 %v1480, %v778
        %v1482 = vsub.f32 %v1468, %v1481
        %v1483 = vmul.f32 %v1482, %v1482
        %v1484 = vsel %vm768, %v1483, 0.0
        %1485 = vadd.xlane.f32.xlu0 %v1484
        %v1486 = vpop.xlane.xlu0 %1485
        %v1487 = vmul.f32 %v1486, %v778
        %v1488 = vadd.f32 %v1487, 1e-05
        %v1489 = vrsqrt.pop %v1488
        %v1490 = vmul.f32 %v1489, %v1488
        %v1491 = vmul.f32 %v1490, %v1489
        %v1492 = vmul.f32 0.5, %v1491
        %v1493 = vsub.f32 1.5, %v1492
        %v1494 = vmul.f32 %v1489, %v1493
        %vm1495 = vweird.f32 %v1488
        %vm1496 = vweird.f32 %v1489
        %vm1497 = vmor %vm1495, %vm1496
        %v1498 = vsel %vm1497, %v1489, %v1494
        %v1499 = vmul.f32 %v1482, %v1498
        %v1500 = vmul.f32 %v1499, %v1476
        %v1501 = vadd.f32 %v1500, %v1477
        %v1502 = vpack.c.bf16 %v1501, %v1501
        %v1503 = vld [vmem:[%s15] sm:$0xf]
        %v1504 = vld [vmem:[%s15 + $0x4] sm:$0xf]
        %v1505 = vld [vmem:[%s15 + $0x8] sm:$0xf]
        %v1506 = vld [vmem:[%s15 + $0xc] sm:$0xf]
        %v1507 = vld [vmem:[%s16] sm:$0x1]
        %v1512 = vunpack.c.l.b16 %v1503
        %v1513 = vunpack.c.l.b16 %v1504
        %v1514 = vunpack.c.l.b16 %v1505
        %v1515 = vunpack.c.l.b16 %v1506
        %v1516 = vpack.c.b16 %v1513, %v1512
        %v1517 = vpack.c.b16 %v1515, %v1514
        %v1521 = vsel %vm764, %v1502, 0
        %1523 = vmatpush.bf16.msra.mxu0 0
        %1524 = vmatpush.bf16.msra.mxu0 0
        %1525 = vmatpush.bf16.msra.mxu0 0
        %1526 = vmatpush.bf16.msra.mxu0 0
        %1527 = vmatpush.bf16.msra.mxu0 0
        %1528 = vmatpush.bf16.msra.mxu0 0
        %1529 = vmatpush.bf16.msra.mxu0 %v1517
        %1530 = vmatpush.bf16.msra.mxu0 %v1516
        %1531 = vmatmul.bf16.gmra.mxu0 %v1521
        %v1532 = vpop.f32.mrf.mxu0
        %v1533 = vadd.f32 %v1507, %v1532
        %v1534 = vpop.f32.mrf.mxu0
        %1535 = vdwg.mxu0
        %vm1536 = vcmask 516096
        %1537 = vst.msk [vmem:[%s748] sm:$0x1] %vm1536, %v1533
      $region96: #{trajectory_encoder_forward.3} parent=87 // pred_fallthru
        _
      %p1538 = scmp.lt.s32.totalorder %s32, 1
      %s1539 = scalar_select %p1538, %s32, 1
      %s1540 = scalar_lea.vmem %s17, %s1539
      // Predicated region
      $region97: #{trajectory_encoder_forward.3} parent=87 // pred_check
        %p1541 = pneg %p480
      $region98: #{trajectory_encoder_forward.3} parent=87 // pred_check_branch
        %1543 = sbr.rel (%p1541) target = $region100
      $region99: #{trajectory_encoder_forward.3} parent=87 // pred_region
        _
      $region100: #{trajectory_encoder_forward.3} parent=87 // pred_fallthru
        _
    $region88: #{trajectory_encoder_forward.3} parent=5 // pred_fallthru
      _
    %p1544 = scmp.le.s32.totalorder 2, %s23
    // Predicated region
    $region101: #{trajectory_encoder_forward.3} parent=5 // pred_check
      %p1545 = pneg %p1544
    $region102: #{trajectory_encoder_forward.3} parent=5 // pred_check_branch
      %1547 = sbr.rel (%p1545) target = $region104
    $region103: #{trajectory_encoder_forward.3} parent=5 // pred_region
      %s1548 = ssub.s32 %s23, 2
      // Predicated region
      $region105: #{trajectory_encoder_forward.3} parent=103 // pred_check
        %p1549 = pneg %p486
      $region106: #{trajectory_encoder_forward.3} parent=103 // pred_check_branch
        %1551 = sbr.rel (%p1549) target = $region108
      $region107: #{trajectory_encoder_forward.3} parent=103 // pred_region
        %p1552 = scmp.lt.s32.totalorder %s34, 1
        %s1553 = scalar_select %p1552, %s34, 1
        %s1554 = scalar_lea.vmem %s17, %s1553
      $region108: #{trajectory_encoder_forward.3} parent=103 // pred_fallthru
        _
    $region104: #{trajectory_encoder_forward.3} parent=5 // pred_fallthru
      _
  $region6: #{trajectory_encoder_forward.3} parent=0 // loop_footer
    %s27 = sadd.s32 1, %s23
  $region7: #{trajectory_encoder_forward.3} parent=0 // loop_footer_branch
    %22 = sbr.rel target = $region3
  $region8: #{trajectory_encoder_forward.3} parent=0 // loop_exit
    _

// kernel: trajectory_encoder_forward.2
$region0: #{trajectory_encoder_forward.2}
  #allocation0 [shape = 'u32[]', space=smem, size = 0x4, offset = 0x4, fixed_abs, tag = 'smem constant byte address 0x4 - core index']
  #allocation1 [shape = 'u32[72,128]{1,0:T(1,128)}', space=vmem, size = 0x9000, scoped, tag = 'internal scratch']
  %s0 = inlined_call_operand.vmem [shape: f32[16,32,16], index: 0, kind: input, shape index: {}]
  %s1 = inlined_call_operand.vmem [shape: f32[1,32], index: 1, kind: input, shape index: {}]
  %s2 = inlined_call_operand.vmem [shape: bf16[32,64], index: 2, kind: input, shape index: {}]
  %s3 = inlined_call_operand.vmem [shape: f32[1,64], index: 3, kind: input, shape index: {}]
  %s4 = inlined_call_operand.vmem [shape: bf16[32,32], index: 4, kind: input, shape index: {}]
  %s5 = inlined_call_operand.vmem [shape: f32[1,32], index: 5, kind: input, shape index: {}]
  %s6 = inlined_call_operand.vmem [shape: f32[1,32], index: 6, kind: input, shape index: {}]
  %s7 = inlined_call_operand.vmem [shape: f32[1,32], index: 7, kind: input, shape index: {}]
  %s8 = inlined_call_operand.vmem [shape: f32[1,32], index: 8, kind: input, shape index: {}]
  %s9 = inlined_call_operand.vmem [shape: f32[16,32], index: 9, kind: output, shape index: {}]
  %s10 = sld [smem:[#allocation0]]
  $region69: #{trajectory_encoder_forward.2} parent=0
    _
  %s12 = ssub.s32 1, %s10
  %s13 = scalar_select 0, %s12, %s10
  loop: start=0, step=1, limit=4
  $region2: #{trajectory_encoder_forward.2} parent=0 // loop_pre_header
    _
  $region3: #{trajectory_encoder_forward.2} parent=0 // loop_header
    %s15 = sphi 0, %s19
    %p16 = scmp.ge.s32.totalorder %s15, 4
    %s25 = sphi 0, %s27
    %s28 = sphi 0, %s25
    %s29 = sphi 0, %s28
    %s45 = sphi 0, %s29
    %s49 = sphi 0, %s49
    %s51 = sphi 0, %s49
    %s52 = sphi 0, %s51
    %s66 = sphi 0, %s52
    %s70 = sphi 0, %s70
    %s72 = sphi 0, %s70
    %s73 = sphi 0, %s72
    %s87 = sphi 0, %s73
    %s91 = sphi 0, %s91
    %s93 = sphi 0, %s91
    %s94 = sphi 0, %s93
    %s108 = sphi 0, %s94
    %s112 = sphi 0, %s112
    %s114 = sphi 0, %s112
    %s115 = sphi 0, %s114
    %s129 = sphi 0, %s115
    %s133 = sphi 0, %s133
    %s135 = sphi 0, %s133
    %s136 = sphi 0, %s135
    %s150 = sphi 0, %s136
    %s154 = sphi 0, %s154
    %s156 = sphi 0, %s154
    %s157 = sphi 0, %s156
    %s171 = sphi 0, %s157
    %s175 = sphi 0, %s175
    %s177 = sphi 0, %s175
    %s178 = sphi 0, %s177
    %s192 = sphi 0, %s178
    %s196 = sphi 0, %s196
    %s198 = sphi 0, %s196
    %s199 = sphi 0, %s198
    %s213 = sphi 0, %s199
    %s219 = sphi 0, %s221
    %s222 = sphi 0, %s219
    %s223 = sphi 0, %s222
    %s239 = sphi 0, %s223
  $region4: #{trajectory_encoder_forward.2} parent=0 // loop_header_branch
    %18 = sbr.rel (%p16) target = $region8
  $region5: #{trajectory_encoder_forward.2} parent=0 // loop_body
    %s20 = ssub.s32 %s15, 1
    %s21 = ssub.s32 %s15, 2
    %s22 = sadd.s32 %s15, 1
    %s23 = ssub.s32 %s15, %s22
    %p24 = scmp.eq.s32.totalorder %s23, 0
    %s26 = sadd.s32 %s25, 1
    %s27 = scalar_select %p24, %s25, %s26
    %p30 = pneg %p24
    %p31 = scmp.eq.s32.totalorder %s15, 1
    %p32 = por %p30, %p31
    %p33 = scmp.ne.s32.totalorder %s25, %s28
    %p34 = scmp.eq.s32.totalorder %s15, 0
    %p35 = por %p33, %p34
    %p36 = scmp.ne.s32.totalorder %s25, %s28
    %p37 = scmp.eq.s32.totalorder %s20, 1
    %p38 = por %p36, %p37
    %p39 = scmp.ne.s32.totalorder %s28, %s29
    %p40 = scmp.eq.s32.totalorder %s20, 0
    %p41 = por %p39, %p40
    %p42 = scmp.ne.s32.totalorder %s28, %s29
    %p43 = scmp.eq.s32.totalorder %s21, 1
    %p44 = por %p42, %p43
    %p46 = scmp.ne.s32.totalorder %s29, %s45
    %p47 = scmp.eq.s32.totalorder %s21, 0
    %p48 = por %p46, %p47
    %s50 = sadd.s32 %s49, 1
    %p53 = scmp.eq.s32.totalorder %s15, 1
    %p54 = scmp.ne.s32.totalorder %s49, %s51
    %p55 = scmp.eq.s32.totalorder %s15, 0
    %p56 = por %p54, %p55
    %p57 = scmp.ne.s32.totalorder %s49, %s51
    %p58 = scmp.eq.s32.totalorder %s20, 1
    %p59 = por %p57, %p58
    %p60 = scmp.ne.s32.totalorder %s51, %s52
    %p61 = scmp.eq.s32.totalorder %s20, 0
    %p62 = por %p60, %p61
    %p63 = scmp.ne.s32.totalorder %s51, %s52
    %p64 = scmp.eq.s32.totalorder %s21, 1
    %p65 = por %p63, %p64
    %p67 = scmp.ne.s32.totalorder %s52, %s66
    %p68 = scmp.eq.s32.totalorder %s21, 0
    %p69 = por %p67, %p68
    %s71 = sadd.s32 %s70, 1
    %p74 = scmp.eq.s32.totalorder %s15, 1
    %p75 = scmp.ne.s32.totalorder %s70, %s72
    %p76 = scmp.eq.s32.totalorder %s15, 0
    %p77 = por %p75, %p76
    %p78 = scmp.ne.s32.totalorder %s70, %s72
    %p79 = scmp.eq.s32.totalorder %s20, 1
    %p80 = por %p78, %p79
    %p81 = scmp.ne.s32.totalorder %s72, %s73
    %p82 = scmp.eq.s32.totalorder %s20, 0
    %p83 = por %p81, %p82
    %p84 = scmp.ne.s32.totalorder %s72, %s73
    %p85 = scmp.eq.s32.totalorder %s21, 1
    %p86 = por %p84, %p85
    %p88 = scmp.ne.s32.totalorder %s73, %s87
    %p89 = scmp.eq.s32.totalorder %s21, 0
    %p90 = por %p88, %p89
    %s92 = sadd.s32 %s91, 1
    %p95 = scmp.eq.s32.totalorder %s15, 1
    %p96 = scmp.ne.s32.totalorder %s91, %s93
    %p97 = scmp.eq.s32.totalorder %s15, 0
    %p98 = por %p96, %p97
    %p99 = scmp.ne.s32.totalorder %s91, %s93
    %p100 = scmp.eq.s32.totalorder %s20, 1
    %p101 = por %p99, %p100
    %p102 = scmp.ne.s32.totalorder %s93, %s94
    %p103 = scmp.eq.s32.totalorder %s20, 0
    %p104 = por %p102, %p103
    %p105 = scmp.ne.s32.totalorder %s93, %s94
    %p106 = scmp.eq.s32.totalorder %s21, 1
    %p107 = por %p105, %p106
    %p109 = scmp.ne.s32.totalorder %s94, %s108
    %p110 = scmp.eq.s32.totalorder %s21, 0
    %p111 = por %p109, %p110
    %s113 = sadd.s32 %s112, 1
    %p116 = scmp.eq.s32.totalorder %s15, 1
    %p117 = scmp.ne.s32.totalorder %s112, %s114
    %p118 = scmp.eq.s32.totalorder %s15, 0
    %p119 = por %p117, %p118
    %p120 = scmp.ne.s32.totalorder %s112, %s114
    %p121 = scmp.eq.s32.totalorder %s20, 1
    %p122 = por %p120, %p121
    %p123 = scmp.ne.s32.totalorder %s114, %s115
    %p124 = scmp.eq.s32.totalorder %s20, 0
    %p125 = por %p123, %p124
    %p126 = scmp.ne.s32.totalorder %s114, %s115
    %p127 = scmp.eq.s32.totalorder %s21, 1
    %p128 = por %p126, %p127
    %p130 = scmp.ne.s32.totalorder %s115, %s129
    %p131 = scmp.eq.s32.totalorder %s21, 0
    %p132 = por %p130, %p131
    %s134 = sadd.s32 %s133, 1
    %p137 = scmp.eq.s32.totalorder %s15, 1
    %p138 = scmp.ne.s32.totalorder %s133, %s135
    %p139 = scmp.eq.s32.totalorder %s15, 0
    %p140 = por %p138, %p139
    %p141 = scmp.ne.s32.totalorder %s133, %s135
    %p142 = scmp.eq.s32.totalorder %s20, 1
    %p143 = por %p141, %p142
    %p144 = scmp.ne.s32.totalorder %s135, %s136
    %p145 = scmp.eq.s32.totalorder %s20, 0
    %p146 = por %p144, %p145
    %p147 = scmp.ne.s32.totalorder %s135, %s136
    %p148 = scmp.eq.s32.totalorder %s21, 1
    %p149 = por %p147, %p148
    %p151 = scmp.ne.s32.totalorder %s136, %s150
    %p152 = scmp.eq.s32.totalorder %s21, 0
    %p153 = por %p151, %p152
    %s155 = sadd.s32 %s154, 1
    %p158 = scmp.eq.s32.totalorder %s15, 1
    %p159 = scmp.ne.s32.totalorder %s154, %s156
    %p160 = scmp.eq.s32.totalorder %s15, 0
    %p161 = por %p159, %p160
    %p162 = scmp.ne.s32.totalorder %s154, %s156
    %p163 = scmp.eq.s32.totalorder %s20, 1
    %p164 = por %p162, %p163
    %p165 = scmp.ne.s32.totalorder %s156, %s157
    %p166 = scmp.eq.s32.totalorder %s20, 0
    %p167 = por %p165, %p166
    %p168 = scmp.ne.s32.totalorder %s156, %s157
    %p169 = scmp.eq.s32.totalorder %s21, 1
    %p170 = por %p168, %p169
    %p172 = scmp.ne.s32.totalorder %s157, %s171
    %p173 = scmp.eq.s32.totalorder %s21, 0
    %p174 = por %p172, %p173
    %s176 = sadd.s32 %s175, 1
    %p179 = scmp.eq.s32.totalorder %s15, 1
    %p180 = scmp.ne.s32.totalorder %s175, %s177
    %p181 = scmp.eq.s32.totalorder %s15, 0
    %p182 = por %p180, %p181
    %p183 = scmp.ne.s32.totalorder %s175, %s177
    %p184 = scmp.eq.s32.totalorder %s20, 1
    %p185 = por %p183, %p184
    %p186 = scmp.ne.s32.totalorder %s177, %s178
    %p187 = scmp.eq.s32.totalorder %s20, 0
    %p188 = por %p186, %p187
    %p189 = scmp.ne.s32.totalorder %s177, %s178
    %p190 = scmp.eq.s32.totalorder %s21, 1
    %p191 = por %p189, %p190
    %p193 = scmp.ne.s32.totalorder %s178, %s192
    %p194 = scmp.eq.s32.totalorder %s21, 0
    %p195 = por %p193, %p194
    %s197 = sadd.s32 %s196, 1
    %p200 = scmp.eq.s32.totalorder %s15, 1
    %p201 = scmp.ne.s32.totalorder %s196, %s198
    %p202 = scmp.eq.s32.totalorder %s15, 0
    %p203 = por %p201, %p202
    %p204 = scmp.ne.s32.totalorder %s196, %s198
    %p205 = scmp.eq.s32.totalorder %s20, 1
    %p206 = por %p204, %p205
    %p207 = scmp.ne.s32.totalorder %s198, %s199
    %p208 = scmp.eq.s32.totalorder %s20, 0
    %p209 = por %p207, %p208
    %p210 = scmp.ne.s32.totalorder %s198, %s199
    %p211 = scmp.eq.s32.totalorder %s21, 1
    %p212 = por %p210, %p211
    %p214 = scmp.ne.s32.totalorder %s199, %s213
    %p215 = scmp.eq.s32.totalorder %s21, 0
    %p216 = por %p214, %p215
    %s217 = ssub.s32 %s15, %s22
    %p218 = scmp.eq.s32.totalorder %s217, 0
    %s220 = sadd.s32 %s219, 1
    %s221 = scalar_select %p218, %s219, %s220
    %p224 = pneg %p218
    %p225 = scmp.eq.s32.totalorder %s15, 1
    %p226 = por %p224, %p225
    %p227 = scmp.ne.s32.totalorder %s219, %s222
    %p228 = scmp.eq.s32.totalorder %s15, 0
    %p229 = por %p227, %p228
    %p230 = scmp.ne.s32.totalorder %s219, %s222
    %p231 = scmp.eq.s32.totalorder %s20, 1
    %p232 = por %p230, %p231
    %p233 = scmp.ne.s32.totalorder %s222, %s223
    %p234 = scmp.eq.s32.totalorder %s20, 0
    %p235 = por %p233, %p234
    %p236 = scmp.ne.s32.totalorder %s222, %s223
    %p237 = scmp.eq.s32.totalorder %s21, 1
    %p238 = por %p236, %p237
    %p240 = scmp.ne.s32.totalorder %s223, %s239
    %p241 = scmp.eq.s32.totalorder %s21, 0
    %p242 = por %p240, %p241
    %p243 = scmp.le.s32.totalorder 1, %s15
    %p244 = scmp.lt.s32.totalorder %s15, 3
    %p245 = pnand %p243, %p244
    %p246 = pneg %p245
    // Predicated region
    $region9: #{trajectory_encoder_forward.2} parent=5 // pred_check
      _
    $region10: #{trajectory_encoder_forward.2} parent=5 // pred_check_branch
      %248 = sbr.rel (%p245) target = $region12
    $region11: #{trajectory_encoder_forward.2} parent=5 // pred_region
      %s249 = ssub.s32 %s15, 1
      // Predicated region
      $region13: #{trajectory_encoder_forward.2} parent=11 // pred_check
        %p250 = pneg %p62
      $region14: #{trajectory_encoder_forward.2} parent=11 // pred_check_branch
        %252 = sbr.rel (%p250) target = $region16
      $region15: #{trajectory_encoder_forward.2} parent=11 // pred_region
        _
      $region16: #{trajectory_encoder_forward.2} parent=11 // pred_fallthru
        _
      // Predicated region
      $region17: #{trajectory_encoder_forward.2} parent=11 // pred_check
        %p253 = pneg %p83
      $region18: #{trajectory_encoder_forward.2} parent=11 // pred_check_branch
        %255 = sbr.rel (%p253) target = $region20
      $region19: #{trajectory_encoder_forward.2} parent=11 // pred_region
        _
      $region20: #{trajectory_encoder_forward.2} parent=11 // pred_fallthru
        _
      // Predicated region
      $region21: #{trajectory_encoder_forward.2} parent=11 // pred_check
        %p256 = pneg %p104
      $region22: #{trajectory_encoder_forward.2} parent=11 // pred_check_branch
        %258 = sbr.rel (%p256) target = $region24
      $region23: #{trajectory_encoder_forward.2} parent=11 // pred_region
        _
      $region24: #{trajectory_encoder_forward.2} parent=11 // pred_fallthru
        _
      // Predicated region
      $region25: #{trajectory_encoder_forward.2} parent=11 // pred_check
        %p259 = pneg %p125
      $region26: #{trajectory_encoder_forward.2} parent=11 // pred_check_branch
        %261 = sbr.rel (%p259) target = $region28
      $region27: #{trajectory_encoder_forward.2} parent=11 // pred_region
        _
      $region28: #{trajectory_encoder_forward.2} parent=11 // pred_fallthru
        _
      // Predicated region
      $region29: #{trajectory_encoder_forward.2} parent=11 // pred_check
        %p262 = pneg %p146
      $region30: #{trajectory_encoder_forward.2} parent=11 // pred_check_branch
        %264 = sbr.rel (%p262) target = $region32
      $region31: #{trajectory_encoder_forward.2} parent=11 // pred_region
        _
      $region32: #{trajectory_encoder_forward.2} parent=11 // pred_fallthru
        _
      // Predicated region
      $region33: #{trajectory_encoder_forward.2} parent=11 // pred_check
        %p265 = pneg %p167
      $region34: #{trajectory_encoder_forward.2} parent=11 // pred_check_branch
        %267 = sbr.rel (%p265) target = $region36
      $region35: #{trajectory_encoder_forward.2} parent=11 // pred_region
        _
      $region36: #{trajectory_encoder_forward.2} parent=11 // pred_fallthru
        _
      // Predicated region
      $region37: #{trajectory_encoder_forward.2} parent=11 // pred_check
        %p268 = pneg %p188
      $region38: #{trajectory_encoder_forward.2} parent=11 // pred_check_branch
        %270 = sbr.rel (%p268) target = $region40
      $region39: #{trajectory_encoder_forward.2} parent=11 // pred_region
        _
      $region40: #{trajectory_encoder_forward.2} parent=11 // pred_fallthru
        _
      // Predicated region
      $region41: #{trajectory_encoder_forward.2} parent=11 // pred_check
        %p271 = pneg %p209
      $region42: #{trajectory_encoder_forward.2} parent=11 // pred_check_branch
        %273 = sbr.rel (%p271) target = $region44
      $region43: #{trajectory_encoder_forward.2} parent=11 // pred_region
        _
      $region44: #{trajectory_encoder_forward.2} parent=11 // pred_fallthru
        _
    $region12: #{trajectory_encoder_forward.2} parent=5 // pred_fallthru
      _
    %p274 = scmp.lt.s32.totalorder %s15, 2
    // Predicated region
    $region45: #{trajectory_encoder_forward.2} parent=5 // pred_check
      %p275 = pneg %p274
    $region46: #{trajectory_encoder_forward.2} parent=5 // pred_check_branch
      %277 = sbr.rel (%p275) target = $region48
    $region47: #{trajectory_encoder_forward.2} parent=5 // pred_region
      // Predicated region
      $region49: #{trajectory_encoder_forward.2} parent=47 // pred_check
        %p278 = pneg %p35
      $region50: #{trajectory_encoder_forward.2} parent=47 // pred_check_branch
        %280 = sbr.rel (%p278) target = $region52
      $region51: #{trajectory_encoder_forward.2} parent=47 // pred_region
        %s281 = smul.u32 8, %s15
        %p282 = scmp.lt.s32.totalorder %s281, 15
        %s283 = scalar_select %p282, %s281, 15
        %s284 = smul.addr %s283, 4
        %s285 = smul.addr %s284, 8
        %s286 = scalar_lea.vmem %s0, %s285
        %s287 = smul.u32 8, %s15
      $region52: #{trajectory_encoder_forward.2} parent=47 // pred_fallthru
        _
    $region48: #{trajectory_encoder_forward.2} parent=5 // pred_fallthru
      _
    %p288 = scmp.le.s32.totalorder 1, %s15
    %p289 = scmp.lt.s32.totalorder %s15, 3
    %p290 = pnand %p288, %p289
    %p291 = pneg %p290
    // Predicated region
    $region53: #{trajectory_encoder_forward.2} parent=5 // pred_check
      _
    $region54: #{trajectory_encoder_forward.2} parent=5 // pred_check_branch
      %293 = sbr.rel (%p290) target = $region56
    $region55: #{trajectory_encoder_forward.2} parent=5 // pred_region
      %s294 = ssub.s32 %s15, 1
      %s295 = smul.u32 8, %s20
      %p296 = scmp.lt.s32.totalorder %s295, 15
      %s297 = scalar_select %p296, %s295, 15
      %s298 = smul.addr %s297, 4
      %s299 = smul.addr %s298, 8
      %s300 = scalar_lea.vmem %s0, %s299
      %p301 = pneg %p41
      %p302 = pneg %p38
      %p303 = pneg %p62
      %p304 = pneg %p59
      %p305 = pneg %p83
      %p306 = pneg %p80
      %p307 = pneg %p104
      %p308 = pneg %p101
      %p309 = pneg %p125
      %p310 = pneg %p122
      %p311 = pneg %p146
      %p312 = pneg %p143
      %p313 = pneg %p167
      %p314 = pneg %p164
      %p315 = pneg %p188
      %p316 = pneg %p185
      %p317 = pneg %p209
      %p318 = pneg %p206
      %p319 = pneg %p235
      %p320 = pneg %p232
      %p321 = scmp.lt.s32.totalorder %s20, 1
      %s322 = scalar_select %p321, %s20, 1
      %s323 = smul.addr %s322, 8
      %s324 = scalar_lea.vmem %s9, %s323
      %s325 = smul.u32 8, %s20
      %p326 = scmp.lt.s32.totalorder %s325, 15
      %s327 = scalar_select %p326, %s325, 15
      %s328 = smul.addr %s327, 4
      %s329 = smul.addr %s328, 8
      %s330 = scalar_lea.vmem %s0, %s329
      %s331 = smul.u32 8, %s20
      %p332 = scmp.lt.s32.totalorder %s20, 1
      %s333 = scalar_select %p332, %s20, 1
      %s334 = smul.addr %s333, 8
      %s335 = scalar_lea.vmem %s9, %s334
      %v337 = vld [vmem:[%s1] sm:$0x1]
      %v338 = vld [vmem:[%s4] sm:$0xf]
      %v339 = vld [vmem:[%s4 + $0x4] sm:$0xf]
      %v340 = vld [vmem:[%s4 + $0x8] sm:$0xf]
      %v341 = vld [vmem:[%s4 + $0xc] sm:$0xf]
      %v342 = vld [vmem:[%s330] sm:$0xff]
      %v343 = vld [vmem:[%s330 + $0x8] sm:$0xff]
      %v344 = vld [vmem:[%s330 + $0x10] sm:$0xff]
      %v345 = vld [vmem:[%s330 + $0x18] sm:$0xff]
      %v346 = vpack.c.bf16 %v343, %v342
      %v347 = vpack.c.bf16 %v345, %v344
      %v348 = vld [vmem:[%s2] sm:$0xf]
      %v349 = vld [vmem:[%s2 + $0x4] sm:$0xf]
      %v350 = vld [vmem:[%s2 + $0x8] sm:$0xf]
      %v351 = vld [vmem:[%s2 + $0xc] sm:$0xf]
      %v352 = vld [vmem:[%s3] sm:$0x1]
      %v354 = vperm.slane %v352, 0
      %356 = vxpose.xlu0.c.b16.start [1/8] %v346, 128
      %357 = vxpose.xlu0.c.b16.cont [2/8] %v347, 128
      %358 = vxpose.xlu0.c.b16.cont [3/8] 0, 128
      %359 = vxpose.xlu0.c.b16.cont [4/8] 0, 128
      %360 = vxpose.xlu0.c.b16.cont [5/8] 0, 128
      %361 = vxpose.xlu0.c.b16.cont [6/8] 0, 128
      %362 = vxpose.xlu0.c.b16.cont [7/8] 0, 128
      %363 = vxpose.xlu0.c.b16.end [8/8] 0, 128
      %v364 = vpop.trf.xlu0
      %v365 = vpop.trf.xlu0
      %v366 = vpop.trf.xlu0
      %v367 = vpop.trf.xlu0
      %v368 = vpop.trf.xlu0
      %v369 = vpop.trf.xlu0
      %v370 = vpop.trf.xlu0
      %v371 = vpop.trf.xlu0
      %v376 = vunpack.c.l.b16 %v348
      %v377 = vunpack.c.l.b16 %v349
      %v378 = vunpack.c.l.b16 %v350
      %v379 = vunpack.c.l.b16 %v351
      %v380 = vpack.c.b16 %v377, %v376
      %v381 = vpack.c.b16 %v379, %v378
      %vm384 = vcmask 261120
      %v386 = vsel %vm384, %v364, 0
      %388 = vmatpush.bf16.msra.mxu0 0
      %389 = vmatpush.bf16.msra.mxu0 0
      %390 = vmatpush.bf16.msra.mxu0 0
      %391 = vmatpush.bf16.msra.mxu0 0
      %392 = vmatpush.bf16.msra.mxu0 0
      %393 = vmatpush.bf16.msra.mxu0 0
      %394 = vmatpush.bf16.msra.mxu0 %v381
      %395 = vmatpush.bf16.msra.mxu0 %v380
      %396 = vmatmul.bf16.gmra.mxu0 %v386
      %v397 = vpop.f32.mrf.mxu0
      %v398 = vadd.f32 %v354, %v397
      %v399 = vpop.f32.mrf.mxu0
      %v400 = vadd.f32 %v354, %v399
      %401 = vdwg.mxu0
      %v402 = vpack.c.bf16 %v337, %v337
      %v403 = vpack.c.bf16 %v400, %v398
      %vm404 = vcmask 64512
      %v406 = vsel %vm404, %v402, 0
      %v409 = vsel %vm404, %v403, 0
      %411 = vmatpush.bf16.xpose.msra.mxu0 0
      %412 = vmatpush.bf16.xpose.msra.mxu0 0
      %413 = vmatpush.bf16.xpose.msra.mxu0 0
      %414 = vmatpush.bf16.xpose.msra.mxu0 0
      %415 = vmatpush.bf16.xpose.msra.mxu0 0
      %416 = vmatpush.bf16.xpose.msra.mxu0 0
      %417 = vmatpush.bf16.xpose.msra.mxu0 0
      %418 = vmatpush.bf16.xpose.msra.mxu0 %v409
      %419 = vmatmul.bf16.gmra.mxu0 %v406
      %v420 = vpop.f32.mrf.mxu0
      %v421 = vadd.f32 0.0, %v420
      %v422 = vpop.f32.mrf.mxu0
      %423 = vdwg.mxu0
      %v424 = vmul.f32 %v421, 0.35355338
      %vm425 = vcmask 122880
      %v426 = vsel %vm425, %v424, -inf
      %427 = vmax.xlane.f32.xlu0 %v426
      %v428 = vpop.xlane.xlu0 %427
      %v429 = vsub.f32 %v424, %v428
      %v430 = vmul.f32 %v429, 1.442695
      %v431 = vpow.pop %v430
      %v432 = vsel %vm425, %v431, 0.0
      %433 = vadd.xlane.f32.xlu0 %v432
      %v434 = vpop.xlane.xlu0 %433
      %v435 = vrcp.pop %v434
      %v436 = vmul.f32 %v431, %v435
      %v437 = vpack.c.bf16 %v436, %v436
      %439 = vrot.lane.b32.xlu0 %v403, 96
      %v440 = vpop.permute.xlu0 %439
      %vm442 = vcmask 130048
      %v444 = vsel %vm442, %v437, 0
      %446 = vmatpush.bf16.msra.mxu0 0
      %447 = vmatpush.bf16.msra.mxu0 0
      %448 = vmatpush.bf16.msra.mxu0 0
      %449 = vmatpush.bf16.msra.mxu0 0
      %450 = vmatpush.bf16.msra.mxu0 0
      %451 = vmatpush.bf16.msra.mxu0 0
      %452 = vmatpush.bf16.msra.mxu0 0
      %453 = vmatpush.bf16.msra.mxu0 %v440
      %454 = vmatmul.bf16.gmra.mxu0 %v444
      %v455 = vpop.f32.mrf.mxu0
      %v456 = vadd.f32 0.0, %v455
      %v457 = vpop.f32.mrf.mxu0
      %458 = vdwg.mxu0
      %v459 = vpack.c.bf16 %v456, %v456
      %461 = vrot.lane.b32.xlu0 %v402, 120
      %v462 = vpop.permute.xlu0 %461
      %463 = vrot.lane.b32.xlu0 %v403, 120
      %v464 = vpop.permute.xlu0 %463
      %v466 = vsel %vm404, %v462, 0
      %v469 = vsel %vm404, %v464, 0
      %471 = vmatpush.bf16.xpose.msra.mxu0 0
      %472 = vmatpush.bf16.xpose.msra.mxu0 0
      %473 = vmatpush.bf16.xpose.msra.mxu0 0
      %474 = vmatpush.bf16.xpose.msra.mxu0 0
      %475 = vmatpush.bf16.xpose.msra.mxu0 0
      %476 = vmatpush.bf16.xpose.msra.mxu0 0
      %477 = vmatpush.bf16.xpose.msra.mxu0 0
      %478 = vmatpush.bf16.xpose.msra.mxu0 %v469
      %479 = vmatmul.bf16.gmra.mxu0 %v466
      %v480 = vpop.f32.mrf.mxu0
      %v481 = vadd.f32 0.0, %v480
      %v482 = vpop.f32.mrf.mxu0
      %483 = vdwg.mxu0
      %v484 = vmul.f32 %v481, 0.35355338
      %v485 = vsel %vm425, %v484, -inf
      %486 = vmax.xlane.f32.xlu0 %v485
      %v487 = vpop.xlane.xlu0 %486
      %v488 = vsub.f32 %v484, %v487
      %v489 = vmul.f32 %v488, 1.442695
      %v490 = vpow.pop %v489
      %v491 = vsel %vm425, %v490, 0.0
      %492 = vadd.xlane.f32.xlu0 %v491
      %v493 = vpop.xlane.xlu0 %492
      %v494 = vrcp.pop %v493
      %v495 = vmul.f32 %v490, %v494
      %v496 = vpack.c.bf16 %v495, %v495
      %497 = vrot.lane.b32.xlu0 %v403, 88
      %v498 = vpop.permute.xlu0 %497
      %v501 = vsel %vm442, %v496, 0
      %503 = vmatpush.bf16.msra.mxu0 0
      %504 = vmatpush.bf16.msra.mxu0 0
      %505 = vmatpush.bf16.msra.mxu0 0
      %506 = vmatpush.bf16.msra.mxu0 0
      %507 = vmatpush.bf16.msra.mxu0 0
      %508 = vmatpush.bf16.msra.mxu0 0
      %509 = vmatpush.bf16.msra.mxu0 0
      %510 = vmatpush.bf16.msra.mxu0 %v498
      %511 = vmatmul.bf16.gmra.mxu0 %v501
      %v512 = vpop.f32.mrf.mxu0
      %v513 = vadd.f32 0.0, %v512
      %v514 = vpop.f32.mrf.mxu0
      %515 = vdwg.mxu0
      %v516 = vpack.c.bf16 %v513, %v513
      %v518 = vsel %vm404, %v516, 0
      %vm520 = vcmask 1043456
      %v522 = vsel %vm520, %v339, 0
      %524 = vmatpush.bf16.msra.mxu0 0
      %525 = vmatpush.bf16.msra.mxu0 0
      %526 = vmatpush.bf16.msra.mxu0 0
      %527 = vmatpush.bf16.msra.mxu0 0
      %528 = vmatpush.bf16.msra.mxu0 0
      %529 = vmatpush.bf16.msra.mxu0 0
      %530 = vmatpush.bf16.msra.mxu0 0
      %531 = vmatpush.bf16.msra.mxu0 %v522
      %532 = vmatmul.bf16.gmra.mxu0 %v518
      %v533 = vpop.f32.mrf.mxu0
      %v534 = vadd.f32 0.0, %v533
      %v535 = vpop.f32.mrf.mxu0
      %536 = vdwg.mxu0
      %v538 = vsel %vm404, %v459, 0
      %v541 = vsel %vm520, %v338, 0
      %543 = vmatpush.bf16.msra.mxu0 0
      %544 = vmatpush.bf16.msra.mxu0 0
      %545 = vmatpush.bf16.msra.mxu0 0
      %546 = vmatpush.bf16.msra.mxu0 0
      %547 = vmatpush.bf16.msra.mxu0 0
      %548 = vmatpush.bf16.msra.mxu0 0
      %549 = vmatpush.bf16.msra.mxu0 0
      %550 = vmatpush.bf16.msra.mxu0 %v541
      %551 = vmatmul.bf16.gmra.mxu0 %v538
      %v552 = vpop.f32.mrf.mxu0
      %v553 = vadd.f32 %v534, %v552
      %v554 = vpop.f32.mrf.mxu0
      %555 = vdwg.mxu0
      %556 = vrot.lane.b32.xlu0 %v402, 112
      %v557 = vpop.permute.xlu0 %556
      %558 = vrot.lane.b32.xlu0 %v403, 112
      %v559 = vpop.permute.xlu0 %558
      %v561 = vsel %vm404, %v557, 0
      %v564 = vsel %vm404, %v559, 0
      %566 = vmatpush.bf16.xpose.msra.mxu0 0
      %567 = vmatpush.bf16.xpose.msra.mxu0 0
      %568 = vmatpush.bf16.xpose.msra.mxu0 0
      %569 = vmatpush.bf16.xpose.msra.mxu0 0
      %570 = vmatpush.bf16.xpose.msra.mxu0 0
      %571 = vmatpush.bf16.xpose.msra.mxu0 0
      %572 = vmatpush.bf16.xpose.msra.mxu0 0
      %573 = vmatpush.bf16.xpose.msra.mxu0 %v564
      %574 = vmatmul.bf16.gmra.mxu0 %v561
      %v575 = vpop.f32.mrf.mxu0
      %v576 = vadd.f32 0.0, %v575
      %v577 = vpop.f32.mrf.mxu0
      %578 = vdwg.mxu0
      %v579 = vmul.f32 %v576, 0.35355338
      %v580 = vsel %vm425, %v579, -inf
      %581 = vmax.xlane.f32.xlu0 %v580
      %v582 = vpop.xlane.xlu0 %581
      %v583 = vsub.f32 %v579, %v582
      %v584 = vmul.f32 %v583, 1.442695
      %v585 = vpow.pop %v584
      %v586 = vsel %vm425, %v585, 0.0
      %587 = vadd.xlane.f32.xlu0 %v586
      %v588 = vpop.xlane.xlu0 %587
      %v589 = vrcp.pop %v588
      %v590 = vmul.f32 %v585, %v589
      %v591 = vpack.c.bf16 %v590, %v590
      %592 = vrot.lane.b32.xlu0 %v403, 80
      %v593 = vpop.permute.xlu0 %592
      %v596 = vsel %vm442, %v591, 0
      %598 = vmatpush.bf16.msra.mxu0 0
      %599 = vmatpush.bf16.msra.mxu0 0
      %600 = vmatpush.bf16.msra.mxu0 0
      %601 = vmatpush.bf16.msra.mxu0 0
      %602 = vmatpush.bf16.msra.mxu0 0
      %603 = vmatpush.bf16.msra.mxu0 0
      %604 = vmatpush.bf16.msra.mxu0 0
      %605 = vmatpush.bf16.msra.mxu0 %v593
      %606 = vmatmul.bf16.gmra.mxu0 %v596
      %v607 = vpop.f32.mrf.mxu0
      %v608 = vadd.f32 0.0, %v607
      %v609 = vpop.f32.mrf.mxu0
      %610 = vdwg.mxu0
      %v611 = vpack.c.bf16 %v608, %v608
      %v613 = vsel %vm404, %v611, 0
      %v616 = vsel %vm520, %v340, 0
      %618 = vmatpush.bf16.msra.mxu0 0
      %619 = vmatpush.bf16.msra.mxu0 0
      %620 = vmatpush.bf16.msra.mxu0 0
      %621 = vmatpush.bf16.msra.mxu0 0
      %622 = vmatpush.bf16.msra.mxu0 0
      %623 = vmatpush.bf16.msra.mxu0 0
      %624 = vmatpush.bf16.msra.mxu0 0
      %625 = vmatpush.bf16.msra.mxu0 %v616
      %626 = vmatmul.bf16.gmra.mxu0 %v613
      %v627 = vpop.f32.mrf.mxu0
      %v628 = vadd.f32 0.0, %v627
      %v629 = vpop.f32.mrf.mxu0
      %630 = vdwg.mxu0
      %v631 = vadd.f32 %v553, %v628
      %632 = vrot.lane.b32.xlu0 %v402, 104
      %v633 = vpop.permute.xlu0 %632
      %634 = vrot.lane.b32.xlu0 %v403, 104
      %v635 = vpop.permute.xlu0 %634
      %v637 = vsel %vm404, %v633, 0
      %v640 = vsel %vm404, %v635, 0
      %642 = vmatpush.bf16.xpose.msra.mxu0 0
      %643 = vmatpush.bf16.xpose.msra.mxu0 0
      %644 = vmatpush.bf16.xpose.msra.mxu0 0
      %645 = vmatpush.bf16.xpose.msra.mxu0 0
      %646 = vmatpush.bf16.xpose.msra.mxu0 0
      %647 = vmatpush.bf16.xpose.msra.mxu0 0
      %648 = vmatpush.bf16.xpose.msra.mxu0 0
      %649 = vmatpush.bf16.xpose.msra.mxu0 %v640
      %650 = vmatmul.bf16.gmra.mxu0 %v637
      %v651 = vpop.f32.mrf.mxu0
      %v652 = vadd.f32 0.0, %v651
      %v653 = vpop.f32.mrf.mxu0
      %654 = vdwg.mxu0
      %v655 = vmul.f32 %v652, 0.35355338
      %v656 = vsel %vm425, %v655, -inf
      %657 = vmax.xlane.f32.xlu0 %v656
      %v658 = vpop.xlane.xlu0 %657
      %v659 = vsub.f32 %v655, %v658
      %v660 = vmul.f32 %v659, 1.442695
      %v661 = vpow.pop %v660
      %v662 = vsel %vm425, %v661, 0.0
      %663 = vadd.xlane.f32.xlu0 %v662
      %v664 = vpop.xlane.xlu0 %663
      %v665 = vrcp.pop %v664
      %v666 = vmul.f32 %v661, %v665
      %v667 = vpack.c.bf16 %v666, %v666
      %668 = vrot.lane.b32.xlu0 %v403, 72
      %v669 = vpop.permute.xlu0 %668
      %v672 = vsel %vm442, %v667, 0
      %674 = vmatpush.bf16.msra.mxu0 0
      %675 = vmatpush.bf16.msra.mxu0 0
      %676 = vmatpush.bf16.msra.mxu0 0
      %677 = vmatpush.bf16.msra.mxu0 0
      %678 = vmatpush.bf16.msra.mxu0 0
      %679 = vmatpush.bf16.msra.mxu0 0
      %680 = vmatpush.bf16.msra.mxu0 0
      %681 = vmatpush.bf16.msra.mxu0 %v669
      %682 = vmatmul.bf16.gmra.mxu0 %v672
      %v683 = vpop.f32.mrf.mxu0
      %v684 = vadd.f32 0.0, %v683
      %v685 = vpop.f32.mrf.mxu0
      %686 = vdwg.mxu0
      %v687 = vpack.c.bf16 %v684, %v684
      %v689 = vsel %vm404, %v687, 0
      %v692 = vsel %vm520, %v341, 0
      %694 = vmatpush.bf16.msra.mxu0 0
      %695 = vmatpush.bf16.msra.mxu0 0
      %696 = vmatpush.bf16.msra.mxu0 0
      %697 = vmatpush.bf16.msra.mxu0 0
      %698 = vmatpush.bf16.msra.mxu0 0
      %699 = vmatpush.bf16.msra.mxu0 0
      %700 = vmatpush.bf16.msra.mxu0 0
      %701 = vmatpush.bf16.msra.mxu0 %v692
      %702 = vmatmul.bf16.gmra.mxu0 %v689
      %v703 = vpop.f32.mrf.mxu0
      %v704 = vadd.f32 0.0, %v703
      %v705 = vpop.f32.mrf.mxu0
      %706 = vdwg.mxu0
      %v707 = vadd.f32 %v631, %v704
      %s708 = scalar_lea.vmem %s330, 32
      %v709 = vld [vmem:[%s708] sm:$0xff]
      %v710 = vld [vmem:[%s708 + $0x8] sm:$0xff]
      %v711 = vld [vmem:[%s708 + $0x10] sm:$0xff]
      %v712 = vld [vmem:[%s708 + $0x18] sm:$0xff]
      %v713 = vpack.c.bf16 %v710, %v709
      %v714 = vpack.c.bf16 %v712, %v711
      %715 = vxpose.xlu0.c.b16.start [1/8] %v713, 128
      %716 = vxpose.xlu0.c.b16.cont [2/8] %v714, 128
      %717 = vxpose.xlu0.c.b16.cont [3/8] 0, 128
      %718 = vxpose.xlu0.c.b16.cont [4/8] 0, 128
      %719 = vxpose.xlu0.c.b16.cont [5/8] 0, 128
      %720 = vxpose.xlu0.c.b16.cont [6/8] 0, 128
      %721 = vxpose.xlu0.c.b16.cont [7/8] 0, 128
      %722 = vxpose.xlu0.c.b16.end [8/8] 0, 128
      %v723 = vpop.trf.xlu0
      %v724 = vpop.trf.xlu0
      %v725 = vpop.trf.xlu0
      %v726 = vpop.trf.xlu0
      %v727 = vpop.trf.xlu0
      %v728 = vpop.trf.xlu0
      %v729 = vpop.trf.xlu0
      %v730 = vpop.trf.xlu0
      %v732 = vsel %vm384, %v723, 0
      %734 = vmatpush.bf16.msra.mxu0 0
      %735 = vmatpush.bf16.msra.mxu0 0
      %736 = vmatpush.bf16.msra.mxu0 0
      %737 = vmatpush.bf16.msra.mxu0 0
      %738 = vmatpush.bf16.msra.mxu0 0
      %739 = vmatpush.bf16.msra.mxu0 0
      %740 = vmatpush.bf16.msra.mxu0 %v381
      %741 = vmatpush.bf16.msra.mxu0 %v380
      %742 = vmatmul.bf16.gmra.mxu0 %v732
      %v743 = vpop.f32.mrf.mxu0
      %v744 = vadd.f32 %v354, %v743
      %v745 = vpop.f32.mrf.mxu0
      %v746 = vadd.f32 %v354, %v745
      %747 = vdwg.mxu0
      %v748 = vpack.c.bf16 %v746, %v744
      %v750 = vsel %vm404, %v748, 0
      %752 = vmatpush.bf16.xpose.msra.mxu0 0
      %753 = vmatpush.bf16.xpose.msra.mxu0 0
      %754 = vmatpush.bf16.xpose.msra.mxu0 0
      %755 = vmatpush.bf16.xpose.msra.mxu0 0
      %756 = vmatpush.bf16.xpose.msra.mxu0 0
      %757 = vmatpush.bf16.xpose.msra.mxu0 0
      %758 = vmatpush.bf16.xpose.msra.mxu0 0
      %759 = vmatpush.bf16.xpose.msra.mxu0 %v750
      %760 = vmatmul.bf16.gmra.mxu0 %v406
      %v761 = vpop.f32.mrf.mxu0
      %v762 = vadd.f32 0.0, %v761
      %v763 = vpop.f32.mrf.mxu0
      %764 = vdwg.mxu0
      %v765 = vmul.f32 %v762, 0.35355338
      %v766 = vsel %vm425, %v765, -inf
      %767 = vmax.xlane.f32.xlu0 %v766
      %v768 = vpop.xlane.xlu0 %767
      %v769 = vsub.f32 %v765, %v768
      %v770 = vmul.f32 %v769, 1.442695
      %v771 = vpow.pop %v770
      %v772 = vsel %vm425, %v771, 0.0
      %773 = vadd.xlane.f32.xlu0 %v772
      %v774 = vpop.xlane.xlu0 %773
      %v775 = vrcp.pop %v774
      %v776 = vmul.f32 %v771, %v775
      %v777 = vpack.c.bf16 %v776, %v776
      %779 = vrot.lane.b32.xlu0 %v748, 96
      %v780 = vpop.permute.xlu0 %779
      %v783 = vsel %vm442, %v777, 0
      %785 = vmatpush.bf16.msra.mxu0 0
      %786 = vmatpush.bf16.msra.mxu0 0
      %787 = vmatpush.bf16.msra.mxu0 0
      %788 = vmatpush.bf16.msra.mxu0 0
      %789 = vmatpush.bf16.msra.mxu0 0
      %790 = vmatpush.bf16.msra.mxu0 0
      %791 = vmatpush.bf16.msra.mxu0 0
      %792 = vmatpush.bf16.msra.mxu0 %v780
      %793 = vmatmul.bf16.gmra.mxu0 %v783
      %v794 = vpop.f32.mrf.mxu0
      %v795 = vadd.f32 0.0, %v794
      %v796 = vpop.f32.mrf.mxu0
      %797 = vdwg.mxu0
      %v798 = vpack.c.bf16 %v795, %v795
      %799 = vrot.lane.b32.xlu0 %v748, 120
      %v800 = vpop.permute.xlu0 %799
      %v802 = vsel %vm404, %v800, 0
      %804 = vmatpush.bf16.xpose.msra.mxu0 0
      %805 = vmatpush.bf16.xpose.msra.mxu0 0
      %806 = vmatpush.bf16.xpose.msra.mxu0 0
      %807 = vmatpush.bf16.xpose.msra.mxu0 0
      %808 = vmatpush.bf16.xpose.msra.mxu0 0
      %809 = vmatpush.bf16.xpose.msra.mxu0 0
      %810 = vmatpush.bf16.xpose.msra.mxu0 0
      %811 = vmatpush.bf16.xpose.msra.mxu0 %v802
      %812 = vmatmul.bf16.gmra.mxu0 %v466
      %v813 = vpop.f32.mrf.mxu0
      %v814 = vadd.f32 0.0, %v813
      %v815 = vpop.f32.mrf.mxu0
      %816 = vdwg.mxu0
      %v817 = vmul.f32 %v814, 0.35355338
      %v818 = vsel %vm425, %v817, -inf
      %819 = vmax.xlane.f32.xlu0 %v818
      %v820 = vpop.xlane.xlu0 %819
      %v821 = vsub.f32 %v817, %v820
      %v822 = vmul.f32 %v821, 1.442695
      %v823 = vpow.pop %v822
      %v824 = vsel %vm425, %v823, 0.0
      %825 = vadd.xlane.f32.xlu0 %v824
      %v826 = vpop.xlane.xlu0 %825
      %v827 = vrcp.pop %v826
      %v828 = vmul.f32 %v823, %v827
      %v829 = vpack.c.bf16 %v828, %v828
      %830 = vrot.lane.b32.xlu0 %v748, 88
      %v831 = vpop.permute.xlu0 %830
      %v834 = vsel %vm442, %v829, 0
      %836 = vmatpush.bf16.msra.mxu0 0
      %837 = vmatpush.bf16.msra.mxu0 0
      %838 = vmatpush.bf16.msra.mxu0 0
      %839 = vmatpush.bf16.msra.mxu0 0
      %840 = vmatpush.bf16.msra.mxu0 0
      %841 = vmatpush.bf16.msra.mxu0 0
      %842 = vmatpush.bf16.msra.mxu0 0
      %843 = vmatpush.bf16.msra.mxu0 %v831
      %844 = vmatmul.bf16.gmra.mxu0 %v834
      %v845 = vpop.f32.mrf.mxu0
      %v846 = vadd.f32 0.0, %v845
      %v847 = vpop.f32.mrf.mxu0
      %848 = vdwg.mxu0
      %v849 = vpack.c.bf16 %v846, %v846
      %v851 = vsel %vm404, %v849, 0
      %853 = vmatpush.bf16.msra.mxu0 0
      %854 = vmatpush.bf16.msra.mxu0 0
      %855 = vmatpush.bf16.msra.mxu0 0
      %856 = vmatpush.bf16.msra.mxu0 0
      %857 = vmatpush.bf16.msra.mxu0 0
      %858 = vmatpush.bf16.msra.mxu0 0
      %859 = vmatpush.bf16.msra.mxu0 0
      %860 = vmatpush.bf16.msra.mxu0 %v522
      %861 = vmatmul.bf16.gmra.mxu0 %v851
      %v862 = vpop.f32.mrf.mxu0
      %v863 = vadd.f32 0.0, %v862
      %v864 = vpop.f32.mrf.mxu0
      %865 = vdwg.mxu0
      %v867 = vsel %vm404, %v798, 0
      %869 = vmatpush.bf16.msra.mxu0 0
      %870 = vmatpush.bf16.msra.mxu0 0
      %871 = vmatpush.bf16.msra.mxu0 0
      %872 = vmatpush.bf16.msra.mxu0 0
      %873 = vmatpush.bf16.msra.mxu0 0
      %874 = vmatpush.bf16.msra.mxu0 0
      %875 = vmatpush.bf16.msra.mxu0 0
      %876 = vmatpush.bf16.msra.mxu0 %v541
      %877 = vmatmul.bf16.gmra.mxu0 %v867
      %v878 = vpop.f32.mrf.mxu0
      %v879 = vadd.f32 %v863, %v878
      %v880 = vpop.f32.mrf.mxu0
      %881 = vdwg.mxu0
      %882 = vrot.lane.b32.xlu0 %v748, 112
      %v883 = vpop.permute.xlu0 %882
      %v885 = vsel %vm404, %v883, 0
      %887 = vmatpush.bf16.xpose.msra.mxu0 0
      %888 = vmatpush.bf16.xpose.msra.mxu0 0
      %889 = vmatpush.bf16.xpose.msra.mxu0 0
      %890 = vmatpush.bf16.xpose.msra.mxu0 0
      %891 = vmatpush.bf16.xpose.msra.mxu0 0
      %892 = vmatpush.bf16.xpose.msra.mxu0 0
      %893 = vmatpush.bf16.xpose.msra.mxu0 0
      %894 = vmatpush.bf16.xpose.msra.mxu0 %v885
      %895 = vmatmul.bf16.gmra.mxu0 %v561
      %v896 = vpop.f32.mrf.mxu0
      %v897 = vadd.f32 0.0, %v896
      %v898 = vpop.f32.mrf.mxu0
      %899 = vdwg.mxu0
      %v900 = vmul.f32 %v897, 0.35355338
      %v901 = vsel %vm425, %v900, -inf
      %902 = vmax.xlane.f32.xlu0 %v901
      %v903 = vpop.xlane.xlu0 %902
      %v904 = vsub.f32 %v900, %v903
      %v905 = vmul.f32 %v904, 1.442695
      %v906 = vpow.pop %v905
      %v907 = vsel %vm425, %v906, 0.0
      %908 = vadd.xlane.f32.xlu0 %v907
      %v909 = vpop.xlane.xlu0 %908
      %v910 = vrcp.pop %v909
      %v911 = vmul.f32 %v906, %v910
      %v912 = vpack.c.bf16 %v911, %v911
      %913 = vrot.lane.b32.xlu0 %v748, 80
      %v914 = vpop.permute.xlu0 %913
      %v917 = vsel %vm442, %v912, 0
      %919 = vmatpush.bf16.msra.mxu0 0
      %920 = vmatpush.bf16.msra.mxu0 0
      %921 = vmatpush.bf16.msra.mxu0 0
      %922 = vmatpush.bf16.msra.mxu0 0
      %923 = vmatpush.bf16.msra.mxu0 0
      %924 = vmatpush.bf16.msra.mxu0 0
      %925 = vmatpush.bf16.msra.mxu0 0
      %926 = vmatpush.bf16.msra.mxu0 %v914
      %927 = vmatmul.bf16.gmra.mxu0 %v917
      %v928 = vpop.f32.mrf.mxu0
      %v929 = vadd.f32 0.0, %v928
      %v930 = vpop.f32.mrf.mxu0
      %931 = vdwg.mxu0
      %v932 = vpack.c.bf16 %v929, %v929
      %v934 = vsel %vm404, %v932, 0
      %936 = vmatpush.bf16.msra.mxu0 0
      %937 = vmatpush.bf16.msra.mxu0 0
      %938 = vmatpush.bf16.msra.mxu0 0
      %939 = vmatpush.bf16.msra.mxu0 0
      %940 = vmatpush.bf16.msra.mxu0 0
      %941 = vmatpush.bf16.msra.mxu0 0
      %942 = vmatpush.bf16.msra.mxu0 0
      %943 = vmatpush.bf16.msra.mxu0 %v616
      %944 = vmatmul.bf16.gmra.mxu0 %v934
      %v945 = vpop.f32.mrf.mxu0
      %v946 = vadd.f32 0.0, %v945
      %v947 = vpop.f32.mrf.mxu0
      %948 = vdwg.mxu0
      %v949 = vadd.f32 %v879, %v946
      %950 = vrot.lane.b32.xlu0 %v748, 104
      %v951 = vpop.permute.xlu0 %950
      %v953 = vsel %vm404, %v951, 0
      %955 = vmatpush.bf16.xpose.msra.mxu0 0
      %956 = vmatpush.bf16.xpose.msra.mxu0 0
      %957 = vmatpush.bf16.xpose.msra.mxu0 0
      %958 = vmatpush.bf16.xpose.msra.mxu0 0
      %959 = vmatpush.bf16.xpose.msra.mxu0 0
      %960 = vmatpush.bf16.xpose.msra.mxu0 0
      %961 = vmatpush.bf16.xpose.msra.mxu0 0
      %962 = vmatpush.bf16.xpose.msra.mxu0 %v953
      %963 = vmatmul.bf16.gmra.mxu0 %v637
      %v964 = vpop.f32.mrf.mxu0
      %v965 = vadd.f32 0.0, %v964
      %v966 = vpop.f32.mrf.mxu0
      %967 = vdwg.mxu0
      %v968 = vmul.f32 %v965, 0.35355338
      %v969 = vsel %vm425, %v968, -inf
      %970 = vmax.xlane.f32.xlu0 %v969
      %v971 = vpop.xlane.xlu0 %970
      %v972 = vsub.f32 %v968, %v971
      %v973 = vmul.f32 %v972, 1.442695
      %v974 = vpow.pop %v973
      %v975 = vsel %vm425, %v974, 0.0
      %976 = vadd.xlane.f32.xlu0 %v975
      %v977 = vpop.xlane.xlu0 %976
      %v978 = vrcp.pop %v977
      %v979 = vmul.f32 %v974, %v978
      %v980 = vpack.c.bf16 %v979, %v979
      %981 = vrot.lane.b32.xlu0 %v748, 72
      %v982 = vpop.permute.xlu0 %981
      %v985 = vsel %vm442, %v980, 0
      %987 = vmatpush.bf16.msra.mxu0 0
      %988 = vmatpush.bf16.msra.mxu0 0
      %989 = vmatpush.bf16.msra.mxu0 0
      %990 = vmatpush.bf16.msra.mxu0 0
      %991 = vmatpush.bf16.msra.mxu0 0
      %992 = vmatpush.bf16.msra.mxu0 0
      %993 = vmatpush.bf16.msra.mxu0 0
      %994 = vmatpush.bf16.msra.mxu0 %v982
      %995 = vmatmul.bf16.gmra.mxu0 %v985
      %v996 = vpop.f32.mrf.mxu0
      %v997 = vadd.f32 0.0, %v996
      %v998 = vpop.f32.mrf.mxu0
      %999 = vdwg.mxu0
      %v1000 = vpack.c.bf16 %v997, %v997
      %v1002 = vsel %vm404, %v1000, 0
      %1004 = vmatpush.bf16.msra.mxu0 0
      %1005 = vmatpush.bf16.msra.mxu0 0
      %1006 = vmatpush.bf16.msra.mxu0 0
      %1007 = vmatpush.bf16.msra.mxu0 0
      %1008 = vmatpush.bf16.msra.mxu0 0
      %1009 = vmatpush.bf16.msra.mxu0 0
      %1010 = vmatpush.bf16.msra.mxu0 0
      %1011 = vmatpush.bf16.msra.mxu0 %v692
      %1012 = vmatmul.bf16.gmra.mxu0 %v1002
      %v1013 = vpop.f32.mrf.mxu0
      %v1014 = vadd.f32 0.0, %v1013
      %v1015 = vpop.f32.mrf.mxu0
      %1016 = vdwg.mxu0
      %v1017 = vadd.f32 %v949, %v1014
      %s1018 = scalar_lea.vmem %s330, 64
      %v1019 = vld [vmem:[%s1018] sm:$0xff]
      %v1020 = vld [vmem:[%s1018 + $0x8] sm:$0xff]
      %v1021 = vld [vmem:[%s1018 + $0x10] sm:$0xff]
      %v1022 = vld [vmem:[%s1018 + $0x18] sm:$0xff]
      %v1023 = vpack.c.bf16 %v1020, %v1019
      %v1024 = vpack.c.bf16 %v1022, %v1021
      %1025 = vxpose.xlu0.c.b16.start [1/8] %v1023, 128
      %1026 = vxpose.xlu0.c.b16.cont [2/8] %v1024, 128
      %1027 = vxpose.xlu0.c.b16.cont [3/8] 0, 128
      %1028 = vxpose.xlu0.c.b16.cont [4/8] 0, 128
      %1029 = vxpose.xlu0.c.b16.cont [5/8] 0, 128
      %1030 = vxpose.xlu0.c.b16.cont [6/8] 0, 128
      %1031 = vxpose.xlu0.c.b16.cont [7/8] 0, 128
      %1032 = vxpose.xlu0.c.b16.end [8/8] 0, 128
      %v1033 = vpop.trf.xlu0
      %v1034 = vpop.trf.xlu0
      %v1035 = vpop.trf.xlu0
      %v1036 = vpop.trf.xlu0
      %v1037 = vpop.trf.xlu0
      %v1038 = vpop.trf.xlu0
      %v1039 = vpop.trf.xlu0
      %v1040 = vpop.trf.xlu0
      %v1042 = vsel %vm384, %v1033, 0
      %1044 = vmatpush.bf16.msra.mxu0 0
      %1045 = vmatpush.bf16.msra.mxu0 0
      %1046 = vmatpush.bf16.msra.mxu0 0
      %1047 = vmatpush.bf16.msra.mxu0 0
      %1048 = vmatpush.bf16.msra.mxu0 0
      %1049 = vmatpush.bf16.msra.mxu0 0
      %1050 = vmatpush.bf16.msra.mxu0 %v381
      %1051 = vmatpush.bf16.msra.mxu0 %v380
      %1052 = vmatmul.bf16.gmra.mxu0 %v1042
      %v1053 = vpop.f32.mrf.mxu0
      %v1054 = vadd.f32 %v354, %v1053
      %v1055 = vpop.f32.mrf.mxu0
      %v1056 = vadd.f32 %v354, %v1055
      %1057 = vdwg.mxu0
      %v1058 = vpack.c.bf16 %v1056, %v1054
      %v1060 = vsel %vm404, %v1058, 0
      %1062 = vmatpush.bf16.xpose.msra.mxu0 0
      %1063 = vmatpush.bf16.xpose.msra.mxu0 0
      %1064 = vmatpush.bf16.xpose.msra.mxu0 0
      %1065 = vmatpush.bf16.xpose.msra.mxu0 0
      %1066 = vmatpush.bf16.xpose.msra.mxu0 0
      %1067 = vmatpush.bf16.xpose.msra.mxu0 0
      %1068 = vmatpush.bf16.xpose.msra.mxu0 0
      %1069 = vmatpush.bf16.xpose.msra.mxu0 %v1060
      %1070 = vmatmul.bf16.gmra.mxu0 %v406
      %v1071 = vpop.f32.mrf.mxu0
      %v1072 = vadd.f32 0.0, %v1071
      %v1073 = vpop.f32.mrf.mxu0
      %1074 = vdwg.mxu0
      %v1075 = vmul.f32 %v1072, 0.35355338
      %v1076 = vsel %vm425, %v1075, -inf
      %1077 = vmax.xlane.f32.xlu0 %v1076
      %v1078 = vpop.xlane.xlu0 %1077
      %v1079 = vsub.f32 %v1075, %v1078
      %v1080 = vmul.f32 %v1079, 1.442695
      %v1081 = vpow.pop %v1080
      %v1082 = vsel %vm425, %v1081, 0.0
      %1083 = vadd.xlane.f32.xlu0 %v1082
      %v1084 = vpop.xlane.xlu0 %1083
      %v1085 = vrcp.pop %v1084
      %v1086 = vmul.f32 %v1081, %v1085
      %v1087 = vpack.c.bf16 %v1086, %v1086
      %1089 = vrot.lane.b32.xlu0 %v1058, 96
      %v1090 = vpop.permute.xlu0 %1089
      %v1093 = vsel %vm442, %v1087, 0
      %1095 = vmatpush.bf16.msra.mxu0 0
      %1096 = vmatpush.bf16.msra.mxu0 0
      %1097 = vmatpush.bf16.msra.mxu0 0
      %1098 = vmatpush.bf16.msra.mxu0 0
      %1099 = vmatpush.bf16.msra.mxu0 0
      %1100 = vmatpush.bf16.msra.mxu0 0
      %1101 = vmatpush.bf16.msra.mxu0 0
      %1102 = vmatpush.bf16.msra.mxu0 %v1090
      %1103 = vmatmul.bf16.gmra.mxu0 %v1093
      %v1104 = vpop.f32.mrf.mxu0
      %v1105 = vadd.f32 0.0, %v1104
      %v1106 = vpop.f32.mrf.mxu0
      %1107 = vdwg.mxu0
      %v1108 = vpack.c.bf16 %v1105, %v1105
      %1109 = vrot.lane.b32.xlu0 %v1058, 120
      %v1110 = vpop.permute.xlu0 %1109
      %v1112 = vsel %vm404, %v1110, 0
      %1114 = vmatpush.bf16.xpose.msra.mxu0 0
      %1115 = vmatpush.bf16.xpose.msra.mxu0 0
      %1116 = vmatpush.bf16.xpose.msra.mxu0 0
      %1117 = vmatpush.bf16.xpose.msra.mxu0 0
      %1118 = vmatpush.bf16.xpose.msra.mxu0 0
      %1119 = vmatpush.bf16.xpose.msra.mxu0 0
      %1120 = vmatpush.bf16.xpose.msra.mxu0 0
      %1121 = vmatpush.bf16.xpose.msra.mxu0 %v1112
      %1122 = vmatmul.bf16.gmra.mxu0 %v466
      %v1123 = vpop.f32.mrf.mxu0
      %v1124 = vadd.f32 0.0, %v1123
      %v1125 = vpop.f32.mrf.mxu0
      %1126 = vdwg.mxu0
      %v1127 = vmul.f32 %v1124, 0.35355338
      %v1128 = vsel %vm425, %v1127, -inf
      %1129 = vmax.xlane.f32.xlu0 %v1128
      %v1130 = vpop.xlane.xlu0 %1129
      %v1131 = vsub.f32 %v1127, %v1130
      %v1132 = vmul.f32 %v1131, 1.442695
      %v1133 = vpow.pop %v1132
      %v1134 = vsel %vm425, %v1133, 0.0
      %1135 = vadd.xlane.f32.xlu0 %v1134
      %v1136 = vpop.xlane.xlu0 %1135
      %v1137 = vrcp.pop %v1136
      %v1138 = vmul.f32 %v1133, %v1137
      %v1139 = vpack.c.bf16 %v1138, %v1138
      %1140 = vrot.lane.b32.xlu0 %v1058, 88
      %v1141 = vpop.permute.xlu0 %1140
      %v1144 = vsel %vm442, %v1139, 0
      %1146 = vmatpush.bf16.msra.mxu0 0
      %1147 = vmatpush.bf16.msra.mxu0 0
      %1148 = vmatpush.bf16.msra.mxu0 0
      %1149 = vmatpush.bf16.msra.mxu0 0
      %1150 = vmatpush.bf16.msra.mxu0 0
      %1151 = vmatpush.bf16.msra.mxu0 0
      %1152 = vmatpush.bf16.msra.mxu0 0
      %1153 = vmatpush.bf16.msra.mxu0 %v1141
      %1154 = vmatmul.bf16.gmra.mxu0 %v1144
      %v1155 = vpop.f32.mrf.mxu0
      %v1156 = vadd.f32 0.0, %v1155
      %v1157 = vpop.f32.mrf.mxu0
      %1158 = vdwg.mxu0
      %v1159 = vpack.c.bf16 %v1156, %v1156
      %v1161 = vsel %vm404, %v1159, 0
      %1163 = vmatpush.bf16.msra.mxu0 0
      %1164 = vmatpush.bf16.msra.mxu0 0
      %1165 = vmatpush.bf16.msra.mxu0 0
      %1166 = vmatpush.bf16.msra.mxu0 0
      %1167 = vmatpush.bf16.msra.mxu0 0
      %1168 = vmatpush.bf16.msra.mxu0 0
      %1169 = vmatpush.bf16.msra.mxu0 0
      %1170 = vmatpush.bf16.msra.mxu0 %v522
      %1171 = vmatmul.bf16.gmra.mxu0 %v1161
      %v1172 = vpop.f32.mrf.mxu0
      %v1173 = vadd.f32 0.0, %v1172
      %v1174 = vpop.f32.mrf.mxu0
      %1175 = vdwg.mxu0
      %v1177 = vsel %vm404, %v1108, 0
      %1179 = vmatpush.bf16.msra.mxu0 0
      %1180 = vmatpush.bf16.msra.mxu0 0
      %1181 = vmatpush.bf16.msra.mxu0 0
      %1182 = vmatpush.bf16.msra.mxu0 0
      %1183 = vmatpush.bf16.msra.mxu0 0
      %1184 = vmatpush.bf16.msra.mxu0 0
      %1185 = vmatpush.bf16.msra.mxu0 0
      %1186 = vmatpush.bf16.msra.mxu0 %v541
      %1187 = vmatmul.bf16.gmra.mxu0 %v1177
      %v1188 = vpop.f32.mrf.mxu0
      %v1189 = vadd.f32 %v1173, %v1188
      %v1190 = vpop.f32.mrf.mxu0
      %1191 = vdwg.mxu0
      %1192 = vrot.lane.b32.xlu0 %v1058, 112
      %v1193 = vpop.permute.xlu0 %1192
      %v1195 = vsel %vm404, %v1193, 0
      %1197 = vmatpush.bf16.xpose.msra.mxu0 0
      %1198 = vmatpush.bf16.xpose.msra.mxu0 0
      %1199 = vmatpush.bf16.xpose.msra.mxu0 0
      %1200 = vmatpush.bf16.xpose.msra.mxu0 0
      %1201 = vmatpush.bf16.xpose.msra.mxu0 0
      %1202 = vmatpush.bf16.xpose.msra.mxu0 0
      %1203 = vmatpush.bf16.xpose.msra.mxu0 0
      %1204 = vmatpush.bf16.xpose.msra.mxu0 %v1195
      %1205 = vmatmul.bf16.gmra.mxu0 %v561
      %v1206 = vpop.f32.mrf.mxu0
      %v1207 = vadd.f32 0.0, %v1206
      %v1208 = vpop.f32.mrf.mxu0
      %1209 = vdwg.mxu0
      %v1210 = vmul.f32 %v1207, 0.35355338
      %v1211 = vsel %vm425, %v1210, -inf
      %1212 = vmax.xlane.f32.xlu0 %v1211
      %v1213 = vpop.xlane.xlu0 %1212
      %v1214 = vsub.f32 %v1210, %v1213
      %v1215 = vmul.f32 %v1214, 1.442695
      %v1216 = vpow.pop %v1215
      %v1217 = vsel %vm425, %v1216, 0.0
      %1218 = vadd.xlane.f32.xlu0 %v1217
      %v1219 = vpop.xlane.xlu0 %1218
      %v1220 = vrcp.pop %v1219
      %v1221 = vmul.f32 %v1216, %v1220
      %v1222 = vpack.c.bf16 %v1221, %v1221
      %1223 = vrot.lane.b32.xlu0 %v1058, 80
      %v1224 = vpop.permute.xlu0 %1223
      %v1227 = vsel %vm442, %v1222, 0
      %1229 = vmatpush.bf16.msra.mxu0 0
      %1230 = vmatpush.bf16.msra.mxu0 0
      %1231 = vmatpush.bf16.msra.mxu0 0
      %1232 = vmatpush.bf16.msra.mxu0 0
      %1233 = vmatpush.bf16.msra.mxu0 0
      %1234 = vmatpush.bf16.msra.mxu0 0
      %1235 = vmatpush.bf16.msra.mxu0 0
      %1236 = vmatpush.bf16.msra.mxu0 %v1224
      %1237 = vmatmul.bf16.gmra.mxu0 %v1227
      %v1238 = vpop.f32.mrf.mxu0
      %v1239 = vadd.f32 0.0, %v1238
      %v1240 = vpop.f32.mrf.mxu0
      %1241 = vdwg.mxu0
      %v1242 = vpack.c.bf16 %v1239, %v1239
      %v1244 = vsel %vm404, %v1242, 0
      %1246 = vmatpush.bf16.msra.mxu0 0
      %1247 = vmatpush.bf16.msra.mxu0 0
      %1248 = vmatpush.bf16.msra.mxu0 0
      %1249 = vmatpush.bf16.msra.mxu0 0
      %1250 = vmatpush.bf16.msra.mxu0 0
      %1251 = vmatpush.bf16.msra.mxu0 0
      %1252 = vmatpush.bf16.msra.mxu0 0
      %1253 = vmatpush.bf16.msra.mxu0 %v616
      %1254 = vmatmul.bf16.gmra.mxu0 %v1244
      %v1255 = vpop.f32.mrf.mxu0
      %v1256 = vadd.f32 0.0, %v1255
      %v1257 = vpop.f32.mrf.mxu0
      %1258 = vdwg.mxu0
      %v1259 = vadd.f32 %v1189, %v1256
      %1260 = vrot.lane.b32.xlu0 %v1058, 104
      %v1261 = vpop.permute.xlu0 %1260
      %v1263 = vsel %vm404, %v1261, 0
      %1265 = vmatpush.bf16.xpose.msra.mxu0 0
      %1266 = vmatpush.bf16.xpose.msra.mxu0 0
      %1267 = vmatpush.bf16.xpose.msra.mxu0 0
      %1268 = vmatpush.bf16.xpose.msra.mxu0 0
      %1269 = vmatpush.bf16.xpose.msra.mxu0 0
      %1270 = vmatpush.bf16.xpose.msra.mxu0 0
      %1271 = vmatpush.bf16.xpose.msra.mxu0 0
      %1272 = vmatpush.bf16.xpose.msra.mxu0 %v1263
      %1273 = vmatmul.bf16.gmra.mxu0 %v637
      %v1274 = vpop.f32.mrf.mxu0
      %v1275 = vadd.f32 0.0, %v1274
      %v1276 = vpop.f32.mrf.mxu0
      %1277 = vdwg.mxu0
      %v1278 = vmul.f32 %v1275, 0.35355338
      %v1279 = vsel %vm425, %v1278, -inf
      %1280 = vmax.xlane.f32.xlu0 %v1279
      %v1281 = vpop.xlane.xlu0 %1280
      %v1282 = vsub.f32 %v1278, %v1281
      %v1283 = vmul.f32 %v1282, 1.442695
      %v1284 = vpow.pop %v1283
      %v1285 = vsel %vm425, %v1284, 0.0
      %1286 = vadd.xlane.f32.xlu0 %v1285
      %v1287 = vpop.xlane.xlu0 %1286
      %v1288 = vrcp.pop %v1287
      %v1289 = vmul.f32 %v1284, %v1288
      %v1290 = vpack.c.bf16 %v1289, %v1289
      %1291 = vrot.lane.b32.xlu0 %v1058, 72
      %v1292 = vpop.permute.xlu0 %1291
      %v1295 = vsel %vm442, %v1290, 0
      %1297 = vmatpush.bf16.msra.mxu0 0
      %1298 = vmatpush.bf16.msra.mxu0 0
      %1299 = vmatpush.bf16.msra.mxu0 0
      %1300 = vmatpush.bf16.msra.mxu0 0
      %1301 = vmatpush.bf16.msra.mxu0 0
      %1302 = vmatpush.bf16.msra.mxu0 0
      %1303 = vmatpush.bf16.msra.mxu0 0
      %1304 = vmatpush.bf16.msra.mxu0 %v1292
      %1305 = vmatmul.bf16.gmra.mxu0 %v1295
      %v1306 = vpop.f32.mrf.mxu0
      %v1307 = vadd.f32 0.0, %v1306
      %v1308 = vpop.f32.mrf.mxu0
      %1309 = vdwg.mxu0
      %v1310 = vpack.c.bf16 %v1307, %v1307
      %v1312 = vsel %vm404, %v1310, 0
      %1314 = vmatpush.bf16.msra.mxu0 0
      %1315 = vmatpush.bf16.msra.mxu0 0
      %1316 = vmatpush.bf16.msra.mxu0 0
      %1317 = vmatpush.bf16.msra.mxu0 0
      %1318 = vmatpush.bf16.msra.mxu0 0
      %1319 = vmatpush.bf16.msra.mxu0 0
      %1320 = vmatpush.bf16.msra.mxu0 0
      %1321 = vmatpush.bf16.msra.mxu0 %v692
      %1322 = vmatmul.bf16.gmra.mxu0 %v1312
      %v1323 = vpop.f32.mrf.mxu0
      %v1324 = vadd.f32 0.0, %v1323
      %v1325 = vpop.f32.mrf.mxu0
      %1326 = vdwg.mxu0
      %v1327 = vadd.f32 %v1259, %v1324
      %s1328 = scalar_lea.vmem %s330, 96
      %v1329 = vld [vmem:[%s1328] sm:$0xff]
      %v1330 = vld [vmem:[%s1328 + $0x8] sm:$0xff]
      %v1331 = vld [vmem:[%s1328 + $0x10] sm:$0xff]
      %v1332 = vld [vmem:[%s1328 + $0x18] sm:$0xff]
      %v1333 = vpack.c.bf16 %v1330, %v1329
      %v1334 = vpack.c.bf16 %v1332, %v1331
      %1335 = vxpose.xlu0.c.b16.start [1/8] %v1333, 128
      %1336 = vxpose.xlu0.c.b16.cont [2/8] %v1334, 128
      %1337 = vxpose.xlu0.c.b16.cont [3/8] 0, 128
      %1338 = vxpose.xlu0.c.b16.cont [4/8] 0, 128
      %1339 = vxpose.xlu0.c.b16.cont [5/8] 0, 128
      %1340 = vxpose.xlu0.c.b16.cont [6/8] 0, 128
      %1341 = vxpose.xlu0.c.b16.cont [7/8] 0, 128
      %1342 = vxpose.xlu0.c.b16.end [8/8] 0, 128
      %v1343 = vpop.trf.xlu0
      %v1344 = vpop.trf.xlu0
      %v1345 = vpop.trf.xlu0
      %v1346 = vpop.trf.xlu0
      %v1347 = vpop.trf.xlu0
      %v1348 = vpop.trf.xlu0
      %v1349 = vpop.trf.xlu0
      %v1350 = vpop.trf.xlu0
      %v1352 = vsel %vm384, %v1343, 0
      %1354 = vmatpush.bf16.msra.mxu0 0
      %1355 = vmatpush.bf16.msra.mxu0 0
      %1356 = vmatpush.bf16.msra.mxu0 0
      %1357 = vmatpush.bf16.msra.mxu0 0
      %1358 = vmatpush.bf16.msra.mxu0 0
      %1359 = vmatpush.bf16.msra.mxu0 0
      %1360 = vmatpush.bf16.msra.mxu0 %v381
      %1361 = vmatpush.bf16.msra.mxu0 %v380
      %1362 = vmatmul.bf16.gmra.mxu0 %v1352
      %v1363 = vpop.f32.mrf.mxu0
      %v1364 = vadd.f32 %v354, %v1363
      %v1365 = vpop.f32.mrf.mxu0
      %v1366 = vadd.f32 %v354, %v1365
      %1367 = vdwg.mxu0
      %v1368 = vpack.c.bf16 %v1366, %v1364
      %v1370 = vsel %vm404, %v1368, 0
      %1372 = vmatpush.bf16.xpose.msra.mxu0 0
      %1373 = vmatpush.bf16.xpose.msra.mxu0 0
      %1374 = vmatpush.bf16.xpose.msra.mxu0 0
      %1375 = vmatpush.bf16.xpose.msra.mxu0 0
      %1376 = vmatpush.bf16.xpose.msra.mxu0 0
      %1377 = vmatpush.bf16.xpose.msra.mxu0 0
      %1378 = vmatpush.bf16.xpose.msra.mxu0 0
      %1379 = vmatpush.bf16.xpose.msra.mxu0 %v1370
      %1380 = vmatmul.bf16.gmra.mxu0 %v406
      %v1381 = vpop.f32.mrf.mxu0
      %v1382 = vadd.f32 0.0, %v1381
      %v1383 = vpop.f32.mrf.mxu0
      %1384 = vdwg.mxu0
      %v1385 = vmul.f32 %v1382, 0.35355338
      %v1386 = vsel %vm425, %v1385, -inf
      %1387 = vmax.xlane.f32.xlu0 %v1386
      %v1388 = vpop.xlane.xlu0 %1387
      %v1389 = vsub.f32 %v1385, %v1388
      %v1390 = vmul.f32 %v1389, 1.442695
      %v1391 = vpow.pop %v1390
      %v1392 = vsel %vm425, %v1391, 0.0
      %1393 = vadd.xlane.f32.xlu0 %v1392
      %v1394 = vpop.xlane.xlu0 %1393
      %v1395 = vrcp.pop %v1394
      %v1396 = vmul.f32 %v1391, %v1395
      %v1397 = vpack.c.bf16 %v1396, %v1396
      %1399 = vrot.lane.b32.xlu0 %v1368, 96
      %v1400 = vpop.permute.xlu0 %1399
      %v1403 = vsel %vm442, %v1397, 0
      %1405 = vmatpush.bf16.msra.mxu0 0
      %1406 = vmatpush.bf16.msra.mxu0 0
      %1407 = vmatpush.bf16.msra.mxu0 0
      %1408 = vmatpush.bf16.msra.mxu0 0
      %1409 = vmatpush.bf16.msra.mxu0 0
      %1410 = vmatpush.bf16.msra.mxu0 0
      %1411 = vmatpush.bf16.msra.mxu0 0
      %1412 = vmatpush.bf16.msra.mxu0 %v1400
      %1413 = vmatmul.bf16.gmra.mxu0 %v1403
      %v1414 = vpop.f32.mrf.mxu0
      %v1415 = vadd.f32 0.0, %v1414
      %v1416 = vpop.f32.mrf.mxu0
      %1417 = vdwg.mxu0
      %v1418 = vpack.c.bf16 %v1415, %v1415
      %1419 = vrot.lane.b32.xlu0 %v1368, 120
      %v1420 = vpop.permute.xlu0 %1419
      %v1422 = vsel %vm404, %v1420, 0
      %1424 = vmatpush.bf16.xpose.msra.mxu0 0
      %1425 = vmatpush.bf16.xpose.msra.mxu0 0
      %1426 = vmatpush.bf16.xpose.msra.mxu0 0
      %1427 = vmatpush.bf16.xpose.msra.mxu0 0
      %1428 = vmatpush.bf16.xpose.msra.mxu0 0
      %1429 = vmatpush.bf16.xpose.msra.mxu0 0
      %1430 = vmatpush.bf16.xpose.msra.mxu0 0
      %1431 = vmatpush.bf16.xpose.msra.mxu0 %v1422
      %1432 = vmatmul.bf16.gmra.mxu0 %v466
      %v1433 = vpop.f32.mrf.mxu0
      %v1434 = vadd.f32 0.0, %v1433
      %v1435 = vpop.f32.mrf.mxu0
      %1436 = vdwg.mxu0
      %v1437 = vmul.f32 %v1434, 0.35355338
      %v1438 = vsel %vm425, %v1437, -inf
      %1439 = vmax.xlane.f32.xlu0 %v1438
      %v1440 = vpop.xlane.xlu0 %1439
      %v1441 = vsub.f32 %v1437, %v1440
      %v1442 = vmul.f32 %v1441, 1.442695
      %v1443 = vpow.pop %v1442
      %v1444 = vsel %vm425, %v1443, 0.0
      %1445 = vadd.xlane.f32.xlu0 %v1444
      %v1446 = vpop.xlane.xlu0 %1445
      %v1447 = vrcp.pop %v1446
      %v1448 = vmul.f32 %v1443, %v1447
      %v1449 = vpack.c.bf16 %v1448, %v1448
      %1450 = vrot.lane.b32.xlu0 %v1368, 88
      %v1451 = vpop.permute.xlu0 %1450
      %v1454 = vsel %vm442, %v1449, 0
      %1456 = vmatpush.bf16.msra.mxu0 0
      %1457 = vmatpush.bf16.msra.mxu0 0
      %1458 = vmatpush.bf16.msra.mxu0 0
      %1459 = vmatpush.bf16.msra.mxu0 0
      %1460 = vmatpush.bf16.msra.mxu0 0
      %1461 = vmatpush.bf16.msra.mxu0 0
      %1462 = vmatpush.bf16.msra.mxu0 0
      %1463 = vmatpush.bf16.msra.mxu0 %v1451
      %1464 = vmatmul.bf16.gmra.mxu0 %v1454
      %v1465 = vpop.f32.mrf.mxu0
      %v1466 = vadd.f32 0.0, %v1465
      %v1467 = vpop.f32.mrf.mxu0
      %1468 = vdwg.mxu0
      %v1469 = vpack.c.bf16 %v1466, %v1466
      %v1471 = vsel %vm404, %v1469, 0
      %1473 = vmatpush.bf16.msra.mxu0 0
      %1474 = vmatpush.bf16.msra.mxu0 0
      %1475 = vmatpush.bf16.msra.mxu0 0
      %1476 = vmatpush.bf16.msra.mxu0 0
      %1477 = vmatpush.bf16.msra.mxu0 0
      %1478 = vmatpush.bf16.msra.mxu0 0
      %1479 = vmatpush.bf16.msra.mxu0 0
      %1480 = vmatpush.bf16.msra.mxu0 %v522
      %1481 = vmatmul.bf16.gmra.mxu0 %v1471
      %v1482 = vpop.f32.mrf.mxu0
      %v1483 = vadd.f32 0.0, %v1482
      %v1484 = vpop.f32.mrf.mxu0
      %1485 = vdwg.mxu0
      %v1487 = vsel %vm404, %v1418, 0
      %1489 = vmatpush.bf16.msra.mxu0 0
      %1490 = vmatpush.bf16.msra.mxu0 0
      %1491 = vmatpush.bf16.msra.mxu0 0
      %1492 = vmatpush.bf16.msra.mxu0 0
      %1493 = vmatpush.bf16.msra.mxu0 0
      %1494 = vmatpush.bf16.msra.mxu0 0
      %1495 = vmatpush.bf16.msra.mxu0 0
      %1496 = vmatpush.bf16.msra.mxu0 %v541
      %1497 = vmatmul.bf16.gmra.mxu0 %v1487
      %v1498 = vpop.f32.mrf.mxu0
      %v1499 = vadd.f32 %v1483, %v1498
      %v1500 = vpop.f32.mrf.mxu0
      %1501 = vdwg.mxu0
      %1502 = vrot.lane.b32.xlu0 %v1368, 112
      %v1503 = vpop.permute.xlu0 %1502
      %v1505 = vsel %vm404, %v1503, 0
      %1507 = vmatpush.bf16.xpose.msra.mxu0 0
      %1508 = vmatpush.bf16.xpose.msra.mxu0 0
      %1509 = vmatpush.bf16.xpose.msra.mxu0 0
      %1510 = vmatpush.bf16.xpose.msra.mxu0 0
      %1511 = vmatpush.bf16.xpose.msra.mxu0 0
      %1512 = vmatpush.bf16.xpose.msra.mxu0 0
      %1513 = vmatpush.bf16.xpose.msra.mxu0 0
      %1514 = vmatpush.bf16.xpose.msra.mxu0 %v1505
      %1515 = vmatmul.bf16.gmra.mxu0 %v561
      %v1516 = vpop.f32.mrf.mxu0
      %v1517 = vadd.f32 0.0, %v1516
      %v1518 = vpop.f32.mrf.mxu0
      %1519 = vdwg.mxu0
      %v1520 = vmul.f32 %v1517, 0.35355338
      %v1521 = vsel %vm425, %v1520, -inf
      %1522 = vmax.xlane.f32.xlu0 %v1521
      %v1523 = vpop.xlane.xlu0 %1522
      %v1524 = vsub.f32 %v1520, %v1523
      %v1525 = vmul.f32 %v1524, 1.442695
      %v1526 = vpow.pop %v1525
      %v1527 = vsel %vm425, %v1526, 0.0
      %1528 = vadd.xlane.f32.xlu0 %v1527
      %v1529 = vpop.xlane.xlu0 %1528
      %v1530 = vrcp.pop %v1529
      %v1531 = vmul.f32 %v1526, %v1530
      %v1532 = vpack.c.bf16 %v1531, %v1531
      %1533 = vrot.lane.b32.xlu0 %v1368, 80
      %v1534 = vpop.permute.xlu0 %1533
      %v1537 = vsel %vm442, %v1532, 0
      %1539 = vmatpush.bf16.msra.mxu0 0
      %1540 = vmatpush.bf16.msra.mxu0 0
      %1541 = vmatpush.bf16.msra.mxu0 0
      %1542 = vmatpush.bf16.msra.mxu0 0
      %1543 = vmatpush.bf16.msra.mxu0 0
      %1544 = vmatpush.bf16.msra.mxu0 0
      %1545 = vmatpush.bf16.msra.mxu0 0
      %1546 = vmatpush.bf16.msra.mxu0 %v1534
      %1547 = vmatmul.bf16.gmra.mxu0 %v1537
      %v1548 = vpop.f32.mrf.mxu0
      %v1549 = vadd.f32 0.0, %v1548
      %v1550 = vpop.f32.mrf.mxu0
      %1551 = vdwg.mxu0
      %v1552 = vpack.c.bf16 %v1549, %v1549
      %v1554 = vsel %vm404, %v1552, 0
      %1556 = vmatpush.bf16.msra.mxu0 0
      %1557 = vmatpush.bf16.msra.mxu0 0
      %1558 = vmatpush.bf16.msra.mxu0 0
      %1559 = vmatpush.bf16.msra.mxu0 0
      %1560 = vmatpush.bf16.msra.mxu0 0
      %1561 = vmatpush.bf16.msra.mxu0 0
      %1562 = vmatpush.bf16.msra.mxu0 0
      %1563 = vmatpush.bf16.msra.mxu0 %v616
      %1564 = vmatmul.bf16.gmra.mxu0 %v1554
      %v1565 = vpop.f32.mrf.mxu0
      %v1566 = vadd.f32 0.0, %v1565
      %v1567 = vpop.f32.mrf.mxu0
      %1568 = vdwg.mxu0
      %v1569 = vadd.f32 %v1499, %v1566
      %1570 = vrot.lane.b32.xlu0 %v1368, 104
      %v1571 = vpop.permute.xlu0 %1570
      %v1573 = vsel %vm404, %v1571, 0
      %1575 = vmatpush.bf16.xpose.msra.mxu0 0
      %1576 = vmatpush.bf16.xpose.msra.mxu0 0
      %1577 = vmatpush.bf16.xpose.msra.mxu0 0
      %1578 = vmatpush.bf16.xpose.msra.mxu0 0
      %1579 = vmatpush.bf16.xpose.msra.mxu0 0
      %1580 = vmatpush.bf16.xpose.msra.mxu0 0
      %1581 = vmatpush.bf16.xpose.msra.mxu0 0
      %1582 = vmatpush.bf16.xpose.msra.mxu0 %v1573
      %1583 = vmatmul.bf16.gmra.mxu0 %v637
      %v1584 = vpop.f32.mrf.mxu0
      %v1585 = vadd.f32 0.0, %v1584
      %v1586 = vpop.f32.mrf.mxu0
      %1587 = vdwg.mxu0
      %v1588 = vmul.f32 %v1585, 0.35355338
      %v1589 = vsel %vm425, %v1588, -inf
      %1590 = vmax.xlane.f32.xlu0 %v1589
      %v1591 = vpop.xlane.xlu0 %1590
      %v1592 = vsub.f32 %v1588, %v1591
      %v1593 = vmul.f32 %v1592, 1.442695
      %v1594 = vpow.pop %v1593
      %v1595 = vsel %vm425, %v1594, 0.0
      %1596 = vadd.xlane.f32.xlu0 %v1595
      %v1597 = vpop.xlane.xlu0 %1596
      %v1598 = vrcp.pop %v1597
      %v1599 = vmul.f32 %v1594, %v1598
      %v1600 = vpack.c.bf16 %v1599, %v1599
      %1601 = vrot.lane.b32.xlu0 %v1368, 72
      %v1602 = vpop.permute.xlu0 %1601
      %v1605 = vsel %vm442, %v1600, 0
      %1607 = vmatpush.bf16.msra.mxu0 0
      %1608 = vmatpush.bf16.msra.mxu0 0
      %1609 = vmatpush.bf16.msra.mxu0 0
      %1610 = vmatpush.bf16.msra.mxu0 0
      %1611 = vmatpush.bf16.msra.mxu0 0
      %1612 = vmatpush.bf16.msra.mxu0 0
      %1613 = vmatpush.bf16.msra.mxu0 0
      %1614 = vmatpush.bf16.msra.mxu0 %v1602
      %1615 = vmatmul.bf16.gmra.mxu0 %v1605
      %v1616 = vpop.f32.mrf.mxu0
      %v1617 = vadd.f32 0.0, %v1616
      %v1618 = vpop.f32.mrf.mxu0
      %1619 = vdwg.mxu0
      %v1620 = vpack.c.bf16 %v1617, %v1617
      %v1622 = vsel %vm404, %v1620, 0
      %1624 = vmatpush.bf16.msra.mxu0 0
      %1625 = vmatpush.bf16.msra.mxu0 0
      %1626 = vmatpush.bf16.msra.mxu0 0
      %1627 = vmatpush.bf16.msra.mxu0 0
      %1628 = vmatpush.bf16.msra.mxu0 0
      %1629 = vmatpush.bf16.msra.mxu0 0
      %1630 = vmatpush.bf16.msra.mxu0 0
      %1631 = vmatpush.bf16.msra.mxu0 %v692
      %1632 = vmatmul.bf16.gmra.mxu0 %v1622
      %v1633 = vpop.f32.mrf.mxu0
      %v1634 = vadd.f32 0.0, %v1633
      %v1635 = vpop.f32.mrf.mxu0
      %1636 = vdwg.mxu0
      %v1637 = vadd.f32 %v1569, %v1634
      %s1638 = scalar_lea.vmem %s330, 128
      %v1639 = vld [vmem:[%s1638] sm:$0xff]
      %v1640 = vld [vmem:[%s1638 + $0x8] sm:$0xff]
      %v1641 = vld [vmem:[%s1638 + $0x10] sm:$0xff]
      %v1642 = vld [vmem:[%s1638 + $0x18] sm:$0xff]
      %v1643 = vpack.c.bf16 %v1640, %v1639
      %v1644 = vpack.c.bf16 %v1642, %v1641
      %1645 = vxpose.xlu0.c.b16.start [1/8] %v1643, 128
      %1646 = vxpose.xlu0.c.b16.cont [2/8] %v1644, 128
      %1647 = vxpose.xlu0.c.b16.cont [3/8] 0, 128
      %1648 = vxpose.xlu0.c.b16.cont [4/8] 0, 128
      %1649 = vxpose.xlu0.c.b16.cont [5/8] 0, 128
      %1650 = vxpose.xlu0.c.b16.cont [6/8] 0, 128
      %1651 = vxpose.xlu0.c.b16.cont [7/8] 0, 128
      %1652 = vxpose.xlu0.c.b16.end [8/8] 0, 128
      %v1653 = vpop.trf.xlu0
      %v1654 = vpop.trf.xlu0
      %v1655 = vpop.trf.xlu0
      %v1656 = vpop.trf.xlu0
      %v1657 = vpop.trf.xlu0
      %v1658 = vpop.trf.xlu0
      %v1659 = vpop.trf.xlu0
      %v1660 = vpop.trf.xlu0
      %v1662 = vsel %vm384, %v1653, 0
      %1664 = vmatpush.bf16.msra.mxu0 0
      %1665 = vmatpush.bf16.msra.mxu0 0
      %1666 = vmatpush.bf16.msra.mxu0 0
      %1667 = vmatpush.bf16.msra.mxu0 0
      %1668 = vmatpush.bf16.msra.mxu0 0
      %1669 = vmatpush.bf16.msra.mxu0 0
      %1670 = vmatpush.bf16.msra.mxu0 %v381
      %1671 = vmatpush.bf16.msra.mxu0 %v380
      %1672 = vmatmul.bf16.gmra.mxu0 %v1662
      %v1673 = vpop.f32.mrf.mxu0
      %v1674 = vadd.f32 %v354, %v1673
      %v1675 = vpop.f32.mrf.mxu0
      %v1676 = vadd.f32 %v354, %v1675
      %1677 = vdwg.mxu0
      %v1678 = vpack.c.bf16 %v1676, %v1674
      %v1680 = vsel %vm404, %v1678, 0
      %1682 = vmatpush.bf16.xpose.msra.mxu0 0
      %1683 = vmatpush.bf16.xpose.msra.mxu0 0
      %1684 = vmatpush.bf16.xpose.msra.mxu0 0
      %1685 = vmatpush.bf16.xpose.msra.mxu0 0
      %1686 = vmatpush.bf16.xpose.msra.mxu0 0
      %1687 = vmatpush.bf16.xpose.msra.mxu0 0
      %1688 = vmatpush.bf16.xpose.msra.mxu0 0
      %1689 = vmatpush.bf16.xpose.msra.mxu0 %v1680
      %1690 = vmatmul.bf16.gmra.mxu0 %v406
      %v1691 = vpop.f32.mrf.mxu0
      %v1692 = vadd.f32 0.0, %v1691
      %v1693 = vpop.f32.mrf.mxu0
      %1694 = vdwg.mxu0
      %v1695 = vmul.f32 %v1692, 0.35355338
      %v1696 = vsel %vm425, %v1695, -inf
      %1697 = vmax.xlane.f32.xlu0 %v1696
      %v1698 = vpop.xlane.xlu0 %1697
      %v1699 = vsub.f32 %v1695, %v1698
      %v1700 = vmul.f32 %v1699, 1.442695
      %v1701 = vpow.pop %v1700
      %v1702 = vsel %vm425, %v1701, 0.0
      %1703 = vadd.xlane.f32.xlu0 %v1702
      %v1704 = vpop.xlane.xlu0 %1703
      %v1705 = vrcp.pop %v1704
      %v1706 = vmul.f32 %v1701, %v1705
      %v1707 = vpack.c.bf16 %v1706, %v1706
      %1709 = vrot.lane.b32.xlu0 %v1678, 96
      %v1710 = vpop.permute.xlu0 %1709
      %v1713 = vsel %vm442, %v1707, 0
      %1715 = vmatpush.bf16.msra.mxu0 0
      %1716 = vmatpush.bf16.msra.mxu0 0
      %1717 = vmatpush.bf16.msra.mxu0 0
      %1718 = vmatpush.bf16.msra.mxu0 0
      %1719 = vmatpush.bf16.msra.mxu0 0
      %1720 = vmatpush.bf16.msra.mxu0 0
      %1721 = vmatpush.bf16.msra.mxu0 0
      %1722 = vmatpush.bf16.msra.mxu0 %v1710
      %1723 = vmatmul.bf16.gmra.mxu0 %v1713
      %v1724 = vpop.f32.mrf.mxu0
      %v1725 = vadd.f32 0.0, %v1724
      %v1726 = vpop.f32.mrf.mxu0
      %1727 = vdwg.mxu0
      %v1728 = vpack.c.bf16 %v1725, %v1725
      %1729 = vrot.lane.b32.xlu0 %v1678, 120
      %v1730 = vpop.permute.xlu0 %1729
      %v1732 = vsel %vm404, %v1730, 0
      %1734 = vmatpush.bf16.xpose.msra.mxu0 0
      %1735 = vmatpush.bf16.xpose.msra.mxu0 0
      %1736 = vmatpush.bf16.xpose.msra.mxu0 0
      %1737 = vmatpush.bf16.xpose.msra.mxu0 0
      %1738 = vmatpush.bf16.xpose.msra.mxu0 0
      %1739 = vmatpush.bf16.xpose.msra.mxu0 0
      %1740 = vmatpush.bf16.xpose.msra.mxu0 0
      %1741 = vmatpush.bf16.xpose.msra.mxu0 %v1732
      %1742 = vmatmul.bf16.gmra.mxu0 %v466
      %v1743 = vpop.f32.mrf.mxu0
      %v1744 = vadd.f32 0.0, %v1743
      %v1745 = vpop.f32.mrf.mxu0
      %1746 = vdwg.mxu0
      %v1747 = vmul.f32 %v1744, 0.35355338
      %v1748 = vsel %vm425, %v1747, -inf
      %1749 = vmax.xlane.f32.xlu0 %v1748
      %v1750 = vpop.xlane.xlu0 %1749
      %v1751 = vsub.f32 %v1747, %v1750
      %v1752 = vmul.f32 %v1751, 1.442695
      %v1753 = vpow.pop %v1752
      %v1754 = vsel %vm425, %v1753, 0.0
      %1755 = vadd.xlane.f32.xlu0 %v1754
      %v1756 = vpop.xlane.xlu0 %1755
      %v1757 = vrcp.pop %v1756
      %v1758 = vmul.f32 %v1753, %v1757
      %v1759 = vpack.c.bf16 %v1758, %v1758
      %1760 = vrot.lane.b32.xlu0 %v1678, 88
      %v1761 = vpop.permute.xlu0 %1760
      %v1764 = vsel %vm442, %v1759, 0
      %1766 = vmatpush.bf16.msra.mxu0 0
      %1767 = vmatpush.bf16.msra.mxu0 0
      %1768 = vmatpush.bf16.msra.mxu0 0
      %1769 = vmatpush.bf16.msra.mxu0 0
      %1770 = vmatpush.bf16.msra.mxu0 0
      %1771 = vmatpush.bf16.msra.mxu0 0
      %1772 = vmatpush.bf16.msra.mxu0 0
      %1773 = vmatpush.bf16.msra.mxu0 %v1761
      %1774 = vmatmul.bf16.gmra.mxu0 %v1764
      %v1775 = vpop.f32.mrf.mxu0
      %v1776 = vadd.f32 0.0, %v1775
      %v1777 = vpop.f32.mrf.mxu0
      %1778 = vdwg.mxu0
      %v1779 = vpack.c.bf16 %v1776, %v1776
      %v1781 = vsel %vm404, %v1779, 0
      %1783 = vmatpush.bf16.msra.mxu0 0
      %1784 = vmatpush.bf16.msra.mxu0 0
      %1785 = vmatpush.bf16.msra.mxu0 0
      %1786 = vmatpush.bf16.msra.mxu0 0
      %1787 = vmatpush.bf16.msra.mxu0 0
      %1788 = vmatpush.bf16.msra.mxu0 0
      %1789 = vmatpush.bf16.msra.mxu0 0
      %1790 = vmatpush.bf16.msra.mxu0 %v522
      %1791 = vmatmul.bf16.gmra.mxu0 %v1781
      %v1792 = vpop.f32.mrf.mxu0
      %v1793 = vadd.f32 0.0, %v1792
      %v1794 = vpop.f32.mrf.mxu0
      %1795 = vdwg.mxu0
      %v1797 = vsel %vm404, %v1728, 0
      %1799 = vmatpush.bf16.msra.mxu0 0
      %1800 = vmatpush.bf16.msra.mxu0 0
      %1801 = vmatpush.bf16.msra.mxu0 0
      %1802 = vmatpush.bf16.msra.mxu0 0
      %1803 = vmatpush.bf16.msra.mxu0 0
      %1804 = vmatpush.bf16.msra.mxu0 0
      %1805 = vmatpush.bf16.msra.mxu0 0
      %1806 = vmatpush.bf16.msra.mxu0 %v541
      %1807 = vmatmul.bf16.gmra.mxu0 %v1797
      %v1808 = vpop.f32.mrf.mxu0
      %v1809 = vadd.f32 %v1793, %v1808
      %v1810 = vpop.f32.mrf.mxu0
      %1811 = vdwg.mxu0
      %1812 = vrot.lane.b32.xlu0 %v1678, 112
      %v1813 = vpop.permute.xlu0 %1812
      %v1815 = vsel %vm404, %v1813, 0
      %1817 = vmatpush.bf16.xpose.msra.mxu0 0
      %1818 = vmatpush.bf16.xpose.msra.mxu0 0
      %1819 = vmatpush.bf16.xpose.msra.mxu0 0
      %1820 = vmatpush.bf16.xpose.msra.mxu0 0
      %1821 = vmatpush.bf16.xpose.msra.mxu0 0
      %1822 = vmatpush.bf16.xpose.msra.mxu0 0
      %1823 = vmatpush.bf16.xpose.msra.mxu0 0
      %1824 = vmatpush.bf16.xpose.msra.mxu0 %v1815
      %1825 = vmatmul.bf16.gmra.mxu0 %v561
      %v1826 = vpop.f32.mrf.mxu0
      %v1827 = vadd.f32 0.0, %v1826
      %v1828 = vpop.f32.mrf.mxu0
      %1829 = vdwg.mxu0
      %v1830 = vmul.f32 %v1827, 0.35355338
      %v1831 = vsel %vm425, %v1830, -inf
      %1832 = vmax.xlane.f32.xlu0 %v1831
      %v1833 = vpop.xlane.xlu0 %1832
      %v1834 = vsub.f32 %v1830, %v1833
      %v1835 = vmul.f32 %v1834, 1.442695
      %v1836 = vpow.pop %v1835
      %v1837 = vsel %vm425, %v1836, 0.0
      %1838 = vadd.xlane.f32.xlu0 %v1837
      %v1839 = vpop.xlane.xlu0 %1838
      %v1840 = vrcp.pop %v1839
      %v1841 = vmul.f32 %v1836, %v1840
      %v1842 = vpack.c.bf16 %v1841, %v1841
      %1843 = vrot.lane.b32.xlu0 %v1678, 80
      %v1844 = vpop.permute.xlu0 %1843
      %v1847 = vsel %vm442, %v1842, 0
      %1849 = vmatpush.bf16.msra.mxu0 0
      %1850 = vmatpush.bf16.msra.mxu0 0
      %1851 = vmatpush.bf16.msra.mxu0 0
      %1852 = vmatpush.bf16.msra.mxu0 0
      %1853 = vmatpush.bf16.msra.mxu0 0
      %1854 = vmatpush.bf16.msra.mxu0 0
      %1855 = vmatpush.bf16.msra.mxu0 0
      %1856 = vmatpush.bf16.msra.mxu0 %v1844
      %1857 = vmatmul.bf16.gmra.mxu0 %v1847
      %v1858 = vpop.f32.mrf.mxu0
      %v1859 = vadd.f32 0.0, %v1858
      %v1860 = vpop.f32.mrf.mxu0
      %1861 = vdwg.mxu0
      %v1862 = vpack.c.bf16 %v1859, %v1859
      %v1864 = vsel %vm404, %v1862, 0
      %1866 = vmatpush.bf16.msra.mxu0 0
      %1867 = vmatpush.bf16.msra.mxu0 0
      %1868 = vmatpush.bf16.msra.mxu0 0
      %1869 = vmatpush.bf16.msra.mxu0 0
      %1870 = vmatpush.bf16.msra.mxu0 0
      %1871 = vmatpush.bf16.msra.mxu0 0
      %1872 = vmatpush.bf16.msra.mxu0 0
      %1873 = vmatpush.bf16.msra.mxu0 %v616
      %1874 = vmatmul.bf16.gmra.mxu0 %v1864
      %v1875 = vpop.f32.mrf.mxu0
      %v1876 = vadd.f32 0.0, %v1875
      %v1877 = vpop.f32.mrf.mxu0
      %1878 = vdwg.mxu0
      %v1879 = vadd.f32 %v1809, %v1876
      %1880 = vrot.lane.b32.xlu0 %v1678, 104
      %v1881 = vpop.permute.xlu0 %1880
      %v1883 = vsel %vm404, %v1881, 0
      %1885 = vmatpush.bf16.xpose.msra.mxu0 0
      %1886 = vmatpush.bf16.xpose.msra.mxu0 0
      %1887 = vmatpush.bf16.xpose.msra.mxu0 0
      %1888 = vmatpush.bf16.xpose.msra.mxu0 0
      %1889 = vmatpush.bf16.xpose.msra.mxu0 0
      %1890 = vmatpush.bf16.xpose.msra.mxu0 0
      %1891 = vmatpush.bf16.xpose.msra.mxu0 0
      %1892 = vmatpush.bf16.xpose.msra.mxu0 %v1883
      %1893 = vmatmul.bf16.gmra.mxu0 %v637
      %v1894 = vpop.f32.mrf.mxu0
      %v1895 = vadd.f32 0.0, %v1894
      %v1896 = vpop.f32.mrf.mxu0
      %1897 = vdwg.mxu0
      %v1898 = vmul.f32 %v1895, 0.35355338
      %v1899 = vsel %vm425, %v1898, -inf
      %1900 = vmax.xlane.f32.xlu0 %v1899
      %v1901 = vpop.xlane.xlu0 %1900
      %v1902 = vsub.f32 %v1898, %v1901
      %v1903 = vmul.f32 %v1902, 1.442695
      %v1904 = vpow.pop %v1903
      %v1905 = vsel %vm425, %v1904, 0.0
      %1906 = vadd.xlane.f32.xlu0 %v1905
      %v1907 = vpop.xlane.xlu0 %1906
      %v1908 = vrcp.pop %v1907
      %v1909 = vmul.f32 %v1904, %v1908
      %v1910 = vpack.c.bf16 %v1909, %v1909
      %1911 = vrot.lane.b32.xlu0 %v1678, 72
      %v1912 = vpop.permute.xlu0 %1911
      %v1915 = vsel %vm442, %v1910, 0
      %1917 = vmatpush.bf16.msra.mxu0 0
      %1918 = vmatpush.bf16.msra.mxu0 0
      %1919 = vmatpush.bf16.msra.mxu0 0
      %1920 = vmatpush.bf16.msra.mxu0 0
      %1921 = vmatpush.bf16.msra.mxu0 0
      %1922 = vmatpush.bf16.msra.mxu0 0
      %1923 = vmatpush.bf16.msra.mxu0 0
      %1924 = vmatpush.bf16.msra.mxu0 %v1912
      %1925 = vmatmul.bf16.gmra.mxu0 %v1915
      %v1926 = vpop.f32.mrf.mxu0
      %v1927 = vadd.f32 0.0, %v1926
      %v1928 = vpop.f32.mrf.mxu0
      %1929 = vdwg.mxu0
      %v1930 = vpack.c.bf16 %v1927, %v1927
      %v1932 = vsel %vm404, %v1930, 0
      %1934 = vmatpush.bf16.msra.mxu0 0
      %1935 = vmatpush.bf16.msra.mxu0 0
      %1936 = vmatpush.bf16.msra.mxu0 0
      %1937 = vmatpush.bf16.msra.mxu0 0
      %1938 = vmatpush.bf16.msra.mxu0 0
      %1939 = vmatpush.bf16.msra.mxu0 0
      %1940 = vmatpush.bf16.msra.mxu0 0
      %1941 = vmatpush.bf16.msra.mxu0 %v692
      %1942 = vmatmul.bf16.gmra.mxu0 %v1932
      %v1943 = vpop.f32.mrf.mxu0
      %v1944 = vadd.f32 0.0, %v1943
      %v1945 = vpop.f32.mrf.mxu0
      %1946 = vdwg.mxu0
      %v1947 = vadd.f32 %v1879, %v1944
      %s1948 = scalar_lea.vmem %s330, 160
      %v1949 = vld [vmem:[%s1948] sm:$0xff]
      %v1950 = vld [vmem:[%s1948 + $0x8] sm:$0xff]
      %v1951 = vld [vmem:[%s1948 + $0x10] sm:$0xff]
      %v1952 = vld [vmem:[%s1948 + $0x18] sm:$0xff]
      %v1953 = vpack.c.bf16 %v1950, %v1949
      %v1954 = vpack.c.bf16 %v1952, %v1951
      %1955 = vxpose.xlu0.c.b16.start [1/8] %v1953, 128
      %1956 = vxpose.xlu0.c.b16.cont [2/8] %v1954, 128
      %1957 = vxpose.xlu0.c.b16.cont [3/8] 0, 128
      %1958 = vxpose.xlu0.c.b16.cont [4/8] 0, 128
      %1959 = vxpose.xlu0.c.b16.cont [5/8] 0, 128
      %1960 = vxpose.xlu0.c.b16.cont [6/8] 0, 128
      %1961 = vxpose.xlu0.c.b16.cont [7/8] 0, 128
      %1962 = vxpose.xlu0.c.b16.end [8/8] 0, 128
      %v1963 = vpop.trf.xlu0
      %v1964 = vpop.trf.xlu0
      %v1965 = vpop.trf.xlu0
      %v1966 = vpop.trf.xlu0
      %v1967 = vpop.trf.xlu0
      %v1968 = vpop.trf.xlu0
      %v1969 = vpop.trf.xlu0
      %v1970 = vpop.trf.xlu0
      %v1972 = vsel %vm384, %v1963, 0
      %1974 = vmatpush.bf16.msra.mxu0 0
      %1975 = vmatpush.bf16.msra.mxu0 0
      %1976 = vmatpush.bf16.msra.mxu0 0
      %1977 = vmatpush.bf16.msra.mxu0 0
      %1978 = vmatpush.bf16.msra.mxu0 0
      %1979 = vmatpush.bf16.msra.mxu0 0
      %1980 = vmatpush.bf16.msra.mxu0 %v381
      %1981 = vmatpush.bf16.msra.mxu0 %v380
      %1982 = vmatmul.bf16.gmra.mxu0 %v1972
      %v1983 = vpop.f32.mrf.mxu0
      %v1984 = vadd.f32 %v354, %v1983
      %v1985 = vpop.f32.mrf.mxu0
      %v1986 = vadd.f32 %v354, %v1985
      %1987 = vdwg.mxu0
      %v1988 = vpack.c.bf16 %v1986, %v1984
      %v1990 = vsel %vm404, %v1988, 0
      %1992 = vmatpush.bf16.xpose.msra.mxu0 0
      %1993 = vmatpush.bf16.xpose.msra.mxu0 0
      %1994 = vmatpush.bf16.xpose.msra.mxu0 0
      %1995 = vmatpush.bf16.xpose.msra.mxu0 0
      %1996 = vmatpush.bf16.xpose.msra.mxu0 0
      %1997 = vmatpush.bf16.xpose.msra.mxu0 0
      %1998 = vmatpush.bf16.xpose.msra.mxu0 0
      %1999 = vmatpush.bf16.xpose.msra.mxu0 %v1990
      %2000 = vmatmul.bf16.gmra.mxu0 %v406
      %v2001 = vpop.f32.mrf.mxu0
      %v2002 = vadd.f32 0.0, %v2001
      %v2003 = vpop.f32.mrf.mxu0
      %2004 = vdwg.mxu0
      %v2005 = vmul.f32 %v2002, 0.35355338
      %v2006 = vsel %vm425, %v2005, -inf
      %2007 = vmax.xlane.f32.xlu0 %v2006
      %v2008 = vpop.xlane.xlu0 %2007
      %v2009 = vsub.f32 %v2005, %v2008
      %v2010 = vmul.f32 %v2009, 1.442695
      %v2011 = vpow.pop %v2010
      %v2012 = vsel %vm425, %v2011, 0.0
      %2013 = vadd.xlane.f32.xlu0 %v2012
      %v2014 = vpop.xlane.xlu0 %2013
      %v2015 = vrcp.pop %v2014
      %v2016 = vmul.f32 %v2011, %v2015
      %v2017 = vpack.c.bf16 %v2016, %v2016
      %2019 = vrot.lane.b32.xlu0 %v1988, 96
      %v2020 = vpop.permute.xlu0 %2019
      %v2023 = vsel %vm442, %v2017, 0
      %2025 = vmatpush.bf16.msra.mxu0 0
      %2026 = vmatpush.bf16.msra.mxu0 0
      %2027 = vmatpush.bf16.msra.mxu0 0
      %2028 = vmatpush.bf16.msra.mxu0 0
      %2029 = vmatpush.bf16.msra.mxu0 0
      %2030 = vmatpush.bf16.msra.mxu0 0
      %2031 = vmatpush.bf16.msra.mxu0 0
      %2032 = vmatpush.bf16.msra.mxu0 %v2020
      %2033 = vmatmul.bf16.gmra.mxu0 %v2023
      %v2034 = vpop.f32.mrf.mxu0
      %v2035 = vadd.f32 0.0, %v2034
      %v2036 = vpop.f32.mrf.mxu0
      %2037 = vdwg.mxu0
      %v2038 = vpack.c.bf16 %v2035, %v2035
      %2039 = vrot.lane.b32.xlu0 %v1988, 120
      %v2040 = vpop.permute.xlu0 %2039
      %v2042 = vsel %vm404, %v2040, 0
      %2044 = vmatpush.bf16.xpose.msra.mxu0 0
      %2045 = vmatpush.bf16.xpose.msra.mxu0 0
      %2046 = vmatpush.bf16.xpose.msra.mxu0 0
      %2047 = vmatpush.bf16.xpose.msra.mxu0 0
      %2048 = vmatpush.bf16.xpose.msra.mxu0 0
      %2049 = vmatpush.bf16.xpose.msra.mxu0 0
      %2050 = vmatpush.bf16.xpose.msra.mxu0 0
      %2051 = vmatpush.bf16.xpose.msra.mxu0 %v2042
      %2052 = vmatmul.bf16.gmra.mxu0 %v466
      %v2053 = vpop.f32.mrf.mxu0
      %v2054 = vadd.f32 0.0, %v2053
      %v2055 = vpop.f32.mrf.mxu0
      %2056 = vdwg.mxu0
      %v2057 = vmul.f32 %v2054, 0.35355338
      %v2058 = vsel %vm425, %v2057, -inf
      %2059 = vmax.xlane.f32.xlu0 %v2058
      %v2060 = vpop.xlane.xlu0 %2059
      %v2061 = vsub.f32 %v2057, %v2060
      %v2062 = vmul.f32 %v2061, 1.442695
      %v2063 = vpow.pop %v2062
      %v2064 = vsel %vm425, %v2063, 0.0
      %2065 = vadd.xlane.f32.xlu0 %v2064
      %v2066 = vpop.xlane.xlu0 %2065
      %v2067 = vrcp.pop %v2066
      %v2068 = vmul.f32 %v2063, %v2067
      %v2069 = vpack.c.bf16 %v2068, %v2068
      %2070 = vrot.lane.b32.xlu0 %v1988, 88
      %v2071 = vpop.permute.xlu0 %2070
      %v2074 = vsel %vm442, %v2069, 0
      %2076 = vmatpush.bf16.msra.mxu0 0
      %2077 = vmatpush.bf16.msra.mxu0 0
      %2078 = vmatpush.bf16.msra.mxu0 0
      %2079 = vmatpush.bf16.msra.mxu0 0
      %2080 = vmatpush.bf16.msra.mxu0 0
      %2081 = vmatpush.bf16.msra.mxu0 0
      %2082 = vmatpush.bf16.msra.mxu0 0
      %2083 = vmatpush.bf16.msra.mxu0 %v2071
      %2084 = vmatmul.bf16.gmra.mxu0 %v2074
      %v2085 = vpop.f32.mrf.mxu0
      %v2086 = vadd.f32 0.0, %v2085
      %v2087 = vpop.f32.mrf.mxu0
      %2088 = vdwg.mxu0
      %v2089 = vpack.c.bf16 %v2086, %v2086
      %v2091 = vsel %vm404, %v2089, 0
      %2093 = vmatpush.bf16.msra.mxu0 0
      %2094 = vmatpush.bf16.msra.mxu0 0
      %2095 = vmatpush.bf16.msra.mxu0 0
      %2096 = vmatpush.bf16.msra.mxu0 0
      %2097 = vmatpush.bf16.msra.mxu0 0
      %2098 = vmatpush.bf16.msra.mxu0 0
      %2099 = vmatpush.bf16.msra.mxu0 0
      %2100 = vmatpush.bf16.msra.mxu0 %v522
      %2101 = vmatmul.bf16.gmra.mxu0 %v2091
      %v2102 = vpop.f32.mrf.mxu0
      %v2103 = vadd.f32 0.0, %v2102
      %v2104 = vpop.f32.mrf.mxu0
      %2105 = vdwg.mxu0
      %v2107 = vsel %vm404, %v2038, 0
      %2109 = vmatpush.bf16.msra.mxu0 0
      %2110 = vmatpush.bf16.msra.mxu0 0
      %2111 = vmatpush.bf16.msra.mxu0 0
      %2112 = vmatpush.bf16.msra.mxu0 0
      %2113 = vmatpush.bf16.msra.mxu0 0
      %2114 = vmatpush.bf16.msra.mxu0 0
      %2115 = vmatpush.bf16.msra.mxu0 0
      %2116 = vmatpush.bf16.msra.mxu0 %v541
      %2117 = vmatmul.bf16.gmra.mxu0 %v2107
      %v2118 = vpop.f32.mrf.mxu0
      %v2119 = vadd.f32 %v2103, %v2118
      %v2120 = vpop.f32.mrf.mxu0
      %2121 = vdwg.mxu0
      %2122 = vrot.lane.b32.xlu0 %v1988, 112
      %v2123 = vpop.permute.xlu0 %2122
      %v2125 = vsel %vm404, %v2123, 0
      %2127 = vmatpush.bf16.xpose.msra.mxu0 0
      %2128 = vmatpush.bf16.xpose.msra.mxu0 0
      %2129 = vmatpush.bf16.xpose.msra.mxu0 0
      %2130 = vmatpush.bf16.xpose.msra.mxu0 0
      %2131 = vmatpush.bf16.xpose.msra.mxu0 0
      %2132 = vmatpush.bf16.xpose.msra.mxu0 0
      %2133 = vmatpush.bf16.xpose.msra.mxu0 0
      %2134 = vmatpush.bf16.xpose.msra.mxu0 %v2125
      %2135 = vmatmul.bf16.gmra.mxu0 %v561
      %v2136 = vpop.f32.mrf.mxu0
      %v2137 = vadd.f32 0.0, %v2136
      %v2138 = vpop.f32.mrf.mxu0
      %2139 = vdwg.mxu0
      %v2140 = vmul.f32 %v2137, 0.35355338
      %v2141 = vsel %vm425, %v2140, -inf
      %2142 = vmax.xlane.f32.xlu0 %v2141
      %v2143 = vpop.xlane.xlu0 %2142
      %v2144 = vsub.f32 %v2140, %v2143
      %v2145 = vmul.f32 %v2144, 1.442695
      %v2146 = vpow.pop %v2145
      %v2147 = vsel %vm425, %v2146, 0.0
      %2148 = vadd.xlane.f32.xlu0 %v2147
      %v2149 = vpop.xlane.xlu0 %2148
      %v2150 = vrcp.pop %v2149
      %v2151 = vmul.f32 %v2146, %v2150
      %v2152 = vpack.c.bf16 %v2151, %v2151
      %2153 = vrot.lane.b32.xlu0 %v1988, 80
      %v2154 = vpop.permute.xlu0 %2153
      %v2157 = vsel %vm442, %v2152, 0
      %2159 = vmatpush.bf16.msra.mxu0 0
      %2160 = vmatpush.bf16.msra.mxu0 0
      %2161 = vmatpush.bf16.msra.mxu0 0
      %2162 = vmatpush.bf16.msra.mxu0 0
      %2163 = vmatpush.bf16.msra.mxu0 0
      %2164 = vmatpush.bf16.msra.mxu0 0
      %2165 = vmatpush.bf16.msra.mxu0 0
      %2166 = vmatpush.bf16.msra.mxu0 %v2154
      %2167 = vmatmul.bf16.gmra.mxu0 %v2157
      %v2168 = vpop.f32.mrf.mxu0
      %v2169 = vadd.f32 0.0, %v2168
      %v2170 = vpop.f32.mrf.mxu0
      %2171 = vdwg.mxu0
      %v2172 = vpack.c.bf16 %v2169, %v2169
      %v2174 = vsel %vm404, %v2172, 0
      %2176 = vmatpush.bf16.msra.mxu0 0
      %2177 = vmatpush.bf16.msra.mxu0 0
      %2178 = vmatpush.bf16.msra.mxu0 0
      %2179 = vmatpush.bf16.msra.mxu0 0
      %2180 = vmatpush.bf16.msra.mxu0 0
      %2181 = vmatpush.bf16.msra.mxu0 0
      %2182 = vmatpush.bf16.msra.mxu0 0
      %2183 = vmatpush.bf16.msra.mxu0 %v616
      %2184 = vmatmul.bf16.gmra.mxu0 %v2174
      %v2185 = vpop.f32.mrf.mxu0
      %v2186 = vadd.f32 0.0, %v2185
      %v2187 = vpop.f32.mrf.mxu0
      %2188 = vdwg.mxu0
      %v2189 = vadd.f32 %v2119, %v2186
      %2190 = vrot.lane.b32.xlu0 %v1988, 104
      %v2191 = vpop.permute.xlu0 %2190
      %v2193 = vsel %vm404, %v2191, 0
      %2195 = vmatpush.bf16.xpose.msra.mxu0 0
      %2196 = vmatpush.bf16.xpose.msra.mxu0 0
      %2197 = vmatpush.bf16.xpose.msra.mxu0 0
      %2198 = vmatpush.bf16.xpose.msra.mxu0 0
      %2199 = vmatpush.bf16.xpose.msra.mxu0 0
      %2200 = vmatpush.bf16.xpose.msra.mxu0 0
      %2201 = vmatpush.bf16.xpose.msra.mxu0 0
      %2202 = vmatpush.bf16.xpose.msra.mxu0 %v2193
      %2203 = vmatmul.bf16.gmra.mxu0 %v637
      %v2204 = vpop.f32.mrf.mxu0
      %v2205 = vadd.f32 0.0, %v2204
      %v2206 = vpop.f32.mrf.mxu0
      %2207 = vdwg.mxu0
      %v2208 = vmul.f32 %v2205, 0.35355338
      %v2209 = vsel %vm425, %v2208, -inf
      %2210 = vmax.xlane.f32.xlu0 %v2209
      %v2211 = vpop.xlane.xlu0 %2210
      %v2212 = vsub.f32 %v2208, %v2211
      %v2213 = vmul.f32 %v2212, 1.442695
      %v2214 = vpow.pop %v2213
      %v2215 = vsel %vm425, %v2214, 0.0
      %2216 = vadd.xlane.f32.xlu0 %v2215
      %v2217 = vpop.xlane.xlu0 %2216
      %v2218 = vrcp.pop %v2217
      %v2219 = vmul.f32 %v2214, %v2218
      %v2220 = vpack.c.bf16 %v2219, %v2219
      %2221 = vrot.lane.b32.xlu0 %v1988, 72
      %v2222 = vpop.permute.xlu0 %2221
      %v2225 = vsel %vm442, %v2220, 0
      %2227 = vmatpush.bf16.msra.mxu0 0
      %2228 = vmatpush.bf16.msra.mxu0 0
      %2229 = vmatpush.bf16.msra.mxu0 0
      %2230 = vmatpush.bf16.msra.mxu0 0
      %2231 = vmatpush.bf16.msra.mxu0 0
      %2232 = vmatpush.bf16.msra.mxu0 0
      %2233 = vmatpush.bf16.msra.mxu0 0
      %2234 = vmatpush.bf16.msra.mxu0 %v2222
      %2235 = vmatmul.bf16.gmra.mxu0 %v2225
      %v2236 = vpop.f32.mrf.mxu0
      %v2237 = vadd.f32 0.0, %v2236
      %v2238 = vpop.f32.mrf.mxu0
      %2239 = vdwg.mxu0
      %v2240 = vpack.c.bf16 %v2237, %v2237
      %v2242 = vsel %vm404, %v2240, 0
      %2244 = vmatpush.bf16.msra.mxu0 0
      %2245 = vmatpush.bf16.msra.mxu0 0
      %2246 = vmatpush.bf16.msra.mxu0 0
      %2247 = vmatpush.bf16.msra.mxu0 0
      %2248 = vmatpush.bf16.msra.mxu0 0
      %2249 = vmatpush.bf16.msra.mxu0 0
      %2250 = vmatpush.bf16.msra.mxu0 0
      %2251 = vmatpush.bf16.msra.mxu0 %v692
      %2252 = vmatmul.bf16.gmra.mxu0 %v2242
      %v2253 = vpop.f32.mrf.mxu0
      %v2254 = vadd.f32 0.0, %v2253
      %v2255 = vpop.f32.mrf.mxu0
      %2256 = vdwg.mxu0
      %v2257 = vadd.f32 %v2189, %v2254
      %s2258 = scalar_lea.vmem %s330, 192
      %v2259 = vld [vmem:[%s2258] sm:$0xff]
      %v2260 = vld [vmem:[%s2258 + $0x8] sm:$0xff]
      %v2261 = vld [vmem:[%s2258 + $0x10] sm:$0xff]
      %v2262 = vld [vmem:[%s2258 + $0x18] sm:$0xff]
      %v2263 = vpack.c.bf16 %v2260, %v2259
      %v2264 = vpack.c.bf16 %v2262, %v2261
      %2265 = vxpose.xlu0.c.b16.start [1/8] %v2263, 128
      %2266 = vxpose.xlu0.c.b16.cont [2/8] %v2264, 128
      %2267 = vxpose.xlu0.c.b16.cont [3/8] 0, 128
      %2268 = vxpose.xlu0.c.b16.cont [4/8] 0, 128
      %2269 = vxpose.xlu0.c.b16.cont [5/8] 0, 128
      %2270 = vxpose.xlu0.c.b16.cont [6/8] 0, 128
      %2271 = vxpose.xlu0.c.b16.cont [7/8] 0, 128
      %2272 = vxpose.xlu0.c.b16.end [8/8] 0, 128
      %v2273 = vpop.trf.xlu0
      %v2274 = vpop.trf.xlu0
      %v2275 = vpop.trf.xlu0
      %v2276 = vpop.trf.xlu0
      %v2277 = vpop.trf.xlu0
      %v2278 = vpop.trf.xlu0
      %v2279 = vpop.trf.xlu0
      %v2280 = vpop.trf.xlu0
      %v2282 = vsel %vm384, %v2273, 0
      %2284 = vmatpush.bf16.msra.mxu0 0
      %2285 = vmatpush.bf16.msra.mxu0 0
      %2286 = vmatpush.bf16.msra.mxu0 0
      %2287 = vmatpush.bf16.msra.mxu0 0
      %2288 = vmatpush.bf16.msra.mxu0 0
      %2289 = vmatpush.bf16.msra.mxu0 0
      %2290 = vmatpush.bf16.msra.mxu0 %v381
      %2291 = vmatpush.bf16.msra.mxu0 %v380
      %2292 = vmatmul.bf16.gmra.mxu0 %v2282
      %v2293 = vpop.f32.mrf.mxu0
      %v2294 = vadd.f32 %v354, %v2293
      %v2295 = vpop.f32.mrf.mxu0
      %v2296 = vadd.f32 %v354, %v2295
      %2297 = vdwg.mxu0
      %v2298 = vpack.c.bf16 %v2296, %v2294
      %v2300 = vsel %vm404, %v2298, 0
      %2302 = vmatpush.bf16.xpose.msra.mxu0 0
      %2303 = vmatpush.bf16.xpose.msra.mxu0 0
      %2304 = vmatpush.bf16.xpose.msra.mxu0 0
      %2305 = vmatpush.bf16.xpose.msra.mxu0 0
      %2306 = vmatpush.bf16.xpose.msra.mxu0 0
      %2307 = vmatpush.bf16.xpose.msra.mxu0 0
      %2308 = vmatpush.bf16.xpose.msra.mxu0 0
      %2309 = vmatpush.bf16.xpose.msra.mxu0 %v2300
      %2310 = vmatmul.bf16.gmra.mxu0 %v406
      %v2311 = vpop.f32.mrf.mxu0
      %v2312 = vadd.f32 0.0, %v2311
      %v2313 = vpop.f32.mrf.mxu0
      %2314 = vdwg.mxu0
      %v2315 = vmul.f32 %v2312, 0.35355338
      %v2316 = vsel %vm425, %v2315, -inf
      %2317 = vmax.xlane.f32.xlu0 %v2316
      %v2318 = vpop.xlane.xlu0 %2317
      %v2319 = vsub.f32 %v2315, %v2318
      %v2320 = vmul.f32 %v2319, 1.442695
      %v2321 = vpow.pop %v2320
      %v2322 = vsel %vm425, %v2321, 0.0
      %2323 = vadd.xlane.f32.xlu0 %v2322
      %v2324 = vpop.xlane.xlu0 %2323
      %v2325 = vrcp.pop %v2324
      %v2326 = vmul.f32 %v2321, %v2325
      %v2327 = vpack.c.bf16 %v2326, %v2326
      %2329 = vrot.lane.b32.xlu0 %v2298, 96
      %v2330 = vpop.permute.xlu0 %2329
      %v2333 = vsel %vm442, %v2327, 0
      %2335 = vmatpush.bf16.msra.mxu0 0
      %2336 = vmatpush.bf16.msra.mxu0 0
      %2337 = vmatpush.bf16.msra.mxu0 0
      %2338 = vmatpush.bf16.msra.mxu0 0
      %2339 = vmatpush.bf16.msra.mxu0 0
      %2340 = vmatpush.bf16.msra.mxu0 0
      %2341 = vmatpush.bf16.msra.mxu0 0
      %2342 = vmatpush.bf16.msra.mxu0 %v2330
      %2343 = vmatmul.bf16.gmra.mxu0 %v2333
      %v2344 = vpop.f32.mrf.mxu0
      %v2345 = vadd.f32 0.0, %v2344
      %v2346 = vpop.f32.mrf.mxu0
      %2347 = vdwg.mxu0
      %v2348 = vpack.c.bf16 %v2345, %v2345
      %2349 = vrot.lane.b32.xlu0 %v2298, 120
      %v2350 = vpop.permute.xlu0 %2349
      %v2352 = vsel %vm404, %v2350, 0
      %2354 = vmatpush.bf16.xpose.msra.mxu0 0
      %2355 = vmatpush.bf16.xpose.msra.mxu0 0
      %2356 = vmatpush.bf16.xpose.msra.mxu0 0
      %2357 = vmatpush.bf16.xpose.msra.mxu0 0
      %2358 = vmatpush.bf16.xpose.msra.mxu0 0
      %2359 = vmatpush.bf16.xpose.msra.mxu0 0
      %2360 = vmatpush.bf16.xpose.msra.mxu0 0
      %2361 = vmatpush.bf16.xpose.msra.mxu0 %v2352
      %2362 = vmatmul.bf16.gmra.mxu0 %v466
      %v2363 = vpop.f32.mrf.mxu0
      %v2364 = vadd.f32 0.0, %v2363
      %v2365 = vpop.f32.mrf.mxu0
      %2366 = vdwg.mxu0
      %v2367 = vmul.f32 %v2364, 0.35355338
      %v2368 = vsel %vm425, %v2367, -inf
      %2369 = vmax.xlane.f32.xlu0 %v2368
      %v2370 = vpop.xlane.xlu0 %2369
      %v2371 = vsub.f32 %v2367, %v2370
      %v2372 = vmul.f32 %v2371, 1.442695
      %v2373 = vpow.pop %v2372
      %v2374 = vsel %vm425, %v2373, 0.0
      %2375 = vadd.xlane.f32.xlu0 %v2374
      %v2376 = vpop.xlane.xlu0 %2375
      %v2377 = vrcp.pop %v2376
      %v2378 = vmul.f32 %v2373, %v2377
      %v2379 = vpack.c.bf16 %v2378, %v2378
      %2380 = vrot.lane.b32.xlu0 %v2298, 88
      %v2381 = vpop.permute.xlu0 %2380
      %v2384 = vsel %vm442, %v2379, 0
      %2386 = vmatpush.bf16.msra.mxu0 0
      %2387 = vmatpush.bf16.msra.mxu0 0
      %2388 = vmatpush.bf16.msra.mxu0 0
      %2389 = vmatpush.bf16.msra.mxu0 0
      %2390 = vmatpush.bf16.msra.mxu0 0
      %2391 = vmatpush.bf16.msra.mxu0 0
      %2392 = vmatpush.bf16.msra.mxu0 0
      %2393 = vmatpush.bf16.msra.mxu0 %v2381
      %2394 = vmatmul.bf16.gmra.mxu0 %v2384
      %v2395 = vpop.f32.mrf.mxu0
      %v2396 = vadd.f32 0.0, %v2395
      %v2397 = vpop.f32.mrf.mxu0
      %2398 = vdwg.mxu0
      %v2399 = vpack.c.bf16 %v2396, %v2396
      %v2401 = vsel %vm404, %v2399, 0
      %2403 = vmatpush.bf16.msra.mxu0 0
      %2404 = vmatpush.bf16.msra.mxu0 0
      %2405 = vmatpush.bf16.msra.mxu0 0
      %2406 = vmatpush.bf16.msra.mxu0 0
      %2407 = vmatpush.bf16.msra.mxu0 0
      %2408 = vmatpush.bf16.msra.mxu0 0
      %2409 = vmatpush.bf16.msra.mxu0 0
      %2410 = vmatpush.bf16.msra.mxu0 %v522
      %2411 = vmatmul.bf16.gmra.mxu0 %v2401
      %v2412 = vpop.f32.mrf.mxu0
      %v2413 = vadd.f32 0.0, %v2412
      %v2414 = vpop.f32.mrf.mxu0
      %2415 = vdwg.mxu0
      %v2417 = vsel %vm404, %v2348, 0
      %2419 = vmatpush.bf16.msra.mxu0 0
      %2420 = vmatpush.bf16.msra.mxu0 0
      %2421 = vmatpush.bf16.msra.mxu0 0
      %2422 = vmatpush.bf16.msra.mxu0 0
      %2423 = vmatpush.bf16.msra.mxu0 0
      %2424 = vmatpush.bf16.msra.mxu0 0
      %2425 = vmatpush.bf16.msra.mxu0 0
      %2426 = vmatpush.bf16.msra.mxu0 %v541
      %2427 = vmatmul.bf16.gmra.mxu0 %v2417
      %v2428 = vpop.f32.mrf.mxu0
      %v2429 = vadd.f32 %v2413, %v2428
      %v2430 = vpop.f32.mrf.mxu0
      %2431 = vdwg.mxu0
      %2432 = vrot.lane.b32.xlu0 %v2298, 112
      %v2433 = vpop.permute.xlu0 %2432
      %v2435 = vsel %vm404, %v2433, 0
      %2437 = vmatpush.bf16.xpose.msra.mxu0 0
      %2438 = vmatpush.bf16.xpose.msra.mxu0 0
      %2439 = vmatpush.bf16.xpose.msra.mxu0 0
      %2440 = vmatpush.bf16.xpose.msra.mxu0 0
      %2441 = vmatpush.bf16.xpose.msra.mxu0 0
      %2442 = vmatpush.bf16.xpose.msra.mxu0 0
      %2443 = vmatpush.bf16.xpose.msra.mxu0 0
      %2444 = vmatpush.bf16.xpose.msra.mxu0 %v2435
      %2445 = vmatmul.bf16.gmra.mxu0 %v561
      %v2446 = vpop.f32.mrf.mxu0
      %v2447 = vadd.f32 0.0, %v2446
      %v2448 = vpop.f32.mrf.mxu0
      %2449 = vdwg.mxu0
      %v2450 = vmul.f32 %v2447, 0.35355338
      %v2451 = vsel %vm425, %v2450, -inf
      %2452 = vmax.xlane.f32.xlu0 %v2451
      %v2453 = vpop.xlane.xlu0 %2452
      %v2454 = vsub.f32 %v2450, %v2453
      %v2455 = vmul.f32 %v2454, 1.442695
      %v2456 = vpow.pop %v2455
      %v2457 = vsel %vm425, %v2456, 0.0
      %2458 = vadd.xlane.f32.xlu0 %v2457
      %v2459 = vpop.xlane.xlu0 %2458
      %v2460 = vrcp.pop %v2459
      %v2461 = vmul.f32 %v2456, %v2460
      %v2462 = vpack.c.bf16 %v2461, %v2461
      %2463 = vrot.lane.b32.xlu0 %v2298, 80
      %v2464 = vpop.permute.xlu0 %2463
      %v2467 = vsel %vm442, %v2462, 0
      %2469 = vmatpush.bf16.msra.mxu0 0
      %2470 = vmatpush.bf16.msra.mxu0 0
      %2471 = vmatpush.bf16.msra.mxu0 0
      %2472 = vmatpush.bf16.msra.mxu0 0
      %2473 = vmatpush.bf16.msra.mxu0 0
      %2474 = vmatpush.bf16.msra.mxu0 0
      %2475 = vmatpush.bf16.msra.mxu0 0
      %2476 = vmatpush.bf16.msra.mxu0 %v2464
      %2477 = vmatmul.bf16.gmra.mxu0 %v2467
      %v2478 = vpop.f32.mrf.mxu0
      %v2479 = vadd.f32 0.0, %v2478
      %v2480 = vpop.f32.mrf.mxu0
      %2481 = vdwg.mxu0
      %v2482 = vpack.c.bf16 %v2479, %v2479
      %v2484 = vsel %vm404, %v2482, 0
      %2486 = vmatpush.bf16.msra.mxu0 0
      %2487 = vmatpush.bf16.msra.mxu0 0
      %2488 = vmatpush.bf16.msra.mxu0 0
      %2489 = vmatpush.bf16.msra.mxu0 0
      %2490 = vmatpush.bf16.msra.mxu0 0
      %2491 = vmatpush.bf16.msra.mxu0 0
      %2492 = vmatpush.bf16.msra.mxu0 0
      %2493 = vmatpush.bf16.msra.mxu0 %v616
      %2494 = vmatmul.bf16.gmra.mxu0 %v2484
      %v2495 = vpop.f32.mrf.mxu0
      %v2496 = vadd.f32 0.0, %v2495
      %v2497 = vpop.f32.mrf.mxu0
      %2498 = vdwg.mxu0
      %v2499 = vadd.f32 %v2429, %v2496
      %2500 = vrot.lane.b32.xlu0 %v2298, 104
      %v2501 = vpop.permute.xlu0 %2500
      %v2503 = vsel %vm404, %v2501, 0
      %2505 = vmatpush.bf16.xpose.msra.mxu0 0
      %2506 = vmatpush.bf16.xpose.msra.mxu0 0
      %2507 = vmatpush.bf16.xpose.msra.mxu0 0
      %2508 = vmatpush.bf16.xpose.msra.mxu0 0
      %2509 = vmatpush.bf16.xpose.msra.mxu0 0
      %2510 = vmatpush.bf16.xpose.msra.mxu0 0
      %2511 = vmatpush.bf16.xpose.msra.mxu0 0
      %2512 = vmatpush.bf16.xpose.msra.mxu0 %v2503
      %2513 = vmatmul.bf16.gmra.mxu0 %v637
      %v2514 = vpop.f32.mrf.mxu0
      %v2515 = vadd.f32 0.0, %v2514
      %v2516 = vpop.f32.mrf.mxu0
      %2517 = vdwg.mxu0
      %v2518 = vmul.f32 %v2515, 0.35355338
      %v2519 = vsel %vm425, %v2518, -inf
      %2520 = vmax.xlane.f32.xlu0 %v2519
      %v2521 = vpop.xlane.xlu0 %2520
      %v2522 = vsub.f32 %v2518, %v2521
      %v2523 = vmul.f32 %v2522, 1.442695
      %v2524 = vpow.pop %v2523
      %v2525 = vsel %vm425, %v2524, 0.0
      %2526 = vadd.xlane.f32.xlu0 %v2525
      %v2527 = vpop.xlane.xlu0 %2526
      %v2528 = vrcp.pop %v2527
      %v2529 = vmul.f32 %v2524, %v2528
      %v2530 = vpack.c.bf16 %v2529, %v2529
      %2531 = vrot.lane.b32.xlu0 %v2298, 72
      %v2532 = vpop.permute.xlu0 %2531
      %v2535 = vsel %vm442, %v2530, 0
      %2537 = vmatpush.bf16.msra.mxu0 0
      %2538 = vmatpush.bf16.msra.mxu0 0
      %2539 = vmatpush.bf16.msra.mxu0 0
      %2540 = vmatpush.bf16.msra.mxu0 0
      %2541 = vmatpush.bf16.msra.mxu0 0
      %2542 = vmatpush.bf16.msra.mxu0 0
      %2543 = vmatpush.bf16.msra.mxu0 0
      %2544 = vmatpush.bf16.msra.mxu0 %v2532
      %2545 = vmatmul.bf16.gmra.mxu0 %v2535
      %v2546 = vpop.f32.mrf.mxu0
      %v2547 = vadd.f32 0.0, %v2546
      %v2548 = vpop.f32.mrf.mxu0
      %2549 = vdwg.mxu0
      %v2550 = vpack.c.bf16 %v2547, %v2547
      %v2552 = vsel %vm404, %v2550, 0
      %2554 = vmatpush.bf16.msra.mxu0 0
      %2555 = vmatpush.bf16.msra.mxu0 0
      %2556 = vmatpush.bf16.msra.mxu0 0
      %2557 = vmatpush.bf16.msra.mxu0 0
      %2558 = vmatpush.bf16.msra.mxu0 0
      %2559 = vmatpush.bf16.msra.mxu0 0
      %2560 = vmatpush.bf16.msra.mxu0 0
      %2561 = vmatpush.bf16.msra.mxu0 %v692
      %2562 = vmatmul.bf16.gmra.mxu0 %v2552
      %v2563 = vpop.f32.mrf.mxu0
      %v2564 = vadd.f32 0.0, %v2563
      %v2565 = vpop.f32.mrf.mxu0
      %2566 = vdwg.mxu0
      %v2567 = vadd.f32 %v2499, %v2564
      %s2568 = scalar_lea.vmem %s330, 224
      %v2569 = vld [vmem:[%s2568] sm:$0xff]
      %v2570 = vld [vmem:[%s2568 + $0x8] sm:$0xff]
      %v2571 = vld [vmem:[%s2568 + $0x10] sm:$0xff]
      %v2572 = vld [vmem:[%s2568 + $0x18] sm:$0xff]
      %v2573 = vpack.c.bf16 %v2570, %v2569
      %v2574 = vpack.c.bf16 %v2572, %v2571
      %2575 = vxpose.xlu0.c.b16.start [1/8] %v2573, 128
      %2576 = vxpose.xlu0.c.b16.cont [2/8] %v2574, 128
      %2577 = vxpose.xlu0.c.b16.cont [3/8] 0, 128
      %2578 = vxpose.xlu0.c.b16.cont [4/8] 0, 128
      %2579 = vxpose.xlu0.c.b16.cont [5/8] 0, 128
      %2580 = vxpose.xlu0.c.b16.cont [6/8] 0, 128
      %2581 = vxpose.xlu0.c.b16.cont [7/8] 0, 128
      %2582 = vxpose.xlu0.c.b16.end [8/8] 0, 128
      %v2583 = vpop.trf.xlu0
      %v2584 = vpop.trf.xlu0
      %v2585 = vpop.trf.xlu0
      %v2586 = vpop.trf.xlu0
      %v2587 = vpop.trf.xlu0
      %v2588 = vpop.trf.xlu0
      %v2589 = vpop.trf.xlu0
      %v2590 = vpop.trf.xlu0
      %v2592 = vsel %vm384, %v2583, 0
      %2594 = vmatpush.bf16.msra.mxu0 0
      %2595 = vmatpush.bf16.msra.mxu0 0
      %2596 = vmatpush.bf16.msra.mxu0 0
      %2597 = vmatpush.bf16.msra.mxu0 0
      %2598 = vmatpush.bf16.msra.mxu0 0
      %2599 = vmatpush.bf16.msra.mxu0 0
      %2600 = vmatpush.bf16.msra.mxu0 %v381
      %2601 = vmatpush.bf16.msra.mxu0 %v380
      %2602 = vmatmul.bf16.gmra.mxu0 %v2592
      %v2603 = vpop.f32.mrf.mxu0
      %v2604 = vadd.f32 %v354, %v2603
      %v2605 = vpop.f32.mrf.mxu0
      %v2606 = vadd.f32 %v354, %v2605
      %2607 = vdwg.mxu0
      %v2608 = vpack.c.bf16 %v2606, %v2604
      %v2610 = vsel %vm404, %v2608, 0
      %2612 = vmatpush.bf16.xpose.msra.mxu0 0
      %2613 = vmatpush.bf16.xpose.msra.mxu0 0
      %2614 = vmatpush.bf16.xpose.msra.mxu0 0
      %2615 = vmatpush.bf16.xpose.msra.mxu0 0
      %2616 = vmatpush.bf16.xpose.msra.mxu0 0
      %2617 = vmatpush.bf16.xpose.msra.mxu0 0
      %2618 = vmatpush.bf16.xpose.msra.mxu0 0
      %2619 = vmatpush.bf16.xpose.msra.mxu0 %v2610
      %2620 = vmatmul.bf16.gmra.mxu0 %v406
      %v2621 = vpop.f32.mrf.mxu0
      %v2622 = vadd.f32 0.0, %v2621
      %v2623 = vpop.f32.mrf.mxu0
      %2624 = vdwg.mxu0
      %v2625 = vmul.f32 %v2622, 0.35355338
      %v2626 = vsel %vm425, %v2625, -inf
      %2627 = vmax.xlane.f32.xlu0 %v2626
      %v2628 = vpop.xlane.xlu0 %2627
      %v2629 = vsub.f32 %v2625, %v2628
      %v2630 = vmul.f32 %v2629, 1.442695
      %v2631 = vpow.pop %v2630
      %v2632 = vsel %vm425, %v2631, 0.0
      %2633 = vadd.xlane.f32.xlu0 %v2632
      %v2634 = vpop.xlane.xlu0 %2633
      %v2635 = vrcp.pop %v2634
      %v2636 = vmul.f32 %v2631, %v2635
      %v2637 = vpack.c.bf16 %v2636, %v2636
      %2639 = vrot.lane.b32.xlu0 %v2608, 96
      %v2640 = vpop.permute.xlu0 %2639
      %v2643 = vsel %vm442, %v2637, 0
      %2645 = vmatpush.bf16.msra.mxu0 0
      %2646 = vmatpush.bf16.msra.mxu0 0
      %2647 = vmatpush.bf16.msra.mxu0 0
      %2648 = vmatpush.bf16.msra.mxu0 0
      %2649 = vmatpush.bf16.msra.mxu0 0
      %2650 = vmatpush.bf16.msra.mxu0 0
      %2651 = vmatpush.bf16.msra.mxu0 0
      %2652 = vmatpush.bf16.msra.mxu0 %v2640
      %2653 = vmatmul.bf16.gmra.mxu0 %v2643
      %v2654 = vpop.f32.mrf.mxu0
      %v2655 = vadd.f32 0.0, %v2654
      %v2656 = vpop.f32.mrf.mxu0
      %2657 = vdwg.mxu0
      %v2658 = vpack.c.bf16 %v2655, %v2655
      %2659 = vrot.lane.b32.xlu0 %v2608, 120
      %v2660 = vpop.permute.xlu0 %2659
      %v2662 = vsel %vm404, %v2660, 0
      %2664 = vmatpush.bf16.xpose.msra.mxu0 0
      %2665 = vmatpush.bf16.xpose.msra.mxu0 0
      %2666 = vmatpush.bf16.xpose.msra.mxu0 0
      %2667 = vmatpush.bf16.xpose.msra.mxu0 0
      %2668 = vmatpush.bf16.xpose.msra.mxu0 0
      %2669 = vmatpush.bf16.xpose.msra.mxu0 0
      %2670 = vmatpush.bf16.xpose.msra.mxu0 0
      %2671 = vmatpush.bf16.xpose.msra.mxu0 %v2662
      %2672 = vmatmul.bf16.gmra.mxu0 %v466
      %v2673 = vpop.f32.mrf.mxu0
      %v2674 = vadd.f32 0.0, %v2673
      %v2675 = vpop.f32.mrf.mxu0
      %2676 = vdwg.mxu0
      %v2677 = vmul.f32 %v2674, 0.35355338
      %v2678 = vsel %vm425, %v2677, -inf
      %2679 = vmax.xlane.f32.xlu0 %v2678
      %v2680 = vpop.xlane.xlu0 %2679
      %v2681 = vsub.f32 %v2677, %v2680
      %v2682 = vmul.f32 %v2681, 1.442695
      %v2683 = vpow.pop %v2682
      %v2684 = vsel %vm425, %v2683, 0.0
      %2685 = vadd.xlane.f32.xlu0 %v2684
      %v2686 = vpop.xlane.xlu0 %2685
      %v2687 = vrcp.pop %v2686
      %v2688 = vmul.f32 %v2683, %v2687
      %v2689 = vpack.c.bf16 %v2688, %v2688
      %2690 = vrot.lane.b32.xlu0 %v2608, 88
      %v2691 = vpop.permute.xlu0 %2690
      %v2694 = vsel %vm442, %v2689, 0
      %2696 = vmatpush.bf16.msra.mxu0 0
      %2697 = vmatpush.bf16.msra.mxu0 0
      %2698 = vmatpush.bf16.msra.mxu0 0
      %2699 = vmatpush.bf16.msra.mxu0 0
      %2700 = vmatpush.bf16.msra.mxu0 0
      %2701 = vmatpush.bf16.msra.mxu0 0
      %2702 = vmatpush.bf16.msra.mxu0 0
      %2703 = vmatpush.bf16.msra.mxu0 %v2691
      %2704 = vmatmul.bf16.gmra.mxu0 %v2694
      %v2705 = vpop.f32.mrf.mxu0
      %v2706 = vadd.f32 0.0, %v2705
      %v2707 = vpop.f32.mrf.mxu0
      %2708 = vdwg.mxu0
      %v2709 = vpack.c.bf16 %v2706, %v2706
      %v2711 = vsel %vm404, %v2709, 0
      %2713 = vmatpush.bf16.msra.mxu0 0
      %2714 = vmatpush.bf16.msra.mxu0 0
      %2715 = vmatpush.bf16.msra.mxu0 0
      %2716 = vmatpush.bf16.msra.mxu0 0
      %2717 = vmatpush.bf16.msra.mxu0 0
      %2718 = vmatpush.bf16.msra.mxu0 0
      %2719 = vmatpush.bf16.msra.mxu0 0
      %2720 = vmatpush.bf16.msra.mxu0 %v522
      %2721 = vmatmul.bf16.gmra.mxu0 %v2711
      %v2722 = vpop.f32.mrf.mxu0
      %v2723 = vadd.f32 0.0, %v2722
      %v2724 = vpop.f32.mrf.mxu0
      %2725 = vdwg.mxu0
      %v2727 = vsel %vm404, %v2658, 0
      %2729 = vmatpush.bf16.msra.mxu0 0
      %2730 = vmatpush.bf16.msra.mxu0 0
      %2731 = vmatpush.bf16.msra.mxu0 0
      %2732 = vmatpush.bf16.msra.mxu0 0
      %2733 = vmatpush.bf16.msra.mxu0 0
      %2734 = vmatpush.bf16.msra.mxu0 0
      %2735 = vmatpush.bf16.msra.mxu0 0
      %2736 = vmatpush.bf16.msra.mxu0 %v541
      %2737 = vmatmul.bf16.gmra.mxu0 %v2727
      %v2738 = vpop.f32.mrf.mxu0
      %v2739 = vadd.f32 %v2723, %v2738
      %v2740 = vpop.f32.mrf.mxu0
      %2741 = vdwg.mxu0
      %2742 = vrot.lane.b32.xlu0 %v2608, 112
      %v2743 = vpop.permute.xlu0 %2742
      %v2745 = vsel %vm404, %v2743, 0
      %2747 = vmatpush.bf16.xpose.msra.mxu0 0
      %2748 = vmatpush.bf16.xpose.msra.mxu0 0
      %2749 = vmatpush.bf16.xpose.msra.mxu0 0
      %2750 = vmatpush.bf16.xpose.msra.mxu0 0
      %2751 = vmatpush.bf16.xpose.msra.mxu0 0
      %2752 = vmatpush.bf16.xpose.msra.mxu0 0
      %2753 = vmatpush.bf16.xpose.msra.mxu0 0
      %2754 = vmatpush.bf16.xpose.msra.mxu0 %v2745
      %2755 = vmatmul.bf16.gmra.mxu0 %v561
      %v2756 = vpop.f32.mrf.mxu0
      %v2757 = vadd.f32 0.0, %v2756
      %v2758 = vpop.f32.mrf.mxu0
      %2759 = vdwg.mxu0
      %v2760 = vmul.f32 %v2757, 0.35355338
      %v2761 = vsel %vm425, %v2760, -inf
      %2762 = vmax.xlane.f32.xlu0 %v2761
      %v2763 = vpop.xlane.xlu0 %2762
      %v2764 = vsub.f32 %v2760, %v2763
      %v2765 = vmul.f32 %v2764, 1.442695
      %v2766 = vpow.pop %v2765
      %v2767 = vsel %vm425, %v2766, 0.0
      %2768 = vadd.xlane.f32.xlu0 %v2767
      %v2769 = vpop.xlane.xlu0 %2768
      %v2770 = vrcp.pop %v2769
      %v2771 = vmul.f32 %v2766, %v2770
      %v2772 = vpack.c.bf16 %v2771, %v2771
      %2773 = vrot.lane.b32.xlu0 %v2608, 80
      %v2774 = vpop.permute.xlu0 %2773
      %v2777 = vsel %vm442, %v2772, 0
      %2779 = vmatpush.bf16.msra.mxu0 0
      %2780 = vmatpush.bf16.msra.mxu0 0
      %2781 = vmatpush.bf16.msra.mxu0 0
      %2782 = vmatpush.bf16.msra.mxu0 0
      %2783 = vmatpush.bf16.msra.mxu0 0
      %2784 = vmatpush.bf16.msra.mxu0 0
      %2785 = vmatpush.bf16.msra.mxu0 0
      %2786 = vmatpush.bf16.msra.mxu0 %v2774
      %2787 = vmatmul.bf16.gmra.mxu0 %v2777
      %v2788 = vpop.f32.mrf.mxu0
      %v2789 = vadd.f32 0.0, %v2788
      %v2790 = vpop.f32.mrf.mxu0
      %2791 = vdwg.mxu0
      %v2792 = vpack.c.bf16 %v2789, %v2789
      %v2794 = vsel %vm404, %v2792, 0
      %2796 = vmatpush.bf16.msra.mxu0 0
      %2797 = vmatpush.bf16.msra.mxu0 0
      %2798 = vmatpush.bf16.msra.mxu0 0
      %2799 = vmatpush.bf16.msra.mxu0 0
      %2800 = vmatpush.bf16.msra.mxu0 0
      %2801 = vmatpush.bf16.msra.mxu0 0
      %2802 = vmatpush.bf16.msra.mxu0 0
      %2803 = vmatpush.bf16.msra.mxu0 %v616
      %2804 = vmatmul.bf16.gmra.mxu0 %v2794
      %v2805 = vpop.f32.mrf.mxu0
      %v2806 = vadd.f32 0.0, %v2805
      %v2807 = vpop.f32.mrf.mxu0
      %2808 = vdwg.mxu0
      %v2809 = vadd.f32 %v2739, %v2806
      %2810 = vrot.lane.b32.xlu0 %v2608, 104
      %v2811 = vpop.permute.xlu0 %2810
      %v2813 = vsel %vm404, %v2811, 0
      %2815 = vmatpush.bf16.xpose.msra.mxu0 0
      %2816 = vmatpush.bf16.xpose.msra.mxu0 0
      %2817 = vmatpush.bf16.xpose.msra.mxu0 0
      %2818 = vmatpush.bf16.xpose.msra.mxu0 0
      %2819 = vmatpush.bf16.xpose.msra.mxu0 0
      %2820 = vmatpush.bf16.xpose.msra.mxu0 0
      %2821 = vmatpush.bf16.xpose.msra.mxu0 0
      %2822 = vmatpush.bf16.xpose.msra.mxu0 %v2813
      %2823 = vmatmul.bf16.gmra.mxu0 %v637
      %v2824 = vpop.f32.mrf.mxu0
      %v2825 = vadd.f32 0.0, %v2824
      %v2826 = vpop.f32.mrf.mxu0
      %2827 = vdwg.mxu0
      %v2828 = vmul.f32 %v2825, 0.35355338
      %v2829 = vsel %vm425, %v2828, -inf
      %2830 = vmax.xlane.f32.xlu0 %v2829
      %v2831 = vpop.xlane.xlu0 %2830
      %v2832 = vsub.f32 %v2828, %v2831
      %v2833 = vmul.f32 %v2832, 1.442695
      %v2834 = vpow.pop %v2833
      %v2835 = vsel %vm425, %v2834, 0.0
      %2836 = vadd.xlane.f32.xlu0 %v2835
      %v2837 = vpop.xlane.xlu0 %2836
      %v2838 = vrcp.pop %v2837
      %v2839 = vmul.f32 %v2834, %v2838
      %v2840 = vpack.c.bf16 %v2839, %v2839
      %2841 = vrot.lane.b32.xlu0 %v2608, 72
      %v2842 = vpop.permute.xlu0 %2841
      %v2845 = vsel %vm442, %v2840, 0
      %2847 = vmatpush.bf16.msra.mxu0 0
      %2848 = vmatpush.bf16.msra.mxu0 0
      %2849 = vmatpush.bf16.msra.mxu0 0
      %2850 = vmatpush.bf16.msra.mxu0 0
      %2851 = vmatpush.bf16.msra.mxu0 0
      %2852 = vmatpush.bf16.msra.mxu0 0
      %2853 = vmatpush.bf16.msra.mxu0 0
      %2854 = vmatpush.bf16.msra.mxu0 %v2842
      %2855 = vmatmul.bf16.gmra.mxu0 %v2845
      %v2856 = vpop.f32.mrf.mxu0
      %v2857 = vadd.f32 0.0, %v2856
      %v2858 = vpop.f32.mrf.mxu0
      %2859 = vdwg.mxu0
      %v2860 = vpack.c.bf16 %v2857, %v2857
      %v2862 = vsel %vm404, %v2860, 0
      %2864 = vmatpush.bf16.msra.mxu0 0
      %2865 = vmatpush.bf16.msra.mxu0 0
      %2866 = vmatpush.bf16.msra.mxu0 0
      %2867 = vmatpush.bf16.msra.mxu0 0
      %2868 = vmatpush.bf16.msra.mxu0 0
      %2869 = vmatpush.bf16.msra.mxu0 0
      %2870 = vmatpush.bf16.msra.mxu0 0
      %2871 = vmatpush.bf16.msra.mxu0 %v692
      %2872 = vmatmul.bf16.gmra.mxu0 %v2862
      %v2873 = vpop.f32.mrf.mxu0
      %v2874 = vadd.f32 0.0, %v2873
      %v2875 = vpop.f32.mrf.mxu0
      %2876 = vdwg.mxu0
      %v2877 = vadd.f32 %v2809, %v2874
      %v2879 = vrot.slane %v1017, 7
      %v2882 = vrot.slane %v1327, 6
      %v2885 = vrot.slane %v1637, 5
      %v2888 = vrot.slane %v1947, 4
      %v2891 = vrot.slane %v2257, 3
      %v2894 = vrot.slane %v2567, 2
      %v2897 = vrot.slane %v2877, 1
      %vm2899 = vcmask 1040384
      %v2900 = vsel %vm2899, %v707, %v2879
      %vm2901 = vcmask 1041408
      %v2902 = vsel %vm2901, %v2900, %v2882
      %vm2903 = vcmask 1042432
      %v2904 = vsel %vm2903, %v2902, %v2885
      %v2905 = vsel %vm520, %v2904, %v2888
      %vm2906 = vcmask 1044480
      %v2907 = vsel %vm2906, %v2905, %v2891
      %vm2908 = vcmask 1045504
      %v2909 = vsel %vm2908, %v2907, %v2894
      %vm2910 = vcmask 1046528
      %v2911 = vsel %vm2910, %v2909, %v2897
      %v2912 = vld [vmem:[%s5] sm:$0x1]
      %v2914 = vperm.slane %v2912, 0
      %v2916 = vadd.f32 %v2911, %v2914
      %v2917 = vld [vmem:[%s6] sm:$0x1]
      %v2919 = vperm.slane %v2917, 0
      %v2921 = vadd.f32 %v2919, %v2916
      %v2922 = vld [vmem:[%s7] sm:$0x1]
      %v2923 = vld [vmem:[%s8] sm:$0x1]
      %v2924 = vsel %vm384, %v2921, 0.0
      %2925 = vadd.xlane.f32.xlu0 %v2924
      %v2926 = vpop.xlane.xlu0 %2925
      %v2927 = vrcp.pop 32.0
      %v2928 = vmul.f32 32.0, %v2927
      %v2929 = vsub.f32 1.0, %v2928
      %v2930 = vmul.f32 %v2927, %v2929
      %v2931 = vadd.f32 %v2927, %v2930
      %vm2932 = vweird.f32 %v2927
      %v2933 = vsel %vm2932, %v2927, %v2931
      %v2934 = vmul.f32 %v2926, %v2933
      %v2935 = vsub.f32 %v2921, %v2934
      %v2936 = vmul.f32 %v2935, %v2935
      %v2937 = vsel %vm384, %v2936, 0.0
      %2938 = vadd.xlane.f32.xlu0 %v2937
      %v2939 = vpop.xlane.xlu0 %2938
      %v2940 = vmul.f32 %v2939, %v2933
      %v2941 = vadd.f32 %v2940, 1e-05
      %v2942 = vrsqrt.pop %v2941
      %v2943 = vmul.f32 %v2942, %v2941
      %v2944 = vmul.f32 %v2943, %v2942
      %v2945 = vmul.f32 0.5, %v2944
      %v2946 = vsub.f32 1.5, %v2945
      %v2947 = vmul.f32 %v2942, %v2946
      %vm2948 = vweird.f32 %v2941
      %vm2949 = vweird.f32 %v2942
      %vm2950 = vmor %vm2948, %vm2949
      %v2951 = vsel %vm2950, %v2942, %v2947
      %v2952 = vmul.f32 %v2935, %v2951
      %v2954 = vperm.slane %v2922, 0
      %v2956 = vmul.f32 %v2952, %v2954
      %v2958 = vperm.slane %v2923, 0
      %v2960 = vadd.f32 %v2956, %v2958
      %2961 = vst.msk [vmem:[%s335] sm:$0xff] %vm384, %v2960
      %p2962 = scmp.lt.s32.totalorder %s20, 1
      %s2963 = scalar_select %p2962, %s20, 1
      %s2964 = smul.addr %s2963, 8
      %s2965 = scalar_lea.vmem %s9, %s2964
      // Predicated region
      $region57: #{trajectory_encoder_forward.2} parent=55 // pred_check
        %p2966 = pneg %p232
      $region58: #{trajectory_encoder_forward.2} parent=55 // pred_check_branch
        %2968 = sbr.rel (%p2966) target = $region60
      $region59: #{trajectory_encoder_forward.2} parent=55 // pred_region
        _
      $region60: #{trajectory_encoder_forward.2} parent=55 // pred_fallthru
        _
    $region56: #{trajectory_encoder_forward.2} parent=5 // pred_fallthru
      _
    %p2969 = scmp.le.s32.totalorder 2, %s15
    // Predicated region
    $region61: #{trajectory_encoder_forward.2} parent=5 // pred_check
      %p2970 = pneg %p2969
    $region62: #{trajectory_encoder_forward.2} parent=5 // pred_check_branch
      %2972 = sbr.rel (%p2970) target = $region64
    $region63: #{trajectory_encoder_forward.2} parent=5 // pred_region
      %s2973 = ssub.s32 %s15, 2
      // Predicated region
      $region65: #{trajectory_encoder_forward.2} parent=63 // pred_check
        %p2974 = pneg %p238
      $region66: #{trajectory_encoder_forward.2} parent=63 // pred_check_branch
        %2976 = sbr.rel (%p2974) target = $region68
      $region67: #{trajectory_encoder_forward.2} parent=63 // pred_region
        %p2977 = scmp.lt.s32.totalorder %s21, 1
        %s2978 = scalar_select %p2977, %s21, 1
        %s2979 = smul.addr %s2978, 8
        %s2980 = scalar_lea.vmem %s9, %s2979
      $region68: #{trajectory_encoder_forward.2} parent=63 // pred_fallthru
        _
    $region64: #{trajectory_encoder_forward.2} parent=5 // pred_fallthru
      _
  $region6: #{trajectory_encoder_forward.2} parent=0 // loop_footer
    %s19 = sadd.s32 1, %s15
  $region7: #{trajectory_encoder_forward.2} parent=0 // loop_footer_branch
    %14 = sbr.rel target = $region3
  $region8: #{trajectory_encoder_forward.2} parent=0 // loop_exit
    _

</llo_original>
